<compile_context>
chip_gen: v6e
topology: v6e:2x2x1
jax: 0.10.0
libtpu: 0.0.40
codegen_flags: <defaults>
</compile_context>

<pallas_src>
import functools
import math

import jax
import jax.numpy as jnp
from jax.experimental import pallas as pl
from jax.experimental.pallas import tpu as pltpu

# Matmul operand dtype.  Kept f32 for parity with the f32 PyTorch module; flip to
# jnp.bfloat16 on v6e/v7x if MXU throughput matters more than exactness.
_MXU_DTYPE = jnp.float32


# ----------------------------------------------------------------------------- in-kernel math helpers


def _mm(a, b):
    return jnp.dot(a.astype(_MXU_DTYPE), b.astype(_MXU_DTYPE),
                   preferred_element_type=jnp.float32)


def _mm_t(a, b):  # a @ b.T without materializing the transpose
    return jax.lax.dot_general(
        a.astype(_MXU_DTYPE), b.astype(_MXU_DTYPE),
        dimension_numbers=(((1,), (1,)), ((), ())),
        preferred_element_type=jnp.float32)


def _erf(x):
    # Abramowitz & Stegun 7.1.26 (|err| < 1.5e-7) — only exp/mul/add/where.
    a1, a2, a3, a4, a5 = 0.254829592, -0.284496736, 1.421413741, -1.453152027, 1.061405429
    p = 0.3275911
    s = jnp.where(x >= 0.0, 1.0, -1.0)
    ax = jnp.abs(x)
    t = 1.0 / (1.0 + p * ax)
    poly = ((((a5 * t + a4) * t + a3) * t + a2) * t + a1) * t
    return s * (1.0 - poly * jnp.exp(-ax * ax))


def _gelu(x):
    return 0.5 * x * (1.0 + _erf(x * (1.0 / math.sqrt(2.0))))


def _layernorm(x, gb, i):
    # gb rows [2i] = gamma, [2i+1] = beta; eps = 1e-5 (torch default).
    g = gb[2 * i: 2 * i + 1, :]
    b = gb[2 * i + 1: 2 * i + 2, :]
    mean = jnp.mean(x, axis=-1, keepdims=True)
    var = jnp.mean((x - mean) ** 2, axis=-1, keepdims=True)
    return (x - mean) * jax.lax.rsqrt(var + 1e-5) * g + b


# ----------------------------------------------------------------------------- fused forward kernel


def _generator_kernel(
    src_ref, tgt_ref, pe_src_ref, pe_tgt_ref,
    enc_qkv_w_ref, enc_qkv_b_ref, enc_wo_ref, enc_bo_ref, enc_ln_ref,
    enc_w1_ref, enc_b1_ref, enc_w2_ref, enc_b2_ref,
    dec_sa_qkv_w_ref, dec_sa_qkv_b_ref, dec_sa_wo_ref, dec_sa_bo_ref,
    dec_ca_q_w_ref, dec_ca_q_b_ref, dec_ca_kv_w_ref, dec_ca_kv_b_ref,
    dec_ca_wo_ref, dec_ca_bo_ref, dec_ln_ref,
    dec_w1_ref, dec_b1_ref, dec_w2_ref, dec_b2_ref,
    enc_norm_ref, dec_norm_ref, cls_w_ref, cls_b_ref,
    out_ref,
    *, D, H, n_enc, n_dec):
    """One grid step == the full Transformer forward for one batch element."""
    Dh = D // H
    scale = 1.0 / math.sqrt(Dh)
    emb_scale = math.sqrt(D)

    def attn(q_all, q_base, kv_all, k_base, v_base, wo):
        # Multi-head attention fused with its output projection:
        #   sum_h softmax(q_h k_h^T * scale) v_h @ Wo[h*Dh:(h+1)*Dh, :]
        # TODO(synk): attn_mask / key_padding_mask not plumbed; forward is called with None masks.
        acc = None
        for h in range(H):
            c = h * Dh
            q_h = q_all[:, q_base + c: q_base + c + Dh]
            k_h = kv_all[:, k_base + c: k_base + c + Dh]
            v_h = kv_all[:, v_base + c: v_base + c + Dh]
            s = _mm_t(q_h, k_h) * scale
            s = s - jnp.max(s, axis=-1, keepdims=True)
            p = jnp.exp(s)
            p = p * pl.reciprocal(jnp.sum(p, axis=-1, keepdims=True), approx=True)
            part = _mm(_mm(p, v_h), wo[c:c + Dh, :])
            acc = part if acc is None else acc + part
        return acc

    def ffn(x, w1, b1, w2, b2):
        return _mm(_gelu(_mm(x, w1) + b1), w2) + b2

    # ---- embeddings * sqrt(D) + positional encoding (dropout = eval identity)
    x = src_ref[...] * emb_scale + pe_src_ref[...]          # (S, D)
    y = tgt_ref[...] * emb_scale + pe_tgt_ref[...]          # (T, D)

    # ---- encoder stack (post-LN layers)
    for l in range(n_enc):
        lnb = enc_ln_ref[l]                                  # (4, D): g1,b1,g2,b2
        qkv = _mm(x, enc_qkv_w_ref[l]) + enc_qkv_b_ref[l]    # (S, 3D)
        sa = attn(qkv, 0, qkv, D, 2 * D, enc_wo_ref[l]) + enc_bo_ref[l]
        x = _layernorm(x + sa, lnb, 0)
        ff = ffn(x, enc_w1_ref[l], enc_b1_ref[l], enc_w2_ref[l], enc_b2_ref[l])
        x = _layernorm(x + ff, lnb, 1)
    memory = _layernorm(x, enc_norm_ref[...], 0)             # final encoder norm

    # ---- decoder stack (post-LN layers)
    for l in range(n_dec):
        lnb = dec_ln_ref[l]                                  # (6, D): g1,b1,g2,b2,g3,b3
        qkv = _mm(y, dec_sa_qkv_w_ref[l]) + dec_sa_qkv_b_ref[l]
        sa = attn(qkv, 0, qkv, D, 2 * D, dec_sa_wo_ref[l]) + dec_sa_bo_ref[l]
        y = _layernorm(y + sa, lnb, 0)
        q = _mm(y, dec_ca_q_w_ref[l]) + dec_ca_q_b_ref[l]          # (T, D)
        kv = _mm(memory, dec_ca_kv_w_ref[l]) + dec_ca_kv_b_ref[l]  # (S, 2D)
        ca = attn(q, 0, kv, 0, D, dec_ca_wo_ref[l]) + dec_ca_bo_ref[l]
        y = _layernorm(y + ca, lnb, 1)
        ff = ffn(y, dec_w1_ref[l], dec_b1_ref[l], dec_w2_ref[l], dec_b2_ref[l])
        y = _layernorm(y + ff, lnb, 2)
    y = _layernorm(y, dec_norm_ref[...], 0)                  # final decoder norm

    # ---- classifier
    out_ref[...] = (_mm(y, cls_w_ref[...]) + cls_b_ref[...]).astype(out_ref.dtype)


# ----------------------------------------------------------------------------- host-side wrapper


def generator_forward(params, src, tgt, nhead):
    S, N = src.shape
    T = tgt.shape[0]
    emb = params["emb"]
    D = emb.shape[1]
    V = params["cls_w"].shape[1]
    enc, dec = params["enc"], params["dec"]
    n_enc = enc["qkv_w"].shape[0]
    n_dec = dec["sa_qkv_w"].shape[0]

    # Token gather (plain-JAX glue), batch-major rows: row = n*L + l.
    src_emb = jnp.take(emb, src.T.reshape(-1), axis=0)       # (N*S, D)
    tgt_emb = jnp.take(emb, tgt.T.reshape(-1), axis=0)       # (N*T, D)
    pe_src = params["pe"][:S, 0, :]                          # (S, D)
    pe_tgt = params["pe"][:T, 0, :]                          # (T, D)

    weights = (
        enc["qkv_w"], enc["qkv_b"], enc["wo"], enc["bo"], enc["ln"],
        enc["w1"], enc["b1"], enc["w2"], enc["b2"],
        dec["sa_qkv_w"], dec["sa_qkv_b"], dec["sa_wo"], dec["sa_bo"],
        dec["ca_q_w"], dec["ca_q_b"], dec["ca_kv_w"], dec["ca_kv_b"],
        dec["ca_wo"], dec["ca_bo"], dec["ln"],
        dec["w1"], dec["b1"], dec["w2"], dec["b2"],
        params["enc_norm"], params["dec_norm"], params["cls_w"], params["cls_b"],
    )

    def whole(a):
        zeros = (0,) * a.ndim
        return pl.BlockSpec(a.shape, lambda n: zeros)        # same block each step -> stays VMEM resident

    in_specs = (
        [pl.BlockSpec((S, D), lambda n: (n, 0)),             # per-batch src rows
         pl.BlockSpec((T, D), lambda n: (n, 0)),             # per-batch tgt rows
         whole(pe_src), whole(pe_tgt)]
        + [whole(w) for w in weights]
    )

    kernel = functools.partial(_generator_kernel, D=D, H=nhead,
                               n_enc=n_enc, n_dec=n_dec)

    logits = pl.pallas_call(
        kernel,
        grid=(N,),                                           # one program per batch element
        out_shape=jax.ShapeDtypeStruct((N * T, V), jnp.float32),
        in_specs=in_specs,
        out_specs=pl.BlockSpec((T, V), lambda n: (n, 0)),
        compiler_params=pltpu.CompilerParams(dimension_semantics=("parallel",)),
    )(src_emb, tgt_emb, pe_src, pe_tgt, *weights)

    # (N*T, V) batch-major -> (T, N, V) to match nn.Transformer's seq-major output.
    return logits.reshape(N, T, V).transpose(1, 0, 2)


# ----------------------------------------------------------------------------- params


def make_pe(max_len, d_model):
    position = jnp.arange(max_len, dtype=jnp.float32)[:, None]
    div_term = jnp.exp(jnp.arange(0, d_model, 2, dtype=jnp.float32) * (-math.log(10000.0) / d_model))
    pe = jnp.zeros((max_len, d_model), jnp.float32)
    pe = pe.at[:, 0::2].set(jnp.sin(position * div_term))
    pe = pe.at[:, 1::2].set(jnp.cos(position * div_term))
    return pe[:, None, :]                                    # (max_len, 1, d_model)


def init_params(key, vocab_size, d_model, nhead, n_enc, n_dec, dff, max_len=65):
    keys = iter(jax.random.split(key, 256))
    D, F, V = d_model, dff, vocab_size

    def uni(shape, fan_in):
        bound = 1.0 / math.sqrt(fan_in)
        return jax.random.uniform(next(keys), shape, jnp.float32, -bound, bound)

    def stack(make, n):
        return jnp.stack([make() for _ in range(n)], axis=0)

    def ln_block(num_ln):
        row = jnp.concatenate([jnp.ones((1, D), jnp.float32),
                               jnp.zeros((1, D), jnp.float32)], axis=0)   # [gamma; beta]
        return jnp.concatenate([row] * num_ln, axis=0)                    # (2*num_ln, D)

    enc = dict(
        qkv_w=stack(lambda: uni((D, 3 * D), D), n_enc),
        qkv_b=stack(lambda: uni((1, 3 * D), D), n_enc),
        wo=stack(lambda: uni((D, D), D), n_enc),
        bo=stack(lambda: uni((1, D), D), n_enc),
        ln=jnp.stack([ln_block(2)] * n_enc, axis=0),
        w1=stack(lambda: uni((D, F), D), n_enc),
        b1=stack(lambda: uni((1, F), D), n_enc),
        w2=stack(lambda: uni((F, D), F), n_enc),
        b2=stack(lambda: uni((1, D), F), n_enc),
    )
    dec = dict(
        sa_qkv_w=stack(lambda: uni((D, 3 * D), D), n_dec),
        sa_qkv_b=stack(lambda: uni((1, 3 * D), D), n_dec),
        sa_wo=stack(lambda: uni((D, D), D), n_dec),
        sa_bo=stack(lambda: uni((1, D), D), n_dec),
        ca_q_w=stack(lambda: uni((D, D), D), n_dec),
        ca_q_b=stack(lambda: uni((1, D), D), n_dec),
        ca_kv_w=stack(lambda: uni((D, 2 * D), D), n_dec),
        ca_kv_b=stack(lambda: uni((1, 2 * D), D), n_dec),
        ca_wo=stack(lambda: uni((D, D), D), n_dec),
        ca_bo=stack(lambda: uni((1, D), D), n_dec),
        ln=jnp.stack([ln_block(3)] * n_dec, axis=0),
        w1=stack(lambda: uni((D, F), D), n_dec),
        b1=stack(lambda: uni((1, F), D), n_dec),
        w2=stack(lambda: uni((F, D), F), n_dec),
        b2=stack(lambda: uni((1, D), F), n_dec),
    )
    return dict(
        emb=jax.random.normal(next(keys), (V, D), jnp.float32),   # nn.Embedding ~ N(0,1)
        pe=make_pe(max_len, D),
        enc=enc,
        dec=dec,
        enc_norm=ln_block(1),
        dec_norm=ln_block(1),
        cls_w=uni((D, V), D),
        cls_b=uni((1, V), D),
    )


# ----------------------------------------------------------------------------- main

if __name__ == "__main__":
    vocab_size, d_model, nhead = 32, 32, 2
    n_enc, n_dec, dff = 2, 2, 64
    S, T, N = 8, 8, 2

    key = jax.random.PRNGKey(0)
    pkey, skey, tkey = jax.random.split(key, 3)
    params = init_params(pkey, vocab_size, d_model, nhead, n_enc, n_dec, dff)

    src = jax.random.randint(skey, (S, N), 0, vocab_size, dtype=jnp.int32)
    tgt = jax.random.randint(tkey, (T, N), 0, vocab_size, dtype=jnp.int32)

    fwd = jax.jit(generator_forward, static_argnames=("nhead",))
    out = fwd(params, src, tgt, nhead=nhead)
    out = jax.block_until_ready(out)
    assert out.shape == (T, N, vocab_size), out.shape
    assert bool(jnp.all(jnp.isfinite(out)))
    print("KERNEL_OK")
</pallas_src>

<mosaic_0001>
module attributes {stable_mosaic.version = 11 : i64} {
  func.func @_generator_kernel(%arg0: i32, %arg1: memref<8x32xf32, #tpu.memory_space<vmem>>, %arg2: memref<8x32xf32, #tpu.memory_space<vmem>>, %arg3: memref<8x32xf32, #tpu.memory_space<vmem>>, %arg4: memref<8x32xf32, #tpu.memory_space<vmem>>, %arg5: memref<2x32x96xf32, #tpu.memory_space<vmem>>, %arg6: memref<2x1x96xf32, #tpu.memory_space<vmem>>, %arg7: memref<2x32x32xf32, #tpu.memory_space<vmem>>, %arg8: memref<2x1x32xf32, #tpu.memory_space<vmem>>, %arg9: memref<2x4x32xf32, #tpu.memory_space<vmem>>, %arg10: memref<2x32x64xf32, #tpu.memory_space<vmem>>, %arg11: memref<2x1x64xf32, #tpu.memory_space<vmem>>, %arg12: memref<2x64x32xf32, #tpu.memory_space<vmem>>, %arg13: memref<2x1x32xf32, #tpu.memory_space<vmem>>, %arg14: memref<2x32x96xf32, #tpu.memory_space<vmem>>, %arg15: memref<2x1x96xf32, #tpu.memory_space<vmem>>, %arg16: memref<2x32x32xf32, #tpu.memory_space<vmem>>, %arg17: memref<2x1x32xf32, #tpu.memory_space<vmem>>, %arg18: memref<2x32x32xf32, #tpu.memory_space<vmem>>, %arg19: memref<2x1x32xf32, #tpu.memory_space<vmem>>, %arg20: memref<2x32x64xf32, #tpu.memory_space<vmem>>, %arg21: memref<2x1x64xf32, #tpu.memory_space<vmem>>, %arg22: memref<2x32x32xf32, #tpu.memory_space<vmem>>, %arg23: memref<2x1x32xf32, #tpu.memory_space<vmem>>, %arg24: memref<2x6x32xf32, #tpu.memory_space<vmem>>, %arg25: memref<2x32x64xf32, #tpu.memory_space<vmem>>, %arg26: memref<2x1x64xf32, #tpu.memory_space<vmem>>, %arg27: memref<2x64x32xf32, #tpu.memory_space<vmem>>, %arg28: memref<2x1x32xf32, #tpu.memory_space<vmem>>, %arg29: memref<2x32xf32, #tpu.memory_space<vmem>>, %arg30: memref<2x32xf32, #tpu.memory_space<vmem>>, %arg31: memref<32x32xf32, #tpu.memory_space<vmem>>, %arg32: memref<1x32xf32, #tpu.memory_space<vmem>>, %arg33: memref<8x32xf32, #tpu.memory_space<vmem>>) attributes {dimension_semantics = [#tpu.dimension_semantics<parallel>], iteration_bounds = array<i64: 2>, scalar_prefetch = 0 : i64, scratch_operands = 0 : i64, tpu.core_type = #tpu.core_type<tc>, window_params = [{transform_indices = @transform_0, window_bounds = array<i64: 8, 32>}, {transform_indices = @transform_1, window_bounds = array<i64: 8, 32>}, {pipeline_mode = #tpu.pipeline_mode<synchronous>, transform_indices = @transform_2, window_bounds = array<i64: 8, 32>}, {pipeline_mode = #tpu.pipeline_mode<synchronous>, transform_indices = @transform_3, window_bounds = array<i64: 8, 32>}, {pipeline_mode = #tpu.pipeline_mode<synchronous>, transform_indices = @transform_4, window_bounds = array<i64: 2, 32, 96>}, {pipeline_mode = #tpu.pipeline_mode<synchronous>, transform_indices = @transform_5, window_bounds = array<i64: 2, 1, 96>}, {pipeline_mode = #tpu.pipeline_mode<synchronous>, transform_indices = @transform_6, window_bounds = array<i64: 2, 32, 32>}, {pipeline_mode = #tpu.pipeline_mode<synchronous>, transform_indices = @transform_7, window_bounds = array<i64: 2, 1, 32>}, {pipeline_mode = #tpu.pipeline_mode<synchronous>, transform_indices = @transform_8, window_bounds = array<i64: 2, 4, 32>}, {pipeline_mode = #tpu.pipeline_mode<synchronous>, transform_indices = @transform_9, window_bounds = array<i64: 2, 32, 64>}, {pipeline_mode = #tpu.pipeline_mode<synchronous>, transform_indices = @transform_10, window_bounds = array<i64: 2, 1, 64>}, {pipeline_mode = #tpu.pipeline_mode<synchronous>, transform_indices = @transform_11, window_bounds = array<i64: 2, 64, 32>}, {pipeline_mode = #tpu.pipeline_mode<synchronous>, transform_indices = @transform_12, window_bounds = array<i64: 2, 1, 32>}, {pipeline_mode = #tpu.pipeline_mode<synchronous>, transform_indices = @transform_13, window_bounds = array<i64: 2, 32, 96>}, {pipeline_mode = #tpu.pipeline_mode<synchronous>, transform_indices = @transform_14, window_bounds = array<i64: 2, 1, 96>}, {pipeline_mode = #tpu.pipeline_mode<synchronous>, transform_indices = @transform_15, window_bounds = array<i64: 2, 32, 32>}, {pipeline_mode = #tpu.pipeline_mode<synchronous>, transform_indices = @transform_16, window_bounds = array<i64: 2, 1, 32>}, {pipeline_mode = #tpu.pipeline_mode<synchronous>, transform_indices = @transform_17, window_bounds = array<i64: 2, 32, 32>}, {pipeline_mode = #tpu.pipeline_mode<synchronous>, transform_indices = @transform_18, window_bounds = array<i64: 2, 1, 32>}, {pipeline_mode = #tpu.pipeline_mode<synchronous>, transform_indices = @transform_19, window_bounds = array<i64: 2, 32, 64>}, {pipeline_mode = #tpu.pipeline_mode<synchronous>, transform_indices = @transform_20, window_bounds = array<i64: 2, 1, 64>}, {pipeline_mode = #tpu.pipeline_mode<synchronous>, transform_indices = @transform_21, window_bounds = array<i64: 2, 32, 32>}, {pipeline_mode = #tpu.pipeline_mode<synchronous>, transform_indices = @transform_22, window_bounds = array<i64: 2, 1, 32>}, {pipeline_mode = #tpu.pipeline_mode<synchronous>, transform_indices = @transform_23, window_bounds = array<i64: 2, 6, 32>}, {pipeline_mode = #tpu.pipeline_mode<synchronous>, transform_indices = @transform_24, window_bounds = array<i64: 2, 32, 64>}, {pipeline_mode = #tpu.pipeline_mode<synchronous>, transform_indices = @transform_25, window_bounds = array<i64: 2, 1, 64>}, {pipeline_mode = #tpu.pipeline_mode<synchronous>, transform_indices = @transform_26, window_bounds = array<i64: 2, 64, 32>}, {pipeline_mode = #tpu.pipeline_mode<synchronous>, transform_indices = @transform_27, window_bounds = array<i64: 2, 1, 32>}, {pipeline_mode = #tpu.pipeline_mode<synchronous>, transform_indices = @transform_28, window_bounds = array<i64: 2, 32>}, {pipeline_mode = #tpu.pipeline_mode<synchronous>, transform_indices = @transform_29, window_bounds = array<i64: 2, 32>}, {pipeline_mode = #tpu.pipeline_mode<synchronous>, transform_indices = @transform_30, window_bounds = array<i64: 32, 32>}, {pipeline_mode = #tpu.pipeline_mode<synchronous>, transform_indices = @transform_31, window_bounds = array<i64: 1, 32>}, {transform_indices = @transform_32, window_bounds = array<i64: 8, 32>}]} {
    %c0 = arith.constant 0 : index
    %c0_0 = arith.constant 0 : index
    %0 = vector.load %arg1[%c0, %c0_0] : memref<8x32xf32, #tpu.memory_space<vmem>>, vector<8x32xf32>
    %cst = arith.constant 5.65685415 : f32
    %1 = vector.broadcast %cst : f32 to vector<8x32xf32>
    %2 = arith.mulf %0, %1 : vector<8x32xf32>
    %c0_1 = arith.constant 0 : index
    %c0_2 = arith.constant 0 : index
    %3 = vector.load %arg3[%c0_1, %c0_2] : memref<8x32xf32, #tpu.memory_space<vmem>>, vector<8x32xf32>
    %4 = arith.addf %2, %3 : vector<8x32xf32>
    %c0_3 = arith.constant 0 : index
    %c0_4 = arith.constant 0 : index
    %5 = vector.load %arg2[%c0_3, %c0_4] : memref<8x32xf32, #tpu.memory_space<vmem>>, vector<8x32xf32>
    %cst_5 = arith.constant 5.65685415 : f32
    %6 = vector.broadcast %cst_5 : f32 to vector<8x32xf32>
    %7 = arith.mulf %5, %6 : vector<8x32xf32>
    %c0_6 = arith.constant 0 : index
    %c0_7 = arith.constant 0 : index
    %8 = vector.load %arg4[%c0_6, %c0_7] : memref<8x32xf32, #tpu.memory_space<vmem>>, vector<8x32xf32>
    %9 = arith.addf %7, %8 : vector<8x32xf32>
    %c0_8 = arith.constant 0 : index
    %c0_9 = arith.constant 0 : index
    %c0_10 = arith.constant 0 : index
    %10 = vector.load %arg9[%c0_8, %c0_9, %c0_10] : memref<2x4x32xf32, #tpu.memory_space<vmem>>, vector<1x4x32xf32>
    %11 = vector.shape_cast %10 : vector<1x4x32xf32> to vector<4x32xf32>
    %c0_11 = arith.constant 0 : index
    %c0_12 = arith.constant 0 : index
    %c0_13 = arith.constant 0 : index
    %12 = vector.load %arg5[%c0_11, %c0_12, %c0_13] : memref<2x32x96xf32, #tpu.memory_space<vmem>>, vector<1x32x96xf32>
    %13 = vector.shape_cast %12 : vector<1x32x96xf32> to vector<32x96xf32>
    %cst_14 = arith.constant dense<0.000000e+00> : vector<8x96xf32>
    %14 = tpu.matmul %4, %13, %cst_14 {dimension_numbers = #tpu.dot_dimension_numbers<[1], [0], [0], [1], [0, 0, 1, 1], [], []>} : vector<8x32xf32>, vector<32x96xf32>, vector<8x96xf32> -> vector<8x96xf32>
    %c0_15 = arith.constant 0 : index
    %c0_16 = arith.constant 0 : index
    %c0_17 = arith.constant 0 : index
    %15 = vector.load %arg6[%c0_15, %c0_16, %c0_17] : memref<2x1x96xf32, #tpu.memory_space<vmem>>, vector<1x1x96xf32>
    %16 = vector.shape_cast %15 : vector<1x1x96xf32> to vector<1x96xf32>
    %17 = vector.broadcast %16 : vector<1x96xf32> to vector<8x96xf32>
    %18 = arith.addf %14, %17 : vector<8x96xf32>
    %c0_18 = arith.constant 0 : index
    %c0_19 = arith.constant 0 : index
    %c0_20 = arith.constant 0 : index
    %19 = vector.load %arg7[%c0_18, %c0_19, %c0_20] : memref<2x32x32xf32, #tpu.memory_space<vmem>>, vector<1x32x32xf32>
    %20 = vector.shape_cast %19 : vector<1x32x32xf32> to vector<32x32xf32>
    %21 = vector.extract_strided_slice %18 {offsets = [0, 0], sizes = [8, 16], strides = [1, 1]} : vector<8x96xf32> to vector<8x16xf32>
    %22 = vector.extract_strided_slice %18 {offsets = [0, 32], sizes = [8, 16], strides = [1, 1]} : vector<8x96xf32> to vector<8x16xf32>
    %23 = vector.extract_strided_slice %18 {offsets = [0, 64], sizes = [8, 16], strides = [1, 1]} : vector<8x96xf32> to vector<8x16xf32>
    %cst_21 = arith.constant dense<0.000000e+00> : vector<8x8xf32>
    %24 = tpu.matmul %21, %22, %cst_21 {dimension_numbers = #tpu.dot_dimension_numbers<[1], [1], [0], [0], [0, 0, 1, 0], [], []>} : vector<8x16xf32>, vector<8x16xf32>, vector<8x8xf32> -> vector<8x8xf32>
    %cst_22 = arith.constant 2.500000e-01 : f32
    %25 = vector.broadcast %cst_22 : f32 to vector<8x8xf32>
    %26 = arith.mulf %24, %25 : vector<8x8xf32>
    %cst_23 = arith.constant dense<0xFF800000> : vector<8xf32>
    %27 = vector.multi_reduction <maximumf>, %26, %cst_23 [1] : vector<8x8xf32> to vector<8xf32>
    %28 = vector.shape_cast %27 : vector<8xf32> to vector<8x1xf32>
    %29 = vector.broadcast %28 : vector<8x1xf32> to vector<8x8xf32>
    %30 = arith.subf %26, %29 : vector<8x8xf32>
    %31 = math.exp %30 : vector<8x8xf32>
    %cst_24 = arith.constant dense<0.000000e+00> : vector<8xf32>
    %32 = vector.multi_reduction <add>, %31, %cst_24 [1] : vector<8x8xf32> to vector<8xf32>
    %33 = vector.shape_cast %32 : vector<8xf32> to vector<8x1xf32>
    %34 = tpu.reciprocal %33 {approx = true} : vector<8x1xf32> -> vector<8x1xf32>
    %35 = vector.broadcast %34 : vector<8x1xf32> to vector<8x8xf32>
    %36 = arith.mulf %31, %35 : vector<8x8xf32>
    %cst_25 = arith.constant dense<0.000000e+00> : vector<8x16xf32>
    %37 = tpu.matmul %36, %23, %cst_25 {dimension_numbers = #tpu.dot_dimension_numbers<[1], [0], [0], [1], [0, 0, 1, 1], [], []>} : vector<8x8xf32>, vector<8x16xf32>, vector<8x16xf32> -> vector<8x16xf32>
    %38 = vector.extract_strided_slice %20 {offsets = [0, 0], sizes = [16, 32], strides = [1, 1]} : vector<32x32xf32> to vector<16x32xf32>
    %cst_26 = arith.constant dense<0.000000e+00> : vector<8x32xf32>
    %39 = tpu.matmul %37, %38, %cst_26 {dimension_numbers = #tpu.dot_dimension_numbers<[1], [0], [0], [1], [0, 0, 1, 1], [], []>} : vector<8x16xf32>, vector<16x32xf32>, vector<8x32xf32> -> vector<8x32xf32>
    %40 = vector.extract_strided_slice %18 {offsets = [0, 16], sizes = [8, 16], strides = [1, 1]} : vector<8x96xf32> to vector<8x16xf32>
    %41 = vector.extract_strided_slice %18 {offsets = [0, 48], sizes = [8, 16], strides = [1, 1]} : vector<8x96xf32> to vector<8x16xf32>
    %42 = vector.extract_strided_slice %18 {offsets = [0, 80], sizes = [8, 16], strides = [1, 1]} : vector<8x96xf32> to vector<8x16xf32>
    %cst_27 = arith.constant dense<0.000000e+00> : vector<8x8xf32>
    %43 = tpu.matmul %40, %41, %cst_27 {dimension_numbers = #tpu.dot_dimension_numbers<[1], [1], [0], [0], [0, 0, 1, 0], [], []>} : vector<8x16xf32>, vector<8x16xf32>, vector<8x8xf32> -> vector<8x8xf32>
    %cst_28 = arith.constant 2.500000e-01 : f32
    %44 = vector.broadcast %cst_28 : f32 to vector<8x8xf32>
    %45 = arith.mulf %43, %44 : vector<8x8xf32>
    %cst_29 = arith.constant dense<0xFF800000> : vector<8xf32>
    %46 = vector.multi_reduction <maximumf>, %45, %cst_29 [1] : vector<8x8xf32> to vector<8xf32>
    %47 = vector.shape_cast %46 : vector<8xf32> to vector<8x1xf32>
    %48 = vector.broadcast %47 : vector<8x1xf32> to vector<8x8xf32>
    %49 = arith.subf %45, %48 : vector<8x8xf32>
    %50 = math.exp %49 : vector<8x8xf32>
    %cst_30 = arith.constant dense<0.000000e+00> : vector<8xf32>
    %51 = vector.multi_reduction <add>, %50, %cst_30 [1] : vector<8x8xf32> to vector<8xf32>
    %52 = vector.shape_cast %51 : vector<8xf32> to vector<8x1xf32>
    %53 = tpu.reciprocal %52 {approx = true} : vector<8x1xf32> -> vector<8x1xf32>
    %54 = vector.broadcast %53 : vector<8x1xf32> to vector<8x8xf32>
    %55 = arith.mulf %50, %54 : vector<8x8xf32>
    %cst_31 = arith.constant dense<0.000000e+00> : vector<8x16xf32>
    %56 = tpu.matmul %55, %42, %cst_31 {dimension_numbers = #tpu.dot_dimension_numbers<[1], [0], [0], [1], [0, 0, 1, 1], [], []>} : vector<8x8xf32>, vector<8x16xf32>, vector<8x16xf32> -> vector<8x16xf32>
    %57 = vector.extract_strided_slice %20 {offsets = [16, 0], sizes = [16, 32], strides = [1, 1]} : vector<32x32xf32> to vector<16x32xf32>
    %cst_32 = arith.constant dense<0.000000e+00> : vector<8x32xf32>
    %58 = tpu.matmul %56, %57, %cst_32 {dimension_numbers = #tpu.dot_dimension_numbers<[1], [0], [0], [1], [0, 0, 1, 1], [], []>} : vector<8x16xf32>, vector<16x32xf32>, vector<8x32xf32> -> vector<8x32xf32>
    %59 = arith.addf %39, %58 : vector<8x32xf32>
    %c0_33 = arith.constant 0 : index
    %c0_34 = arith.constant 0 : index
    %c0_35 = arith.constant 0 : index
    %60 = vector.load %arg8[%c0_33, %c0_34, %c0_35] : memref<2x1x32xf32, #tpu.memory_space<vmem>>, vector<1x1x32xf32>
    %61 = vector.shape_cast %60 : vector<1x1x32xf32> to vector<1x32xf32>
    %62 = vector.broadcast %61 : vector<1x32xf32> to vector<8x32xf32>
    %63 = arith.addf %59, %62 : vector<8x32xf32>
    %64 = arith.addf %4, %63 : vector<8x32xf32>
    %65 = vector.extract_strided_slice %11 {offsets = [0, 0], sizes = [1, 32], strides = [1, 1]} : vector<4x32xf32> to vector<1x32xf32>
    %66 = vector.extract_strided_slice %11 {offsets = [1, 0], sizes = [1, 32], strides = [1, 1]} : vector<4x32xf32> to vector<1x32xf32>
    %cst_36 = arith.constant dense<0.000000e+00> : vector<8xf32>
    %67 = vector.multi_reduction <add>, %64, %cst_36 [1] : vector<8x32xf32> to vector<8xf32>
    %68 = vector.shape_cast %67 : vector<8xf32> to vector<8x1xf32>
    %cst_37 = arith.constant 3.200000e+01 : f32
    %69 = vector.broadcast %cst_37 : f32 to vector<8x1xf32>
    %70 = arith.divf %68, %69 : vector<8x1xf32>
    %71 = vector.broadcast %70 : vector<8x1xf32> to vector<8x32xf32>
    %72 = arith.subf %64, %71 : vector<8x32xf32>
    %73 = arith.mulf %72, %72 : vector<8x32xf32>
    %cst_38 = arith.constant dense<0.000000e+00> : vector<8xf32>
    %74 = vector.multi_reduction <add>, %73, %cst_38 [1] : vector<8x32xf32> to vector<8xf32>
    %75 = vector.shape_cast %74 : vector<8xf32> to vector<8x1xf32>
    %cst_39 = arith.constant 3.200000e+01 : f32
    %76 = vector.broadcast %cst_39 : f32 to vector<8x1xf32>
    %77 = arith.divf %75, %76 : vector<8x1xf32>
    %78 = vector.broadcast %70 : vector<8x1xf32> to vector<8x32xf32>
    %79 = arith.subf %64, %78 : vector<8x32xf32>
    %cst_40 = arith.constant 9.99999974E-6 : f32
    %80 = vector.broadcast %cst_40 : f32 to vector<8x1xf32>
    %81 = arith.addf %77, %80 : vector<8x1xf32>
    %82 = math.rsqrt %81 : vector<8x1xf32>
    %83 = vector.broadcast %82 : vector<8x1xf32> to vector<8x32xf32>
    %84 = arith.mulf %79, %83 : vector<8x32xf32>
    %85 = vector.broadcast %65 : vector<1x32xf32> to vector<8x32xf32>
    %86 = arith.mulf %84, %85 : vector<8x32xf32>
    %87 = vector.broadcast %66 : vector<1x32xf32> to vector<8x32xf32>
    %88 = arith.addf %86, %87 : vector<8x32xf32>
    %c0_41 = arith.constant 0 : index
    %c0_42 = arith.constant 0 : index
    %c0_43 = arith.constant 0 : index
    %89 = vector.load %arg10[%c0_41, %c0_42, %c0_43] : memref<2x32x64xf32, #tpu.memory_space<vmem>>, vector<1x32x64xf32>
    %90 = vector.shape_cast %89 : vector<1x32x64xf32> to vector<32x64xf32>
    %c0_44 = arith.constant 0 : index
    %c0_45 = arith.constant 0 : index
    %c0_46 = arith.constant 0 : index
    %91 = vector.load %arg11[%c0_44, %c0_45, %c0_46] : memref<2x1x64xf32, #tpu.memory_space<vmem>>, vector<1x1x64xf32>
    %92 = vector.shape_cast %91 : vector<1x1x64xf32> to vector<1x64xf32>
    %c0_47 = arith.constant 0 : index
    %c0_48 = arith.constant 0 : index
    %c0_49 = arith.constant 0 : index
    %93 = vector.load %arg12[%c0_47, %c0_48, %c0_49] : memref<2x64x32xf32, #tpu.memory_space<vmem>>, vector<1x64x32xf32>
    %94 = vector.shape_cast %93 : vector<1x64x32xf32> to vector<64x32xf32>
    %c0_50 = arith.constant 0 : index
    %c0_51 = arith.constant 0 : index
    %c0_52 = arith.constant 0 : index
    %95 = vector.load %arg13[%c0_50, %c0_51, %c0_52] : memref<2x1x32xf32, #tpu.memory_space<vmem>>, vector<1x1x32xf32>
    %96 = vector.shape_cast %95 : vector<1x1x32xf32> to vector<1x32xf32>
    %cst_53 = arith.constant dense<0.000000e+00> : vector<8x64xf32>
    %97 = tpu.matmul %88, %90, %cst_53 {dimension_numbers = #tpu.dot_dimension_numbers<[1], [0], [0], [1], [0, 0, 1, 1], [], []>} : vector<8x32xf32>, vector<32x64xf32>, vector<8x64xf32> -> vector<8x64xf32>
    %98 = vector.broadcast %92 : vector<1x64xf32> to vector<8x64xf32>
    %99 = arith.addf %97, %98 : vector<8x64xf32>
    %cst_54 = arith.constant 5.000000e-01 : f32
    %100 = vector.broadcast %cst_54 : f32 to vector<8x64xf32>
    %101 = arith.mulf %100, %99 : vector<8x64xf32>
    %cst_55 = arith.constant 0.707106769 : f32
    %102 = vector.broadcast %cst_55 : f32 to vector<8x64xf32>
    %103 = arith.mulf %99, %102 : vector<8x64xf32>
    %cst_56 = arith.constant 0.000000e+00 : f32
    %104 = vector.broadcast %cst_56 : f32 to vector<8x64xf32>
    %105 = arith.cmpf oge, %103, %104 : vector<8x64xf32>
    %cst_57 = arith.constant 1.000000e+00 : f32
    %cst_58 = arith.constant -1.000000e+00 : f32
    %106 = vector.broadcast %cst_57 : f32 to vector<8x64xf32>
    %107 = vector.broadcast %cst_58 : f32 to vector<8x64xf32>
    %108 = arith.select %105, %106, %107 : vector<8x64xi1>, vector<8x64xf32>
    %109 = math.absf %103 : vector<8x64xf32>
    %cst_59 = arith.constant 0.327591091 : f32
    %110 = vector.broadcast %cst_59 : f32 to vector<8x64xf32>
    %111 = arith.mulf %110, %109 : vector<8x64xf32>
    %cst_60 = arith.constant 1.000000e+00 : f32
    %112 = vector.broadcast %cst_60 : f32 to vector<8x64xf32>
    %113 = arith.addf %112, %111 : vector<8x64xf32>
    %cst_61 = arith.constant 1.000000e+00 : f32
    %114 = vector.broadcast %cst_61 : f32 to vector<8x64xf32>
    %115 = arith.divf %114, %113 : vector<8x64xf32>
    %cst_62 = arith.constant 1.06140542 : f32
    %116 = vector.broadcast %cst_62 : f32 to vector<8x64xf32>
    %117 = arith.mulf %116, %115 : vector<8x64xf32>
    %cst_63 = arith.constant -1.45315206 : f32
    %118 = vector.broadcast %cst_63 : f32 to vector<8x64xf32>
    %119 = arith.addf %117, %118 : vector<8x64xf32>
    %120 = arith.mulf %119, %115 : vector<8x64xf32>
    %cst_64 = arith.constant 1.42141378 : f32
    %121 = vector.broadcast %cst_64 : f32 to vector<8x64xf32>
    %122 = arith.addf %120, %121 : vector<8x64xf32>
    %123 = arith.mulf %122, %115 : vector<8x64xf32>
    %cst_65 = arith.constant -0.284496725 : f32
    %124 = vector.broadcast %cst_65 : f32 to vector<8x64xf32>
    %125 = arith.addf %123, %124 : vector<8x64xf32>
    %126 = arith.mulf %125, %115 : vector<8x64xf32>
    %cst_66 = arith.constant 0.254829586 : f32
    %127 = vector.broadcast %cst_66 : f32 to vector<8x64xf32>
    %128 = arith.addf %126, %127 : vector<8x64xf32>
    %129 = arith.mulf %128, %115 : vector<8x64xf32>
    %cst_67 = arith.constant 0.000000e+00 : f32
    %130 = vector.broadcast %cst_67 : f32 to vector<8x64xf32>
    %131 = arith.subf %130, %109 : vector<8x64xf32>
    %132 = arith.mulf %131, %109 : vector<8x64xf32>
    %133 = math.exp %132 : vector<8x64xf32>
    %134 = arith.mulf %129, %133 : vector<8x64xf32>
    %cst_68 = arith.constant 1.000000e+00 : f32
    %135 = vector.broadcast %cst_68 : f32 to vector<8x64xf32>
    %136 = arith.subf %135, %134 : vector<8x64xf32>
    %137 = arith.mulf %108, %136 : vector<8x64xf32>
    %cst_69 = arith.constant 1.000000e+00 : f32
    %138 = vector.broadcast %cst_69 : f32 to vector<8x64xf32>
    %139 = arith.addf %138, %137 : vector<8x64xf32>
    %140 = arith.mulf %101, %139 : vector<8x64xf32>
    %cst_70 = arith.constant dense<0.000000e+00> : vector<8x32xf32>
    %141 = tpu.matmul %140, %94, %cst_70 {dimension_numbers = #tpu.dot_dimension_numbers<[1], [0], [0], [1], [0, 0, 1, 1], [], []>} : vector<8x64xf32>, vector<64x32xf32>, vector<8x32xf32> -> vector<8x32xf32>
    %142 = vector.broadcast %96 : vector<1x32xf32> to vector<8x32xf32>
    %143 = arith.addf %141, %142 : vector<8x32xf32>
    %144 = arith.addf %88, %143 : vector<8x32xf32>
    %145 = vector.extract_strided_slice %11 {offsets = [2, 0], sizes = [1, 32], strides = [1, 1]} : vector<4x32xf32> to vector<1x32xf32>
    %146 = vector.extract_strided_slice %11 {offsets = [3, 0], sizes = [1, 32], strides = [1, 1]} : vector<4x32xf32> to vector<1x32xf32>
    %cst_71 = arith.constant dense<0.000000e+00> : vector<8xf32>
    %147 = vector.multi_reduction <add>, %144, %cst_71 [1] : vector<8x32xf32> to vector<8xf32>
    %148 = vector.shape_cast %147 : vector<8xf32> to vector<8x1xf32>
    %cst_72 = arith.constant 3.200000e+01 : f32
    %149 = vector.broadcast %cst_72 : f32 to vector<8x1xf32>
    %150 = arith.divf %148, %149 : vector<8x1xf32>
    %151 = vector.broadcast %150 : vector<8x1xf32> to vector<8x32xf32>
    %152 = arith.subf %144, %151 : vector<8x32xf32>
    %153 = arith.mulf %152, %152 : vector<8x32xf32>
    %cst_73 = arith.constant dense<0.000000e+00> : vector<8xf32>
    %154 = vector.multi_reduction <add>, %153, %cst_73 [1] : vector<8x32xf32> to vector<8xf32>
    %155 = vector.shape_cast %154 : vector<8xf32> to vector<8x1xf32>
    %cst_74 = arith.constant 3.200000e+01 : f32
    %156 = vector.broadcast %cst_74 : f32 to vector<8x1xf32>
    %157 = arith.divf %155, %156 : vector<8x1xf32>
    %158 = vector.broadcast %150 : vector<8x1xf32> to vector<8x32xf32>
    %159 = arith.subf %144, %158 : vector<8x32xf32>
    %cst_75 = arith.constant 9.99999974E-6 : f32
    %160 = vector.broadcast %cst_75 : f32 to vector<8x1xf32>
    %161 = arith.addf %157, %160 : vector<8x1xf32>
    %162 = math.rsqrt %161 : vector<8x1xf32>
    %163 = vector.broadcast %162 : vector<8x1xf32> to vector<8x32xf32>
    %164 = arith.mulf %159, %163 : vector<8x32xf32>
    %165 = vector.broadcast %145 : vector<1x32xf32> to vector<8x32xf32>
    %166 = arith.mulf %164, %165 : vector<8x32xf32>
    %167 = vector.broadcast %146 : vector<1x32xf32> to vector<8x32xf32>
    %168 = arith.addf %166, %167 : vector<8x32xf32>
    %c1 = arith.constant 1 : index
    %c0_76 = arith.constant 0 : index
    %c0_77 = arith.constant 0 : index
    %169 = vector.load %arg9[%c1, %c0_76, %c0_77] : memref<2x4x32xf32, #tpu.memory_space<vmem>>, vector<1x4x32xf32>
    %170 = vector.shape_cast %169 : vector<1x4x32xf32> to vector<4x32xf32>
    %c1_78 = arith.constant 1 : index
    %c0_79 = arith.constant 0 : index
    %c0_80 = arith.constant 0 : index
    %171 = vector.load %arg5[%c1_78, %c0_79, %c0_80] : memref<2x32x96xf32, #tpu.memory_space<vmem>>, vector<1x32x96xf32>
    %172 = vector.shape_cast %171 : vector<1x32x96xf32> to vector<32x96xf32>
    %cst_81 = arith.constant dense<0.000000e+00> : vector<8x96xf32>
    %173 = tpu.matmul %168, %172, %cst_81 {dimension_numbers = #tpu.dot_dimension_numbers<[1], [0], [0], [1], [0, 0, 1, 1], [], []>} : vector<8x32xf32>, vector<32x96xf32>, vector<8x96xf32> -> vector<8x96xf32>
    %c1_82 = arith.constant 1 : index
    %c0_83 = arith.constant 0 : index
    %c0_84 = arith.constant 0 : index
    %174 = vector.load %arg6[%c1_82, %c0_83, %c0_84] : memref<2x1x96xf32, #tpu.memory_space<vmem>>, vector<1x1x96xf32>
    %175 = vector.shape_cast %174 : vector<1x1x96xf32> to vector<1x96xf32>
    %176 = vector.broadcast %175 : vector<1x96xf32> to vector<8x96xf32>
    %177 = arith.addf %173, %176 : vector<8x96xf32>
    %c1_85 = arith.constant 1 : index
    %c0_86 = arith.constant 0 : index
    %c0_87 = arith.constant 0 : index
    %178 = vector.load %arg7[%c1_85, %c0_86, %c0_87] : memref<2x32x32xf32, #tpu.memory_space<vmem>>, vector<1x32x32xf32>
    %179 = vector.shape_cast %178 : vector<1x32x32xf32> to vector<32x32xf32>
    %180 = vector.extract_strided_slice %177 {offsets = [0, 0], sizes = [8, 16], strides = [1, 1]} : vector<8x96xf32> to vector<8x16xf32>
    %181 = vector.extract_strided_slice %177 {offsets = [0, 32], sizes = [8, 16], strides = [1, 1]} : vector<8x96xf32> to vector<8x16xf32>
    %182 = vector.extract_strided_slice %177 {offsets = [0, 64], sizes = [8, 16], strides = [1, 1]} : vector<8x96xf32> to vector<8x16xf32>
    %cst_88 = arith.constant dense<0.000000e+00> : vector<8x8xf32>
    %183 = tpu.matmul %180, %181, %cst_88 {dimension_numbers = #tpu.dot_dimension_numbers<[1], [1], [0], [0], [0, 0, 1, 0], [], []>} : vector<8x16xf32>, vector<8x16xf32>, vector<8x8xf32> -> vector<8x8xf32>
    %cst_89 = arith.constant 2.500000e-01 : f32
    %184 = vector.broadcast %cst_89 : f32 to vector<8x8xf32>
    %185 = arith.mulf %183, %184 : vector<8x8xf32>
    %cst_90 = arith.constant dense<0xFF800000> : vector<8xf32>
    %186 = vector.multi_reduction <maximumf>, %185, %cst_90 [1] : vector<8x8xf32> to vector<8xf32>
    %187 = vector.shape_cast %186 : vector<8xf32> to vector<8x1xf32>
    %188 = vector.broadcast %187 : vector<8x1xf32> to vector<8x8xf32>
    %189 = arith.subf %185, %188 : vector<8x8xf32>
    %190 = math.exp %189 : vector<8x8xf32>
    %cst_91 = arith.constant dense<0.000000e+00> : vector<8xf32>
    %191 = vector.multi_reduction <add>, %190, %cst_91 [1] : vector<8x8xf32> to vector<8xf32>
    %192 = vector.shape_cast %191 : vector<8xf32> to vector<8x1xf32>
    %193 = tpu.reciprocal %192 {approx = true} : vector<8x1xf32> -> vector<8x1xf32>
    %194 = vector.broadcast %193 : vector<8x1xf32> to vector<8x8xf32>
    %195 = arith.mulf %190, %194 : vector<8x8xf32>
    %cst_92 = arith.constant dense<0.000000e+00> : vector<8x16xf32>
    %196 = tpu.matmul %195, %182, %cst_92 {dimension_numbers = #tpu.dot_dimension_numbers<[1], [0], [0], [1], [0, 0, 1, 1], [], []>} : vector<8x8xf32>, vector<8x16xf32>, vector<8x16xf32> -> vector<8x16xf32>
    %197 = vector.extract_strided_slice %179 {offsets = [0, 0], sizes = [16, 32], strides = [1, 1]} : vector<32x32xf32> to vector<16x32xf32>
    %cst_93 = arith.constant dense<0.000000e+00> : vector<8x32xf32>
    %198 = tpu.matmul %196, %197, %cst_93 {dimension_numbers = #tpu.dot_dimension_numbers<[1], [0], [0], [1], [0, 0, 1, 1], [], []>} : vector<8x16xf32>, vector<16x32xf32>, vector<8x32xf32> -> vector<8x32xf32>
    %199 = vector.extract_strided_slice %177 {offsets = [0, 16], sizes = [8, 16], strides = [1, 1]} : vector<8x96xf32> to vector<8x16xf32>
    %200 = vector.extract_strided_slice %177 {offsets = [0, 48], sizes = [8, 16], strides = [1, 1]} : vector<8x96xf32> to vector<8x16xf32>
    %201 = vector.extract_strided_slice %177 {offsets = [0, 80], sizes = [8, 16], strides = [1, 1]} : vector<8x96xf32> to vector<8x16xf32>
    %cst_94 = arith.constant dense<0.000000e+00> : vector<8x8xf32>
    %202 = tpu.matmul %199, %200, %cst_94 {dimension_numbers = #tpu.dot_dimension_numbers<[1], [1], [0], [0], [0, 0, 1, 0], [], []>} : vector<8x16xf32>, vector<8x16xf32>, vector<8x8xf32> -> vector<8x8xf32>
    %cst_95 = arith.constant 2.500000e-01 : f32
    %203 = vector.broadcast %cst_95 : f32 to vector<8x8xf32>
    %204 = arith.mulf %202, %203 : vector<8x8xf32>
    %cst_96 = arith.constant dense<0xFF800000> : vector<8xf32>
    %205 = vector.multi_reduction <maximumf>, %204, %cst_96 [1] : vector<8x8xf32> to vector<8xf32>
    %206 = vector.shape_cast %205 : vector<8xf32> to vector<8x1xf32>
    %207 = vector.broadcast %206 : vector<8x1xf32> to vector<8x8xf32>
    %208 = arith.subf %204, %207 : vector<8x8xf32>
    %209 = math.exp %208 : vector<8x8xf32>
    %cst_97 = arith.constant dense<0.000000e+00> : vector<8xf32>
    %210 = vector.multi_reduction <add>, %209, %cst_97 [1] : vector<8x8xf32> to vector<8xf32>
    %211 = vector.shape_cast %210 : vector<8xf32> to vector<8x1xf32>
    %212 = tpu.reciprocal %211 {approx = true} : vector<8x1xf32> -> vector<8x1xf32>
    %213 = vector.broadcast %212 : vector<8x1xf32> to vector<8x8xf32>
    %214 = arith.mulf %209, %213 : vector<8x8xf32>
    %cst_98 = arith.constant dense<0.000000e+00> : vector<8x16xf32>
    %215 = tpu.matmul %214, %201, %cst_98 {dimension_numbers = #tpu.dot_dimension_numbers<[1], [0], [0], [1], [0, 0, 1, 1], [], []>} : vector<8x8xf32>, vector<8x16xf32>, vector<8x16xf32> -> vector<8x16xf32>
    %216 = vector.extract_strided_slice %179 {offsets = [16, 0], sizes = [16, 32], strides = [1, 1]} : vector<32x32xf32> to vector<16x32xf32>
    %cst_99 = arith.constant dense<0.000000e+00> : vector<8x32xf32>
    %217 = tpu.matmul %215, %216, %cst_99 {dimension_numbers = #tpu.dot_dimension_numbers<[1], [0], [0], [1], [0, 0, 1, 1], [], []>} : vector<8x16xf32>, vector<16x32xf32>, vector<8x32xf32> -> vector<8x32xf32>
    %218 = arith.addf %198, %217 : vector<8x32xf32>
    %c1_100 = arith.constant 1 : index
    %c0_101 = arith.constant 0 : index
    %c0_102 = arith.constant 0 : index
    %219 = vector.load %arg8[%c1_100, %c0_101, %c0_102] : memref<2x1x32xf32, #tpu.memory_space<vmem>>, vector<1x1x32xf32>
    %220 = vector.shape_cast %219 : vector<1x1x32xf32> to vector<1x32xf32>
    %221 = vector.broadcast %220 : vector<1x32xf32> to vector<8x32xf32>
    %222 = arith.addf %218, %221 : vector<8x32xf32>
    %223 = arith.addf %168, %222 : vector<8x32xf32>
    %224 = vector.extract_strided_slice %170 {offsets = [0, 0], sizes = [1, 32], strides = [1, 1]} : vector<4x32xf32> to vector<1x32xf32>
    %225 = vector.extract_strided_slice %170 {offsets = [1, 0], sizes = [1, 32], strides = [1, 1]} : vector<4x32xf32> to vector<1x32xf32>
    %cst_103 = arith.constant dense<0.000000e+00> : vector<8xf32>
    %226 = vector.multi_reduction <add>, %223, %cst_103 [1] : vector<8x32xf32> to vector<8xf32>
    %227 = vector.shape_cast %226 : vector<8xf32> to vector<8x1xf32>
    %cst_104 = arith.constant 3.200000e+01 : f32
    %228 = vector.broadcast %cst_104 : f32 to vector<8x1xf32>
    %229 = arith.divf %227, %228 : vector<8x1xf32>
    %230 = vector.broadcast %229 : vector<8x1xf32> to vector<8x32xf32>
    %231 = arith.subf %223, %230 : vector<8x32xf32>
    %232 = arith.mulf %231, %231 : vector<8x32xf32>
    %cst_105 = arith.constant dense<0.000000e+00> : vector<8xf32>
    %233 = vector.multi_reduction <add>, %232, %cst_105 [1] : vector<8x32xf32> to vector<8xf32>
    %234 = vector.shape_cast %233 : vector<8xf32> to vector<8x1xf32>
    %cst_106 = arith.constant 3.200000e+01 : f32
    %235 = vector.broadcast %cst_106 : f32 to vector<8x1xf32>
    %236 = arith.divf %234, %235 : vector<8x1xf32>
    %237 = vector.broadcast %229 : vector<8x1xf32> to vector<8x32xf32>
    %238 = arith.subf %223, %237 : vector<8x32xf32>
    %cst_107 = arith.constant 9.99999974E-6 : f32
    %239 = vector.broadcast %cst_107 : f32 to vector<8x1xf32>
    %240 = arith.addf %236, %239 : vector<8x1xf32>
    %241 = math.rsqrt %240 : vector<8x1xf32>
    %242 = vector.broadcast %241 : vector<8x1xf32> to vector<8x32xf32>
    %243 = arith.mulf %238, %242 : vector<8x32xf32>
    %244 = vector.broadcast %224 : vector<1x32xf32> to vector<8x32xf32>
    %245 = arith.mulf %243, %244 : vector<8x32xf32>
    %246 = vector.broadcast %225 : vector<1x32xf32> to vector<8x32xf32>
    %247 = arith.addf %245, %246 : vector<8x32xf32>
    %c1_108 = arith.constant 1 : index
    %c0_109 = arith.constant 0 : index
    %c0_110 = arith.constant 0 : index
    %248 = vector.load %arg10[%c1_108, %c0_109, %c0_110] : memref<2x32x64xf32, #tpu.memory_space<vmem>>, vector<1x32x64xf32>
    %249 = vector.shape_cast %248 : vector<1x32x64xf32> to vector<32x64xf32>
    %c1_111 = arith.constant 1 : index
    %c0_112 = arith.constant 0 : index
    %c0_113 = arith.constant 0 : index
    %250 = vector.load %arg11[%c1_111, %c0_112, %c0_113] : memref<2x1x64xf32, #tpu.memory_space<vmem>>, vector<1x1x64xf32>
    %251 = vector.shape_cast %250 : vector<1x1x64xf32> to vector<1x64xf32>
    %c1_114 = arith.constant 1 : index
    %c0_115 = arith.constant 0 : index
    %c0_116 = arith.constant 0 : index
    %252 = vector.load %arg12[%c1_114, %c0_115, %c0_116] : memref<2x64x32xf32, #tpu.memory_space<vmem>>, vector<1x64x32xf32>
    %253 = vector.shape_cast %252 : vector<1x64x32xf32> to vector<64x32xf32>
    %c1_117 = arith.constant 1 : index
    %c0_118 = arith.constant 0 : index
    %c0_119 = arith.constant 0 : index
    %254 = vector.load %arg13[%c1_117, %c0_118, %c0_119] : memref<2x1x32xf32, #tpu.memory_space<vmem>>, vector<1x1x32xf32>
    %255 = vector.shape_cast %254 : vector<1x1x32xf32> to vector<1x32xf32>
    %cst_120 = arith.constant dense<0.000000e+00> : vector<8x64xf32>
    %256 = tpu.matmul %247, %249, %cst_120 {dimension_numbers = #tpu.dot_dimension_numbers<[1], [0], [0], [1], [0, 0, 1, 1], [], []>} : vector<8x32xf32>, vector<32x64xf32>, vector<8x64xf32> -> vector<8x64xf32>
    %257 = vector.broadcast %251 : vector<1x64xf32> to vector<8x64xf32>
    %258 = arith.addf %256, %257 : vector<8x64xf32>
    %cst_121 = arith.constant 5.000000e-01 : f32
    %259 = vector.broadcast %cst_121 : f32 to vector<8x64xf32>
    %260 = arith.mulf %259, %258 : vector<8x64xf32>
    %cst_122 = arith.constant 0.707106769 : f32
    %261 = vector.broadcast %cst_122 : f32 to vector<8x64xf32>
    %262 = arith.mulf %258, %261 : vector<8x64xf32>
    %cst_123 = arith.constant 0.000000e+00 : f32
    %263 = vector.broadcast %cst_123 : f32 to vector<8x64xf32>
    %264 = arith.cmpf oge, %262, %263 : vector<8x64xf32>
    %cst_124 = arith.constant 1.000000e+00 : f32
    %cst_125 = arith.constant -1.000000e+00 : f32
    %265 = vector.broadcast %cst_124 : f32 to vector<8x64xf32>
    %266 = vector.broadcast %cst_125 : f32 to vector<8x64xf32>
    %267 = arith.select %264, %265, %266 : vector<8x64xi1>, vector<8x64xf32>
    %268 = math.absf %262 : vector<8x64xf32>
    %cst_126 = arith.constant 0.327591091 : f32
    %269 = vector.broadcast %cst_126 : f32 to vector<8x64xf32>
    %270 = arith.mulf %269, %268 : vector<8x64xf32>
    %cst_127 = arith.constant 1.000000e+00 : f32
    %271 = vector.broadcast %cst_127 : f32 to vector<8x64xf32>
    %272 = arith.addf %271, %270 : vector<8x64xf32>
    %cst_128 = arith.constant 1.000000e+00 : f32
    %273 = vector.broadcast %cst_128 : f32 to vector<8x64xf32>
    %274 = arith.divf %273, %272 : vector<8x64xf32>
    %cst_129 = arith.constant 1.06140542 : f32
    %275 = vector.broadcast %cst_129 : f32 to vector<8x64xf32>
    %276 = arith.mulf %275, %274 : vector<8x64xf32>
    %cst_130 = arith.constant -1.45315206 : f32
    %277 = vector.broadcast %cst_130 : f32 to vector<8x64xf32>
    %278 = arith.addf %276, %277 : vector<8x64xf32>
    %279 = arith.mulf %278, %274 : vector<8x64xf32>
    %cst_131 = arith.constant 1.42141378 : f32
    %280 = vector.broadcast %cst_131 : f32 to vector<8x64xf32>
    %281 = arith.addf %279, %280 : vector<8x64xf32>
    %282 = arith.mulf %281, %274 : vector<8x64xf32>
    %cst_132 = arith.constant -0.284496725 : f32
    %283 = vector.broadcast %cst_132 : f32 to vector<8x64xf32>
    %284 = arith.addf %282, %283 : vector<8x64xf32>
    %285 = arith.mulf %284, %274 : vector<8x64xf32>
    %cst_133 = arith.constant 0.254829586 : f32
    %286 = vector.broadcast %cst_133 : f32 to vector<8x64xf32>
    %287 = arith.addf %285, %286 : vector<8x64xf32>
    %288 = arith.mulf %287, %274 : vector<8x64xf32>
    %cst_134 = arith.constant 0.000000e+00 : f32
    %289 = vector.broadcast %cst_134 : f32 to vector<8x64xf32>
    %290 = arith.subf %289, %268 : vector<8x64xf32>
    %291 = arith.mulf %290, %268 : vector<8x64xf32>
    %292 = math.exp %291 : vector<8x64xf32>
    %293 = arith.mulf %288, %292 : vector<8x64xf32>
    %cst_135 = arith.constant 1.000000e+00 : f32
    %294 = vector.broadcast %cst_135 : f32 to vector<8x64xf32>
    %295 = arith.subf %294, %293 : vector<8x64xf32>
    %296 = arith.mulf %267, %295 : vector<8x64xf32>
    %cst_136 = arith.constant 1.000000e+00 : f32
    %297 = vector.broadcast %cst_136 : f32 to vector<8x64xf32>
    %298 = arith.addf %297, %296 : vector<8x64xf32>
    %299 = arith.mulf %260, %298 : vector<8x64xf32>
    %cst_137 = arith.constant dense<0.000000e+00> : vector<8x32xf32>
    %300 = tpu.matmul %299, %253, %cst_137 {dimension_numbers = #tpu.dot_dimension_numbers<[1], [0], [0], [1], [0, 0, 1, 1], [], []>} : vector<8x64xf32>, vector<64x32xf32>, vector<8x32xf32> -> vector<8x32xf32>
    %301 = vector.broadcast %255 : vector<1x32xf32> to vector<8x32xf32>
    %302 = arith.addf %300, %301 : vector<8x32xf32>
    %303 = arith.addf %247, %302 : vector<8x32xf32>
    %304 = vector.extract_strided_slice %170 {offsets = [2, 0], sizes = [1, 32], strides = [1, 1]} : vector<4x32xf32> to vector<1x32xf32>
    %305 = vector.extract_strided_slice %170 {offsets = [3, 0], sizes = [1, 32], strides = [1, 1]} : vector<4x32xf32> to vector<1x32xf32>
    %cst_138 = arith.constant dense<0.000000e+00> : vector<8xf32>
    %306 = vector.multi_reduction <add>, %303, %cst_138 [1] : vector<8x32xf32> to vector<8xf32>
    %307 = vector.shape_cast %306 : vector<8xf32> to vector<8x1xf32>
    %cst_139 = arith.constant 3.200000e+01 : f32
    %308 = vector.broadcast %cst_139 : f32 to vector<8x1xf32>
    %309 = arith.divf %307, %308 : vector<8x1xf32>
    %310 = vector.broadcast %309 : vector<8x1xf32> to vector<8x32xf32>
    %311 = arith.subf %303, %310 : vector<8x32xf32>
    %312 = arith.mulf %311, %311 : vector<8x32xf32>
    %cst_140 = arith.constant dense<0.000000e+00> : vector<8xf32>
    %313 = vector.multi_reduction <add>, %312, %cst_140 [1] : vector<8x32xf32> to vector<8xf32>
    %314 = vector.shape_cast %313 : vector<8xf32> to vector<8x1xf32>
    %cst_141 = arith.constant 3.200000e+01 : f32
    %315 = vector.broadcast %cst_141 : f32 to vector<8x1xf32>
    %316 = arith.divf %314, %315 : vector<8x1xf32>
    %317 = vector.broadcast %309 : vector<8x1xf32> to vector<8x32xf32>
    %318 = arith.subf %303, %317 : vector<8x32xf32>
    %cst_142 = arith.constant 9.99999974E-6 : f32
    %319 = vector.broadcast %cst_142 : f32 to vector<8x1xf32>
    %320 = arith.addf %316, %319 : vector<8x1xf32>
    %321 = math.rsqrt %320 : vector<8x1xf32>
    %322 = vector.broadcast %321 : vector<8x1xf32> to vector<8x32xf32>
    %323 = arith.mulf %318, %322 : vector<8x32xf32>
    %324 = vector.broadcast %304 : vector<1x32xf32> to vector<8x32xf32>
    %325 = arith.mulf %323, %324 : vector<8x32xf32>
    %326 = vector.broadcast %305 : vector<1x32xf32> to vector<8x32xf32>
    %327 = arith.addf %325, %326 : vector<8x32xf32>
    %c0_143 = arith.constant 0 : index
    %c0_144 = arith.constant 0 : index
    %328 = vector.load %arg29[%c0_143, %c0_144] : memref<2x32xf32, #tpu.memory_space<vmem>>, vector<2x32xf32>
    %329 = vector.extract_strided_slice %328 {offsets = [0, 0], sizes = [1, 32], strides = [1, 1]} : vector<2x32xf32> to vector<1x32xf32>
    %330 = vector.extract_strided_slice %328 {offsets = [1, 0], sizes = [1, 32], strides = [1, 1]} : vector<2x32xf32> to vector<1x32xf32>
    %cst_145 = arith.constant dense<0.000000e+00> : vector<8xf32>
    %331 = vector.multi_reduction <add>, %327, %cst_145 [1] : vector<8x32xf32> to vector<8xf32>
    %332 = vector.shape_cast %331 : vector<8xf32> to vector<8x1xf32>
    %cst_146 = arith.constant 3.200000e+01 : f32
    %333 = vector.broadcast %cst_146 : f32 to vector<8x1xf32>
    %334 = arith.divf %332, %333 : vector<8x1xf32>
    %335 = vector.broadcast %334 : vector<8x1xf32> to vector<8x32xf32>
    %336 = arith.subf %327, %335 : vector<8x32xf32>
    %337 = arith.mulf %336, %336 : vector<8x32xf32>
    %cst_147 = arith.constant dense<0.000000e+00> : vector<8xf32>
    %338 = vector.multi_reduction <add>, %337, %cst_147 [1] : vector<8x32xf32> to vector<8xf32>
    %339 = vector.shape_cast %338 : vector<8xf32> to vector<8x1xf32>
    %cst_148 = arith.constant 3.200000e+01 : f32
    %340 = vector.broadcast %cst_148 : f32 to vector<8x1xf32>
    %341 = arith.divf %339, %340 : vector<8x1xf32>
    %342 = vector.broadcast %334 : vector<8x1xf32> to vector<8x32xf32>
    %343 = arith.subf %327, %342 : vector<8x32xf32>
    %cst_149 = arith.constant 9.99999974E-6 : f32
    %344 = vector.broadcast %cst_149 : f32 to vector<8x1xf32>
    %345 = arith.addf %341, %344 : vector<8x1xf32>
    %346 = math.rsqrt %345 : vector<8x1xf32>
    %347 = vector.broadcast %346 : vector<8x1xf32> to vector<8x32xf32>
    %348 = arith.mulf %343, %347 : vector<8x32xf32>
    %349 = vector.broadcast %329 : vector<1x32xf32> to vector<8x32xf32>
    %350 = arith.mulf %348, %349 : vector<8x32xf32>
    %351 = vector.broadcast %330 : vector<1x32xf32> to vector<8x32xf32>
    %352 = arith.addf %350, %351 : vector<8x32xf32>
    %c0_150 = arith.constant 0 : index
    %c0_151 = arith.constant 0 : index
    %c0_152 = arith.constant 0 : index
    %353 = vector.load %arg24[%c0_150, %c0_151, %c0_152] : memref<2x6x32xf32, #tpu.memory_space<vmem>>, vector<1x6x32xf32>
    %354 = vector.shape_cast %353 : vector<1x6x32xf32> to vector<6x32xf32>
    %c0_153 = arith.constant 0 : index
    %c0_154 = arith.constant 0 : index
    %c0_155 = arith.constant 0 : index
    %355 = vector.load %arg14[%c0_153, %c0_154, %c0_155] : memref<2x32x96xf32, #tpu.memory_space<vmem>>, vector<1x32x96xf32>
    %356 = vector.shape_cast %355 : vector<1x32x96xf32> to vector<32x96xf32>
    %cst_156 = arith.constant dense<0.000000e+00> : vector<8x96xf32>
    %357 = tpu.matmul %9, %356, %cst_156 {dimension_numbers = #tpu.dot_dimension_numbers<[1], [0], [0], [1], [0, 0, 1, 1], [], []>} : vector<8x32xf32>, vector<32x96xf32>, vector<8x96xf32> -> vector<8x96xf32>
    %c0_157 = arith.constant 0 : index
    %c0_158 = arith.constant 0 : index
    %c0_159 = arith.constant 0 : index
    %358 = vector.load %arg15[%c0_157, %c0_158, %c0_159] : memref<2x1x96xf32, #tpu.memory_space<vmem>>, vector<1x1x96xf32>
    %359 = vector.shape_cast %358 : vector<1x1x96xf32> to vector<1x96xf32>
    %360 = vector.broadcast %359 : vector<1x96xf32> to vector<8x96xf32>
    %361 = arith.addf %357, %360 : vector<8x96xf32>
    %c0_160 = arith.constant 0 : index
    %c0_161 = arith.constant 0 : index
    %c0_162 = arith.constant 0 : index
    %362 = vector.load %arg16[%c0_160, %c0_161, %c0_162] : memref<2x32x32xf32, #tpu.memory_space<vmem>>, vector<1x32x32xf32>
    %363 = vector.shape_cast %362 : vector<1x32x32xf32> to vector<32x32xf32>
    %364 = vector.extract_strided_slice %361 {offsets = [0, 0], sizes = [8, 16], strides = [1, 1]} : vector<8x96xf32> to vector<8x16xf32>
    %365 = vector.extract_strided_slice %361 {offsets = [0, 32], sizes = [8, 16], strides = [1, 1]} : vector<8x96xf32> to vector<8x16xf32>
    %366 = vector.extract_strided_slice %361 {offsets = [0, 64], sizes = [8, 16], strides = [1, 1]} : vector<8x96xf32> to vector<8x16xf32>
    %cst_163 = arith.constant dense<0.000000e+00> : vector<8x8xf32>
    %367 = tpu.matmul %364, %365, %cst_163 {dimension_numbers = #tpu.dot_dimension_numbers<[1], [1], [0], [0], [0, 0, 1, 0], [], []>} : vector<8x16xf32>, vector<8x16xf32>, vector<8x8xf32> -> vector<8x8xf32>
    %cst_164 = arith.constant 2.500000e-01 : f32
    %368 = vector.broadcast %cst_164 : f32 to vector<8x8xf32>
    %369 = arith.mulf %367, %368 : vector<8x8xf32>
    %cst_165 = arith.constant dense<0xFF800000> : vector<8xf32>
    %370 = vector.multi_reduction <maximumf>, %369, %cst_165 [1] : vector<8x8xf32> to vector<8xf32>
    %371 = vector.shape_cast %370 : vector<8xf32> to vector<8x1xf32>
    %372 = vector.broadcast %371 : vector<8x1xf32> to vector<8x8xf32>
    %373 = arith.subf %369, %372 : vector<8x8xf32>
    %374 = math.exp %373 : vector<8x8xf32>
    %cst_166 = arith.constant dense<0.000000e+00> : vector<8xf32>
    %375 = vector.multi_reduction <add>, %374, %cst_166 [1] : vector<8x8xf32> to vector<8xf32>
    %376 = vector.shape_cast %375 : vector<8xf32> to vector<8x1xf32>
    %377 = tpu.reciprocal %376 {approx = true} : vector<8x1xf32> -> vector<8x1xf32>
    %378 = vector.broadcast %377 : vector<8x1xf32> to vector<8x8xf32>
    %379 = arith.mulf %374, %378 : vector<8x8xf32>
    %cst_167 = arith.constant dense<0.000000e+00> : vector<8x16xf32>
    %380 = tpu.matmul %379, %366, %cst_167 {dimension_numbers = #tpu.dot_dimension_numbers<[1], [0], [0], [1], [0, 0, 1, 1], [], []>} : vector<8x8xf32>, vector<8x16xf32>, vector<8x16xf32> -> vector<8x16xf32>
    %381 = vector.extract_strided_slice %363 {offsets = [0, 0], sizes = [16, 32], strides = [1, 1]} : vector<32x32xf32> to vector<16x32xf32>
    %cst_168 = arith.constant dense<0.000000e+00> : vector<8x32xf32>
    %382 = tpu.matmul %380, %381, %cst_168 {dimension_numbers = #tpu.dot_dimension_numbers<[1], [0], [0], [1], [0, 0, 1, 1], [], []>} : vector<8x16xf32>, vector<16x32xf32>, vector<8x32xf32> -> vector<8x32xf32>
    %383 = vector.extract_strided_slice %361 {offsets = [0, 16], sizes = [8, 16], strides = [1, 1]} : vector<8x96xf32> to vector<8x16xf32>
    %384 = vector.extract_strided_slice %361 {offsets = [0, 48], sizes = [8, 16], strides = [1, 1]} : vector<8x96xf32> to vector<8x16xf32>
    %385 = vector.extract_strided_slice %361 {offsets = [0, 80], sizes = [8, 16], strides = [1, 1]} : vector<8x96xf32> to vector<8x16xf32>
    %cst_169 = arith.constant dense<0.000000e+00> : vector<8x8xf32>
    %386 = tpu.matmul %383, %384, %cst_169 {dimension_numbers = #tpu.dot_dimension_numbers<[1], [1], [0], [0], [0, 0, 1, 0], [], []>} : vector<8x16xf32>, vector<8x16xf32>, vector<8x8xf32> -> vector<8x8xf32>
    %cst_170 = arith.constant 2.500000e-01 : f32
    %387 = vector.broadcast %cst_170 : f32 to vector<8x8xf32>
    %388 = arith.mulf %386, %387 : vector<8x8xf32>
    %cst_171 = arith.constant dense<0xFF800000> : vector<8xf32>
    %389 = vector.multi_reduction <maximumf>, %388, %cst_171 [1] : vector<8x8xf32> to vector<8xf32>
    %390 = vector.shape_cast %389 : vector<8xf32> to vector<8x1xf32>
    %391 = vector.broadcast %390 : vector<8x1xf32> to vector<8x8xf32>
    %392 = arith.subf %388, %391 : vector<8x8xf32>
    %393 = math.exp %392 : vector<8x8xf32>
    %cst_172 = arith.constant dense<0.000000e+00> : vector<8xf32>
    %394 = vector.multi_reduction <add>, %393, %cst_172 [1] : vector<8x8xf32> to vector<8xf32>
    %395 = vector.shape_cast %394 : vector<8xf32> to vector<8x1xf32>
    %396 = tpu.reciprocal %395 {approx = true} : vector<8x1xf32> -> vector<8x1xf32>
    %397 = vector.broadcast %396 : vector<8x1xf32> to vector<8x8xf32>
    %398 = arith.mulf %393, %397 : vector<8x8xf32>
    %cst_173 = arith.constant dense<0.000000e+00> : vector<8x16xf32>
    %399 = tpu.matmul %398, %385, %cst_173 {dimension_numbers = #tpu.dot_dimension_numbers<[1], [0], [0], [1], [0, 0, 1, 1], [], []>} : vector<8x8xf32>, vector<8x16xf32>, vector<8x16xf32> -> vector<8x16xf32>
    %400 = vector.extract_strided_slice %363 {offsets = [16, 0], sizes = [16, 32], strides = [1, 1]} : vector<32x32xf32> to vector<16x32xf32>
    %cst_174 = arith.constant dense<0.000000e+00> : vector<8x32xf32>
    %401 = tpu.matmul %399, %400, %cst_174 {dimension_numbers = #tpu.dot_dimension_numbers<[1], [0], [0], [1], [0, 0, 1, 1], [], []>} : vector<8x16xf32>, vector<16x32xf32>, vector<8x32xf32> -> vector<8x32xf32>
    %402 = arith.addf %382, %401 : vector<8x32xf32>
    %c0_175 = arith.constant 0 : index
    %c0_176 = arith.constant 0 : index
    %c0_177 = arith.constant 0 : index
    %403 = vector.load %arg17[%c0_175, %c0_176, %c0_177] : memref<2x1x32xf32, #tpu.memory_space<vmem>>, vector<1x1x32xf32>
    %404 = vector.shape_cast %403 : vector<1x1x32xf32> to vector<1x32xf32>
    %405 = vector.broadcast %404 : vector<1x32xf32> to vector<8x32xf32>
    %406 = arith.addf %402, %405 : vector<8x32xf32>
    %407 = arith.addf %9, %406 : vector<8x32xf32>
    %408 = vector.extract_strided_slice %354 {offsets = [0, 0], sizes = [1, 32], strides = [1, 1]} : vector<6x32xf32> to vector<1x32xf32>
    %409 = vector.extract_strided_slice %354 {offsets = [1, 0], sizes = [1, 32], strides = [1, 1]} : vector<6x32xf32> to vector<1x32xf32>
    %cst_178 = arith.constant dense<0.000000e+00> : vector<8xf32>
    %410 = vector.multi_reduction <add>, %407, %cst_178 [1] : vector<8x32xf32> to vector<8xf32>
    %411 = vector.shape_cast %410 : vector<8xf32> to vector<8x1xf32>
    %cst_179 = arith.constant 3.200000e+01 : f32
    %412 = vector.broadcast %cst_179 : f32 to vector<8x1xf32>
    %413 = arith.divf %411, %412 : vector<8x1xf32>
    %414 = vector.broadcast %413 : vector<8x1xf32> to vector<8x32xf32>
    %415 = arith.subf %407, %414 : vector<8x32xf32>
    %416 = arith.mulf %415, %415 : vector<8x32xf32>
    %cst_180 = arith.constant dense<0.000000e+00> : vector<8xf32>
    %417 = vector.multi_reduction <add>, %416, %cst_180 [1] : vector<8x32xf32> to vector<8xf32>
    %418 = vector.shape_cast %417 : vector<8xf32> to vector<8x1xf32>
    %cst_181 = arith.constant 3.200000e+01 : f32
    %419 = vector.broadcast %cst_181 : f32 to vector<8x1xf32>
    %420 = arith.divf %418, %419 : vector<8x1xf32>
    %421 = vector.broadcast %413 : vector<8x1xf32> to vector<8x32xf32>
    %422 = arith.subf %407, %421 : vector<8x32xf32>
    %cst_182 = arith.constant 9.99999974E-6 : f32
    %423 = vector.broadcast %cst_182 : f32 to vector<8x1xf32>
    %424 = arith.addf %420, %423 : vector<8x1xf32>
    %425 = math.rsqrt %424 : vector<8x1xf32>
    %426 = vector.broadcast %425 : vector<8x1xf32> to vector<8x32xf32>
    %427 = arith.mulf %422, %426 : vector<8x32xf32>
    %428 = vector.broadcast %408 : vector<1x32xf32> to vector<8x32xf32>
    %429 = arith.mulf %427, %428 : vector<8x32xf32>
    %430 = vector.broadcast %409 : vector<1x32xf32> to vector<8x32xf32>
    %431 = arith.addf %429, %430 : vector<8x32xf32>
    %c0_183 = arith.constant 0 : index
    %c0_184 = arith.constant 0 : index
    %c0_185 = arith.constant 0 : index
    %432 = vector.load %arg18[%c0_183, %c0_184, %c0_185] : memref<2x32x32xf32, #tpu.memory_space<vmem>>, vector<1x32x32xf32>
    %433 = vector.shape_cast %432 : vector<1x32x32xf32> to vector<32x32xf32>
    %cst_186 = arith.constant dense<0.000000e+00> : vector<8x32xf32>
    %434 = tpu.matmul %431, %433, %cst_186 {dimension_numbers = #tpu.dot_dimension_numbers<[1], [0], [0], [1], [0, 0, 1, 1], [], []>} : vector<8x32xf32>, vector<32x32xf32>, vector<8x32xf32> -> vector<8x32xf32>
    %c0_187 = arith.constant 0 : index
    %c0_188 = arith.constant 0 : index
    %c0_189 = arith.constant 0 : index
    %435 = vector.load %arg19[%c0_187, %c0_188, %c0_189] : memref<2x1x32xf32, #tpu.memory_space<vmem>>, vector<1x1x32xf32>
    %436 = vector.shape_cast %435 : vector<1x1x32xf32> to vector<1x32xf32>
    %437 = vector.broadcast %436 : vector<1x32xf32> to vector<8x32xf32>
    %438 = arith.addf %434, %437 : vector<8x32xf32>
    %c0_190 = arith.constant 0 : index
    %c0_191 = arith.constant 0 : index
    %c0_192 = arith.constant 0 : index
    %439 = vector.load %arg20[%c0_190, %c0_191, %c0_192] : memref<2x32x64xf32, #tpu.memory_space<vmem>>, vector<1x32x64xf32>
    %440 = vector.shape_cast %439 : vector<1x32x64xf32> to vector<32x64xf32>
    %cst_193 = arith.constant dense<0.000000e+00> : vector<8x64xf32>
    %441 = tpu.matmul %352, %440, %cst_193 {dimension_numbers = #tpu.dot_dimension_numbers<[1], [0], [0], [1], [0, 0, 1, 1], [], []>} : vector<8x32xf32>, vector<32x64xf32>, vector<8x64xf32> -> vector<8x64xf32>
    %c0_194 = arith.constant 0 : index
    %c0_195 = arith.constant 0 : index
    %c0_196 = arith.constant 0 : index
    %442 = vector.load %arg21[%c0_194, %c0_195, %c0_196] : memref<2x1x64xf32, #tpu.memory_space<vmem>>, vector<1x1x64xf32>
    %443 = vector.shape_cast %442 : vector<1x1x64xf32> to vector<1x64xf32>
    %444 = vector.broadcast %443 : vector<1x64xf32> to vector<8x64xf32>
    %445 = arith.addf %441, %444 : vector<8x64xf32>
    %c0_197 = arith.constant 0 : index
    %c0_198 = arith.constant 0 : index
    %c0_199 = arith.constant 0 : index
    %446 = vector.load %arg22[%c0_197, %c0_198, %c0_199] : memref<2x32x32xf32, #tpu.memory_space<vmem>>, vector<1x32x32xf32>
    %447 = vector.shape_cast %446 : vector<1x32x32xf32> to vector<32x32xf32>
    %448 = vector.extract_strided_slice %438 {offsets = [0, 0], sizes = [8, 16], strides = [1, 1]} : vector<8x32xf32> to vector<8x16xf32>
    %449 = vector.extract_strided_slice %445 {offsets = [0, 0], sizes = [8, 16], strides = [1, 1]} : vector<8x64xf32> to vector<8x16xf32>
    %450 = vector.extract_strided_slice %445 {offsets = [0, 32], sizes = [8, 16], strides = [1, 1]} : vector<8x64xf32> to vector<8x16xf32>
    %cst_200 = arith.constant dense<0.000000e+00> : vector<8x8xf32>
    %451 = tpu.matmul %448, %449, %cst_200 {dimension_numbers = #tpu.dot_dimension_numbers<[1], [1], [0], [0], [0, 0, 1, 0], [], []>} : vector<8x16xf32>, vector<8x16xf32>, vector<8x8xf32> -> vector<8x8xf32>
    %cst_201 = arith.constant 2.500000e-01 : f32
    %452 = vector.broadcast %cst_201 : f32 to vector<8x8xf32>
    %453 = arith.mulf %451, %452 : vector<8x8xf32>
    %cst_202 = arith.constant dense<0xFF800000> : vector<8xf32>
    %454 = vector.multi_reduction <maximumf>, %453, %cst_202 [1] : vector<8x8xf32> to vector<8xf32>
    %455 = vector.shape_cast %454 : vector<8xf32> to vector<8x1xf32>
    %456 = vector.broadcast %455 : vector<8x1xf32> to vector<8x8xf32>
    %457 = arith.subf %453, %456 : vector<8x8xf32>
    %458 = math.exp %457 : vector<8x8xf32>
    %cst_203 = arith.constant dense<0.000000e+00> : vector<8xf32>
    %459 = vector.multi_reduction <add>, %458, %cst_203 [1] : vector<8x8xf32> to vector<8xf32>
    %460 = vector.shape_cast %459 : vector<8xf32> to vector<8x1xf32>
    %461 = tpu.reciprocal %460 {approx = true} : vector<8x1xf32> -> vector<8x1xf32>
    %462 = vector.broadcast %461 : vector<8x1xf32> to vector<8x8xf32>
    %463 = arith.mulf %458, %462 : vector<8x8xf32>
    %cst_204 = arith.constant dense<0.000000e+00> : vector<8x16xf32>
    %464 = tpu.matmul %463, %450, %cst_204 {dimension_numbers = #tpu.dot_dimension_numbers<[1], [0], [0], [1], [0, 0, 1, 1], [], []>} : vector<8x8xf32>, vector<8x16xf32>, vector<8x16xf32> -> vector<8x16xf32>
    %465 = vector.extract_strided_slice %447 {offsets = [0, 0], sizes = [16, 32], strides = [1, 1]} : vector<32x32xf32> to vector<16x32xf32>
    %cst_205 = arith.constant dense<0.000000e+00> : vector<8x32xf32>
    %466 = tpu.matmul %464, %465, %cst_205 {dimension_numbers = #tpu.dot_dimension_numbers<[1], [0], [0], [1], [0, 0, 1, 1], [], []>} : vector<8x16xf32>, vector<16x32xf32>, vector<8x32xf32> -> vector<8x32xf32>
    %467 = vector.extract_strided_slice %438 {offsets = [0, 16], sizes = [8, 16], strides = [1, 1]} : vector<8x32xf32> to vector<8x16xf32>
    %468 = vector.extract_strided_slice %445 {offsets = [0, 16], sizes = [8, 16], strides = [1, 1]} : vector<8x64xf32> to vector<8x16xf32>
    %469 = vector.extract_strided_slice %445 {offsets = [0, 48], sizes = [8, 16], strides = [1, 1]} : vector<8x64xf32> to vector<8x16xf32>
    %cst_206 = arith.constant dense<0.000000e+00> : vector<8x8xf32>
    %470 = tpu.matmul %467, %468, %cst_206 {dimension_numbers = #tpu.dot_dimension_numbers<[1], [1], [0], [0], [0, 0, 1, 0], [], []>} : vector<8x16xf32>, vector<8x16xf32>, vector<8x8xf32> -> vector<8x8xf32>
    %cst_207 = arith.constant 2.500000e-01 : f32
    %471 = vector.broadcast %cst_207 : f32 to vector<8x8xf32>
    %472 = arith.mulf %470, %471 : vector<8x8xf32>
    %cst_208 = arith.constant dense<0xFF800000> : vector<8xf32>
    %473 = vector.multi_reduction <maximumf>, %472, %cst_208 [1] : vector<8x8xf32> to vector<8xf32>
    %474 = vector.shape_cast %473 : vector<8xf32> to vector<8x1xf32>
    %475 = vector.broadcast %474 : vector<8x1xf32> to vector<8x8xf32>
    %476 = arith.subf %472, %475 : vector<8x8xf32>
    %477 = math.exp %476 : vector<8x8xf32>
    %cst_209 = arith.constant dense<0.000000e+00> : vector<8xf32>
    %478 = vector.multi_reduction <add>, %477, %cst_209 [1] : vector<8x8xf32> to vector<8xf32>
    %479 = vector.shape_cast %478 : vector<8xf32> to vector<8x1xf32>
    %480 = tpu.reciprocal %479 {approx = true} : vector<8x1xf32> -> vector<8x1xf32>
    %481 = vector.broadcast %480 : vector<8x1xf32> to vector<8x8xf32>
    %482 = arith.mulf %477, %481 : vector<8x8xf32>
    %cst_210 = arith.constant dense<0.000000e+00> : vector<8x16xf32>
    %483 = tpu.matmul %482, %469, %cst_210 {dimension_numbers = #tpu.dot_dimension_numbers<[1], [0], [0], [1], [0, 0, 1, 1], [], []>} : vector<8x8xf32>, vector<8x16xf32>, vector<8x16xf32> -> vector<8x16xf32>
    %484 = vector.extract_strided_slice %447 {offsets = [16, 0], sizes = [16, 32], strides = [1, 1]} : vector<32x32xf32> to vector<16x32xf32>
    %cst_211 = arith.constant dense<0.000000e+00> : vector<8x32xf32>
    %485 = tpu.matmul %483, %484, %cst_211 {dimension_numbers = #tpu.dot_dimension_numbers<[1], [0], [0], [1], [0, 0, 1, 1], [], []>} : vector<8x16xf32>, vector<16x32xf32>, vector<8x32xf32> -> vector<8x32xf32>
    %486 = arith.addf %466, %485 : vector<8x32xf32>
    %c0_212 = arith.constant 0 : index
    %c0_213 = arith.constant 0 : index
    %c0_214 = arith.constant 0 : index
    %487 = vector.load %arg23[%c0_212, %c0_213, %c0_214] : memref<2x1x32xf32, #tpu.memory_space<vmem>>, vector<1x1x32xf32>
    %488 = vector.shape_cast %487 : vector<1x1x32xf32> to vector<1x32xf32>
    %489 = vector.broadcast %488 : vector<1x32xf32> to vector<8x32xf32>
    %490 = arith.addf %486, %489 : vector<8x32xf32>
    %491 = arith.addf %431, %490 : vector<8x32xf32>
    %492 = vector.extract_strided_slice %354 {offsets = [2, 0], sizes = [1, 32], strides = [1, 1]} : vector<6x32xf32> to vector<1x32xf32>
    %493 = vector.extract_strided_slice %354 {offsets = [3, 0], sizes = [1, 32], strides = [1, 1]} : vector<6x32xf32> to vector<1x32xf32>
    %cst_215 = arith.constant dense<0.000000e+00> : vector<8xf32>
    %494 = vector.multi_reduction <add>, %491, %cst_215 [1] : vector<8x32xf32> to vector<8xf32>
    %495 = vector.shape_cast %494 : vector<8xf32> to vector<8x1xf32>
    %cst_216 = arith.constant 3.200000e+01 : f32
    %496 = vector.broadcast %cst_216 : f32 to vector<8x1xf32>
    %497 = arith.divf %495, %496 : vector<8x1xf32>
    %498 = vector.broadcast %497 : vector<8x1xf32> to vector<8x32xf32>
    %499 = arith.subf %491, %498 : vector<8x32xf32>
    %500 = arith.mulf %499, %499 : vector<8x32xf32>
    %cst_217 = arith.constant dense<0.000000e+00> : vector<8xf32>
    %501 = vector.multi_reduction <add>, %500, %cst_217 [1] : vector<8x32xf32> to vector<8xf32>
    %502 = vector.shape_cast %501 : vector<8xf32> to vector<8x1xf32>
    %cst_218 = arith.constant 3.200000e+01 : f32
    %503 = vector.broadcast %cst_218 : f32 to vector<8x1xf32>
    %504 = arith.divf %502, %503 : vector<8x1xf32>
    %505 = vector.broadcast %497 : vector<8x1xf32> to vector<8x32xf32>
    %506 = arith.subf %491, %505 : vector<8x32xf32>
    %cst_219 = arith.constant 9.99999974E-6 : f32
    %507 = vector.broadcast %cst_219 : f32 to vector<8x1xf32>
    %508 = arith.addf %504, %507 : vector<8x1xf32>
    %509 = math.rsqrt %508 : vector<8x1xf32>
    %510 = vector.broadcast %509 : vector<8x1xf32> to vector<8x32xf32>
    %511 = arith.mulf %506, %510 : vector<8x32xf32>
    %512 = vector.broadcast %492 : vector<1x32xf32> to vector<8x32xf32>
    %513 = arith.mulf %511, %512 : vector<8x32xf32>
    %514 = vector.broadcast %493 : vector<1x32xf32> to vector<8x32xf32>
    %515 = arith.addf %513, %514 : vector<8x32xf32>
    %c0_220 = arith.constant 0 : index
    %c0_221 = arith.constant 0 : index
    %c0_222 = arith.constant 0 : index
    %516 = vector.load %arg25[%c0_220, %c0_221, %c0_222] : memref<2x32x64xf32, #tpu.memory_space<vmem>>, vector<1x32x64xf32>
    %517 = vector.shape_cast %516 : vector<1x32x64xf32> to vector<32x64xf32>
    %c0_223 = arith.constant 0 : index
    %c0_224 = arith.constant 0 : index
    %c0_225 = arith.constant 0 : index
    %518 = vector.load %arg26[%c0_223, %c0_224, %c0_225] : memref<2x1x64xf32, #tpu.memory_space<vmem>>, vector<1x1x64xf32>
    %519 = vector.shape_cast %518 : vector<1x1x64xf32> to vector<1x64xf32>
    %c0_226 = arith.constant 0 : index
    %c0_227 = arith.constant 0 : index
    %c0_228 = arith.constant 0 : index
    %520 = vector.load %arg27[%c0_226, %c0_227, %c0_228] : memref<2x64x32xf32, #tpu.memory_space<vmem>>, vector<1x64x32xf32>
    %521 = vector.shape_cast %520 : vector<1x64x32xf32> to vector<64x32xf32>
    %c0_229 = arith.constant 0 : index
    %c0_230 = arith.constant 0 : index
    %c0_231 = arith.constant 0 : index
    %522 = vector.load %arg28[%c0_229, %c0_230, %c0_231] : memref<2x1x32xf32, #tpu.memory_space<vmem>>, vector<1x1x32xf32>
    %523 = vector.shape_cast %522 : vector<1x1x32xf32> to vector<1x32xf32>
    %cst_232 = arith.constant dense<0.000000e+00> : vector<8x64xf32>
    %524 = tpu.matmul %515, %517, %cst_232 {dimension_numbers = #tpu.dot_dimension_numbers<[1], [0], [0], [1], [0, 0, 1, 1], [], []>} : vector<8x32xf32>, vector<32x64xf32>, vector<8x64xf32> -> vector<8x64xf32>
    %525 = vector.broadcast %519 : vector<1x64xf32> to vector<8x64xf32>
    %526 = arith.addf %524, %525 : vector<8x64xf32>
    %cst_233 = arith.constant 5.000000e-01 : f32
    %527 = vector.broadcast %cst_233 : f32 to vector<8x64xf32>
    %528 = arith.mulf %527, %526 : vector<8x64xf32>
    %cst_234 = arith.constant 0.707106769 : f32
    %529 = vector.broadcast %cst_234 : f32 to vector<8x64xf32>
    %530 = arith.mulf %526, %529 : vector<8x64xf32>
    %cst_235 = arith.constant 0.000000e+00 : f32
    %531 = vector.broadcast %cst_235 : f32 to vector<8x64xf32>
    %532 = arith.cmpf oge, %530, %531 : vector<8x64xf32>
    %cst_236 = arith.constant 1.000000e+00 : f32
    %cst_237 = arith.constant -1.000000e+00 : f32
    %533 = vector.broadcast %cst_236 : f32 to vector<8x64xf32>
    %534 = vector.broadcast %cst_237 : f32 to vector<8x64xf32>
    %535 = arith.select %532, %533, %534 : vector<8x64xi1>, vector<8x64xf32>
    %536 = math.absf %530 : vector<8x64xf32>
    %cst_238 = arith.constant 0.327591091 : f32
    %537 = vector.broadcast %cst_238 : f32 to vector<8x64xf32>
    %538 = arith.mulf %537, %536 : vector<8x64xf32>
    %cst_239 = arith.constant 1.000000e+00 : f32
    %539 = vector.broadcast %cst_239 : f32 to vector<8x64xf32>
    %540 = arith.addf %539, %538 : vector<8x64xf32>
    %cst_240 = arith.constant 1.000000e+00 : f32
    %541 = vector.broadcast %cst_240 : f32 to vector<8x64xf32>
    %542 = arith.divf %541, %540 : vector<8x64xf32>
    %cst_241 = arith.constant 1.06140542 : f32
    %543 = vector.broadcast %cst_241 : f32 to vector<8x64xf32>
    %544 = arith.mulf %543, %542 : vector<8x64xf32>
    %cst_242 = arith.constant -1.45315206 : f32
    %545 = vector.broadcast %cst_242 : f32 to vector<8x64xf32>
    %546 = arith.addf %544, %545 : vector<8x64xf32>
    %547 = arith.mulf %546, %542 : vector<8x64xf32>
    %cst_243 = arith.constant 1.42141378 : f32
    %548 = vector.broadcast %cst_243 : f32 to vector<8x64xf32>
    %549 = arith.addf %547, %548 : vector<8x64xf32>
    %550 = arith.mulf %549, %542 : vector<8x64xf32>
    %cst_244 = arith.constant -0.284496725 : f32
    %551 = vector.broadcast %cst_244 : f32 to vector<8x64xf32>
    %552 = arith.addf %550, %551 : vector<8x64xf32>
    %553 = arith.mulf %552, %542 : vector<8x64xf32>
    %cst_245 = arith.constant 0.254829586 : f32
    %554 = vector.broadcast %cst_245 : f32 to vector<8x64xf32>
    %555 = arith.addf %553, %554 : vector<8x64xf32>
    %556 = arith.mulf %555, %542 : vector<8x64xf32>
    %cst_246 = arith.constant 0.000000e+00 : f32
    %557 = vector.broadcast %cst_246 : f32 to vector<8x64xf32>
    %558 = arith.subf %557, %536 : vector<8x64xf32>
    %559 = arith.mulf %558, %536 : vector<8x64xf32>
    %560 = math.exp %559 : vector<8x64xf32>
    %561 = arith.mulf %556, %560 : vector<8x64xf32>
    %cst_247 = arith.constant 1.000000e+00 : f32
    %562 = vector.broadcast %cst_247 : f32 to vector<8x64xf32>
    %563 = arith.subf %562, %561 : vector<8x64xf32>
    %564 = arith.mulf %535, %563 : vector<8x64xf32>
    %cst_248 = arith.constant 1.000000e+00 : f32
    %565 = vector.broadcast %cst_248 : f32 to vector<8x64xf32>
    %566 = arith.addf %565, %564 : vector<8x64xf32>
    %567 = arith.mulf %528, %566 : vector<8x64xf32>
    %cst_249 = arith.constant dense<0.000000e+00> : vector<8x32xf32>
    %568 = tpu.matmul %567, %521, %cst_249 {dimension_numbers = #tpu.dot_dimension_numbers<[1], [0], [0], [1], [0, 0, 1, 1], [], []>} : vector<8x64xf32>, vector<64x32xf32>, vector<8x32xf32> -> vector<8x32xf32>
    %569 = vector.broadcast %523 : vector<1x32xf32> to vector<8x32xf32>
    %570 = arith.addf %568, %569 : vector<8x32xf32>
    %571 = arith.addf %515, %570 : vector<8x32xf32>
    %572 = vector.extract_strided_slice %354 {offsets = [4, 0], sizes = [1, 32], strides = [1, 1]} : vector<6x32xf32> to vector<1x32xf32>
    %573 = vector.extract_strided_slice %354 {offsets = [5, 0], sizes = [1, 32], strides = [1, 1]} : vector<6x32xf32> to vector<1x32xf32>
    %cst_250 = arith.constant dense<0.000000e+00> : vector<8xf32>
    %574 = vector.multi_reduction <add>, %571, %cst_250 [1] : vector<8x32xf32> to vector<8xf32>
    %575 = vector.shape_cast %574 : vector<8xf32> to vector<8x1xf32>
    %cst_251 = arith.constant 3.200000e+01 : f32
    %576 = vector.broadcast %cst_251 : f32 to vector<8x1xf32>
    %577 = arith.divf %575, %576 : vector<8x1xf32>
    %578 = vector.broadcast %577 : vector<8x1xf32> to vector<8x32xf32>
    %579 = arith.subf %571, %578 : vector<8x32xf32>
    %580 = arith.mulf %579, %579 : vector<8x32xf32>
    %cst_252 = arith.constant dense<0.000000e+00> : vector<8xf32>
    %581 = vector.multi_reduction <add>, %580, %cst_252 [1] : vector<8x32xf32> to vector<8xf32>
    %582 = vector.shape_cast %581 : vector<8xf32> to vector<8x1xf32>
    %cst_253 = arith.constant 3.200000e+01 : f32
    %583 = vector.broadcast %cst_253 : f32 to vector<8x1xf32>
    %584 = arith.divf %582, %583 : vector<8x1xf32>
    %585 = vector.broadcast %577 : vector<8x1xf32> to vector<8x32xf32>
    %586 = arith.subf %571, %585 : vector<8x32xf32>
    %cst_254 = arith.constant 9.99999974E-6 : f32
    %587 = vector.broadcast %cst_254 : f32 to vector<8x1xf32>
    %588 = arith.addf %584, %587 : vector<8x1xf32>
    %589 = math.rsqrt %588 : vector<8x1xf32>
    %590 = vector.broadcast %589 : vector<8x1xf32> to vector<8x32xf32>
    %591 = arith.mulf %586, %590 : vector<8x32xf32>
    %592 = vector.broadcast %572 : vector<1x32xf32> to vector<8x32xf32>
    %593 = arith.mulf %591, %592 : vector<8x32xf32>
    %594 = vector.broadcast %573 : vector<1x32xf32> to vector<8x32xf32>
    %595 = arith.addf %593, %594 : vector<8x32xf32>
    %c1_255 = arith.constant 1 : index
    %c0_256 = arith.constant 0 : index
    %c0_257 = arith.constant 0 : index
    %596 = vector.load %arg24[%c1_255, %c0_256, %c0_257] : memref<2x6x32xf32, #tpu.memory_space<vmem>>, vector<1x6x32xf32>
    %597 = vector.shape_cast %596 : vector<1x6x32xf32> to vector<6x32xf32>
    %c1_258 = arith.constant 1 : index
    %c0_259 = arith.constant 0 : index
    %c0_260 = arith.constant 0 : index
    %598 = vector.load %arg14[%c1_258, %c0_259, %c0_260] : memref<2x32x96xf32, #tpu.memory_space<vmem>>, vector<1x32x96xf32>
    %599 = vector.shape_cast %598 : vector<1x32x96xf32> to vector<32x96xf32>
    %cst_261 = arith.constant dense<0.000000e+00> : vector<8x96xf32>
    %600 = tpu.matmul %595, %599, %cst_261 {dimension_numbers = #tpu.dot_dimension_numbers<[1], [0], [0], [1], [0, 0, 1, 1], [], []>} : vector<8x32xf32>, vector<32x96xf32>, vector<8x96xf32> -> vector<8x96xf32>
    %c1_262 = arith.constant 1 : index
    %c0_263 = arith.constant 0 : index
    %c0_264 = arith.constant 0 : index
    %601 = vector.load %arg15[%c1_262, %c0_263, %c0_264] : memref<2x1x96xf32, #tpu.memory_space<vmem>>, vector<1x1x96xf32>
    %602 = vector.shape_cast %601 : vector<1x1x96xf32> to vector<1x96xf32>
    %603 = vector.broadcast %602 : vector<1x96xf32> to vector<8x96xf32>
    %604 = arith.addf %600, %603 : vector<8x96xf32>
    %c1_265 = arith.constant 1 : index
    %c0_266 = arith.constant 0 : index
    %c0_267 = arith.constant 0 : index
    %605 = vector.load %arg16[%c1_265, %c0_266, %c0_267] : memref<2x32x32xf32, #tpu.memory_space<vmem>>, vector<1x32x32xf32>
    %606 = vector.shape_cast %605 : vector<1x32x32xf32> to vector<32x32xf32>
    %607 = vector.extract_strided_slice %604 {offsets = [0, 0], sizes = [8, 16], strides = [1, 1]} : vector<8x96xf32> to vector<8x16xf32>
    %608 = vector.extract_strided_slice %604 {offsets = [0, 32], sizes = [8, 16], strides = [1, 1]} : vector<8x96xf32> to vector<8x16xf32>
    %609 = vector.extract_strided_slice %604 {offsets = [0, 64], sizes = [8, 16], strides = [1, 1]} : vector<8x96xf32> to vector<8x16xf32>
    %cst_268 = arith.constant dense<0.000000e+00> : vector<8x8xf32>
    %610 = tpu.matmul %607, %608, %cst_268 {dimension_numbers = #tpu.dot_dimension_numbers<[1], [1], [0], [0], [0, 0, 1, 0], [], []>} : vector<8x16xf32>, vector<8x16xf32>, vector<8x8xf32> -> vector<8x8xf32>
    %cst_269 = arith.constant 2.500000e-01 : f32
    %611 = vector.broadcast %cst_269 : f32 to vector<8x8xf32>
    %612 = arith.mulf %610, %611 : vector<8x8xf32>
    %cst_270 = arith.constant dense<0xFF800000> : vector<8xf32>
    %613 = vector.multi_reduction <maximumf>, %612, %cst_270 [1] : vector<8x8xf32> to vector<8xf32>
    %614 = vector.shape_cast %613 : vector<8xf32> to vector<8x1xf32>
    %615 = vector.broadcast %614 : vector<8x1xf32> to vector<8x8xf32>
    %616 = arith.subf %612, %615 : vector<8x8xf32>
    %617 = math.exp %616 : vector<8x8xf32>
    %cst_271 = arith.constant dense<0.000000e+00> : vector<8xf32>
    %618 = vector.multi_reduction <add>, %617, %cst_271 [1] : vector<8x8xf32> to vector<8xf32>
    %619 = vector.shape_cast %618 : vector<8xf32> to vector<8x1xf32>
    %620 = tpu.reciprocal %619 {approx = true} : vector<8x1xf32> -> vector<8x1xf32>
    %621 = vector.broadcast %620 : vector<8x1xf32> to vector<8x8xf32>
    %622 = arith.mulf %617, %621 : vector<8x8xf32>
    %cst_272 = arith.constant dense<0.000000e+00> : vector<8x16xf32>
    %623 = tpu.matmul %622, %609, %cst_272 {dimension_numbers = #tpu.dot_dimension_numbers<[1], [0], [0], [1], [0, 0, 1, 1], [], []>} : vector<8x8xf32>, vector<8x16xf32>, vector<8x16xf32> -> vector<8x16xf32>
    %624 = vector.extract_strided_slice %606 {offsets = [0, 0], sizes = [16, 32], strides = [1, 1]} : vector<32x32xf32> to vector<16x32xf32>
    %cst_273 = arith.constant dense<0.000000e+00> : vector<8x32xf32>
    %625 = tpu.matmul %623, %624, %cst_273 {dimension_numbers = #tpu.dot_dimension_numbers<[1], [0], [0], [1], [0, 0, 1, 1], [], []>} : vector<8x16xf32>, vector<16x32xf32>, vector<8x32xf32> -> vector<8x32xf32>
    %626 = vector.extract_strided_slice %604 {offsets = [0, 16], sizes = [8, 16], strides = [1, 1]} : vector<8x96xf32> to vector<8x16xf32>
    %627 = vector.extract_strided_slice %604 {offsets = [0, 48], sizes = [8, 16], strides = [1, 1]} : vector<8x96xf32> to vector<8x16xf32>
    %628 = vector.extract_strided_slice %604 {offsets = [0, 80], sizes = [8, 16], strides = [1, 1]} : vector<8x96xf32> to vector<8x16xf32>
    %cst_274 = arith.constant dense<0.000000e+00> : vector<8x8xf32>
    %629 = tpu.matmul %626, %627, %cst_274 {dimension_numbers = #tpu.dot_dimension_numbers<[1], [1], [0], [0], [0, 0, 1, 0], [], []>} : vector<8x16xf32>, vector<8x16xf32>, vector<8x8xf32> -> vector<8x8xf32>
    %cst_275 = arith.constant 2.500000e-01 : f32
    %630 = vector.broadcast %cst_275 : f32 to vector<8x8xf32>
    %631 = arith.mulf %629, %630 : vector<8x8xf32>
    %cst_276 = arith.constant dense<0xFF800000> : vector<8xf32>
    %632 = vector.multi_reduction <maximumf>, %631, %cst_276 [1] : vector<8x8xf32> to vector<8xf32>
    %633 = vector.shape_cast %632 : vector<8xf32> to vector<8x1xf32>
    %634 = vector.broadcast %633 : vector<8x1xf32> to vector<8x8xf32>
    %635 = arith.subf %631, %634 : vector<8x8xf32>
    %636 = math.exp %635 : vector<8x8xf32>
    %cst_277 = arith.constant dense<0.000000e+00> : vector<8xf32>
    %637 = vector.multi_reduction <add>, %636, %cst_277 [1] : vector<8x8xf32> to vector<8xf32>
    %638 = vector.shape_cast %637 : vector<8xf32> to vector<8x1xf32>
    %639 = tpu.reciprocal %638 {approx = true} : vector<8x1xf32> -> vector<8x1xf32>
    %640 = vector.broadcast %639 : vector<8x1xf32> to vector<8x8xf32>
    %641 = arith.mulf %636, %640 : vector<8x8xf32>
    %cst_278 = arith.constant dense<0.000000e+00> : vector<8x16xf32>
    %642 = tpu.matmul %641, %628, %cst_278 {dimension_numbers = #tpu.dot_dimension_numbers<[1], [0], [0], [1], [0, 0, 1, 1], [], []>} : vector<8x8xf32>, vector<8x16xf32>, vector<8x16xf32> -> vector<8x16xf32>
    %643 = vector.extract_strided_slice %606 {offsets = [16, 0], sizes = [16, 32], strides = [1, 1]} : vector<32x32xf32> to vector<16x32xf32>
    %cst_279 = arith.constant dense<0.000000e+00> : vector<8x32xf32>
    %644 = tpu.matmul %642, %643, %cst_279 {dimension_numbers = #tpu.dot_dimension_numbers<[1], [0], [0], [1], [0, 0, 1, 1], [], []>} : vector<8x16xf32>, vector<16x32xf32>, vector<8x32xf32> -> vector<8x32xf32>
    %645 = arith.addf %625, %644 : vector<8x32xf32>
    %c1_280 = arith.constant 1 : index
    %c0_281 = arith.constant 0 : index
    %c0_282 = arith.constant 0 : index
    %646 = vector.load %arg17[%c1_280, %c0_281, %c0_282] : memref<2x1x32xf32, #tpu.memory_space<vmem>>, vector<1x1x32xf32>
    %647 = vector.shape_cast %646 : vector<1x1x32xf32> to vector<1x32xf32>
    %648 = vector.broadcast %647 : vector<1x32xf32> to vector<8x32xf32>
    %649 = arith.addf %645, %648 : vector<8x32xf32>
    %650 = arith.addf %595, %649 : vector<8x32xf32>
    %651 = vector.extract_strided_slice %597 {offsets = [0, 0], sizes = [1, 32], strides = [1, 1]} : vector<6x32xf32> to vector<1x32xf32>
    %652 = vector.extract_strided_slice %597 {offsets = [1, 0], sizes = [1, 32], strides = [1, 1]} : vector<6x32xf32> to vector<1x32xf32>
    %cst_283 = arith.constant dense<0.000000e+00> : vector<8xf32>
    %653 = vector.multi_reduction <add>, %650, %cst_283 [1] : vector<8x32xf32> to vector<8xf32>
    %654 = vector.shape_cast %653 : vector<8xf32> to vector<8x1xf32>
    %cst_284 = arith.constant 3.200000e+01 : f32
    %655 = vector.broadcast %cst_284 : f32 to vector<8x1xf32>
    %656 = arith.divf %654, %655 : vector<8x1xf32>
    %657 = vector.broadcast %656 : vector<8x1xf32> to vector<8x32xf32>
    %658 = arith.subf %650, %657 : vector<8x32xf32>
    %659 = arith.mulf %658, %658 : vector<8x32xf32>
    %cst_285 = arith.constant dense<0.000000e+00> : vector<8xf32>
    %660 = vector.multi_reduction <add>, %659, %cst_285 [1] : vector<8x32xf32> to vector<8xf32>
    %661 = vector.shape_cast %660 : vector<8xf32> to vector<8x1xf32>
    %cst_286 = arith.constant 3.200000e+01 : f32
    %662 = vector.broadcast %cst_286 : f32 to vector<8x1xf32>
    %663 = arith.divf %661, %662 : vector<8x1xf32>
    %664 = vector.broadcast %656 : vector<8x1xf32> to vector<8x32xf32>
    %665 = arith.subf %650, %664 : vector<8x32xf32>
    %cst_287 = arith.constant 9.99999974E-6 : f32
    %666 = vector.broadcast %cst_287 : f32 to vector<8x1xf32>
    %667 = arith.addf %663, %666 : vector<8x1xf32>
    %668 = math.rsqrt %667 : vector<8x1xf32>
    %669 = vector.broadcast %668 : vector<8x1xf32> to vector<8x32xf32>
    %670 = arith.mulf %665, %669 : vector<8x32xf32>
    %671 = vector.broadcast %651 : vector<1x32xf32> to vector<8x32xf32>
    %672 = arith.mulf %670, %671 : vector<8x32xf32>
    %673 = vector.broadcast %652 : vector<1x32xf32> to vector<8x32xf32>
    %674 = arith.addf %672, %673 : vector<8x32xf32>
    %c1_288 = arith.constant 1 : index
    %c0_289 = arith.constant 0 : index
    %c0_290 = arith.constant 0 : index
    %675 = vector.load %arg18[%c1_288, %c0_289, %c0_290] : memref<2x32x32xf32, #tpu.memory_space<vmem>>, vector<1x32x32xf32>
    %676 = vector.shape_cast %675 : vector<1x32x32xf32> to vector<32x32xf32>
    %cst_291 = arith.constant dense<0.000000e+00> : vector<8x32xf32>
    %677 = tpu.matmul %674, %676, %cst_291 {dimension_numbers = #tpu.dot_dimension_numbers<[1], [0], [0], [1], [0, 0, 1, 1], [], []>} : vector<8x32xf32>, vector<32x32xf32>, vector<8x32xf32> -> vector<8x32xf32>
    %c1_292 = arith.constant 1 : index
    %c0_293 = arith.constant 0 : index
    %c0_294 = arith.constant 0 : index
    %678 = vector.load %arg19[%c1_292, %c0_293, %c0_294] : memref<2x1x32xf32, #tpu.memory_space<vmem>>, vector<1x1x32xf32>
    %679 = vector.shape_cast %678 : vector<1x1x32xf32> to vector<1x32xf32>
    %680 = vector.broadcast %679 : vector<1x32xf32> to vector<8x32xf32>
    %681 = arith.addf %677, %680 : vector<8x32xf32>
    %c1_295 = arith.constant 1 : index
    %c0_296 = arith.constant 0 : index
    %c0_297 = arith.constant 0 : index
    %682 = vector.load %arg20[%c1_295, %c0_296, %c0_297] : memref<2x32x64xf32, #tpu.memory_space<vmem>>, vector<1x32x64xf32>
    %683 = vector.shape_cast %682 : vector<1x32x64xf32> to vector<32x64xf32>
    %cst_298 = arith.constant dense<0.000000e+00> : vector<8x64xf32>
    %684 = tpu.matmul %352, %683, %cst_298 {dimension_numbers = #tpu.dot_dimension_numbers<[1], [0], [0], [1], [0, 0, 1, 1], [], []>} : vector<8x32xf32>, vector<32x64xf32>, vector<8x64xf32> -> vector<8x64xf32>
    %c1_299 = arith.constant 1 : index
    %c0_300 = arith.constant 0 : index
    %c0_301 = arith.constant 0 : index
    %685 = vector.load %arg21[%c1_299, %c0_300, %c0_301] : memref<2x1x64xf32, #tpu.memory_space<vmem>>, vector<1x1x64xf32>
    %686 = vector.shape_cast %685 : vector<1x1x64xf32> to vector<1x64xf32>
    %687 = vector.broadcast %686 : vector<1x64xf32> to vector<8x64xf32>
    %688 = arith.addf %684, %687 : vector<8x64xf32>
    %c1_302 = arith.constant 1 : index
    %c0_303 = arith.constant 0 : index
    %c0_304 = arith.constant 0 : index
    %689 = vector.load %arg22[%c1_302, %c0_303, %c0_304] : memref<2x32x32xf32, #tpu.memory_space<vmem>>, vector<1x32x32xf32>
    %690 = vector.shape_cast %689 : vector<1x32x32xf32> to vector<32x32xf32>
    %691 = vector.extract_strided_slice %681 {offsets = [0, 0], sizes = [8, 16], strides = [1, 1]} : vector<8x32xf32> to vector<8x16xf32>
    %692 = vector.extract_strided_slice %688 {offsets = [0, 0], sizes = [8, 16], strides = [1, 1]} : vector<8x64xf32> to vector<8x16xf32>
    %693 = vector.extract_strided_slice %688 {offsets = [0, 32], sizes = [8, 16], strides = [1, 1]} : vector<8x64xf32> to vector<8x16xf32>
    %cst_305 = arith.constant dense<0.000000e+00> : vector<8x8xf32>
    %694 = tpu.matmul %691, %692, %cst_305 {dimension_numbers = #tpu.dot_dimension_numbers<[1], [1], [0], [0], [0, 0, 1, 0], [], []>} : vector<8x16xf32>, vector<8x16xf32>, vector<8x8xf32> -> vector<8x8xf32>
    %cst_306 = arith.constant 2.500000e-01 : f32
    %695 = vector.broadcast %cst_306 : f32 to vector<8x8xf32>
    %696 = arith.mulf %694, %695 : vector<8x8xf32>
    %cst_307 = arith.constant dense<0xFF800000> : vector<8xf32>
    %697 = vector.multi_reduction <maximumf>, %696, %cst_307 [1] : vector<8x8xf32> to vector<8xf32>
    %698 = vector.shape_cast %697 : vector<8xf32> to vector<8x1xf32>
    %699 = vector.broadcast %698 : vector<8x1xf32> to vector<8x8xf32>
    %700 = arith.subf %696, %699 : vector<8x8xf32>
    %701 = math.exp %700 : vector<8x8xf32>
    %cst_308 = arith.constant dense<0.000000e+00> : vector<8xf32>
    %702 = vector.multi_reduction <add>, %701, %cst_308 [1] : vector<8x8xf32> to vector<8xf32>
    %703 = vector.shape_cast %702 : vector<8xf32> to vector<8x1xf32>
    %704 = tpu.reciprocal %703 {approx = true} : vector<8x1xf32> -> vector<8x1xf32>
    %705 = vector.broadcast %704 : vector<8x1xf32> to vector<8x8xf32>
    %706 = arith.mulf %701, %705 : vector<8x8xf32>
    %cst_309 = arith.constant dense<0.000000e+00> : vector<8x16xf32>
    %707 = tpu.matmul %706, %693, %cst_309 {dimension_numbers = #tpu.dot_dimension_numbers<[1], [0], [0], [1], [0, 0, 1, 1], [], []>} : vector<8x8xf32>, vector<8x16xf32>, vector<8x16xf32> -> vector<8x16xf32>
    %708 = vector.extract_strided_slice %690 {offsets = [0, 0], sizes = [16, 32], strides = [1, 1]} : vector<32x32xf32> to vector<16x32xf32>
    %cst_310 = arith.constant dense<0.000000e+00> : vector<8x32xf32>
    %709 = tpu.matmul %707, %708, %cst_310 {dimension_numbers = #tpu.dot_dimension_numbers<[1], [0], [0], [1], [0, 0, 1, 1], [], []>} : vector<8x16xf32>, vector<16x32xf32>, vector<8x32xf32> -> vector<8x32xf32>
    %710 = vector.extract_strided_slice %681 {offsets = [0, 16], sizes = [8, 16], strides = [1, 1]} : vector<8x32xf32> to vector<8x16xf32>
    %711 = vector.extract_strided_slice %688 {offsets = [0, 16], sizes = [8, 16], strides = [1, 1]} : vector<8x64xf32> to vector<8x16xf32>
    %712 = vector.extract_strided_slice %688 {offsets = [0, 48], sizes = [8, 16], strides = [1, 1]} : vector<8x64xf32> to vector<8x16xf32>
    %cst_311 = arith.constant dense<0.000000e+00> : vector<8x8xf32>
    %713 = tpu.matmul %710, %711, %cst_311 {dimension_numbers = #tpu.dot_dimension_numbers<[1], [1], [0], [0], [0, 0, 1, 0], [], []>} : vector<8x16xf32>, vector<8x16xf32>, vector<8x8xf32> -> vector<8x8xf32>
    %cst_312 = arith.constant 2.500000e-01 : f32
    %714 = vector.broadcast %cst_312 : f32 to vector<8x8xf32>
    %715 = arith.mulf %713, %714 : vector<8x8xf32>
    %cst_313 = arith.constant dense<0xFF800000> : vector<8xf32>
    %716 = vector.multi_reduction <maximumf>, %715, %cst_313 [1] : vector<8x8xf32> to vector<8xf32>
    %717 = vector.shape_cast %716 : vector<8xf32> to vector<8x1xf32>
    %718 = vector.broadcast %717 : vector<8x1xf32> to vector<8x8xf32>
    %719 = arith.subf %715, %718 : vector<8x8xf32>
    %720 = math.exp %719 : vector<8x8xf32>
    %cst_314 = arith.constant dense<0.000000e+00> : vector<8xf32>
    %721 = vector.multi_reduction <add>, %720, %cst_314 [1] : vector<8x8xf32> to vector<8xf32>
    %722 = vector.shape_cast %721 : vector<8xf32> to vector<8x1xf32>
    %723 = tpu.reciprocal %722 {approx = true} : vector<8x1xf32> -> vector<8x1xf32>
    %724 = vector.broadcast %723 : vector<8x1xf32> to vector<8x8xf32>
    %725 = arith.mulf %720, %724 : vector<8x8xf32>
    %cst_315 = arith.constant dense<0.000000e+00> : vector<8x16xf32>
    %726 = tpu.matmul %725, %712, %cst_315 {dimension_numbers = #tpu.dot_dimension_numbers<[1], [0], [0], [1], [0, 0, 1, 1], [], []>} : vector<8x8xf32>, vector<8x16xf32>, vector<8x16xf32> -> vector<8x16xf32>
    %727 = vector.extract_strided_slice %690 {offsets = [16, 0], sizes = [16, 32], strides = [1, 1]} : vector<32x32xf32> to vector<16x32xf32>
    %cst_316 = arith.constant dense<0.000000e+00> : vector<8x32xf32>
    %728 = tpu.matmul %726, %727, %cst_316 {dimension_numbers = #tpu.dot_dimension_numbers<[1], [0], [0], [1], [0, 0, 1, 1], [], []>} : vector<8x16xf32>, vector<16x32xf32>, vector<8x32xf32> -> vector<8x32xf32>
    %729 = arith.addf %709, %728 : vector<8x32xf32>
    %c1_317 = arith.constant 1 : index
    %c0_318 = arith.constant 0 : index
    %c0_319 = arith.constant 0 : index
    %730 = vector.load %arg23[%c1_317, %c0_318, %c0_319] : memref<2x1x32xf32, #tpu.memory_space<vmem>>, vector<1x1x32xf32>
    %731 = vector.shape_cast %730 : vector<1x1x32xf32> to vector<1x32xf32>
    %732 = vector.broadcast %731 : vector<1x32xf32> to vector<8x32xf32>
    %733 = arith.addf %729, %732 : vector<8x32xf32>
    %734 = arith.addf %674, %733 : vector<8x32xf32>
    %735 = vector.extract_strided_slice %597 {offsets = [2, 0], sizes = [1, 32], strides = [1, 1]} : vector<6x32xf32> to vector<1x32xf32>
    %736 = vector.extract_strided_slice %597 {offsets = [3, 0], sizes = [1, 32], strides = [1, 1]} : vector<6x32xf32> to vector<1x32xf32>
    %cst_320 = arith.constant dense<0.000000e+00> : vector<8xf32>
    %737 = vector.multi_reduction <add>, %734, %cst_320 [1] : vector<8x32xf32> to vector<8xf32>
    %738 = vector.shape_cast %737 : vector<8xf32> to vector<8x1xf32>
    %cst_321 = arith.constant 3.200000e+01 : f32
    %739 = vector.broadcast %cst_321 : f32 to vector<8x1xf32>
    %740 = arith.divf %738, %739 : vector<8x1xf32>
    %741 = vector.broadcast %740 : vector<8x1xf32> to vector<8x32xf32>
    %742 = arith.subf %734, %741 : vector<8x32xf32>
    %743 = arith.mulf %742, %742 : vector<8x32xf32>
    %cst_322 = arith.constant dense<0.000000e+00> : vector<8xf32>
    %744 = vector.multi_reduction <add>, %743, %cst_322 [1] : vector<8x32xf32> to vector<8xf32>
    %745 = vector.shape_cast %744 : vector<8xf32> to vector<8x1xf32>
    %cst_323 = arith.constant 3.200000e+01 : f32
    %746 = vector.broadcast %cst_323 : f32 to vector<8x1xf32>
    %747 = arith.divf %745, %746 : vector<8x1xf32>
    %748 = vector.broadcast %740 : vector<8x1xf32> to vector<8x32xf32>
    %749 = arith.subf %734, %748 : vector<8x32xf32>
    %cst_324 = arith.constant 9.99999974E-6 : f32
    %750 = vector.broadcast %cst_324 : f32 to vector<8x1xf32>
    %751 = arith.addf %747, %750 : vector<8x1xf32>
    %752 = math.rsqrt %751 : vector<8x1xf32>
    %753 = vector.broadcast %752 : vector<8x1xf32> to vector<8x32xf32>
    %754 = arith.mulf %749, %753 : vector<8x32xf32>
    %755 = vector.broadcast %735 : vector<1x32xf32> to vector<8x32xf32>
    %756 = arith.mulf %754, %755 : vector<8x32xf32>
    %757 = vector.broadcast %736 : vector<1x32xf32> to vector<8x32xf32>
    %758 = arith.addf %756, %757 : vector<8x32xf32>
    %c1_325 = arith.constant 1 : index
    %c0_326 = arith.constant 0 : index
    %c0_327 = arith.constant 0 : index
    %759 = vector.load %arg25[%c1_325, %c0_326, %c0_327] : memref<2x32x64xf32, #tpu.memory_space<vmem>>, vector<1x32x64xf32>
    %760 = vector.shape_cast %759 : vector<1x32x64xf32> to vector<32x64xf32>
    %c1_328 = arith.constant 1 : index
    %c0_329 = arith.constant 0 : index
    %c0_330 = arith.constant 0 : index
    %761 = vector.load %arg26[%c1_328, %c0_329, %c0_330] : memref<2x1x64xf32, #tpu.memory_space<vmem>>, vector<1x1x64xf32>
    %762 = vector.shape_cast %761 : vector<1x1x64xf32> to vector<1x64xf32>
    %c1_331 = arith.constant 1 : index
    %c0_332 = arith.constant 0 : index
    %c0_333 = arith.constant 0 : index
    %763 = vector.load %arg27[%c1_331, %c0_332, %c0_333] : memref<2x64x32xf32, #tpu.memory_space<vmem>>, vector<1x64x32xf32>
    %764 = vector.shape_cast %763 : vector<1x64x32xf32> to vector<64x32xf32>
    %c1_334 = arith.constant 1 : index
    %c0_335 = arith.constant 0 : index
    %c0_336 = arith.constant 0 : index
    %765 = vector.load %arg28[%c1_334, %c0_335, %c0_336] : memref<2x1x32xf32, #tpu.memory_space<vmem>>, vector<1x1x32xf32>
    %766 = vector.shape_cast %765 : vector<1x1x32xf32> to vector<1x32xf32>
    %cst_337 = arith.constant dense<0.000000e+00> : vector<8x64xf32>
    %767 = tpu.matmul %758, %760, %cst_337 {dimension_numbers = #tpu.dot_dimension_numbers<[1], [0], [0], [1], [0, 0, 1, 1], [], []>} : vector<8x32xf32>, vector<32x64xf32>, vector<8x64xf32> -> vector<8x64xf32>
    %768 = vector.broadcast %762 : vector<1x64xf32> to vector<8x64xf32>
    %769 = arith.addf %767, %768 : vector<8x64xf32>
    %cst_338 = arith.constant 5.000000e-01 : f32
    %770 = vector.broadcast %cst_338 : f32 to vector<8x64xf32>
    %771 = arith.mulf %770, %769 : vector<8x64xf32>
    %cst_339 = arith.constant 0.707106769 : f32
    %772 = vector.broadcast %cst_339 : f32 to vector<8x64xf32>
    %773 = arith.mulf %769, %772 : vector<8x64xf32>
    %cst_340 = arith.constant 0.000000e+00 : f32
    %774 = vector.broadcast %cst_340 : f32 to vector<8x64xf32>
    %775 = arith.cmpf oge, %773, %774 : vector<8x64xf32>
    %cst_341 = arith.constant 1.000000e+00 : f32
    %cst_342 = arith.constant -1.000000e+00 : f32
    %776 = vector.broadcast %cst_341 : f32 to vector<8x64xf32>
    %777 = vector.broadcast %cst_342 : f32 to vector<8x64xf32>
    %778 = arith.select %775, %776, %777 : vector<8x64xi1>, vector<8x64xf32>
    %779 = math.absf %773 : vector<8x64xf32>
    %cst_343 = arith.constant 0.327591091 : f32
    %780 = vector.broadcast %cst_343 : f32 to vector<8x64xf32>
    %781 = arith.mulf %780, %779 : vector<8x64xf32>
    %cst_344 = arith.constant 1.000000e+00 : f32
    %782 = vector.broadcast %cst_344 : f32 to vector<8x64xf32>
    %783 = arith.addf %782, %781 : vector<8x64xf32>
    %cst_345 = arith.constant 1.000000e+00 : f32
    %784 = vector.broadcast %cst_345 : f32 to vector<8x64xf32>
    %785 = arith.divf %784, %783 : vector<8x64xf32>
    %cst_346 = arith.constant 1.06140542 : f32
    %786 = vector.broadcast %cst_346 : f32 to vector<8x64xf32>
    %787 = arith.mulf %786, %785 : vector<8x64xf32>
    %cst_347 = arith.constant -1.45315206 : f32
    %788 = vector.broadcast %cst_347 : f32 to vector<8x64xf32>
    %789 = arith.addf %787, %788 : vector<8x64xf32>
    %790 = arith.mulf %789, %785 : vector<8x64xf32>
    %cst_348 = arith.constant 1.42141378 : f32
    %791 = vector.broadcast %cst_348 : f32 to vector<8x64xf32>
    %792 = arith.addf %790, %791 : vector<8x64xf32>
    %793 = arith.mulf %792, %785 : vector<8x64xf32>
    %cst_349 = arith.constant -0.284496725 : f32
    %794 = vector.broadcast %cst_349 : f32 to vector<8x64xf32>
    %795 = arith.addf %793, %794 : vector<8x64xf32>
    %796 = arith.mulf %795, %785 : vector<8x64xf32>
    %cst_350 = arith.constant 0.254829586 : f32
    %797 = vector.broadcast %cst_350 : f32 to vector<8x64xf32>
    %798 = arith.addf %796, %797 : vector<8x64xf32>
    %799 = arith.mulf %798, %785 : vector<8x64xf32>
    %cst_351 = arith.constant 0.000000e+00 : f32
    %800 = vector.broadcast %cst_351 : f32 to vector<8x64xf32>
    %801 = arith.subf %800, %779 : vector<8x64xf32>
    %802 = arith.mulf %801, %779 : vector<8x64xf32>
    %803 = math.exp %802 : vector<8x64xf32>
    %804 = arith.mulf %799, %803 : vector<8x64xf32>
    %cst_352 = arith.constant 1.000000e+00 : f32
    %805 = vector.broadcast %cst_352 : f32 to vector<8x64xf32>
    %806 = arith.subf %805, %804 : vector<8x64xf32>
    %807 = arith.mulf %778, %806 : vector<8x64xf32>
    %cst_353 = arith.constant 1.000000e+00 : f32
    %808 = vector.broadcast %cst_353 : f32 to vector<8x64xf32>
    %809 = arith.addf %808, %807 : vector<8x64xf32>
    %810 = arith.mulf %771, %809 : vector<8x64xf32>
    %cst_354 = arith.constant dense<0.000000e+00> : vector<8x32xf32>
    %811 = tpu.matmul %810, %764, %cst_354 {dimension_numbers = #tpu.dot_dimension_numbers<[1], [0], [0], [1], [0, 0, 1, 1], [], []>} : vector<8x64xf32>, vector<64x32xf32>, vector<8x32xf32> -> vector<8x32xf32>
    %812 = vector.broadcast %766 : vector<1x32xf32> to vector<8x32xf32>
    %813 = arith.addf %811, %812 : vector<8x32xf32>
    %814 = arith.addf %758, %813 : vector<8x32xf32>
    %815 = vector.extract_strided_slice %597 {offsets = [4, 0], sizes = [1, 32], strides = [1, 1]} : vector<6x32xf32> to vector<1x32xf32>
    %816 = vector.extract_strided_slice %597 {offsets = [5, 0], sizes = [1, 32], strides = [1, 1]} : vector<6x32xf32> to vector<1x32xf32>
    %cst_355 = arith.constant dense<0.000000e+00> : vector<8xf32>
    %817 = vector.multi_reduction <add>, %814, %cst_355 [1] : vector<8x32xf32> to vector<8xf32>
    %818 = vector.shape_cast %817 : vector<8xf32> to vector<8x1xf32>
    %cst_356 = arith.constant 3.200000e+01 : f32
    %819 = vector.broadcast %cst_356 : f32 to vector<8x1xf32>
    %820 = arith.divf %818, %819 : vector<8x1xf32>
    %821 = vector.broadcast %820 : vector<8x1xf32> to vector<8x32xf32>
    %822 = arith.subf %814, %821 : vector<8x32xf32>
    %823 = arith.mulf %822, %822 : vector<8x32xf32>
    %cst_357 = arith.constant dense<0.000000e+00> : vector<8xf32>
    %824 = vector.multi_reduction <add>, %823, %cst_357 [1] : vector<8x32xf32> to vector<8xf32>
    %825 = vector.shape_cast %824 : vector<8xf32> to vector<8x1xf32>
    %cst_358 = arith.constant 3.200000e+01 : f32
    %826 = vector.broadcast %cst_358 : f32 to vector<8x1xf32>
    %827 = arith.divf %825, %826 : vector<8x1xf32>
    %828 = vector.broadcast %820 : vector<8x1xf32> to vector<8x32xf32>
    %829 = arith.subf %814, %828 : vector<8x32xf32>
    %cst_359 = arith.constant 9.99999974E-6 : f32
    %830 = vector.broadcast %cst_359 : f32 to vector<8x1xf32>
    %831 = arith.addf %827, %830 : vector<8x1xf32>
    %832 = math.rsqrt %831 : vector<8x1xf32>
    %833 = vector.broadcast %832 : vector<8x1xf32> to vector<8x32xf32>
    %834 = arith.mulf %829, %833 : vector<8x32xf32>
    %835 = vector.broadcast %815 : vector<1x32xf32> to vector<8x32xf32>
    %836 = arith.mulf %834, %835 : vector<8x32xf32>
    %837 = vector.broadcast %816 : vector<1x32xf32> to vector<8x32xf32>
    %838 = arith.addf %836, %837 : vector<8x32xf32>
    %c0_360 = arith.constant 0 : index
    %c0_361 = arith.constant 0 : index
    %839 = vector.load %arg30[%c0_360, %c0_361] : memref<2x32xf32, #tpu.memory_space<vmem>>, vector<2x32xf32>
    %840 = vector.extract_strided_slice %839 {offsets = [0, 0], sizes = [1, 32], strides = [1, 1]} : vector<2x32xf32> to vector<1x32xf32>
    %841 = vector.extract_strided_slice %839 {offsets = [1, 0], sizes = [1, 32], strides = [1, 1]} : vector<2x32xf32> to vector<1x32xf32>
    %cst_362 = arith.constant dense<0.000000e+00> : vector<8xf32>
    %842 = vector.multi_reduction <add>, %838, %cst_362 [1] : vector<8x32xf32> to vector<8xf32>
    %843 = vector.shape_cast %842 : vector<8xf32> to vector<8x1xf32>
    %cst_363 = arith.constant 3.200000e+01 : f32
    %844 = vector.broadcast %cst_363 : f32 to vector<8x1xf32>
    %845 = arith.divf %843, %844 : vector<8x1xf32>
    %846 = vector.broadcast %845 : vector<8x1xf32> to vector<8x32xf32>
    %847 = arith.subf %838, %846 : vector<8x32xf32>
    %848 = arith.mulf %847, %847 : vector<8x32xf32>
    %cst_364 = arith.constant dense<0.000000e+00> : vector<8xf32>
    %849 = vector.multi_reduction <add>, %848, %cst_364 [1] : vector<8x32xf32> to vector<8xf32>
    %850 = vector.shape_cast %849 : vector<8xf32> to vector<8x1xf32>
    %cst_365 = arith.constant 3.200000e+01 : f32
    %851 = vector.broadcast %cst_365 : f32 to vector<8x1xf32>
    %852 = arith.divf %850, %851 : vector<8x1xf32>
    %853 = vector.broadcast %845 : vector<8x1xf32> to vector<8x32xf32>
    %854 = arith.subf %838, %853 : vector<8x32xf32>
    %cst_366 = arith.constant 9.99999974E-6 : f32
    %855 = vector.broadcast %cst_366 : f32 to vector<8x1xf32>
    %856 = arith.addf %852, %855 : vector<8x1xf32>
    %857 = math.rsqrt %856 : vector<8x1xf32>
    %858 = vector.broadcast %857 : vector<8x1xf32> to vector<8x32xf32>
    %859 = arith.mulf %854, %858 : vector<8x32xf32>
    %860 = vector.broadcast %840 : vector<1x32xf32> to vector<8x32xf32>
    %861 = arith.mulf %859, %860 : vector<8x32xf32>
    %862 = vector.broadcast %841 : vector<1x32xf32> to vector<8x32xf32>
    %863 = arith.addf %861, %862 : vector<8x32xf32>
    %c0_367 = arith.constant 0 : index
    %c0_368 = arith.constant 0 : index
    %864 = vector.load %arg31[%c0_367, %c0_368] : memref<32x32xf32, #tpu.memory_space<vmem>>, vector<32x32xf32>
    %cst_369 = arith.constant dense<0.000000e+00> : vector<8x32xf32>
    %865 = tpu.matmul %863, %864, %cst_369 {dimension_numbers = #tpu.dot_dimension_numbers<[1], [0], [0], [1], [0, 0, 1, 1], [], []>} : vector<8x32xf32>, vector<32x32xf32>, vector<8x32xf32> -> vector<8x32xf32>
    %c0_370 = arith.constant 0 : index
    %c0_371 = arith.constant 0 : index
    %866 = vector.load %arg32[%c0_370, %c0_371] : memref<1x32xf32, #tpu.memory_space<vmem>>, vector<1x32xf32>
    %867 = vector.broadcast %866 : vector<1x32xf32> to vector<8x32xf32>
    %868 = arith.addf %865, %867 : vector<8x32xf32>
    %c0_372 = arith.constant 0 : index
    %c0_373 = arith.constant 0 : index
    %869 = vector.load %arg33[%c0_372, %c0_373] : memref<8x32xf32, #tpu.memory_space<vmem>>, vector<8x32xf32>
    tpu.vector_store %arg33[%c0_372, %c0_373], %868 {strides = array<i32>} : memref<8x32xf32, #tpu.memory_space<vmem>>, vector<8x32xf32>,
    return
  }
  func.func @transform_0(%arg0: i32) -> (i32, i32) {
    %c0_i32 = arith.constant 0 : i32
    %c0_i32_0 = arith.constant 0 : i32
    return %arg0, %c0_i32 : i32, i32
  }
  func.func @transform_1(%arg0: i32) -> (i32, i32) {
    %c0_i32 = arith.constant 0 : i32
    %c0_i32_0 = arith.constant 0 : i32
    return %arg0, %c0_i32 : i32, i32
  }
  func.func @transform_2(%arg0: i32) -> (i32, i32) {
    %c0_i32 = arith.constant 0 : i32
    %c0_i32_0 = arith.constant 0 : i32
    %c0_i32_1 = arith.constant 0 : i32
    return %c0_i32, %c0_i32_0 : i32, i32
  }
  func.func @transform_3(%arg0: i32) -> (i32, i32) {
    %c0_i32 = arith.constant 0 : i32
    %c0_i32_0 = arith.constant 0 : i32
    %c0_i32_1 = arith.constant 0 : i32
    return %c0_i32, %c0_i32_0 : i32, i32
  }
  func.func @transform_4(%arg0: i32) -> (i32, i32, i32) {
    %c0_i32 = arith.constant 0 : i32
    %c0_i32_0 = arith.constant 0 : i32
    %c0_i32_1 = arith.constant 0 : i32
    %c0_i32_2 = arith.constant 0 : i32
    return %c0_i32, %c0_i32_0, %c0_i32_1 : i32, i32, i32
  }
  func.func @transform_5(%arg0: i32) -> (i32, i32, i32) {
    %c0_i32 = arith.constant 0 : i32
    %c0_i32_0 = arith.constant 0 : i32
    %c0_i32_1 = arith.constant 0 : i32
    %c0_i32_2 = arith.constant 0 : i32
    return %c0_i32, %c0_i32_0, %c0_i32_1 : i32, i32, i32
  }
  func.func @transform_6(%arg0: i32) -> (i32, i32, i32) {
    %c0_i32 = arith.constant 0 : i32
    %c0_i32_0 = arith.constant 0 : i32
    %c0_i32_1 = arith.constant 0 : i32
    %c0_i32_2 = arith.constant 0 : i32
    return %c0_i32, %c0_i32_0, %c0_i32_1 : i32, i32, i32
  }
  func.func @transform_7(%arg0: i32) -> (i32, i32, i32) {
    %c0_i32 = arith.constant 0 : i32
    %c0_i32_0 = arith.constant 0 : i32
    %c0_i32_1 = arith.constant 0 : i32
    %c0_i32_2 = arith.constant 0 : i32
    return %c0_i32, %c0_i32_0, %c0_i32_1 : i32, i32, i32
  }
  func.func @transform_8(%arg0: i32) -> (i32, i32, i32) {
    %c0_i32 = arith.constant 0 : i32
    %c0_i32_0 = arith.constant 0 : i32
    %c0_i32_1 = arith.constant 0 : i32
    %c0_i32_2 = arith.constant 0 : i32
    return %c0_i32, %c0_i32_0, %c0_i32_1 : i32, i32, i32
  }
  func.func @transform_9(%arg0: i32) -> (i32, i32, i32) {
    %c0_i32 = arith.constant 0 : i32
    %c0_i32_0 = arith.constant 0 : i32
    %c0_i32_1 = arith.constant 0 : i32
    %c0_i32_2 = arith.constant 0 : i32
    return %c0_i32, %c0_i32_0, %c0_i32_1 : i32, i32, i32
  }
  func.func @transform_10(%arg0: i32) -> (i32, i32, i32) {
    %c0_i32 = arith.constant 0 : i32
    %c0_i32_0 = arith.constant 0 : i32
    %c0_i32_1 = arith.constant 0 : i32
    %c0_i32_2 = arith.constant 0 : i32
    return %c0_i32, %c0_i32_0, %c0_i32_1 : i32, i32, i32
  }
  func.func @transform_11(%arg0: i32) -> (i32, i32, i32) {
    %c0_i32 = arith.constant 0 : i32
    %c0_i32_0 = arith.constant 0 : i32
    %c0_i32_1 = arith.constant 0 : i32
    %c0_i32_2 = arith.constant 0 : i32
    return %c0_i32, %c0_i32_0, %c0_i32_1 : i32, i32, i32
  }
  func.func @transform_12(%arg0: i32) -> (i32, i32, i32) {
    %c0_i32 = arith.constant 0 : i32
    %c0_i32_0 = arith.constant 0 : i32
    %c0_i32_1 = arith.constant 0 : i32
    %c0_i32_2 = arith.constant 0 : i32
    return %c0_i32, %c0_i32_0, %c0_i32_1 : i32, i32, i32
  }
  func.func @transform_13(%arg0: i32) -> (i32, i32, i32) {
    %c0_i32 = arith.constant 0 : i32
    %c0_i32_0 = arith.constant 0 : i32
    %c0_i32_1 = arith.constant 0 : i32
    %c0_i32_2 = arith.constant 0 : i32
    return %c0_i32, %c0_i32_0, %c0_i32_1 : i32, i32, i32
  }
  func.func @transform_14(%arg0: i32) -> (i32, i32, i32) {
    %c0_i32 = arith.constant 0 : i32
    %c0_i32_0 = arith.constant 0 : i32
    %c0_i32_1 = arith.constant 0 : i32
    %c0_i32_2 = arith.constant 0 : i32
    return %c0_i32, %c0_i32_0, %c0_i32_1 : i32, i32, i32
  }
  func.func @transform_15(%arg0: i32) -> (i32, i32, i32) {
    %c0_i32 = arith.constant 0 : i32
    %c0_i32_0 = arith.constant 0 : i32
    %c0_i32_1 = arith.constant 0 : i32
    %c0_i32_2 = arith.constant 0 : i32
    return %c0_i32, %c0_i32_0, %c0_i32_1 : i32, i32, i32
  }
  func.func @transform_16(%arg0: i32) -> (i32, i32, i32) {
    %c0_i32 = arith.constant 0 : i32
    %c0_i32_0 = arith.constant 0 : i32
    %c0_i32_1 = arith.constant 0 : i32
    %c0_i32_2 = arith.constant 0 : i32
    return %c0_i32, %c0_i32_0, %c0_i32_1 : i32, i32, i32
  }
  func.func @transform_17(%arg0: i32) -> (i32, i32, i32) {
    %c0_i32 = arith.constant 0 : i32
    %c0_i32_0 = arith.constant 0 : i32
    %c0_i32_1 = arith.constant 0 : i32
    %c0_i32_2 = arith.constant 0 : i32
    return %c0_i32, %c0_i32_0, %c0_i32_1 : i32, i32, i32
  }
  func.func @transform_18(%arg0: i32) -> (i32, i32, i32) {
    %c0_i32 = arith.constant 0 : i32
    %c0_i32_0 = arith.constant 0 : i32
    %c0_i32_1 = arith.constant 0 : i32
    %c0_i32_2 = arith.constant 0 : i32
    return %c0_i32, %c0_i32_0, %c0_i32_1 : i32, i32, i32
  }
  func.func @transform_19(%arg0: i32) -> (i32, i32, i32) {
    %c0_i32 = arith.constant 0 : i32
    %c0_i32_0 = arith.constant 0 : i32
    %c0_i32_1 = arith.constant 0 : i32
    %c0_i32_2 = arith.constant 0 : i32
    return %c0_i32, %c0_i32_0, %c0_i32_1 : i32, i32, i32
  }
  func.func @transform_20(%arg0: i32) -> (i32, i32, i32) {
    %c0_i32 = arith.constant 0 : i32
    %c0_i32_0 = arith.constant 0 : i32
    %c0_i32_1 = arith.constant 0 : i32
    %c0_i32_2 = arith.constant 0 : i32
    return %c0_i32, %c0_i32_0, %c0_i32_1 : i32, i32, i32
  }
  func.func @transform_21(%arg0: i32) -> (i32, i32, i32) {
    %c0_i32 = arith.constant 0 : i32
    %c0_i32_0 = arith.constant 0 : i32
    %c0_i32_1 = arith.constant 0 : i32
    %c0_i32_2 = arith.constant 0 : i32
    return %c0_i32, %c0_i32_0, %c0_i32_1 : i32, i32, i32
  }
  func.func @transform_22(%arg0: i32) -> (i32, i32, i32) {
    %c0_i32 = arith.constant 0 : i32
    %c0_i32_0 = arith.constant 0 : i32
    %c0_i32_1 = arith.constant 0 : i32
    %c0_i32_2 = arith.constant 0 : i32
    return %c0_i32, %c0_i32_0, %c0_i32_1 : i32, i32, i32
  }
  func.func @transform_23(%arg0: i32) -> (i32, i32, i32) {
    %c0_i32 = arith.constant 0 : i32
    %c0_i32_0 = arith.constant 0 : i32
    %c0_i32_1 = arith.constant 0 : i32
    %c0_i32_2 = arith.constant 0 : i32
    return %c0_i32, %c0_i32_0, %c0_i32_1 : i32, i32, i32
  }
  func.func @transform_24(%arg0: i32) -> (i32, i32, i32) {
    %c0_i32 = arith.constant 0 : i32
    %c0_i32_0 = arith.constant 0 : i32
    %c0_i32_1 = arith.constant 0 : i32
    %c0_i32_2 = arith.constant 0 : i32
    return %c0_i32, %c0_i32_0, %c0_i32_1 : i32, i32, i32
  }
  func.func @transform_25(%arg0: i32) -> (i32, i32, i32) {
    %c0_i32 = arith.constant 0 : i32
    %c0_i32_0 = arith.constant 0 : i32
    %c0_i32_1 = arith.constant 0 : i32
    %c0_i32_2 = arith.constant 0 : i32
    return %c0_i32, %c0_i32_0, %c0_i32_1 : i32, i32, i32
  }
  func.func @transform_26(%arg0: i32) -> (i32, i32, i32) {
    %c0_i32 = arith.constant 0 : i32
    %c0_i32_0 = arith.constant 0 : i32
    %c0_i32_1 = arith.constant 0 : i32
    %c0_i32_2 = arith.constant 0 : i32
    return %c0_i32, %c0_i32_0, %c0_i32_1 : i32, i32, i32
  }
  func.func @transform_27(%arg0: i32) -> (i32, i32, i32) {
    %c0_i32 = arith.constant 0 : i32
    %c0_i32_0 = arith.constant 0 : i32
    %c0_i32_1 = arith.constant 0 : i32
    %c0_i32_2 = arith.constant 0 : i32
    return %c0_i32, %c0_i32_0, %c0_i32_1 : i32, i32, i32
  }
  func.func @transform_28(%arg0: i32) -> (i32, i32) {
    %c0_i32 = arith.constant 0 : i32
    %c0_i32_0 = arith.constant 0 : i32
    %c0_i32_1 = arith.constant 0 : i32
    return %c0_i32, %c0_i32_0 : i32, i32
  }
  func.func @transform_29(%arg0: i32) -> (i32, i32) {
    %c0_i32 = arith.constant 0 : i32
    %c0_i32_0 = arith.constant 0 : i32
    %c0_i32_1 = arith.constant 0 : i32
    return %c0_i32, %c0_i32_0 : i32, i32
  }
  func.func @transform_30(%arg0: i32) -> (i32, i32) {
    %c0_i32 = arith.constant 0 : i32
    %c0_i32_0 = arith.constant 0 : i32
    %c0_i32_1 = arith.constant 0 : i32
    return %c0_i32, %c0_i32_0 : i32, i32
  }
  func.func @transform_31(%arg0: i32) -> (i32, i32) {
    %c0_i32 = arith.constant 0 : i32
    %c0_i32_0 = arith.constant 0 : i32
    %c0_i32_1 = arith.constant 0 : i32
    return %c0_i32, %c0_i32_0 : i32, i32
  }
  func.func @transform_32(%arg0: i32) -> (i32, i32) {
    %c0_i32 = arith.constant 0 : i32
    %c0_i32_0 = arith.constant 0 : i32
    return %arg0, %c0_i32 : i32, i32
  }
}

</mosaic_0001>

<llo_original>
// kernel: generator_forward.1
$region0: #{generator_forward.1}
  #allocation0 [shape = 'u32[]', space=smem, size = 0x4, offset = 0x4, fixed_abs, tag = 'smem constant byte address 0x4 - core index']
  #allocation1 [shape = 'u32[144,128]{1,0:T(1,128)}', space=vmem, size = 0x12000, scoped, tag = 'internal scratch']
  %s0 = inlined_call_operand.smem [shape: u32[33], index: -1, kind: input, shape index: {}]
  %s1 = sld [smem:[%s0]]
  %s2 = scalar_lea.smem %s0, 1
  %s3 = sld [smem:[%s2]]
  %s4 = scalar_lea.smem %s0, 2
  %s5 = sld [smem:[%s4]]
  %s6 = scalar_lea.smem %s0, 3
  %s7 = sld [smem:[%s6]]
  %s8 = scalar_lea.smem %s0, 4
  %s9 = sld [smem:[%s8]]
  %s10 = scalar_lea.smem %s0, 5
  %s11 = sld [smem:[%s10]]
  %s12 = scalar_lea.smem %s0, 6
  %s13 = sld [smem:[%s12]]
  %s14 = scalar_lea.smem %s0, 7
  %s15 = sld [smem:[%s14]]
  %s16 = scalar_lea.smem %s0, 8
  %s17 = sld [smem:[%s16]]
  %s18 = scalar_lea.smem %s0, 9
  %s19 = sld [smem:[%s18]]
  %s20 = scalar_lea.smem %s0, 10
  %s21 = sld [smem:[%s20]]
  %s22 = scalar_lea.smem %s0, 11
  %s23 = sld [smem:[%s22]]
  %s24 = scalar_lea.smem %s0, 12
  %s25 = sld [smem:[%s24]]
  %s26 = scalar_lea.smem %s0, 13
  %s27 = sld [smem:[%s26]]
  %s28 = scalar_lea.smem %s0, 14
  %s29 = sld [smem:[%s28]]
  %s30 = scalar_lea.smem %s0, 15
  %s31 = sld [smem:[%s30]]
  %s32 = scalar_lea.smem %s0, 16
  %s33 = sld [smem:[%s32]]
  %s34 = scalar_lea.smem %s0, 17
  %s35 = sld [smem:[%s34]]
  %s36 = scalar_lea.smem %s0, 18
  %s37 = sld [smem:[%s36]]
  %s38 = scalar_lea.smem %s0, 19
  %s39 = sld [smem:[%s38]]
  %s40 = scalar_lea.smem %s0, 20
  %s41 = sld [smem:[%s40]]
  %s42 = scalar_lea.smem %s0, 21
  %s43 = sld [smem:[%s42]]
  %s44 = scalar_lea.smem %s0, 22
  %s45 = sld [smem:[%s44]]
  %s46 = scalar_lea.smem %s0, 23
  %s47 = sld [smem:[%s46]]
  %s48 = scalar_lea.smem %s0, 24
  %s49 = sld [smem:[%s48]]
  %s50 = scalar_lea.smem %s0, 25
  %s51 = sld [smem:[%s50]]
  %s52 = scalar_lea.smem %s0, 26
  %s53 = sld [smem:[%s52]]
  %s54 = scalar_lea.smem %s0, 27
  %s55 = sld [smem:[%s54]]
  %s56 = scalar_lea.smem %s0, 28
  %s57 = sld [smem:[%s56]]
  %s58 = scalar_lea.smem %s0, 29
  %s59 = sld [smem:[%s58]]
  %s60 = scalar_lea.smem %s0, 30
  %s61 = sld [smem:[%s60]]
  %s62 = scalar_lea.smem %s0, 31
  %s63 = sld [smem:[%s62]]
  %s64 = scalar_lea.smem %s0, 32
  %s65 = sld [smem:[%s64]]
  %s66 = sld [smem:[#allocation0]]
  $region161: #{generator_forward.1} parent=0
    _
  %s68 = ssub.s32 1, %s66
  %s69 = scalar_select 0, %s68, %s66
  loop: start=0, step=1, limit=4
  $region2: #{generator_forward.1} parent=0 // loop_pre_header
    _
  $region3: #{generator_forward.1} parent=0 // loop_header
    %s71 = sphi 0, %s75
    %p72 = scmp.ge.s32.totalorder %s71, 4
    %s81 = sphi 0, %s83
    %s84 = sphi 0, %s81
    %s85 = sphi 0, %s84
    %s101 = sphi 0, %s85
    %s107 = sphi 0, %s109
    %s110 = sphi 0, %s107
    %s111 = sphi 0, %s110
    %s127 = sphi 0, %s111
    %s131 = sphi 0, %s131
    %s133 = sphi 0, %s131
    %s134 = sphi 0, %s133
    %s148 = sphi 0, %s134
    %s152 = sphi 0, %s152
    %s154 = sphi 0, %s152
    %s155 = sphi 0, %s154
    %s169 = sphi 0, %s155
    %s173 = sphi 0, %s173
    %s175 = sphi 0, %s173
    %s176 = sphi 0, %s175
    %s190 = sphi 0, %s176
    %s194 = sphi 0, %s194
    %s196 = sphi 0, %s194
    %s197 = sphi 0, %s196
    %s211 = sphi 0, %s197
    %s215 = sphi 0, %s215
    %s217 = sphi 0, %s215
    %s218 = sphi 0, %s217
    %s232 = sphi 0, %s218
    %s236 = sphi 0, %s236
    %s238 = sphi 0, %s236
    %s239 = sphi 0, %s238
    %s253 = sphi 0, %s239
    %s257 = sphi 0, %s257
    %s259 = sphi 0, %s257
    %s260 = sphi 0, %s259
    %s274 = sphi 0, %s260
    %s278 = sphi 0, %s278
    %s280 = sphi 0, %s278
    %s281 = sphi 0, %s280
    %s295 = sphi 0, %s281
    %s299 = sphi 0, %s299
    %s301 = sphi 0, %s299
    %s302 = sphi 0, %s301
    %s316 = sphi 0, %s302
    %s320 = sphi 0, %s320
    %s322 = sphi 0, %s320
    %s323 = sphi 0, %s322
    %s337 = sphi 0, %s323
    %s341 = sphi 0, %s341
    %s343 = sphi 0, %s341
    %s344 = sphi 0, %s343
    %s358 = sphi 0, %s344
    %s362 = sphi 0, %s362
    %s364 = sphi 0, %s362
    %s365 = sphi 0, %s364
    %s379 = sphi 0, %s365
    %s383 = sphi 0, %s383
    %s385 = sphi 0, %s383
    %s386 = sphi 0, %s385
    %s400 = sphi 0, %s386
    %s404 = sphi 0, %s404
    %s406 = sphi 0, %s404
    %s407 = sphi 0, %s406
    %s421 = sphi 0, %s407
    %s425 = sphi 0, %s425
    %s427 = sphi 0, %s425
    %s428 = sphi 0, %s427
    %s442 = sphi 0, %s428
    %s446 = sphi 0, %s446
    %s448 = sphi 0, %s446
    %s449 = sphi 0, %s448
    %s463 = sphi 0, %s449
    %s467 = sphi 0, %s467
    %s469 = sphi 0, %s467
    %s470 = sphi 0, %s469
    %s484 = sphi 0, %s470
    %s488 = sphi 0, %s488
    %s490 = sphi 0, %s488
    %s491 = sphi 0, %s490
    %s505 = sphi 0, %s491
    %s509 = sphi 0, %s509
    %s511 = sphi 0, %s509
    %s512 = sphi 0, %s511
    %s526 = sphi 0, %s512
    %s530 = sphi 0, %s530
    %s532 = sphi 0, %s530
    %s533 = sphi 0, %s532
    %s547 = sphi 0, %s533
    %s551 = sphi 0, %s551
    %s553 = sphi 0, %s551
    %s554 = sphi 0, %s553
    %s568 = sphi 0, %s554
    %s572 = sphi 0, %s572
    %s574 = sphi 0, %s572
    %s575 = sphi 0, %s574
    %s589 = sphi 0, %s575
    %s593 = sphi 0, %s593
    %s595 = sphi 0, %s593
    %s596 = sphi 0, %s595
    %s610 = sphi 0, %s596
    %s614 = sphi 0, %s614
    %s616 = sphi 0, %s614
    %s617 = sphi 0, %s616
    %s631 = sphi 0, %s617
    %s635 = sphi 0, %s635
    %s637 = sphi 0, %s635
    %s638 = sphi 0, %s637
    %s652 = sphi 0, %s638
    %s656 = sphi 0, %s656
    %s658 = sphi 0, %s656
    %s659 = sphi 0, %s658
    %s673 = sphi 0, %s659
    %s677 = sphi 0, %s677
    %s679 = sphi 0, %s677
    %s680 = sphi 0, %s679
    %s694 = sphi 0, %s680
    %s698 = sphi 0, %s698
    %s700 = sphi 0, %s698
    %s701 = sphi 0, %s700
    %s715 = sphi 0, %s701
    %s719 = sphi 0, %s719
    %s721 = sphi 0, %s719
    %s722 = sphi 0, %s721
    %s736 = sphi 0, %s722
    %s740 = sphi 0, %s740
    %s742 = sphi 0, %s740
    %s743 = sphi 0, %s742
    %s757 = sphi 0, %s743
    %s763 = sphi 0, %s765
    %s766 = sphi 0, %s763
    %s767 = sphi 0, %s766
    %s783 = sphi 0, %s767
  $region4: #{generator_forward.1} parent=0 // loop_header_branch
    %74 = sbr.rel (%p72) target = $region8
  $region5: #{generator_forward.1} parent=0 // loop_body
    %s76 = ssub.s32 %s71, 1
    %s77 = ssub.s32 %s71, 2
    %s78 = sadd.s32 %s71, 1
    %s79 = ssub.s32 %s71, %s78
    %p80 = scmp.eq.s32.totalorder %s79, 0
    %s82 = sadd.s32 %s81, 1
    %s83 = scalar_select %p80, %s81, %s82
    %p86 = pneg %p80
    %p87 = scmp.eq.s32.totalorder %s71, 1
    %p88 = por %p86, %p87
    %p89 = scmp.ne.s32.totalorder %s81, %s84
    %p90 = scmp.eq.s32.totalorder %s71, 0
    %p91 = por %p89, %p90
    %p92 = scmp.ne.s32.totalorder %s81, %s84
    %p93 = scmp.eq.s32.totalorder %s76, 1
    %p94 = por %p92, %p93
    %p95 = scmp.ne.s32.totalorder %s84, %s85
    %p96 = scmp.eq.s32.totalorder %s76, 0
    %p97 = por %p95, %p96
    %p98 = scmp.ne.s32.totalorder %s84, %s85
    %p99 = scmp.eq.s32.totalorder %s77, 1
    %p100 = por %p98, %p99
    %p102 = scmp.ne.s32.totalorder %s85, %s101
    %p103 = scmp.eq.s32.totalorder %s77, 0
    %p104 = por %p102, %p103
    %s105 = ssub.s32 %s71, %s78
    %p106 = scmp.eq.s32.totalorder %s105, 0
    %s108 = sadd.s32 %s107, 1
    %s109 = scalar_select %p106, %s107, %s108
    %p112 = pneg %p106
    %p113 = scmp.eq.s32.totalorder %s71, 1
    %p114 = por %p112, %p113
    %p115 = scmp.ne.s32.totalorder %s107, %s110
    %p116 = scmp.eq.s32.totalorder %s71, 0
    %p117 = por %p115, %p116
    %p118 = scmp.ne.s32.totalorder %s107, %s110
    %p119 = scmp.eq.s32.totalorder %s76, 1
    %p120 = por %p118, %p119
    %p121 = scmp.ne.s32.totalorder %s110, %s111
    %p122 = scmp.eq.s32.totalorder %s76, 0
    %p123 = por %p121, %p122
    %p124 = scmp.ne.s32.totalorder %s110, %s111
    %p125 = scmp.eq.s32.totalorder %s77, 1
    %p126 = por %p124, %p125
    %p128 = scmp.ne.s32.totalorder %s111, %s127
    %p129 = scmp.eq.s32.totalorder %s77, 0
    %p130 = por %p128, %p129
    %s132 = sadd.s32 %s131, 1
    %p135 = scmp.eq.s32.totalorder %s71, 1
    %p136 = scmp.ne.s32.totalorder %s131, %s133
    %p137 = scmp.eq.s32.totalorder %s71, 0
    %p138 = por %p136, %p137
    %p139 = scmp.ne.s32.totalorder %s131, %s133
    %p140 = scmp.eq.s32.totalorder %s76, 1
    %p141 = por %p139, %p140
    %p142 = scmp.ne.s32.totalorder %s133, %s134
    %p143 = scmp.eq.s32.totalorder %s76, 0
    %p144 = por %p142, %p143
    %p145 = scmp.ne.s32.totalorder %s133, %s134
    %p146 = scmp.eq.s32.totalorder %s77, 1
    %p147 = por %p145, %p146
    %p149 = scmp.ne.s32.totalorder %s134, %s148
    %p150 = scmp.eq.s32.totalorder %s77, 0
    %p151 = por %p149, %p150
    %s153 = sadd.s32 %s152, 1
    %p156 = scmp.eq.s32.totalorder %s71, 1
    %p157 = scmp.ne.s32.totalorder %s152, %s154
    %p158 = scmp.eq.s32.totalorder %s71, 0
    %p159 = por %p157, %p158
    %p160 = scmp.ne.s32.totalorder %s152, %s154
    %p161 = scmp.eq.s32.totalorder %s76, 1
    %p162 = por %p160, %p161
    %p163 = scmp.ne.s32.totalorder %s154, %s155
    %p164 = scmp.eq.s32.totalorder %s76, 0
    %p165 = por %p163, %p164
    %p166 = scmp.ne.s32.totalorder %s154, %s155
    %p167 = scmp.eq.s32.totalorder %s77, 1
    %p168 = por %p166, %p167
    %p170 = scmp.ne.s32.totalorder %s155, %s169
    %p171 = scmp.eq.s32.totalorder %s77, 0
    %p172 = por %p170, %p171
    %s174 = sadd.s32 %s173, 1
    %p177 = scmp.eq.s32.totalorder %s71, 1
    %p178 = scmp.ne.s32.totalorder %s173, %s175
    %p179 = scmp.eq.s32.totalorder %s71, 0
    %p180 = por %p178, %p179
    %p181 = scmp.ne.s32.totalorder %s173, %s175
    %p182 = scmp.eq.s32.totalorder %s76, 1
    %p183 = por %p181, %p182
    %p184 = scmp.ne.s32.totalorder %s175, %s176
    %p185 = scmp.eq.s32.totalorder %s76, 0
    %p186 = por %p184, %p185
    %p187 = scmp.ne.s32.totalorder %s175, %s176
    %p188 = scmp.eq.s32.totalorder %s77, 1
    %p189 = por %p187, %p188
    %p191 = scmp.ne.s32.totalorder %s176, %s190
    %p192 = scmp.eq.s32.totalorder %s77, 0
    %p193 = por %p191, %p192
    %s195 = sadd.s32 %s194, 1
    %p198 = scmp.eq.s32.totalorder %s71, 1
    %p199 = scmp.ne.s32.totalorder %s194, %s196
    %p200 = scmp.eq.s32.totalorder %s71, 0
    %p201 = por %p199, %p200
    %p202 = scmp.ne.s32.totalorder %s194, %s196
    %p203 = scmp.eq.s32.totalorder %s76, 1
    %p204 = por %p202, %p203
    %p205 = scmp.ne.s32.totalorder %s196, %s197
    %p206 = scmp.eq.s32.totalorder %s76, 0
    %p207 = por %p205, %p206
    %p208 = scmp.ne.s32.totalorder %s196, %s197
    %p209 = scmp.eq.s32.totalorder %s77, 1
    %p210 = por %p208, %p209
    %p212 = scmp.ne.s32.totalorder %s197, %s211
    %p213 = scmp.eq.s32.totalorder %s77, 0
    %p214 = por %p212, %p213
    %s216 = sadd.s32 %s215, 1
    %p219 = scmp.eq.s32.totalorder %s71, 1
    %p220 = scmp.ne.s32.totalorder %s215, %s217
    %p221 = scmp.eq.s32.totalorder %s71, 0
    %p222 = por %p220, %p221
    %p223 = scmp.ne.s32.totalorder %s215, %s217
    %p224 = scmp.eq.s32.totalorder %s76, 1
    %p225 = por %p223, %p224
    %p226 = scmp.ne.s32.totalorder %s217, %s218
    %p227 = scmp.eq.s32.totalorder %s76, 0
    %p228 = por %p226, %p227
    %p229 = scmp.ne.s32.totalorder %s217, %s218
    %p230 = scmp.eq.s32.totalorder %s77, 1
    %p231 = por %p229, %p230
    %p233 = scmp.ne.s32.totalorder %s218, %s232
    %p234 = scmp.eq.s32.totalorder %s77, 0
    %p235 = por %p233, %p234
    %s237 = sadd.s32 %s236, 1
    %p240 = scmp.eq.s32.totalorder %s71, 1
    %p241 = scmp.ne.s32.totalorder %s236, %s238
    %p242 = scmp.eq.s32.totalorder %s71, 0
    %p243 = por %p241, %p242
    %p244 = scmp.ne.s32.totalorder %s236, %s238
    %p245 = scmp.eq.s32.totalorder %s76, 1
    %p246 = por %p244, %p245
    %p247 = scmp.ne.s32.totalorder %s238, %s239
    %p248 = scmp.eq.s32.totalorder %s76, 0
    %p249 = por %p247, %p248
    %p250 = scmp.ne.s32.totalorder %s238, %s239
    %p251 = scmp.eq.s32.totalorder %s77, 1
    %p252 = por %p250, %p251
    %p254 = scmp.ne.s32.totalorder %s239, %s253
    %p255 = scmp.eq.s32.totalorder %s77, 0
    %p256 = por %p254, %p255
    %s258 = sadd.s32 %s257, 1
    %p261 = scmp.eq.s32.totalorder %s71, 1
    %p262 = scmp.ne.s32.totalorder %s257, %s259
    %p263 = scmp.eq.s32.totalorder %s71, 0
    %p264 = por %p262, %p263
    %p265 = scmp.ne.s32.totalorder %s257, %s259
    %p266 = scmp.eq.s32.totalorder %s76, 1
    %p267 = por %p265, %p266
    %p268 = scmp.ne.s32.totalorder %s259, %s260
    %p269 = scmp.eq.s32.totalorder %s76, 0
    %p270 = por %p268, %p269
    %p271 = scmp.ne.s32.totalorder %s259, %s260
    %p272 = scmp.eq.s32.totalorder %s77, 1
    %p273 = por %p271, %p272
    %p275 = scmp.ne.s32.totalorder %s260, %s274
    %p276 = scmp.eq.s32.totalorder %s77, 0
    %p277 = por %p275, %p276
    %s279 = sadd.s32 %s278, 1
    %p282 = scmp.eq.s32.totalorder %s71, 1
    %p283 = scmp.ne.s32.totalorder %s278, %s280
    %p284 = scmp.eq.s32.totalorder %s71, 0
    %p285 = por %p283, %p284
    %p286 = scmp.ne.s32.totalorder %s278, %s280
    %p287 = scmp.eq.s32.totalorder %s76, 1
    %p288 = por %p286, %p287
    %p289 = scmp.ne.s32.totalorder %s280, %s281
    %p290 = scmp.eq.s32.totalorder %s76, 0
    %p291 = por %p289, %p290
    %p292 = scmp.ne.s32.totalorder %s280, %s281
    %p293 = scmp.eq.s32.totalorder %s77, 1
    %p294 = por %p292, %p293
    %p296 = scmp.ne.s32.totalorder %s281, %s295
    %p297 = scmp.eq.s32.totalorder %s77, 0
    %p298 = por %p296, %p297
    %s300 = sadd.s32 %s299, 1
    %p303 = scmp.eq.s32.totalorder %s71, 1
    %p304 = scmp.ne.s32.totalorder %s299, %s301
    %p305 = scmp.eq.s32.totalorder %s71, 0
    %p306 = por %p304, %p305
    %p307 = scmp.ne.s32.totalorder %s299, %s301
    %p308 = scmp.eq.s32.totalorder %s76, 1
    %p309 = por %p307, %p308
    %p310 = scmp.ne.s32.totalorder %s301, %s302
    %p311 = scmp.eq.s32.totalorder %s76, 0
    %p312 = por %p310, %p311
    %p313 = scmp.ne.s32.totalorder %s301, %s302
    %p314 = scmp.eq.s32.totalorder %s77, 1
    %p315 = por %p313, %p314
    %p317 = scmp.ne.s32.totalorder %s302, %s316
    %p318 = scmp.eq.s32.totalorder %s77, 0
    %p319 = por %p317, %p318
    %s321 = sadd.s32 %s320, 1
    %p324 = scmp.eq.s32.totalorder %s71, 1
    %p325 = scmp.ne.s32.totalorder %s320, %s322
    %p326 = scmp.eq.s32.totalorder %s71, 0
    %p327 = por %p325, %p326
    %p328 = scmp.ne.s32.totalorder %s320, %s322
    %p329 = scmp.eq.s32.totalorder %s76, 1
    %p330 = por %p328, %p329
    %p331 = scmp.ne.s32.totalorder %s322, %s323
    %p332 = scmp.eq.s32.totalorder %s76, 0
    %p333 = por %p331, %p332
    %p334 = scmp.ne.s32.totalorder %s322, %s323
    %p335 = scmp.eq.s32.totalorder %s77, 1
    %p336 = por %p334, %p335
    %p338 = scmp.ne.s32.totalorder %s323, %s337
    %p339 = scmp.eq.s32.totalorder %s77, 0
    %p340 = por %p338, %p339
    %s342 = sadd.s32 %s341, 1
    %p345 = scmp.eq.s32.totalorder %s71, 1
    %p346 = scmp.ne.s32.totalorder %s341, %s343
    %p347 = scmp.eq.s32.totalorder %s71, 0
    %p348 = por %p346, %p347
    %p349 = scmp.ne.s32.totalorder %s341, %s343
    %p350 = scmp.eq.s32.totalorder %s76, 1
    %p351 = por %p349, %p350
    %p352 = scmp.ne.s32.totalorder %s343, %s344
    %p353 = scmp.eq.s32.totalorder %s76, 0
    %p354 = por %p352, %p353
    %p355 = scmp.ne.s32.totalorder %s343, %s344
    %p356 = scmp.eq.s32.totalorder %s77, 1
    %p357 = por %p355, %p356
    %p359 = scmp.ne.s32.totalorder %s344, %s358
    %p360 = scmp.eq.s32.totalorder %s77, 0
    %p361 = por %p359, %p360
    %s363 = sadd.s32 %s362, 1
    %p366 = scmp.eq.s32.totalorder %s71, 1
    %p367 = scmp.ne.s32.totalorder %s362, %s364
    %p368 = scmp.eq.s32.totalorder %s71, 0
    %p369 = por %p367, %p368
    %p370 = scmp.ne.s32.totalorder %s362, %s364
    %p371 = scmp.eq.s32.totalorder %s76, 1
    %p372 = por %p370, %p371
    %p373 = scmp.ne.s32.totalorder %s364, %s365
    %p374 = scmp.eq.s32.totalorder %s76, 0
    %p375 = por %p373, %p374
    %p376 = scmp.ne.s32.totalorder %s364, %s365
    %p377 = scmp.eq.s32.totalorder %s77, 1
    %p378 = por %p376, %p377
    %p380 = scmp.ne.s32.totalorder %s365, %s379
    %p381 = scmp.eq.s32.totalorder %s77, 0
    %p382 = por %p380, %p381
    %s384 = sadd.s32 %s383, 1
    %p387 = scmp.eq.s32.totalorder %s71, 1
    %p388 = scmp.ne.s32.totalorder %s383, %s385
    %p389 = scmp.eq.s32.totalorder %s71, 0
    %p390 = por %p388, %p389
    %p391 = scmp.ne.s32.totalorder %s383, %s385
    %p392 = scmp.eq.s32.totalorder %s76, 1
    %p393 = por %p391, %p392
    %p394 = scmp.ne.s32.totalorder %s385, %s386
    %p395 = scmp.eq.s32.totalorder %s76, 0
    %p396 = por %p394, %p395
    %p397 = scmp.ne.s32.totalorder %s385, %s386
    %p398 = scmp.eq.s32.totalorder %s77, 1
    %p399 = por %p397, %p398
    %p401 = scmp.ne.s32.totalorder %s386, %s400
    %p402 = scmp.eq.s32.totalorder %s77, 0
    %p403 = por %p401, %p402
    %s405 = sadd.s32 %s404, 1
    %p408 = scmp.eq.s32.totalorder %s71, 1
    %p409 = scmp.ne.s32.totalorder %s404, %s406
    %p410 = scmp.eq.s32.totalorder %s71, 0
    %p411 = por %p409, %p410
    %p412 = scmp.ne.s32.totalorder %s404, %s406
    %p413 = scmp.eq.s32.totalorder %s76, 1
    %p414 = por %p412, %p413
    %p415 = scmp.ne.s32.totalorder %s406, %s407
    %p416 = scmp.eq.s32.totalorder %s76, 0
    %p417 = por %p415, %p416
    %p418 = scmp.ne.s32.totalorder %s406, %s407
    %p419 = scmp.eq.s32.totalorder %s77, 1
    %p420 = por %p418, %p419
    %p422 = scmp.ne.s32.totalorder %s407, %s421
    %p423 = scmp.eq.s32.totalorder %s77, 0
    %p424 = por %p422, %p423
    %s426 = sadd.s32 %s425, 1
    %p429 = scmp.eq.s32.totalorder %s71, 1
    %p430 = scmp.ne.s32.totalorder %s425, %s427
    %p431 = scmp.eq.s32.totalorder %s71, 0
    %p432 = por %p430, %p431
    %p433 = scmp.ne.s32.totalorder %s425, %s427
    %p434 = scmp.eq.s32.totalorder %s76, 1
    %p435 = por %p433, %p434
    %p436 = scmp.ne.s32.totalorder %s427, %s428
    %p437 = scmp.eq.s32.totalorder %s76, 0
    %p438 = por %p436, %p437
    %p439 = scmp.ne.s32.totalorder %s427, %s428
    %p440 = scmp.eq.s32.totalorder %s77, 1
    %p441 = por %p439, %p440
    %p443 = scmp.ne.s32.totalorder %s428, %s442
    %p444 = scmp.eq.s32.totalorder %s77, 0
    %p445 = por %p443, %p444
    %s447 = sadd.s32 %s446, 1
    %p450 = scmp.eq.s32.totalorder %s71, 1
    %p451 = scmp.ne.s32.totalorder %s446, %s448
    %p452 = scmp.eq.s32.totalorder %s71, 0
    %p453 = por %p451, %p452
    %p454 = scmp.ne.s32.totalorder %s446, %s448
    %p455 = scmp.eq.s32.totalorder %s76, 1
    %p456 = por %p454, %p455
    %p457 = scmp.ne.s32.totalorder %s448, %s449
    %p458 = scmp.eq.s32.totalorder %s76, 0
    %p459 = por %p457, %p458
    %p460 = scmp.ne.s32.totalorder %s448, %s449
    %p461 = scmp.eq.s32.totalorder %s77, 1
    %p462 = por %p460, %p461
    %p464 = scmp.ne.s32.totalorder %s449, %s463
    %p465 = scmp.eq.s32.totalorder %s77, 0
    %p466 = por %p464, %p465
    %s468 = sadd.s32 %s467, 1
    %p471 = scmp.eq.s32.totalorder %s71, 1
    %p472 = scmp.ne.s32.totalorder %s467, %s469
    %p473 = scmp.eq.s32.totalorder %s71, 0
    %p474 = por %p472, %p473
    %p475 = scmp.ne.s32.totalorder %s467, %s469
    %p476 = scmp.eq.s32.totalorder %s76, 1
    %p477 = por %p475, %p476
    %p478 = scmp.ne.s32.totalorder %s469, %s470
    %p479 = scmp.eq.s32.totalorder %s76, 0
    %p480 = por %p478, %p479
    %p481 = scmp.ne.s32.totalorder %s469, %s470
    %p482 = scmp.eq.s32.totalorder %s77, 1
    %p483 = por %p481, %p482
    %p485 = scmp.ne.s32.totalorder %s470, %s484
    %p486 = scmp.eq.s32.totalorder %s77, 0
    %p487 = por %p485, %p486
    %s489 = sadd.s32 %s488, 1
    %p492 = scmp.eq.s32.totalorder %s71, 1
    %p493 = scmp.ne.s32.totalorder %s488, %s490
    %p494 = scmp.eq.s32.totalorder %s71, 0
    %p495 = por %p493, %p494
    %p496 = scmp.ne.s32.totalorder %s488, %s490
    %p497 = scmp.eq.s32.totalorder %s76, 1
    %p498 = por %p496, %p497
    %p499 = scmp.ne.s32.totalorder %s490, %s491
    %p500 = scmp.eq.s32.totalorder %s76, 0
    %p501 = por %p499, %p500
    %p502 = scmp.ne.s32.totalorder %s490, %s491
    %p503 = scmp.eq.s32.totalorder %s77, 1
    %p504 = por %p502, %p503
    %p506 = scmp.ne.s32.totalorder %s491, %s505
    %p507 = scmp.eq.s32.totalorder %s77, 0
    %p508 = por %p506, %p507
    %s510 = sadd.s32 %s509, 1
    %p513 = scmp.eq.s32.totalorder %s71, 1
    %p514 = scmp.ne.s32.totalorder %s509, %s511
    %p515 = scmp.eq.s32.totalorder %s71, 0
    %p516 = por %p514, %p515
    %p517 = scmp.ne.s32.totalorder %s509, %s511
    %p518 = scmp.eq.s32.totalorder %s76, 1
    %p519 = por %p517, %p518
    %p520 = scmp.ne.s32.totalorder %s511, %s512
    %p521 = scmp.eq.s32.totalorder %s76, 0
    %p522 = por %p520, %p521
    %p523 = scmp.ne.s32.totalorder %s511, %s512
    %p524 = scmp.eq.s32.totalorder %s77, 1
    %p525 = por %p523, %p524
    %p527 = scmp.ne.s32.totalorder %s512, %s526
    %p528 = scmp.eq.s32.totalorder %s77, 0
    %p529 = por %p527, %p528
    %s531 = sadd.s32 %s530, 1
    %p534 = scmp.eq.s32.totalorder %s71, 1
    %p535 = scmp.ne.s32.totalorder %s530, %s532
    %p536 = scmp.eq.s32.totalorder %s71, 0
    %p537 = por %p535, %p536
    %p538 = scmp.ne.s32.totalorder %s530, %s532
    %p539 = scmp.eq.s32.totalorder %s76, 1
    %p540 = por %p538, %p539
    %p541 = scmp.ne.s32.totalorder %s532, %s533
    %p542 = scmp.eq.s32.totalorder %s76, 0
    %p543 = por %p541, %p542
    %p544 = scmp.ne.s32.totalorder %s532, %s533
    %p545 = scmp.eq.s32.totalorder %s77, 1
    %p546 = por %p544, %p545
    %p548 = scmp.ne.s32.totalorder %s533, %s547
    %p549 = scmp.eq.s32.totalorder %s77, 0
    %p550 = por %p548, %p549
    %s552 = sadd.s32 %s551, 1
    %p555 = scmp.eq.s32.totalorder %s71, 1
    %p556 = scmp.ne.s32.totalorder %s551, %s553
    %p557 = scmp.eq.s32.totalorder %s71, 0
    %p558 = por %p556, %p557
    %p559 = scmp.ne.s32.totalorder %s551, %s553
    %p560 = scmp.eq.s32.totalorder %s76, 1
    %p561 = por %p559, %p560
    %p562 = scmp.ne.s32.totalorder %s553, %s554
    %p563 = scmp.eq.s32.totalorder %s76, 0
    %p564 = por %p562, %p563
    %p565 = scmp.ne.s32.totalorder %s553, %s554
    %p566 = scmp.eq.s32.totalorder %s77, 1
    %p567 = por %p565, %p566
    %p569 = scmp.ne.s32.totalorder %s554, %s568
    %p570 = scmp.eq.s32.totalorder %s77, 0
    %p571 = por %p569, %p570
    %s573 = sadd.s32 %s572, 1
    %p576 = scmp.eq.s32.totalorder %s71, 1
    %p577 = scmp.ne.s32.totalorder %s572, %s574
    %p578 = scmp.eq.s32.totalorder %s71, 0
    %p579 = por %p577, %p578
    %p580 = scmp.ne.s32.totalorder %s572, %s574
    %p581 = scmp.eq.s32.totalorder %s76, 1
    %p582 = por %p580, %p581
    %p583 = scmp.ne.s32.totalorder %s574, %s575
    %p584 = scmp.eq.s32.totalorder %s76, 0
    %p585 = por %p583, %p584
    %p586 = scmp.ne.s32.totalorder %s574, %s575
    %p587 = scmp.eq.s32.totalorder %s77, 1
    %p588 = por %p586, %p587
    %p590 = scmp.ne.s32.totalorder %s575, %s589
    %p591 = scmp.eq.s32.totalorder %s77, 0
    %p592 = por %p590, %p591
    %s594 = sadd.s32 %s593, 1
    %p597 = scmp.eq.s32.totalorder %s71, 1
    %p598 = scmp.ne.s32.totalorder %s593, %s595
    %p599 = scmp.eq.s32.totalorder %s71, 0
    %p600 = por %p598, %p599
    %p601 = scmp.ne.s32.totalorder %s593, %s595
    %p602 = scmp.eq.s32.totalorder %s76, 1
    %p603 = por %p601, %p602
    %p604 = scmp.ne.s32.totalorder %s595, %s596
    %p605 = scmp.eq.s32.totalorder %s76, 0
    %p606 = por %p604, %p605
    %p607 = scmp.ne.s32.totalorder %s595, %s596
    %p608 = scmp.eq.s32.totalorder %s77, 1
    %p609 = por %p607, %p608
    %p611 = scmp.ne.s32.totalorder %s596, %s610
    %p612 = scmp.eq.s32.totalorder %s77, 0
    %p613 = por %p611, %p612
    %s615 = sadd.s32 %s614, 1
    %p618 = scmp.eq.s32.totalorder %s71, 1
    %p619 = scmp.ne.s32.totalorder %s614, %s616
    %p620 = scmp.eq.s32.totalorder %s71, 0
    %p621 = por %p619, %p620
    %p622 = scmp.ne.s32.totalorder %s614, %s616
    %p623 = scmp.eq.s32.totalorder %s76, 1
    %p624 = por %p622, %p623
    %p625 = scmp.ne.s32.totalorder %s616, %s617
    %p626 = scmp.eq.s32.totalorder %s76, 0
    %p627 = por %p625, %p626
    %p628 = scmp.ne.s32.totalorder %s616, %s617
    %p629 = scmp.eq.s32.totalorder %s77, 1
    %p630 = por %p628, %p629
    %p632 = scmp.ne.s32.totalorder %s617, %s631
    %p633 = scmp.eq.s32.totalorder %s77, 0
    %p634 = por %p632, %p633
    %s636 = sadd.s32 %s635, 1
    %p639 = scmp.eq.s32.totalorder %s71, 1
    %p640 = scmp.ne.s32.totalorder %s635, %s637
    %p641 = scmp.eq.s32.totalorder %s71, 0
    %p642 = por %p640, %p641
    %p643 = scmp.ne.s32.totalorder %s635, %s637
    %p644 = scmp.eq.s32.totalorder %s76, 1
    %p645 = por %p643, %p644
    %p646 = scmp.ne.s32.totalorder %s637, %s638
    %p647 = scmp.eq.s32.totalorder %s76, 0
    %p648 = por %p646, %p647
    %p649 = scmp.ne.s32.totalorder %s637, %s638
    %p650 = scmp.eq.s32.totalorder %s77, 1
    %p651 = por %p649, %p650
    %p653 = scmp.ne.s32.totalorder %s638, %s652
    %p654 = scmp.eq.s32.totalorder %s77, 0
    %p655 = por %p653, %p654
    %s657 = sadd.s32 %s656, 1
    %p660 = scmp.eq.s32.totalorder %s71, 1
    %p661 = scmp.ne.s32.totalorder %s656, %s658
    %p662 = scmp.eq.s32.totalorder %s71, 0
    %p663 = por %p661, %p662
    %p664 = scmp.ne.s32.totalorder %s656, %s658
    %p665 = scmp.eq.s32.totalorder %s76, 1
    %p666 = por %p664, %p665
    %p667 = scmp.ne.s32.totalorder %s658, %s659
    %p668 = scmp.eq.s32.totalorder %s76, 0
    %p669 = por %p667, %p668
    %p670 = scmp.ne.s32.totalorder %s658, %s659
    %p671 = scmp.eq.s32.totalorder %s77, 1
    %p672 = por %p670, %p671
    %p674 = scmp.ne.s32.totalorder %s659, %s673
    %p675 = scmp.eq.s32.totalorder %s77, 0
    %p676 = por %p674, %p675
    %s678 = sadd.s32 %s677, 1
    %p681 = scmp.eq.s32.totalorder %s71, 1
    %p682 = scmp.ne.s32.totalorder %s677, %s679
    %p683 = scmp.eq.s32.totalorder %s71, 0
    %p684 = por %p682, %p683
    %p685 = scmp.ne.s32.totalorder %s677, %s679
    %p686 = scmp.eq.s32.totalorder %s76, 1
    %p687 = por %p685, %p686
    %p688 = scmp.ne.s32.totalorder %s679, %s680
    %p689 = scmp.eq.s32.totalorder %s76, 0
    %p690 = por %p688, %p689
    %p691 = scmp.ne.s32.totalorder %s679, %s680
    %p692 = scmp.eq.s32.totalorder %s77, 1
    %p693 = por %p691, %p692
    %p695 = scmp.ne.s32.totalorder %s680, %s694
    %p696 = scmp.eq.s32.totalorder %s77, 0
    %p697 = por %p695, %p696
    %s699 = sadd.s32 %s698, 1
    %p702 = scmp.eq.s32.totalorder %s71, 1
    %p703 = scmp.ne.s32.totalorder %s698, %s700
    %p704 = scmp.eq.s32.totalorder %s71, 0
    %p705 = por %p703, %p704
    %p706 = scmp.ne.s32.totalorder %s698, %s700
    %p707 = scmp.eq.s32.totalorder %s76, 1
    %p708 = por %p706, %p707
    %p709 = scmp.ne.s32.totalorder %s700, %s701
    %p710 = scmp.eq.s32.totalorder %s76, 0
    %p711 = por %p709, %p710
    %p712 = scmp.ne.s32.totalorder %s700, %s701
    %p713 = scmp.eq.s32.totalorder %s77, 1
    %p714 = por %p712, %p713
    %p716 = scmp.ne.s32.totalorder %s701, %s715
    %p717 = scmp.eq.s32.totalorder %s77, 0
    %p718 = por %p716, %p717
    %s720 = sadd.s32 %s719, 1
    %p723 = scmp.eq.s32.totalorder %s71, 1
    %p724 = scmp.ne.s32.totalorder %s719, %s721
    %p725 = scmp.eq.s32.totalorder %s71, 0
    %p726 = por %p724, %p725
    %p727 = scmp.ne.s32.totalorder %s719, %s721
    %p728 = scmp.eq.s32.totalorder %s76, 1
    %p729 = por %p727, %p728
    %p730 = scmp.ne.s32.totalorder %s721, %s722
    %p731 = scmp.eq.s32.totalorder %s76, 0
    %p732 = por %p730, %p731
    %p733 = scmp.ne.s32.totalorder %s721, %s722
    %p734 = scmp.eq.s32.totalorder %s77, 1
    %p735 = por %p733, %p734
    %p737 = scmp.ne.s32.totalorder %s722, %s736
    %p738 = scmp.eq.s32.totalorder %s77, 0
    %p739 = por %p737, %p738
    %s741 = sadd.s32 %s740, 1
    %p744 = scmp.eq.s32.totalorder %s71, 1
    %p745 = scmp.ne.s32.totalorder %s740, %s742
    %p746 = scmp.eq.s32.totalorder %s71, 0
    %p747 = por %p745, %p746
    %p748 = scmp.ne.s32.totalorder %s740, %s742
    %p749 = scmp.eq.s32.totalorder %s76, 1
    %p750 = por %p748, %p749
    %p751 = scmp.ne.s32.totalorder %s742, %s743
    %p752 = scmp.eq.s32.totalorder %s76, 0
    %p753 = por %p751, %p752
    %p754 = scmp.ne.s32.totalorder %s742, %s743
    %p755 = scmp.eq.s32.totalorder %s77, 1
    %p756 = por %p754, %p755
    %p758 = scmp.ne.s32.totalorder %s743, %s757
    %p759 = scmp.eq.s32.totalorder %s77, 0
    %p760 = por %p758, %p759
    %s761 = ssub.s32 %s71, %s78
    %p762 = scmp.eq.s32.totalorder %s761, 0
    %s764 = sadd.s32 %s763, 1
    %s765 = scalar_select %p762, %s763, %s764
    %p768 = pneg %p762
    %p769 = scmp.eq.s32.totalorder %s71, 1
    %p770 = por %p768, %p769
    %p771 = scmp.ne.s32.totalorder %s763, %s766
    %p772 = scmp.eq.s32.totalorder %s71, 0
    %p773 = por %p771, %p772
    %p774 = scmp.ne.s32.totalorder %s763, %s766
    %p775 = scmp.eq.s32.totalorder %s76, 1
    %p776 = por %p774, %p775
    %p777 = scmp.ne.s32.totalorder %s766, %s767
    %p778 = scmp.eq.s32.totalorder %s76, 0
    %p779 = por %p777, %p778
    %p780 = scmp.ne.s32.totalorder %s766, %s767
    %p781 = scmp.eq.s32.totalorder %s77, 1
    %p782 = por %p780, %p781
    %p784 = scmp.ne.s32.totalorder %s767, %s783
    %p785 = scmp.eq.s32.totalorder %s77, 0
    %p786 = por %p784, %p785
    %p787 = scmp.le.s32.totalorder 1, %s71
    %p788 = scmp.lt.s32.totalorder %s71, 3
    %p789 = pnand %p787, %p788
    %p790 = pneg %p789
    // Predicated region
    $region9: #{generator_forward.1} parent=5 // pred_check
      _
    $region10: #{generator_forward.1} parent=5 // pred_check_branch
      %792 = sbr.rel (%p789) target = $region12
    $region11: #{generator_forward.1} parent=5 // pred_region
      %s793 = ssub.s32 %s71, 1
      // Predicated region
      $region13: #{generator_forward.1} parent=11 // pred_check
        %p794 = pneg %p144
      $region14: #{generator_forward.1} parent=11 // pred_check_branch
        %796 = sbr.rel (%p794) target = $region16
      $region15: #{generator_forward.1} parent=11 // pred_region
        _
      $region16: #{generator_forward.1} parent=11 // pred_fallthru
        _
      // Predicated region
      $region17: #{generator_forward.1} parent=11 // pred_check
        %p797 = pneg %p165
      $region18: #{generator_forward.1} parent=11 // pred_check_branch
        %799 = sbr.rel (%p797) target = $region20
      $region19: #{generator_forward.1} parent=11 // pred_region
        _
      $region20: #{generator_forward.1} parent=11 // pred_fallthru
        _
      // Predicated region
      $region21: #{generator_forward.1} parent=11 // pred_check
        %p800 = pneg %p186
      $region22: #{generator_forward.1} parent=11 // pred_check_branch
        %802 = sbr.rel (%p800) target = $region24
      $region23: #{generator_forward.1} parent=11 // pred_region
        _
      $region24: #{generator_forward.1} parent=11 // pred_fallthru
        _
      // Predicated region
      $region25: #{generator_forward.1} parent=11 // pred_check
        %p803 = pneg %p207
      $region26: #{generator_forward.1} parent=11 // pred_check_branch
        %805 = sbr.rel (%p803) target = $region28
      $region27: #{generator_forward.1} parent=11 // pred_region
        _
      $region28: #{generator_forward.1} parent=11 // pred_fallthru
        _
      // Predicated region
      $region29: #{generator_forward.1} parent=11 // pred_check
        %p806 = pneg %p228
      $region30: #{generator_forward.1} parent=11 // pred_check_branch
        %808 = sbr.rel (%p806) target = $region32
      $region31: #{generator_forward.1} parent=11 // pred_region
        _
      $region32: #{generator_forward.1} parent=11 // pred_fallthru
        _
      // Predicated region
      $region33: #{generator_forward.1} parent=11 // pred_check
        %p809 = pneg %p249
      $region34: #{generator_forward.1} parent=11 // pred_check_branch
        %811 = sbr.rel (%p809) target = $region36
      $region35: #{generator_forward.1} parent=11 // pred_region
        _
      $region36: #{generator_forward.1} parent=11 // pred_fallthru
        _
      // Predicated region
      $region37: #{generator_forward.1} parent=11 // pred_check
        %p812 = pneg %p270
      $region38: #{generator_forward.1} parent=11 // pred_check_branch
        %814 = sbr.rel (%p812) target = $region40
      $region39: #{generator_forward.1} parent=11 // pred_region
        _
      $region40: #{generator_forward.1} parent=11 // pred_fallthru
        _
      // Predicated region
      $region41: #{generator_forward.1} parent=11 // pred_check
        %p815 = pneg %p291
      $region42: #{generator_forward.1} parent=11 // pred_check_branch
        %817 = sbr.rel (%p815) target = $region44
      $region43: #{generator_forward.1} parent=11 // pred_region
        _
      $region44: #{generator_forward.1} parent=11 // pred_fallthru
        _
      // Predicated region
      $region45: #{generator_forward.1} parent=11 // pred_check
        %p818 = pneg %p312
      $region46: #{generator_forward.1} parent=11 // pred_check_branch
        %820 = sbr.rel (%p818) target = $region48
      $region47: #{generator_forward.1} parent=11 // pred_region
        _
      $region48: #{generator_forward.1} parent=11 // pred_fallthru
        _
      // Predicated region
      $region49: #{generator_forward.1} parent=11 // pred_check
        %p821 = pneg %p333
      $region50: #{generator_forward.1} parent=11 // pred_check_branch
        %823 = sbr.rel (%p821) target = $region52
      $region51: #{generator_forward.1} parent=11 // pred_region
        _
      $region52: #{generator_forward.1} parent=11 // pred_fallthru
        _
      // Predicated region
      $region53: #{generator_forward.1} parent=11 // pred_check
        %p824 = pneg %p354
      $region54: #{generator_forward.1} parent=11 // pred_check_branch
        %826 = sbr.rel (%p824) target = $region56
      $region55: #{generator_forward.1} parent=11 // pred_region
        _
      $region56: #{generator_forward.1} parent=11 // pred_fallthru
        _
      // Predicated region
      $region57: #{generator_forward.1} parent=11 // pred_check
        %p827 = pneg %p375
      $region58: #{generator_forward.1} parent=11 // pred_check_branch
        %829 = sbr.rel (%p827) target = $region60
      $region59: #{generator_forward.1} parent=11 // pred_region
        _
      $region60: #{generator_forward.1} parent=11 // pred_fallthru
        _
      // Predicated region
      $region61: #{generator_forward.1} parent=11 // pred_check
        %p830 = pneg %p396
      $region62: #{generator_forward.1} parent=11 // pred_check_branch
        %832 = sbr.rel (%p830) target = $region64
      $region63: #{generator_forward.1} parent=11 // pred_region
        _
      $region64: #{generator_forward.1} parent=11 // pred_fallthru
        _
      // Predicated region
      $region65: #{generator_forward.1} parent=11 // pred_check
        %p833 = pneg %p417
      $region66: #{generator_forward.1} parent=11 // pred_check_branch
        %835 = sbr.rel (%p833) target = $region68
      $region67: #{generator_forward.1} parent=11 // pred_region
        _
      $region68: #{generator_forward.1} parent=11 // pred_fallthru
        _
      // Predicated region
      $region69: #{generator_forward.1} parent=11 // pred_check
        %p836 = pneg %p438
      $region70: #{generator_forward.1} parent=11 // pred_check_branch
        %838 = sbr.rel (%p836) target = $region72
      $region71: #{generator_forward.1} parent=11 // pred_region
        _
      $region72: #{generator_forward.1} parent=11 // pred_fallthru
        _
      // Predicated region
      $region73: #{generator_forward.1} parent=11 // pred_check
        %p839 = pneg %p459
      $region74: #{generator_forward.1} parent=11 // pred_check_branch
        %841 = sbr.rel (%p839) target = $region76
      $region75: #{generator_forward.1} parent=11 // pred_region
        _
      $region76: #{generator_forward.1} parent=11 // pred_fallthru
        _
      // Predicated region
      $region77: #{generator_forward.1} parent=11 // pred_check
        %p842 = pneg %p480
      $region78: #{generator_forward.1} parent=11 // pred_check_branch
        %844 = sbr.rel (%p842) target = $region80
      $region79: #{generator_forward.1} parent=11 // pred_region
        _
      $region80: #{generator_forward.1} parent=11 // pred_fallthru
        _
      // Predicated region
      $region81: #{generator_forward.1} parent=11 // pred_check
        %p845 = pneg %p501
      $region82: #{generator_forward.1} parent=11 // pred_check_branch
        %847 = sbr.rel (%p845) target = $region84
      $region83: #{generator_forward.1} parent=11 // pred_region
        _
      $region84: #{generator_forward.1} parent=11 // pred_fallthru
        _
      // Predicated region
      $region85: #{generator_forward.1} parent=11 // pred_check
        %p848 = pneg %p522
      $region86: #{generator_forward.1} parent=11 // pred_check_branch
        %850 = sbr.rel (%p848) target = $region88
      $region87: #{generator_forward.1} parent=11 // pred_region
        _
      $region88: #{generator_forward.1} parent=11 // pred_fallthru
        _
      // Predicated region
      $region89: #{generator_forward.1} parent=11 // pred_check
        %p851 = pneg %p543
      $region90: #{generator_forward.1} parent=11 // pred_check_branch
        %853 = sbr.rel (%p851) target = $region92
      $region91: #{generator_forward.1} parent=11 // pred_region
        _
      $region92: #{generator_forward.1} parent=11 // pred_fallthru
        _
      // Predicated region
      $region93: #{generator_forward.1} parent=11 // pred_check
        %p854 = pneg %p564
      $region94: #{generator_forward.1} parent=11 // pred_check_branch
        %856 = sbr.rel (%p854) target = $region96
      $region95: #{generator_forward.1} parent=11 // pred_region
        _
      $region96: #{generator_forward.1} parent=11 // pred_fallthru
        _
      // Predicated region
      $region97: #{generator_forward.1} parent=11 // pred_check
        %p857 = pneg %p585
      $region98: #{generator_forward.1} parent=11 // pred_check_branch
        %859 = sbr.rel (%p857) target = $region100
      $region99: #{generator_forward.1} parent=11 // pred_region
        _
      $region100: #{generator_forward.1} parent=11 // pred_fallthru
        _
      // Predicated region
      $region101: #{generator_forward.1} parent=11 // pred_check
        %p860 = pneg %p606
      $region102: #{generator_forward.1} parent=11 // pred_check_branch
        %862 = sbr.rel (%p860) target = $region104
      $region103: #{generator_forward.1} parent=11 // pred_region
        _
      $region104: #{generator_forward.1} parent=11 // pred_fallthru
        _
      // Predicated region
      $region105: #{generator_forward.1} parent=11 // pred_check
        %p863 = pneg %p627
      $region106: #{generator_forward.1} parent=11 // pred_check_branch
        %865 = sbr.rel (%p863) target = $region108
      $region107: #{generator_forward.1} parent=11 // pred_region
        _
      $region108: #{generator_forward.1} parent=11 // pred_fallthru
        _
      // Predicated region
      $region109: #{generator_forward.1} parent=11 // pred_check
        %p866 = pneg %p648
      $region110: #{generator_forward.1} parent=11 // pred_check_branch
        %868 = sbr.rel (%p866) target = $region112
      $region111: #{generator_forward.1} parent=11 // pred_region
        _
      $region112: #{generator_forward.1} parent=11 // pred_fallthru
        _
      // Predicated region
      $region113: #{generator_forward.1} parent=11 // pred_check
        %p869 = pneg %p669
      $region114: #{generator_forward.1} parent=11 // pred_check_branch
        %871 = sbr.rel (%p869) target = $region116
      $region115: #{generator_forward.1} parent=11 // pred_region
        _
      $region116: #{generator_forward.1} parent=11 // pred_fallthru
        _
      // Predicated region
      $region117: #{generator_forward.1} parent=11 // pred_check
        %p872 = pneg %p690
      $region118: #{generator_forward.1} parent=11 // pred_check_branch
        %874 = sbr.rel (%p872) target = $region120
      $region119: #{generator_forward.1} parent=11 // pred_region
        _
      $region120: #{generator_forward.1} parent=11 // pred_fallthru
        _
      // Predicated region
      $region121: #{generator_forward.1} parent=11 // pred_check
        %p875 = pneg %p711
      $region122: #{generator_forward.1} parent=11 // pred_check_branch
        %877 = sbr.rel (%p875) target = $region124
      $region123: #{generator_forward.1} parent=11 // pred_region
        _
      $region124: #{generator_forward.1} parent=11 // pred_fallthru
        _
      // Predicated region
      $region125: #{generator_forward.1} parent=11 // pred_check
        %p878 = pneg %p732
      $region126: #{generator_forward.1} parent=11 // pred_check_branch
        %880 = sbr.rel (%p878) target = $region128
      $region127: #{generator_forward.1} parent=11 // pred_region
        _
      $region128: #{generator_forward.1} parent=11 // pred_fallthru
        _
      // Predicated region
      $region129: #{generator_forward.1} parent=11 // pred_check
        %p881 = pneg %p753
      $region130: #{generator_forward.1} parent=11 // pred_check_branch
        %883 = sbr.rel (%p881) target = $region132
      $region131: #{generator_forward.1} parent=11 // pred_region
        _
      $region132: #{generator_forward.1} parent=11 // pred_fallthru
        _
    $region12: #{generator_forward.1} parent=5 // pred_fallthru
      _
    %p884 = scmp.lt.s32.totalorder %s71, 2
    // Predicated region
    $region133: #{generator_forward.1} parent=5 // pred_check
      %p885 = pneg %p884
    $region134: #{generator_forward.1} parent=5 // pred_check_branch
      %887 = sbr.rel (%p885) target = $region136
    $region135: #{generator_forward.1} parent=5 // pred_region
      // Predicated region
      $region137: #{generator_forward.1} parent=135 // pred_check
        %p888 = pneg %p91
      $region138: #{generator_forward.1} parent=135 // pred_check_branch
        %890 = sbr.rel (%p888) target = $region140
      $region139: #{generator_forward.1} parent=135 // pred_region
        %p891 = scmp.lt.s32.totalorder %s71, 1
        %s892 = scalar_select %p891, %s71, 1
        %s893 = smul.addr %s892, 8
        %s894 = scalar_lea.vmem %s1, %s893
      $region140: #{generator_forward.1} parent=135 // pred_fallthru
        _
      // Predicated region
      $region141: #{generator_forward.1} parent=135 // pred_check
        %p895 = pneg %p117
      $region142: #{generator_forward.1} parent=135 // pred_check_branch
        %897 = sbr.rel (%p895) target = $region144
      $region143: #{generator_forward.1} parent=135 // pred_region
        %p898 = scmp.lt.s32.totalorder %s71, 1
        %s899 = scalar_select %p898, %s71, 1
        %s900 = smul.addr %s899, 8
        %s901 = scalar_lea.vmem %s3, %s900
      $region144: #{generator_forward.1} parent=135 // pred_fallthru
        _
    $region136: #{generator_forward.1} parent=5 // pred_fallthru
      _
    %p902 = scmp.le.s32.totalorder 1, %s71
    %p903 = scmp.lt.s32.totalorder %s71, 3
    %p904 = pnand %p902, %p903
    %p905 = pneg %p904
    // Predicated region
    $region145: #{generator_forward.1} parent=5 // pred_check
      _
    $region146: #{generator_forward.1} parent=5 // pred_check_branch
      %907 = sbr.rel (%p904) target = $region148
    $region147: #{generator_forward.1} parent=5 // pred_region
      %s908 = ssub.s32 %s71, 1
      %p909 = scmp.lt.s32.totalorder %s76, 1
      %s910 = scalar_select %p909, %s76, 1
      %s911 = smul.addr %s910, 8
      %s912 = scalar_lea.vmem %s1, %s911
      %p913 = pneg %p97
      %p914 = pneg %p94
      %p915 = scmp.lt.s32.totalorder %s76, 1
      %s916 = scalar_select %p915, %s76, 1
      %s917 = smul.addr %s916, 8
      %s918 = scalar_lea.vmem %s3, %s917
      %p919 = pneg %p123
      %p920 = pneg %p120
      %p921 = pneg %p144
      %p922 = pneg %p141
      %p923 = pneg %p165
      %p924 = pneg %p162
      %p925 = pneg %p186
      %p926 = pneg %p183
      %p927 = pneg %p207
      %p928 = pneg %p204
      %p929 = pneg %p228
      %p930 = pneg %p225
      %p931 = pneg %p249
      %p932 = pneg %p246
      %p933 = pneg %p270
      %p934 = pneg %p267
      %p935 = pneg %p291
      %p936 = pneg %p288
      %p937 = pneg %p312
      %p938 = pneg %p309
      %p939 = pneg %p333
      %p940 = pneg %p330
      %p941 = pneg %p354
      %p942 = pneg %p351
      %p943 = pneg %p375
      %p944 = pneg %p372
      %p945 = pneg %p396
      %p946 = pneg %p393
      %p947 = pneg %p417
      %p948 = pneg %p414
      %p949 = pneg %p438
      %p950 = pneg %p435
      %p951 = pneg %p459
      %p952 = pneg %p456
      %p953 = pneg %p480
      %p954 = pneg %p477
      %p955 = pneg %p501
      %p956 = pneg %p498
      %p957 = pneg %p522
      %p958 = pneg %p519
      %p959 = pneg %p543
      %p960 = pneg %p540
      %p961 = pneg %p564
      %p962 = pneg %p561
      %p963 = pneg %p585
      %p964 = pneg %p582
      %p965 = pneg %p606
      %p966 = pneg %p603
      %p967 = pneg %p627
      %p968 = pneg %p624
      %p969 = pneg %p648
      %p970 = pneg %p645
      %p971 = pneg %p669
      %p972 = pneg %p666
      %p973 = pneg %p690
      %p974 = pneg %p687
      %p975 = pneg %p711
      %p976 = pneg %p708
      %p977 = pneg %p732
      %p978 = pneg %p729
      %p979 = pneg %p753
      %p980 = pneg %p750
      %p981 = pneg %p779
      %p982 = pneg %p776
      %p983 = scmp.lt.s32.totalorder %s76, 1
      %s984 = scalar_select %p983, %s76, 1
      %s985 = smul.addr %s984, 8
      %s986 = scalar_lea.vmem %s65, %s985
      %p987 = scmp.lt.s32.totalorder %s76, 1
      %s988 = scalar_select %p987, %s76, 1
      %s989 = smul.addr %s988, 8
      %s990 = scalar_lea.vmem %s1, %s989
      %p991 = scmp.lt.s32.totalorder %s76, 1
      %s992 = scalar_select %p991, %s76, 1
      %s993 = smul.addr %s992, 8
      %s994 = scalar_lea.vmem %s3, %s993
      %p995 = scmp.lt.s32.totalorder %s76, 1
      %s996 = scalar_select %p995, %s76, 1
      %s997 = smul.addr %s996, 8
      %s998 = scalar_lea.vmem %s65, %s997
      %v999 = vld [vmem:[%s990] sm:$0xff]
      %v1000 = vmul.f32 %v999, 5.656854
      %v1001 = vld [vmem:[%s5] sm:$0xff]
      %v1002 = vadd.f32 %v1000, %v1001
      %v1003 = vld [vmem:[%s994] sm:$0xff]
      %v1004 = vmul.f32 %v1003, 5.656854
      %v1005 = vld [vmem:[%s7] sm:$0xff]
      %v1006 = vadd.f32 %v1004, %v1005
      %v1007 = vld [vmem:[%s17] sm:$0xf]
      %v1008 = vld [vmem:[%s9] sm:$0xff]
      %v1009 = vld [vmem:[%s9 + $0x8] sm:$0xff]
      %v1010 = vld [vmem:[%s9 + $0x10] sm:$0xff]
      %v1011 = vld [vmem:[%s9 + $0x18] sm:$0xff]
      %v1012 = vld [vmem:[%s11] sm:$0x1]
      %v1014 = vlaneseq
      %v1015 = vshrl.u32 %v1014, 7
      %v1016 = vsub.s32 0, %v1015
      %v1017 = vrot.slane %v1012, %v1016
      %vm1019 = vcmask 261120
      %v1021 = vsel %vm1019, %v1002, 0
      %1023 = vmatprep.subr.mxu0 0.0
      %1024 = vmatpush1.msra.mxu0 0.0
      %1025 = vmatprep.subr.mxu0 0.0
      %1026 = vmatpush1.msra.mxu0 0.0
      %1027 = vmatprep.subr.mxu0 0.0
      %1028 = vmatpush1.msra.mxu0 0.0
      %1029 = vmatprep.subr.mxu0 0.0
      %1030 = vmatpush1.msra.mxu0 0.0
      %1031 = vmatprep.subr.mxu0 0.0
      %1032 = vmatpush1.msra.mxu0 0.0
      %1033 = vmatprep.subr.mxu0 0.0
      %1034 = vmatpush1.msra.mxu0 0.0
      %1035 = vmatprep.subr.mxu0 0.0
      %1036 = vmatpush1.msra.mxu0 0.0
      %1037 = vmatprep.subr.mxu0 0.0
      %1038 = vmatpush1.msra.mxu0 0.0
      %1039 = vmatprep.subr.mxu0 0.0
      %1040 = vmatpush1.msra.mxu0 0.0
      %1041 = vmatprep.subr.mxu0 0.0
      %1042 = vmatpush1.msra.mxu0 0.0
      %1043 = vmatprep.subr.mxu0 0.0
      %1044 = vmatpush1.msra.mxu0 0.0
      %1045 = vmatprep.subr.mxu0 0.0
      %1046 = vmatpush1.msra.mxu0 0.0
      %1047 = vmatprep.subr.mxu0 0.0
      %1048 = vmatpush1.msra.mxu0 %v1011
      %1049 = vmatprep.subr.mxu0 0.0
      %1050 = vmatpush1.msra.mxu0 %v1010
      %1051 = vmatprep.subr.mxu0 0.0
      %1052 = vmatpush1.msra.mxu0 %v1009
      %1053 = vmatprep.subr.mxu0 0.0
      %1054 = vmatpush1.msra.mxu0 %v1008
      %1055 = vmatprep.subr.mxu0 0.0
      %1056 = vmatpush2.msra.mxu0 0.0
      %1057 = vmatprep.subr.mxu0 0.0
      %1058 = vmatpush2.msra.mxu0 0.0
      %1059 = vmatprep.subr.mxu0 0.0
      %1060 = vmatpush2.msra.mxu0 0.0
      %1061 = vmatprep.subr.mxu0 0.0
      %1062 = vmatpush2.msra.mxu0 0.0
      %1063 = vmatprep.subr.mxu0 0.0
      %1064 = vmatpush2.msra.mxu0 0.0
      %1065 = vmatprep.subr.mxu0 0.0
      %1066 = vmatpush2.msra.mxu0 0.0
      %1067 = vmatprep.subr.mxu0 0.0
      %1068 = vmatpush2.msra.mxu0 0.0
      %1069 = vmatprep.subr.mxu0 0.0
      %1070 = vmatpush2.msra.mxu0 0.0
      %1071 = vmatprep.subr.mxu0 0.0
      %1072 = vmatpush2.msra.mxu0 0.0
      %1073 = vmatprep.subr.mxu0 0.0
      %1074 = vmatpush2.msra.mxu0 0.0
      %1075 = vmatprep.subr.mxu0 0.0
      %1076 = vmatpush2.msra.mxu0 0.0
      %1077 = vmatprep.subr.mxu0 0.0
      %1078 = vmatpush2.msra.mxu0 0.0
      %1079 = vmatprep.subr.mxu0 0.0
      %1080 = vmatpush2.msra.mxu0 0.0
      %1081 = vmatprep.subr.mxu0 0.0
      %1082 = vmatpush2.msra.mxu0 0.0
      %1083 = vmatprep.subr.mxu0 0.0
      %1084 = vmatpush2.msra.mxu0 0.0
      %1085 = vmatprep.subr.mxu0 0.0
      %1086 = vmatpush2.msra.mxu0 0.0
      %1087 = vmatprep.mubr.f32.mxu0 0.0
      %1088 = vmatmul.mubr.f32.gmra.mxu0 %v1021
      %v1089 = vpop.f32.mrf.mxu0
      %v1090 = vadd.f32 %v1017, %v1089
      %v1091 = vpop.f32.mrf.mxu0
      %1092 = vdwg.mxu0
      %v1093 = vld [vmem:[%s13] sm:$0xff]
      %v1094 = vld [vmem:[%s13 + $0x8] sm:$0xff]
      %v1095 = vld [vmem:[%s13 + $0x10] sm:$0xff]
      %v1096 = vld [vmem:[%s13 + $0x18] sm:$0xff]
      %1098 = vrot.lane.b32.xlu0 %v1090, 96
      %v1099 = vpop.permute.xlu0 %1098
      %vm1100 = vcmask 130048
      %v1101 = vsel %vm1100, %v1090, 0
      %v1103 = vsel %vm1100, %v1099, 0
      %1105 = vmatprep.subr.mxu0 0.0
      %1106 = vmatpush1.xpose.msra.mxu0 0.0
      %1107 = vmatprep.subr.mxu0 0.0
      %1108 = vmatpush1.xpose.msra.mxu0 0.0
      %1109 = vmatprep.subr.mxu0 0.0
      %1110 = vmatpush1.xpose.msra.mxu0 0.0
      %1111 = vmatprep.subr.mxu0 0.0
      %1112 = vmatpush1.xpose.msra.mxu0 0.0
      %1113 = vmatprep.subr.mxu0 0.0
      %1114 = vmatpush1.xpose.msra.mxu0 0.0
      %1115 = vmatprep.subr.mxu0 0.0
      %1116 = vmatpush1.xpose.msra.mxu0 0.0
      %1117 = vmatprep.subr.mxu0 0.0
      %1118 = vmatpush1.xpose.msra.mxu0 0.0
      %1119 = vmatprep.subr.mxu0 0.0
      %1120 = vmatpush1.xpose.msra.mxu0 0.0
      %1121 = vmatprep.subr.mxu0 0.0
      %1122 = vmatpush1.xpose.msra.mxu0 0.0
      %1123 = vmatprep.subr.mxu0 0.0
      %1124 = vmatpush1.xpose.msra.mxu0 0.0
      %1125 = vmatprep.subr.mxu0 0.0
      %1126 = vmatpush1.xpose.msra.mxu0 0.0
      %1127 = vmatprep.subr.mxu0 0.0
      %1128 = vmatpush1.xpose.msra.mxu0 0.0
      %1129 = vmatprep.subr.mxu0 0.0
      %1130 = vmatpush1.xpose.msra.mxu0 0.0
      %1131 = vmatprep.subr.mxu0 0.0
      %1132 = vmatpush1.xpose.msra.mxu0 0.0
      %1133 = vmatprep.subr.mxu0 0.0
      %1134 = vmatpush1.xpose.msra.mxu0 0.0
      %1135 = vmatprep.subr.mxu0 0.0
      %1136 = vmatpush1.xpose.msra.mxu0 %v1103
      %1137 = vmatprep.subr.mxu0 0.0
      %1138 = vmatpush2.xpose.msra.mxu0 0.0
      %1139 = vmatprep.subr.mxu0 0.0
      %1140 = vmatpush2.xpose.msra.mxu0 0.0
      %1141 = vmatprep.subr.mxu0 0.0
      %1142 = vmatpush2.xpose.msra.mxu0 0.0
      %1143 = vmatprep.subr.mxu0 0.0
      %1144 = vmatpush2.xpose.msra.mxu0 0.0
      %1145 = vmatprep.subr.mxu0 0.0
      %1146 = vmatpush2.xpose.msra.mxu0 0.0
      %1147 = vmatprep.subr.mxu0 0.0
      %1148 = vmatpush2.xpose.msra.mxu0 0.0
      %1149 = vmatprep.subr.mxu0 0.0
      %1150 = vmatpush2.xpose.msra.mxu0 0.0
      %1151 = vmatprep.subr.mxu0 0.0
      %1152 = vmatpush2.xpose.msra.mxu0 0.0
      %1153 = vmatprep.subr.mxu0 0.0
      %1154 = vmatpush2.xpose.msra.mxu0 0.0
      %1155 = vmatprep.subr.mxu0 0.0
      %1156 = vmatpush2.xpose.msra.mxu0 0.0
      %1157 = vmatprep.subr.mxu0 0.0
      %1158 = vmatpush2.xpose.msra.mxu0 0.0
      %1159 = vmatprep.subr.mxu0 0.0
      %1160 = vmatpush2.xpose.msra.mxu0 0.0
      %1161 = vmatprep.subr.mxu0 0.0
      %1162 = vmatpush2.xpose.msra.mxu0 0.0
      %1163 = vmatprep.subr.mxu0 0.0
      %1164 = vmatpush2.xpose.msra.mxu0 0.0
      %1165 = vmatprep.subr.mxu0 0.0
      %1166 = vmatpush2.xpose.msra.mxu0 0.0
      %1167 = vmatprep.subr.mxu0 0.0
      %1168 = vmatpush2.xpose.msra.mxu0 0.0
      %1169 = vmatprep.mubr.f32.mxu0 0.0
      %1170 = vmatmul.mubr.f32.gmra.mxu0 %v1101
      %v1171 = vpop.f32.mrf.mxu0
      %v1172 = vadd.f32 0.0, %v1171
      %v1173 = vpop.f32.mrf.mxu0
      %1174 = vdwg.mxu0
      %v1175 = vmul.f32 %v1172, 0.25
      %vm1176 = vcmask 64512
      %v1177 = vsel %vm1176, %v1175, -inf
      %1178 = vmax.xlane.f32.xlu0 %v1177
      %v1179 = vpop.xlane.xlu0 %1178
      %v1180 = vsub.f32 %v1175, %v1179
      %v1181 = vmul.f32 %v1180, 1.442695
      %v1182 = vpow.pop %v1181
      %v1183 = vsel %vm1176, %v1182, 0.0
      %1184 = vadd.xlane.f32.xlu0 %v1183
      %v1185 = vpop.xlane.xlu0 %1184
      %v1186 = vrcp.pop %v1185
      %v1187 = vmul.f32 %v1182, %v1186
      %1188 = vrot.lane.b32.xlu0 %v1090, 64
      %v1189 = vpop.permute.xlu0 %1188
      %v1192 = vsel %vm1176, %v1187, 0
      %1194 = vmatprep.subr.mxu0 0.0
      %1195 = vmatpush1.msra.mxu0 0.0
      %1196 = vmatprep.subr.mxu0 0.0
      %1197 = vmatpush1.msra.mxu0 0.0
      %1198 = vmatprep.subr.mxu0 0.0
      %1199 = vmatpush1.msra.mxu0 0.0
      %1200 = vmatprep.subr.mxu0 0.0
      %1201 = vmatpush1.msra.mxu0 0.0
      %1202 = vmatprep.subr.mxu0 0.0
      %1203 = vmatpush1.msra.mxu0 0.0
      %1204 = vmatprep.subr.mxu0 0.0
      %1205 = vmatpush1.msra.mxu0 0.0
      %1206 = vmatprep.subr.mxu0 0.0
      %1207 = vmatpush1.msra.mxu0 0.0
      %1208 = vmatprep.subr.mxu0 0.0
      %1209 = vmatpush1.msra.mxu0 0.0
      %1210 = vmatprep.subr.mxu0 0.0
      %1211 = vmatpush1.msra.mxu0 0.0
      %1212 = vmatprep.subr.mxu0 0.0
      %1213 = vmatpush1.msra.mxu0 0.0
      %1214 = vmatprep.subr.mxu0 0.0
      %1215 = vmatpush1.msra.mxu0 0.0
      %1216 = vmatprep.subr.mxu0 0.0
      %1217 = vmatpush1.msra.mxu0 0.0
      %1218 = vmatprep.subr.mxu0 0.0
      %1219 = vmatpush1.msra.mxu0 0.0
      %1220 = vmatprep.subr.mxu0 0.0
      %1221 = vmatpush1.msra.mxu0 0.0
      %1222 = vmatprep.subr.mxu0 0.0
      %1223 = vmatpush1.msra.mxu0 0.0
      %1224 = vmatprep.subr.mxu0 0.0
      %1225 = vmatpush1.msra.mxu0 %v1189
      %1226 = vmatprep.subr.mxu0 0.0
      %1227 = vmatpush2.msra.mxu0 0.0
      %1228 = vmatprep.subr.mxu0 0.0
      %1229 = vmatpush2.msra.mxu0 0.0
      %1230 = vmatprep.subr.mxu0 0.0
      %1231 = vmatpush2.msra.mxu0 0.0
      %1232 = vmatprep.subr.mxu0 0.0
      %1233 = vmatpush2.msra.mxu0 0.0
      %1234 = vmatprep.subr.mxu0 0.0
      %1235 = vmatpush2.msra.mxu0 0.0
      %1236 = vmatprep.subr.mxu0 0.0
      %1237 = vmatpush2.msra.mxu0 0.0
      %1238 = vmatprep.subr.mxu0 0.0
      %1239 = vmatpush2.msra.mxu0 0.0
      %1240 = vmatprep.subr.mxu0 0.0
      %1241 = vmatpush2.msra.mxu0 0.0
      %1242 = vmatprep.subr.mxu0 0.0
      %1243 = vmatpush2.msra.mxu0 0.0
      %1244 = vmatprep.subr.mxu0 0.0
      %1245 = vmatpush2.msra.mxu0 0.0
      %1246 = vmatprep.subr.mxu0 0.0
      %1247 = vmatpush2.msra.mxu0 0.0
      %1248 = vmatprep.subr.mxu0 0.0
      %1249 = vmatpush2.msra.mxu0 0.0
      %1250 = vmatprep.subr.mxu0 0.0
      %1251 = vmatpush2.msra.mxu0 0.0
      %1252 = vmatprep.subr.mxu0 0.0
      %1253 = vmatpush2.msra.mxu0 0.0
      %1254 = vmatprep.subr.mxu0 0.0
      %1255 = vmatpush2.msra.mxu0 0.0
      %1256 = vmatprep.subr.mxu0 0.0
      %1257 = vmatpush2.msra.mxu0 0.0
      %1258 = vmatprep.mubr.f32.mxu0 0.0
      %1259 = vmatmul.mubr.f32.gmra.mxu0 %v1192
      %v1260 = vpop.f32.mrf.mxu0
      %v1261 = vadd.f32 0.0, %v1260
      %v1262 = vpop.f32.mrf.mxu0
      %1263 = vdwg.mxu0
      %1264 = vrot.lane.b32.xlu0 %v1090, 112
      %v1265 = vpop.permute.xlu0 %1264
      %1266 = vrot.lane.b32.xlu0 %v1090, 80
      %v1267 = vpop.permute.xlu0 %1266
      %v1268 = vsel %vm1100, %v1265, 0
      %v1270 = vsel %vm1100, %v1267, 0
      %1272 = vmatprep.subr.mxu0 0.0
      %1273 = vmatpush1.xpose.msra.mxu0 0.0
      %1274 = vmatprep.subr.mxu0 0.0
      %1275 = vmatpush1.xpose.msra.mxu0 0.0
      %1276 = vmatprep.subr.mxu0 0.0
      %1277 = vmatpush1.xpose.msra.mxu0 0.0
      %1278 = vmatprep.subr.mxu0 0.0
      %1279 = vmatpush1.xpose.msra.mxu0 0.0
      %1280 = vmatprep.subr.mxu0 0.0
      %1281 = vmatpush1.xpose.msra.mxu0 0.0
      %1282 = vmatprep.subr.mxu0 0.0
      %1283 = vmatpush1.xpose.msra.mxu0 0.0
      %1284 = vmatprep.subr.mxu0 0.0
      %1285 = vmatpush1.xpose.msra.mxu0 0.0
      %1286 = vmatprep.subr.mxu0 0.0
      %1287 = vmatpush1.xpose.msra.mxu0 0.0
      %1288 = vmatprep.subr.mxu0 0.0
      %1289 = vmatpush1.xpose.msra.mxu0 0.0
      %1290 = vmatprep.subr.mxu0 0.0
      %1291 = vmatpush1.xpose.msra.mxu0 0.0
      %1292 = vmatprep.subr.mxu0 0.0
      %1293 = vmatpush1.xpose.msra.mxu0 0.0
      %1294 = vmatprep.subr.mxu0 0.0
      %1295 = vmatpush1.xpose.msra.mxu0 0.0
      %1296 = vmatprep.subr.mxu0 0.0
      %1297 = vmatpush1.xpose.msra.mxu0 0.0
      %1298 = vmatprep.subr.mxu0 0.0
      %1299 = vmatpush1.xpose.msra.mxu0 0.0
      %1300 = vmatprep.subr.mxu0 0.0
      %1301 = vmatpush1.xpose.msra.mxu0 0.0
      %1302 = vmatprep.subr.mxu0 0.0
      %1303 = vmatpush1.xpose.msra.mxu0 %v1270
      %1304 = vmatprep.subr.mxu0 0.0
      %1305 = vmatpush2.xpose.msra.mxu0 0.0
      %1306 = vmatprep.subr.mxu0 0.0
      %1307 = vmatpush2.xpose.msra.mxu0 0.0
      %1308 = vmatprep.subr.mxu0 0.0
      %1309 = vmatpush2.xpose.msra.mxu0 0.0
      %1310 = vmatprep.subr.mxu0 0.0
      %1311 = vmatpush2.xpose.msra.mxu0 0.0
      %1312 = vmatprep.subr.mxu0 0.0
      %1313 = vmatpush2.xpose.msra.mxu0 0.0
      %1314 = vmatprep.subr.mxu0 0.0
      %1315 = vmatpush2.xpose.msra.mxu0 0.0
      %1316 = vmatprep.subr.mxu0 0.0
      %1317 = vmatpush2.xpose.msra.mxu0 0.0
      %1318 = vmatprep.subr.mxu0 0.0
      %1319 = vmatpush2.xpose.msra.mxu0 0.0
      %1320 = vmatprep.subr.mxu0 0.0
      %1321 = vmatpush2.xpose.msra.mxu0 0.0
      %1322 = vmatprep.subr.mxu0 0.0
      %1323 = vmatpush2.xpose.msra.mxu0 0.0
      %1324 = vmatprep.subr.mxu0 0.0
      %1325 = vmatpush2.xpose.msra.mxu0 0.0
      %1326 = vmatprep.subr.mxu0 0.0
      %1327 = vmatpush2.xpose.msra.mxu0 0.0
      %1328 = vmatprep.subr.mxu0 0.0
      %1329 = vmatpush2.xpose.msra.mxu0 0.0
      %1330 = vmatprep.subr.mxu0 0.0
      %1331 = vmatpush2.xpose.msra.mxu0 0.0
      %1332 = vmatprep.subr.mxu0 0.0
      %1333 = vmatpush2.xpose.msra.mxu0 0.0
      %1334 = vmatprep.subr.mxu0 0.0
      %1335 = vmatpush2.xpose.msra.mxu0 0.0
      %1336 = vmatprep.mubr.f32.mxu0 0.0
      %1337 = vmatmul.mubr.f32.gmra.mxu0 %v1268
      %v1338 = vpop.f32.mrf.mxu0
      %v1339 = vadd.f32 0.0, %v1338
      %v1340 = vpop.f32.mrf.mxu0
      %1341 = vdwg.mxu0
      %v1342 = vmul.f32 %v1339, 0.25
      %v1343 = vsel %vm1176, %v1342, -inf
      %1344 = vmax.xlane.f32.xlu0 %v1343
      %v1345 = vpop.xlane.xlu0 %1344
      %v1346 = vsub.f32 %v1342, %v1345
      %v1347 = vmul.f32 %v1346, 1.442695
      %v1348 = vpow.pop %v1347
      %v1349 = vsel %vm1176, %v1348, 0.0
      %1350 = vadd.xlane.f32.xlu0 %v1349
      %v1351 = vpop.xlane.xlu0 %1350
      %v1352 = vrcp.pop %v1351
      %v1353 = vmul.f32 %v1348, %v1352
      %1354 = vrot.lane.b32.xlu0 %v1090, 48
      %v1355 = vpop.permute.xlu0 %1354
      %v1358 = vsel %vm1176, %v1353, 0
      %1360 = vmatprep.subr.mxu0 0.0
      %1361 = vmatpush1.msra.mxu0 0.0
      %1362 = vmatprep.subr.mxu0 0.0
      %1363 = vmatpush1.msra.mxu0 0.0
      %1364 = vmatprep.subr.mxu0 0.0
      %1365 = vmatpush1.msra.mxu0 0.0
      %1366 = vmatprep.subr.mxu0 0.0
      %1367 = vmatpush1.msra.mxu0 0.0
      %1368 = vmatprep.subr.mxu0 0.0
      %1369 = vmatpush1.msra.mxu0 0.0
      %1370 = vmatprep.subr.mxu0 0.0
      %1371 = vmatpush1.msra.mxu0 0.0
      %1372 = vmatprep.subr.mxu0 0.0
      %1373 = vmatpush1.msra.mxu0 0.0
      %1374 = vmatprep.subr.mxu0 0.0
      %1375 = vmatpush1.msra.mxu0 0.0
      %1376 = vmatprep.subr.mxu0 0.0
      %1377 = vmatpush1.msra.mxu0 0.0
      %1378 = vmatprep.subr.mxu0 0.0
      %1379 = vmatpush1.msra.mxu0 0.0
      %1380 = vmatprep.subr.mxu0 0.0
      %1381 = vmatpush1.msra.mxu0 0.0
      %1382 = vmatprep.subr.mxu0 0.0
      %1383 = vmatpush1.msra.mxu0 0.0
      %1384 = vmatprep.subr.mxu0 0.0
      %1385 = vmatpush1.msra.mxu0 0.0
      %1386 = vmatprep.subr.mxu0 0.0
      %1387 = vmatpush1.msra.mxu0 0.0
      %1388 = vmatprep.subr.mxu0 0.0
      %1389 = vmatpush1.msra.mxu0 0.0
      %1390 = vmatprep.subr.mxu0 0.0
      %1391 = vmatpush1.msra.mxu0 %v1355
      %1392 = vmatprep.subr.mxu0 0.0
      %1393 = vmatpush2.msra.mxu0 0.0
      %1394 = vmatprep.subr.mxu0 0.0
      %1395 = vmatpush2.msra.mxu0 0.0
      %1396 = vmatprep.subr.mxu0 0.0
      %1397 = vmatpush2.msra.mxu0 0.0
      %1398 = vmatprep.subr.mxu0 0.0
      %1399 = vmatpush2.msra.mxu0 0.0
      %1400 = vmatprep.subr.mxu0 0.0
      %1401 = vmatpush2.msra.mxu0 0.0
      %1402 = vmatprep.subr.mxu0 0.0
      %1403 = vmatpush2.msra.mxu0 0.0
      %1404 = vmatprep.subr.mxu0 0.0
      %1405 = vmatpush2.msra.mxu0 0.0
      %1406 = vmatprep.subr.mxu0 0.0
      %1407 = vmatpush2.msra.mxu0 0.0
      %1408 = vmatprep.subr.mxu0 0.0
      %1409 = vmatpush2.msra.mxu0 0.0
      %1410 = vmatprep.subr.mxu0 0.0
      %1411 = vmatpush2.msra.mxu0 0.0
      %1412 = vmatprep.subr.mxu0 0.0
      %1413 = vmatpush2.msra.mxu0 0.0
      %1414 = vmatprep.subr.mxu0 0.0
      %1415 = vmatpush2.msra.mxu0 0.0
      %1416 = vmatprep.subr.mxu0 0.0
      %1417 = vmatpush2.msra.mxu0 0.0
      %1418 = vmatprep.subr.mxu0 0.0
      %1419 = vmatpush2.msra.mxu0 0.0
      %1420 = vmatprep.subr.mxu0 0.0
      %1421 = vmatpush2.msra.mxu0 0.0
      %1422 = vmatprep.subr.mxu0 0.0
      %1423 = vmatpush2.msra.mxu0 0.0
      %1424 = vmatprep.mubr.f32.mxu0 0.0
      %1425 = vmatmul.mubr.f32.gmra.mxu0 %v1358
      %v1426 = vpop.f32.mrf.mxu0
      %v1427 = vadd.f32 0.0, %v1426
      %v1428 = vpop.f32.mrf.mxu0
      %1429 = vdwg.mxu0
      %v1431 = vsel %vm1100, %v1427, 0
      %1433 = vmatprep.subr.mxu0 0.0
      %1434 = vmatpush1.msra.mxu0 0.0
      %1435 = vmatprep.subr.mxu0 0.0
      %1436 = vmatpush1.msra.mxu0 0.0
      %1437 = vmatprep.subr.mxu0 0.0
      %1438 = vmatpush1.msra.mxu0 0.0
      %1439 = vmatprep.subr.mxu0 0.0
      %1440 = vmatpush1.msra.mxu0 0.0
      %1441 = vmatprep.subr.mxu0 0.0
      %1442 = vmatpush1.msra.mxu0 0.0
      %1443 = vmatprep.subr.mxu0 0.0
      %1444 = vmatpush1.msra.mxu0 0.0
      %1445 = vmatprep.subr.mxu0 0.0
      %1446 = vmatpush1.msra.mxu0 0.0
      %1447 = vmatprep.subr.mxu0 0.0
      %1448 = vmatpush1.msra.mxu0 0.0
      %1449 = vmatprep.subr.mxu0 0.0
      %1450 = vmatpush1.msra.mxu0 0.0
      %1451 = vmatprep.subr.mxu0 0.0
      %1452 = vmatpush1.msra.mxu0 0.0
      %1453 = vmatprep.subr.mxu0 0.0
      %1454 = vmatpush1.msra.mxu0 0.0
      %1455 = vmatprep.subr.mxu0 0.0
      %1456 = vmatpush1.msra.mxu0 0.0
      %1457 = vmatprep.subr.mxu0 0.0
      %1458 = vmatpush1.msra.mxu0 0.0
      %1459 = vmatprep.subr.mxu0 0.0
      %1460 = vmatpush1.msra.mxu0 0.0
      %1461 = vmatprep.subr.mxu0 0.0
      %1462 = vmatpush1.msra.mxu0 %v1096
      %1463 = vmatprep.subr.mxu0 0.0
      %1464 = vmatpush1.msra.mxu0 %v1095
      %1465 = vmatprep.subr.mxu0 0.0
      %1466 = vmatpush2.msra.mxu0 0.0
      %1467 = vmatprep.subr.mxu0 0.0
      %1468 = vmatpush2.msra.mxu0 0.0
      %1469 = vmatprep.subr.mxu0 0.0
      %1470 = vmatpush2.msra.mxu0 0.0
      %1471 = vmatprep.subr.mxu0 0.0
      %1472 = vmatpush2.msra.mxu0 0.0
      %1473 = vmatprep.subr.mxu0 0.0
      %1474 = vmatpush2.msra.mxu0 0.0
      %1475 = vmatprep.subr.mxu0 0.0
      %1476 = vmatpush2.msra.mxu0 0.0
      %1477 = vmatprep.subr.mxu0 0.0
      %1478 = vmatpush2.msra.mxu0 0.0
      %1479 = vmatprep.subr.mxu0 0.0
      %1480 = vmatpush2.msra.mxu0 0.0
      %1481 = vmatprep.subr.mxu0 0.0
      %1482 = vmatpush2.msra.mxu0 0.0
      %1483 = vmatprep.subr.mxu0 0.0
      %1484 = vmatpush2.msra.mxu0 0.0
      %1485 = vmatprep.subr.mxu0 0.0
      %1486 = vmatpush2.msra.mxu0 0.0
      %1487 = vmatprep.subr.mxu0 0.0
      %1488 = vmatpush2.msra.mxu0 0.0
      %1489 = vmatprep.subr.mxu0 0.0
      %1490 = vmatpush2.msra.mxu0 0.0
      %1491 = vmatprep.subr.mxu0 0.0
      %1492 = vmatpush2.msra.mxu0 0.0
      %1493 = vmatprep.subr.mxu0 0.0
      %1494 = vmatpush2.msra.mxu0 0.0
      %1495 = vmatprep.subr.mxu0 0.0
      %1496 = vmatpush2.msra.mxu0 0.0
      %1497 = vmatprep.mubr.f32.mxu0 0.0
      %1498 = vmatmul.mubr.f32.gmra.mxu0 %v1431
      %v1499 = vpop.f32.mrf.mxu0
      %v1500 = vadd.f32 0.0, %v1499
      %v1501 = vpop.f32.mrf.mxu0
      %1502 = vdwg.mxu0
      %v1504 = vsel %vm1100, %v1261, 0
      %1506 = vmatprep.subr.mxu0 0.0
      %1507 = vmatpush1.msra.mxu0 0.0
      %1508 = vmatprep.subr.mxu0 0.0
      %1509 = vmatpush1.msra.mxu0 0.0
      %1510 = vmatprep.subr.mxu0 0.0
      %1511 = vmatpush1.msra.mxu0 0.0
      %1512 = vmatprep.subr.mxu0 0.0
      %1513 = vmatpush1.msra.mxu0 0.0
      %1514 = vmatprep.subr.mxu0 0.0
      %1515 = vmatpush1.msra.mxu0 0.0
      %1516 = vmatprep.subr.mxu0 0.0
      %1517 = vmatpush1.msra.mxu0 0.0
      %1518 = vmatprep.subr.mxu0 0.0
      %1519 = vmatpush1.msra.mxu0 0.0
      %1520 = vmatprep.subr.mxu0 0.0
      %1521 = vmatpush1.msra.mxu0 0.0
      %1522 = vmatprep.subr.mxu0 0.0
      %1523 = vmatpush1.msra.mxu0 0.0
      %1524 = vmatprep.subr.mxu0 0.0
      %1525 = vmatpush1.msra.mxu0 0.0
      %1526 = vmatprep.subr.mxu0 0.0
      %1527 = vmatpush1.msra.mxu0 0.0
      %1528 = vmatprep.subr.mxu0 0.0
      %1529 = vmatpush1.msra.mxu0 0.0
      %1530 = vmatprep.subr.mxu0 0.0
      %1531 = vmatpush1.msra.mxu0 0.0
      %1532 = vmatprep.subr.mxu0 0.0
      %1533 = vmatpush1.msra.mxu0 0.0
      %1534 = vmatprep.subr.mxu0 0.0
      %1535 = vmatpush1.msra.mxu0 %v1094
      %1536 = vmatprep.subr.mxu0 0.0
      %1537 = vmatpush1.msra.mxu0 %v1093
      %1538 = vmatprep.subr.mxu0 0.0
      %1539 = vmatpush2.msra.mxu0 0.0
      %1540 = vmatprep.subr.mxu0 0.0
      %1541 = vmatpush2.msra.mxu0 0.0
      %1542 = vmatprep.subr.mxu0 0.0
      %1543 = vmatpush2.msra.mxu0 0.0
      %1544 = vmatprep.subr.mxu0 0.0
      %1545 = vmatpush2.msra.mxu0 0.0
      %1546 = vmatprep.subr.mxu0 0.0
      %1547 = vmatpush2.msra.mxu0 0.0
      %1548 = vmatprep.subr.mxu0 0.0
      %1549 = vmatpush2.msra.mxu0 0.0
      %1550 = vmatprep.subr.mxu0 0.0
      %1551 = vmatpush2.msra.mxu0 0.0
      %1552 = vmatprep.subr.mxu0 0.0
      %1553 = vmatpush2.msra.mxu0 0.0
      %1554 = vmatprep.subr.mxu0 0.0
      %1555 = vmatpush2.msra.mxu0 0.0
      %1556 = vmatprep.subr.mxu0 0.0
      %1557 = vmatpush2.msra.mxu0 0.0
      %1558 = vmatprep.subr.mxu0 0.0
      %1559 = vmatpush2.msra.mxu0 0.0
      %1560 = vmatprep.subr.mxu0 0.0
      %1561 = vmatpush2.msra.mxu0 0.0
      %1562 = vmatprep.subr.mxu0 0.0
      %1563 = vmatpush2.msra.mxu0 0.0
      %1564 = vmatprep.subr.mxu0 0.0
      %1565 = vmatpush2.msra.mxu0 0.0
      %1566 = vmatprep.subr.mxu0 0.0
      %1567 = vmatpush2.msra.mxu0 0.0
      %1568 = vmatprep.subr.mxu0 0.0
      %1569 = vmatpush2.msra.mxu0 0.0
      %1570 = vmatprep.mubr.f32.mxu0 0.0
      %1571 = vmatmul.mubr.f32.gmra.mxu0 %v1504
      %v1572 = vpop.f32.mrf.mxu0
      %v1573 = vadd.f32 %v1500, %v1572
      %v1574 = vpop.f32.mrf.mxu0
      %1575 = vdwg.mxu0
      %v1576 = vld [vmem:[%s15] sm:$0x1]
      %v1578 = vlaneseq
      %v1579 = vshrl.u32 %v1578, 7
      %v1580 = vsub.s32 0, %v1579
      %v1581 = vrot.slane %v1576, %v1580
      %v1583 = vadd.f32 %v1573, %v1581
      %v1584 = vadd.f32 %v1002, %v1583
      %v1585 = vsel %vm1019, %v1584, 0.0
      %1586 = vadd.xlane.f32.xlu0 %v1585
      %v1587 = vpop.xlane.xlu0 %1586
      %v1588 = vrcp.pop 32.0
      %v1589 = vmul.f32 %v1587, %v1588
      %v1590 = vsub.f32 %v1584, %v1589
      %v1591 = vmul.f32 %v1590, %v1590
      %v1592 = vsel %vm1019, %v1591, 0.0
      %1593 = vadd.xlane.f32.xlu0 %v1592
      %v1594 = vpop.xlane.xlu0 %1593
      %v1595 = vmul.f32 %v1594, %v1588
      %v1596 = vadd.f32 %v1595, 1e-05
      %v1597 = vrsqrt.pop %v1596
      %v1598 = vmul.f32 %v1590, %v1597
      %v1599 = vlaneseq
      %v1600 = vshrl.u32 %v1599, 7
      %v1601 = vsub.s32 0, %v1600
      %v1602 = vrot.slane %v1007, %v1601
      %v1603 = vmul.f32 %v1598, %v1602
      %v1604 = vlaneseq
      %v1605 = vshrl.u32 %v1604, 7
      %v1606 = vsub.s32 1, %v1605
      %v1607 = vrot.slane %v1007, %v1606
      %v1608 = vadd.f32 %v1603, %v1607
      %v1609 = vld [vmem:[%s19] sm:$0xff]
      %v1610 = vld [vmem:[%s19 + $0x8] sm:$0xff]
      %v1611 = vld [vmem:[%s19 + $0x10] sm:$0xff]
      %v1612 = vld [vmem:[%s19 + $0x18] sm:$0xff]
      %v1613 = vld [vmem:[%s21] sm:$0x1]
      %v1614 = vld [vmem:[%s23] sm:$0xff]
      %v1615 = vld [vmem:[%s23 + $0x8] sm:$0xff]
      %v1616 = vld [vmem:[%s23 + $0x10] sm:$0xff]
      %v1617 = vld [vmem:[%s23 + $0x18] sm:$0xff]
      %v1618 = vld [vmem:[%s23 + $0x20] sm:$0xff]
      %v1619 = vld [vmem:[%s23 + $0x28] sm:$0xff]
      %v1620 = vld [vmem:[%s23 + $0x30] sm:$0xff]
      %v1621 = vld [vmem:[%s23 + $0x38] sm:$0xff]
      %v1622 = vld [vmem:[%s25] sm:$0x1]
      %v1624 = vlaneseq
      %v1625 = vshrl.u32 %v1624, 7
      %v1626 = vsub.s32 0, %v1625
      %v1627 = vrot.slane %v1613, %v1626
      %v1630 = vsel %vm1019, %v1608, 0
      %1632 = vmatprep.subr.mxu0 0.0
      %1633 = vmatpush1.msra.mxu0 0.0
      %1634 = vmatprep.subr.mxu0 0.0
      %1635 = vmatpush1.msra.mxu0 0.0
      %1636 = vmatprep.subr.mxu0 0.0
      %1637 = vmatpush1.msra.mxu0 0.0
      %1638 = vmatprep.subr.mxu0 0.0
      %1639 = vmatpush1.msra.mxu0 0.0
      %1640 = vmatprep.subr.mxu0 0.0
      %1641 = vmatpush1.msra.mxu0 0.0
      %1642 = vmatprep.subr.mxu0 0.0
      %1643 = vmatpush1.msra.mxu0 0.0
      %1644 = vmatprep.subr.mxu0 0.0
      %1645 = vmatpush1.msra.mxu0 0.0
      %1646 = vmatprep.subr.mxu0 0.0
      %1647 = vmatpush1.msra.mxu0 0.0
      %1648 = vmatprep.subr.mxu0 0.0
      %1649 = vmatpush1.msra.mxu0 0.0
      %1650 = vmatprep.subr.mxu0 0.0
      %1651 = vmatpush1.msra.mxu0 0.0
      %1652 = vmatprep.subr.mxu0 0.0
      %1653 = vmatpush1.msra.mxu0 0.0
      %1654 = vmatprep.subr.mxu0 0.0
      %1655 = vmatpush1.msra.mxu0 0.0
      %1656 = vmatprep.subr.mxu0 0.0
      %1657 = vmatpush1.msra.mxu0 %v1612
      %1658 = vmatprep.subr.mxu0 0.0
      %1659 = vmatpush1.msra.mxu0 %v1611
      %1660 = vmatprep.subr.mxu0 0.0
      %1661 = vmatpush1.msra.mxu0 %v1610
      %1662 = vmatprep.subr.mxu0 0.0
      %1663 = vmatpush1.msra.mxu0 %v1609
      %1664 = vmatprep.subr.mxu0 0.0
      %1665 = vmatpush2.msra.mxu0 0.0
      %1666 = vmatprep.subr.mxu0 0.0
      %1667 = vmatpush2.msra.mxu0 0.0
      %1668 = vmatprep.subr.mxu0 0.0
      %1669 = vmatpush2.msra.mxu0 0.0
      %1670 = vmatprep.subr.mxu0 0.0
      %1671 = vmatpush2.msra.mxu0 0.0
      %1672 = vmatprep.subr.mxu0 0.0
      %1673 = vmatpush2.msra.mxu0 0.0
      %1674 = vmatprep.subr.mxu0 0.0
      %1675 = vmatpush2.msra.mxu0 0.0
      %1676 = vmatprep.subr.mxu0 0.0
      %1677 = vmatpush2.msra.mxu0 0.0
      %1678 = vmatprep.subr.mxu0 0.0
      %1679 = vmatpush2.msra.mxu0 0.0
      %1680 = vmatprep.subr.mxu0 0.0
      %1681 = vmatpush2.msra.mxu0 0.0
      %1682 = vmatprep.subr.mxu0 0.0
      %1683 = vmatpush2.msra.mxu0 0.0
      %1684 = vmatprep.subr.mxu0 0.0
      %1685 = vmatpush2.msra.mxu0 0.0
      %1686 = vmatprep.subr.mxu0 0.0
      %1687 = vmatpush2.msra.mxu0 0.0
      %1688 = vmatprep.subr.mxu0 0.0
      %1689 = vmatpush2.msra.mxu0 0.0
      %1690 = vmatprep.subr.mxu0 0.0
      %1691 = vmatpush2.msra.mxu0 0.0
      %1692 = vmatprep.subr.mxu0 0.0
      %1693 = vmatpush2.msra.mxu0 0.0
      %1694 = vmatprep.subr.mxu0 0.0
      %1695 = vmatpush2.msra.mxu0 0.0
      %1696 = vmatprep.mubr.f32.mxu0 0.0
      %1697 = vmatmul.mubr.f32.gmra.mxu0 %v1630
      %v1698 = vpop.f32.mrf.mxu0
      %v1699 = vadd.f32 %v1627, %v1698
      %v1700 = vpop.f32.mrf.mxu0
      %1701 = vdwg.mxu0
      %v1702 = vmul.f32 %v1699, 0.5
      %v1703 = vmul.f32 %v1699, 0.70710677
      %vm1704 = vcmp.ge.f32.partialorder %v1703, 0.0
      %v1705 = vsel %vm1704, 1.0, -1.0
      %v1706 = vand.u32 2147483647, %v1703
      %v1707 = vmul.f32 %v1706, 0.3275911
      %v1708 = vadd.f32 %v1707, 1.0
      %v1709 = vrcp.pop %v1708
      %v1710 = vmul.f32 1.0, %v1709
      %v1711 = vmul.f32 %v1710, 1.0614054
      %v1712 = vadd.f32 %v1711, -1.4531521
      %v1713 = vmul.f32 %v1712, %v1710
      %v1714 = vadd.f32 %v1713, 1.4214138
      %v1715 = vmul.f32 %v1714, %v1710
      %v1716 = vadd.f32 %v1715, -0.28449672
      %v1717 = vmul.f32 %v1716, %v1710
      %v1718 = vadd.f32 %v1717, 0.2548296
      %v1719 = vmul.f32 %v1718, %v1710
      %v1720 = vsub.f32 0.0, %v1706
      %v1721 = vmul.f32 %v1720, %v1706
      %v1722 = vmul.f32 %v1721, 1.442695
      %v1723 = vpow.pop %v1722
      %v1724 = vmul.f32 %v1719, %v1723
      %v1725 = vsub.f32 1.0, %v1724
      %v1726 = vmul.f32 %v1705, %v1725
      %v1727 = vadd.f32 %v1726, 1.0
      %v1728 = vmul.f32 %v1702, %v1727
      %v1730 = vlaneseq
      %v1731 = vshrl.u32 %v1730, 7
      %v1732 = vsub.s32 0, %v1731
      %v1733 = vrot.slane %v1622, %v1732
      %vm1735 = vcmask 523264
      %v1737 = vsel %vm1735, %v1728, 0
      %1739 = vmatprep.subr.mxu0 0.0
      %1740 = vmatpush1.msra.mxu0 0.0
      %1741 = vmatprep.subr.mxu0 0.0
      %1742 = vmatpush1.msra.mxu0 0.0
      %1743 = vmatprep.subr.mxu0 0.0
      %1744 = vmatpush1.msra.mxu0 0.0
      %1745 = vmatprep.subr.mxu0 0.0
      %1746 = vmatpush1.msra.mxu0 0.0
      %1747 = vmatprep.subr.mxu0 0.0
      %1748 = vmatpush1.msra.mxu0 0.0
      %1749 = vmatprep.subr.mxu0 0.0
      %1750 = vmatpush1.msra.mxu0 0.0
      %1751 = vmatprep.subr.mxu0 0.0
      %1752 = vmatpush1.msra.mxu0 0.0
      %1753 = vmatprep.subr.mxu0 0.0
      %1754 = vmatpush1.msra.mxu0 0.0
      %1755 = vmatprep.subr.mxu0 0.0
      %1756 = vmatpush1.msra.mxu0 %v1621
      %1757 = vmatprep.subr.mxu0 0.0
      %1758 = vmatpush1.msra.mxu0 %v1620
      %1759 = vmatprep.subr.mxu0 0.0
      %1760 = vmatpush1.msra.mxu0 %v1619
      %1761 = vmatprep.subr.mxu0 0.0
      %1762 = vmatpush1.msra.mxu0 %v1618
      %1763 = vmatprep.subr.mxu0 0.0
      %1764 = vmatpush1.msra.mxu0 %v1617
      %1765 = vmatprep.subr.mxu0 0.0
      %1766 = vmatpush1.msra.mxu0 %v1616
      %1767 = vmatprep.subr.mxu0 0.0
      %1768 = vmatpush1.msra.mxu0 %v1615
      %1769 = vmatprep.subr.mxu0 0.0
      %1770 = vmatpush1.msra.mxu0 %v1614
      %1771 = vmatprep.subr.mxu0 0.0
      %1772 = vmatpush2.msra.mxu0 0.0
      %1773 = vmatprep.subr.mxu0 0.0
      %1774 = vmatpush2.msra.mxu0 0.0
      %1775 = vmatprep.subr.mxu0 0.0
      %1776 = vmatpush2.msra.mxu0 0.0
      %1777 = vmatprep.subr.mxu0 0.0
      %1778 = vmatpush2.msra.mxu0 0.0
      %1779 = vmatprep.subr.mxu0 0.0
      %1780 = vmatpush2.msra.mxu0 0.0
      %1781 = vmatprep.subr.mxu0 0.0
      %1782 = vmatpush2.msra.mxu0 0.0
      %1783 = vmatprep.subr.mxu0 0.0
      %1784 = vmatpush2.msra.mxu0 0.0
      %1785 = vmatprep.subr.mxu0 0.0
      %1786 = vmatpush2.msra.mxu0 0.0
      %1787 = vmatprep.subr.mxu0 0.0
      %1788 = vmatpush2.msra.mxu0 0.0
      %1789 = vmatprep.subr.mxu0 0.0
      %1790 = vmatpush2.msra.mxu0 0.0
      %1791 = vmatprep.subr.mxu0 0.0
      %1792 = vmatpush2.msra.mxu0 0.0
      %1793 = vmatprep.subr.mxu0 0.0
      %1794 = vmatpush2.msra.mxu0 0.0
      %1795 = vmatprep.subr.mxu0 0.0
      %1796 = vmatpush2.msra.mxu0 0.0
      %1797 = vmatprep.subr.mxu0 0.0
      %1798 = vmatpush2.msra.mxu0 0.0
      %1799 = vmatprep.subr.mxu0 0.0
      %1800 = vmatpush2.msra.mxu0 0.0
      %1801 = vmatprep.subr.mxu0 0.0
      %1802 = vmatpush2.msra.mxu0 0.0
      %1803 = vmatprep.mubr.f32.mxu0 0.0
      %1804 = vmatmul.mubr.f32.gmra.mxu0 %v1737
      %v1805 = vpop.f32.mrf.mxu0
      %v1806 = vadd.f32 %v1733, %v1805
      %v1807 = vpop.f32.mrf.mxu0
      %1808 = vdwg.mxu0
      %v1809 = vadd.f32 %v1608, %v1806
      %v1810 = vsel %vm1019, %v1809, 0.0
      %1811 = vadd.xlane.f32.xlu0 %v1810
      %v1812 = vpop.xlane.xlu0 %1811
      %v1813 = vmul.f32 %v1812, %v1588
      %v1814 = vsub.f32 %v1809, %v1813
      %v1815 = vmul.f32 %v1814, %v1814
      %v1816 = vsel %vm1019, %v1815, 0.0
      %1817 = vadd.xlane.f32.xlu0 %v1816
      %v1818 = vpop.xlane.xlu0 %1817
      %v1819 = vmul.f32 %v1818, %v1588
      %v1820 = vadd.f32 %v1819, 1e-05
      %v1821 = vrsqrt.pop %v1820
      %v1822 = vmul.f32 %v1814, %v1821
      %v1823 = vlaneseq
      %v1824 = vshrl.u32 %v1823, 7
      %v1825 = vsub.s32 2, %v1824
      %v1826 = vrot.slane %v1007, %v1825
      %v1827 = vmul.f32 %v1822, %v1826
      %v1828 = vlaneseq
      %v1829 = vshrl.u32 %v1828, 7
      %v1830 = vsub.s32 3, %v1829
      %v1831 = vrot.slane %v1007, %v1830
      %v1832 = vadd.f32 %v1827, %v1831
      %s1833 = scalar_lea.vmem %s17, 4
      %v1834 = vld [vmem:[%s1833] sm:$0xf]
      %s1835 = scalar_lea.vmem %s9, 32
      %v1836 = vld [vmem:[%s1835] sm:$0xff]
      %v1837 = vld [vmem:[%s1835 + $0x8] sm:$0xff]
      %v1838 = vld [vmem:[%s1835 + $0x10] sm:$0xff]
      %v1839 = vld [vmem:[%s1835 + $0x18] sm:$0xff]
      %s1840 = scalar_lea.vmem %s11, 1
      %v1841 = vld [vmem:[%s1840] sm:$0x1]
      %v1843 = vlaneseq
      %v1844 = vshrl.u32 %v1843, 7
      %v1845 = vsub.s32 0, %v1844
      %v1846 = vrot.slane %v1841, %v1845
      %v1849 = vsel %vm1019, %v1832, 0
      %1851 = vmatprep.subr.mxu0 0.0
      %1852 = vmatpush1.msra.mxu0 0.0
      %1853 = vmatprep.subr.mxu0 0.0
      %1854 = vmatpush1.msra.mxu0 0.0
      %1855 = vmatprep.subr.mxu0 0.0
      %1856 = vmatpush1.msra.mxu0 0.0
      %1857 = vmatprep.subr.mxu0 0.0
      %1858 = vmatpush1.msra.mxu0 0.0
      %1859 = vmatprep.subr.mxu0 0.0
      %1860 = vmatpush1.msra.mxu0 0.0
      %1861 = vmatprep.subr.mxu0 0.0
      %1862 = vmatpush1.msra.mxu0 0.0
      %1863 = vmatprep.subr.mxu0 0.0
      %1864 = vmatpush1.msra.mxu0 0.0
      %1865 = vmatprep.subr.mxu0 0.0
      %1866 = vmatpush1.msra.mxu0 0.0
      %1867 = vmatprep.subr.mxu0 0.0
      %1868 = vmatpush1.msra.mxu0 0.0
      %1869 = vmatprep.subr.mxu0 0.0
      %1870 = vmatpush1.msra.mxu0 0.0
      %1871 = vmatprep.subr.mxu0 0.0
      %1872 = vmatpush1.msra.mxu0 0.0
      %1873 = vmatprep.subr.mxu0 0.0
      %1874 = vmatpush1.msra.mxu0 0.0
      %1875 = vmatprep.subr.mxu0 0.0
      %1876 = vmatpush1.msra.mxu0 %v1839
      %1877 = vmatprep.subr.mxu0 0.0
      %1878 = vmatpush1.msra.mxu0 %v1838
      %1879 = vmatprep.subr.mxu0 0.0
      %1880 = vmatpush1.msra.mxu0 %v1837
      %1881 = vmatprep.subr.mxu0 0.0
      %1882 = vmatpush1.msra.mxu0 %v1836
      %1883 = vmatprep.subr.mxu0 0.0
      %1884 = vmatpush2.msra.mxu0 0.0
      %1885 = vmatprep.subr.mxu0 0.0
      %1886 = vmatpush2.msra.mxu0 0.0
      %1887 = vmatprep.subr.mxu0 0.0
      %1888 = vmatpush2.msra.mxu0 0.0
      %1889 = vmatprep.subr.mxu0 0.0
      %1890 = vmatpush2.msra.mxu0 0.0
      %1891 = vmatprep.subr.mxu0 0.0
      %1892 = vmatpush2.msra.mxu0 0.0
      %1893 = vmatprep.subr.mxu0 0.0
      %1894 = vmatpush2.msra.mxu0 0.0
      %1895 = vmatprep.subr.mxu0 0.0
      %1896 = vmatpush2.msra.mxu0 0.0
      %1897 = vmatprep.subr.mxu0 0.0
      %1898 = vmatpush2.msra.mxu0 0.0
      %1899 = vmatprep.subr.mxu0 0.0
      %1900 = vmatpush2.msra.mxu0 0.0
      %1901 = vmatprep.subr.mxu0 0.0
      %1902 = vmatpush2.msra.mxu0 0.0
      %1903 = vmatprep.subr.mxu0 0.0
      %1904 = vmatpush2.msra.mxu0 0.0
      %1905 = vmatprep.subr.mxu0 0.0
      %1906 = vmatpush2.msra.mxu0 0.0
      %1907 = vmatprep.subr.mxu0 0.0
      %1908 = vmatpush2.msra.mxu0 0.0
      %1909 = vmatprep.subr.mxu0 0.0
      %1910 = vmatpush2.msra.mxu0 0.0
      %1911 = vmatprep.subr.mxu0 0.0
      %1912 = vmatpush2.msra.mxu0 0.0
      %1913 = vmatprep.subr.mxu0 0.0
      %1914 = vmatpush2.msra.mxu0 0.0
      %1915 = vmatprep.mubr.f32.mxu0 0.0
      %1916 = vmatmul.mubr.f32.gmra.mxu0 %v1849
      %v1917 = vpop.f32.mrf.mxu0
      %v1918 = vadd.f32 %v1846, %v1917
      %v1919 = vpop.f32.mrf.mxu0
      %1920 = vdwg.mxu0
      %s1921 = scalar_lea.vmem %s13, 32
      %v1922 = vld [vmem:[%s1921] sm:$0xff]
      %v1923 = vld [vmem:[%s1921 + $0x8] sm:$0xff]
      %v1924 = vld [vmem:[%s1921 + $0x10] sm:$0xff]
      %v1925 = vld [vmem:[%s1921 + $0x18] sm:$0xff]
      %1927 = vrot.lane.b32.xlu0 %v1918, 96
      %v1928 = vpop.permute.xlu0 %1927
      %v1929 = vsel %vm1100, %v1918, 0
      %v1931 = vsel %vm1100, %v1928, 0
      %1933 = vmatprep.subr.mxu0 0.0
      %1934 = vmatpush1.xpose.msra.mxu0 0.0
      %1935 = vmatprep.subr.mxu0 0.0
      %1936 = vmatpush1.xpose.msra.mxu0 0.0
      %1937 = vmatprep.subr.mxu0 0.0
      %1938 = vmatpush1.xpose.msra.mxu0 0.0
      %1939 = vmatprep.subr.mxu0 0.0
      %1940 = vmatpush1.xpose.msra.mxu0 0.0
      %1941 = vmatprep.subr.mxu0 0.0
      %1942 = vmatpush1.xpose.msra.mxu0 0.0
      %1943 = vmatprep.subr.mxu0 0.0
      %1944 = vmatpush1.xpose.msra.mxu0 0.0
      %1945 = vmatprep.subr.mxu0 0.0
      %1946 = vmatpush1.xpose.msra.mxu0 0.0
      %1947 = vmatprep.subr.mxu0 0.0
      %1948 = vmatpush1.xpose.msra.mxu0 0.0
      %1949 = vmatprep.subr.mxu0 0.0
      %1950 = vmatpush1.xpose.msra.mxu0 0.0
      %1951 = vmatprep.subr.mxu0 0.0
      %1952 = vmatpush1.xpose.msra.mxu0 0.0
      %1953 = vmatprep.subr.mxu0 0.0
      %1954 = vmatpush1.xpose.msra.mxu0 0.0
      %1955 = vmatprep.subr.mxu0 0.0
      %1956 = vmatpush1.xpose.msra.mxu0 0.0
      %1957 = vmatprep.subr.mxu0 0.0
      %1958 = vmatpush1.xpose.msra.mxu0 0.0
      %1959 = vmatprep.subr.mxu0 0.0
      %1960 = vmatpush1.xpose.msra.mxu0 0.0
      %1961 = vmatprep.subr.mxu0 0.0
      %1962 = vmatpush1.xpose.msra.mxu0 0.0
      %1963 = vmatprep.subr.mxu0 0.0
      %1964 = vmatpush1.xpose.msra.mxu0 %v1931
      %1965 = vmatprep.subr.mxu0 0.0
      %1966 = vmatpush2.xpose.msra.mxu0 0.0
      %1967 = vmatprep.subr.mxu0 0.0
      %1968 = vmatpush2.xpose.msra.mxu0 0.0
      %1969 = vmatprep.subr.mxu0 0.0
      %1970 = vmatpush2.xpose.msra.mxu0 0.0
      %1971 = vmatprep.subr.mxu0 0.0
      %1972 = vmatpush2.xpose.msra.mxu0 0.0
      %1973 = vmatprep.subr.mxu0 0.0
      %1974 = vmatpush2.xpose.msra.mxu0 0.0
      %1975 = vmatprep.subr.mxu0 0.0
      %1976 = vmatpush2.xpose.msra.mxu0 0.0
      %1977 = vmatprep.subr.mxu0 0.0
      %1978 = vmatpush2.xpose.msra.mxu0 0.0
      %1979 = vmatprep.subr.mxu0 0.0
      %1980 = vmatpush2.xpose.msra.mxu0 0.0
      %1981 = vmatprep.subr.mxu0 0.0
      %1982 = vmatpush2.xpose.msra.mxu0 0.0
      %1983 = vmatprep.subr.mxu0 0.0
      %1984 = vmatpush2.xpose.msra.mxu0 0.0
      %1985 = vmatprep.subr.mxu0 0.0
      %1986 = vmatpush2.xpose.msra.mxu0 0.0
      %1987 = vmatprep.subr.mxu0 0.0
      %1988 = vmatpush2.xpose.msra.mxu0 0.0
      %1989 = vmatprep.subr.mxu0 0.0
      %1990 = vmatpush2.xpose.msra.mxu0 0.0
      %1991 = vmatprep.subr.mxu0 0.0
      %1992 = vmatpush2.xpose.msra.mxu0 0.0
      %1993 = vmatprep.subr.mxu0 0.0
      %1994 = vmatpush2.xpose.msra.mxu0 0.0
      %1995 = vmatprep.subr.mxu0 0.0
      %1996 = vmatpush2.xpose.msra.mxu0 0.0
      %1997 = vmatprep.mubr.f32.mxu0 0.0
      %1998 = vmatmul.mubr.f32.gmra.mxu0 %v1929
      %v1999 = vpop.f32.mrf.mxu0
      %v2000 = vadd.f32 0.0, %v1999
      %v2001 = vpop.f32.mrf.mxu0
      %2002 = vdwg.mxu0
      %v2003 = vmul.f32 %v2000, 0.25
      %v2004 = vsel %vm1176, %v2003, -inf
      %2005 = vmax.xlane.f32.xlu0 %v2004
      %v2006 = vpop.xlane.xlu0 %2005
      %v2007 = vsub.f32 %v2003, %v2006
      %v2008 = vmul.f32 %v2007, 1.442695
      %v2009 = vpow.pop %v2008
      %v2010 = vsel %vm1176, %v2009, 0.0
      %2011 = vadd.xlane.f32.xlu0 %v2010
      %v2012 = vpop.xlane.xlu0 %2011
      %v2013 = vrcp.pop %v2012
      %v2014 = vmul.f32 %v2009, %v2013
      %2015 = vrot.lane.b32.xlu0 %v1918, 64
      %v2016 = vpop.permute.xlu0 %2015
      %v2019 = vsel %vm1176, %v2014, 0
      %2021 = vmatprep.subr.mxu0 0.0
      %2022 = vmatpush1.msra.mxu0 0.0
      %2023 = vmatprep.subr.mxu0 0.0
      %2024 = vmatpush1.msra.mxu0 0.0
      %2025 = vmatprep.subr.mxu0 0.0
      %2026 = vmatpush1.msra.mxu0 0.0
      %2027 = vmatprep.subr.mxu0 0.0
      %2028 = vmatpush1.msra.mxu0 0.0
      %2029 = vmatprep.subr.mxu0 0.0
      %2030 = vmatpush1.msra.mxu0 0.0
      %2031 = vmatprep.subr.mxu0 0.0
      %2032 = vmatpush1.msra.mxu0 0.0
      %2033 = vmatprep.subr.mxu0 0.0
      %2034 = vmatpush1.msra.mxu0 0.0
      %2035 = vmatprep.subr.mxu0 0.0
      %2036 = vmatpush1.msra.mxu0 0.0
      %2037 = vmatprep.subr.mxu0 0.0
      %2038 = vmatpush1.msra.mxu0 0.0
      %2039 = vmatprep.subr.mxu0 0.0
      %2040 = vmatpush1.msra.mxu0 0.0
      %2041 = vmatprep.subr.mxu0 0.0
      %2042 = vmatpush1.msra.mxu0 0.0
      %2043 = vmatprep.subr.mxu0 0.0
      %2044 = vmatpush1.msra.mxu0 0.0
      %2045 = vmatprep.subr.mxu0 0.0
      %2046 = vmatpush1.msra.mxu0 0.0
      %2047 = vmatprep.subr.mxu0 0.0
      %2048 = vmatpush1.msra.mxu0 0.0
      %2049 = vmatprep.subr.mxu0 0.0
      %2050 = vmatpush1.msra.mxu0 0.0
      %2051 = vmatprep.subr.mxu0 0.0
      %2052 = vmatpush1.msra.mxu0 %v2016
      %2053 = vmatprep.subr.mxu0 0.0
      %2054 = vmatpush2.msra.mxu0 0.0
      %2055 = vmatprep.subr.mxu0 0.0
      %2056 = vmatpush2.msra.mxu0 0.0
      %2057 = vmatprep.subr.mxu0 0.0
      %2058 = vmatpush2.msra.mxu0 0.0
      %2059 = vmatprep.subr.mxu0 0.0
      %2060 = vmatpush2.msra.mxu0 0.0
      %2061 = vmatprep.subr.mxu0 0.0
      %2062 = vmatpush2.msra.mxu0 0.0
      %2063 = vmatprep.subr.mxu0 0.0
      %2064 = vmatpush2.msra.mxu0 0.0
      %2065 = vmatprep.subr.mxu0 0.0
      %2066 = vmatpush2.msra.mxu0 0.0
      %2067 = vmatprep.subr.mxu0 0.0
      %2068 = vmatpush2.msra.mxu0 0.0
      %2069 = vmatprep.subr.mxu0 0.0
      %2070 = vmatpush2.msra.mxu0 0.0
      %2071 = vmatprep.subr.mxu0 0.0
      %2072 = vmatpush2.msra.mxu0 0.0
      %2073 = vmatprep.subr.mxu0 0.0
      %2074 = vmatpush2.msra.mxu0 0.0
      %2075 = vmatprep.subr.mxu0 0.0
      %2076 = vmatpush2.msra.mxu0 0.0
      %2077 = vmatprep.subr.mxu0 0.0
      %2078 = vmatpush2.msra.mxu0 0.0
      %2079 = vmatprep.subr.mxu0 0.0
      %2080 = vmatpush2.msra.mxu0 0.0
      %2081 = vmatprep.subr.mxu0 0.0
      %2082 = vmatpush2.msra.mxu0 0.0
      %2083 = vmatprep.subr.mxu0 0.0
      %2084 = vmatpush2.msra.mxu0 0.0
      %2085 = vmatprep.mubr.f32.mxu0 0.0
      %2086 = vmatmul.mubr.f32.gmra.mxu0 %v2019
      %v2087 = vpop.f32.mrf.mxu0
      %v2088 = vadd.f32 0.0, %v2087
      %v2089 = vpop.f32.mrf.mxu0
      %2090 = vdwg.mxu0
      %2091 = vrot.lane.b32.xlu0 %v1918, 112
      %v2092 = vpop.permute.xlu0 %2091
      %2093 = vrot.lane.b32.xlu0 %v1918, 80
      %v2094 = vpop.permute.xlu0 %2093
      %v2095 = vsel %vm1100, %v2092, 0
      %v2097 = vsel %vm1100, %v2094, 0
      %2099 = vmatprep.subr.mxu0 0.0
      %2100 = vmatpush1.xpose.msra.mxu0 0.0
      %2101 = vmatprep.subr.mxu0 0.0
      %2102 = vmatpush1.xpose.msra.mxu0 0.0
      %2103 = vmatprep.subr.mxu0 0.0
      %2104 = vmatpush1.xpose.msra.mxu0 0.0
      %2105 = vmatprep.subr.mxu0 0.0
      %2106 = vmatpush1.xpose.msra.mxu0 0.0
      %2107 = vmatprep.subr.mxu0 0.0
      %2108 = vmatpush1.xpose.msra.mxu0 0.0
      %2109 = vmatprep.subr.mxu0 0.0
      %2110 = vmatpush1.xpose.msra.mxu0 0.0
      %2111 = vmatprep.subr.mxu0 0.0
      %2112 = vmatpush1.xpose.msra.mxu0 0.0
      %2113 = vmatprep.subr.mxu0 0.0
      %2114 = vmatpush1.xpose.msra.mxu0 0.0
      %2115 = vmatprep.subr.mxu0 0.0
      %2116 = vmatpush1.xpose.msra.mxu0 0.0
      %2117 = vmatprep.subr.mxu0 0.0
      %2118 = vmatpush1.xpose.msra.mxu0 0.0
      %2119 = vmatprep.subr.mxu0 0.0
      %2120 = vmatpush1.xpose.msra.mxu0 0.0
      %2121 = vmatprep.subr.mxu0 0.0
      %2122 = vmatpush1.xpose.msra.mxu0 0.0
      %2123 = vmatprep.subr.mxu0 0.0
      %2124 = vmatpush1.xpose.msra.mxu0 0.0
      %2125 = vmatprep.subr.mxu0 0.0
      %2126 = vmatpush1.xpose.msra.mxu0 0.0
      %2127 = vmatprep.subr.mxu0 0.0
      %2128 = vmatpush1.xpose.msra.mxu0 0.0
      %2129 = vmatprep.subr.mxu0 0.0
      %2130 = vmatpush1.xpose.msra.mxu0 %v2097
      %2131 = vmatprep.subr.mxu0 0.0
      %2132 = vmatpush2.xpose.msra.mxu0 0.0
      %2133 = vmatprep.subr.mxu0 0.0
      %2134 = vmatpush2.xpose.msra.mxu0 0.0
      %2135 = vmatprep.subr.mxu0 0.0
      %2136 = vmatpush2.xpose.msra.mxu0 0.0
      %2137 = vmatprep.subr.mxu0 0.0
      %2138 = vmatpush2.xpose.msra.mxu0 0.0
      %2139 = vmatprep.subr.mxu0 0.0
      %2140 = vmatpush2.xpose.msra.mxu0 0.0
      %2141 = vmatprep.subr.mxu0 0.0
      %2142 = vmatpush2.xpose.msra.mxu0 0.0
      %2143 = vmatprep.subr.mxu0 0.0
      %2144 = vmatpush2.xpose.msra.mxu0 0.0
      %2145 = vmatprep.subr.mxu0 0.0
      %2146 = vmatpush2.xpose.msra.mxu0 0.0
      %2147 = vmatprep.subr.mxu0 0.0
      %2148 = vmatpush2.xpose.msra.mxu0 0.0
      %2149 = vmatprep.subr.mxu0 0.0
      %2150 = vmatpush2.xpose.msra.mxu0 0.0
      %2151 = vmatprep.subr.mxu0 0.0
      %2152 = vmatpush2.xpose.msra.mxu0 0.0
      %2153 = vmatprep.subr.mxu0 0.0
      %2154 = vmatpush2.xpose.msra.mxu0 0.0
      %2155 = vmatprep.subr.mxu0 0.0
      %2156 = vmatpush2.xpose.msra.mxu0 0.0
      %2157 = vmatprep.subr.mxu0 0.0
      %2158 = vmatpush2.xpose.msra.mxu0 0.0
      %2159 = vmatprep.subr.mxu0 0.0
      %2160 = vmatpush2.xpose.msra.mxu0 0.0
      %2161 = vmatprep.subr.mxu0 0.0
      %2162 = vmatpush2.xpose.msra.mxu0 0.0
      %2163 = vmatprep.mubr.f32.mxu0 0.0
      %2164 = vmatmul.mubr.f32.gmra.mxu0 %v2095
      %v2165 = vpop.f32.mrf.mxu0
      %v2166 = vadd.f32 0.0, %v2165
      %v2167 = vpop.f32.mrf.mxu0
      %2168 = vdwg.mxu0
      %v2169 = vmul.f32 %v2166, 0.25
      %v2170 = vsel %vm1176, %v2169, -inf
      %2171 = vmax.xlane.f32.xlu0 %v2170
      %v2172 = vpop.xlane.xlu0 %2171
      %v2173 = vsub.f32 %v2169, %v2172
      %v2174 = vmul.f32 %v2173, 1.442695
      %v2175 = vpow.pop %v2174
      %v2176 = vsel %vm1176, %v2175, 0.0
      %2177 = vadd.xlane.f32.xlu0 %v2176
      %v2178 = vpop.xlane.xlu0 %2177
      %v2179 = vrcp.pop %v2178
      %v2180 = vmul.f32 %v2175, %v2179
      %2181 = vrot.lane.b32.xlu0 %v1918, 48
      %v2182 = vpop.permute.xlu0 %2181
      %v2185 = vsel %vm1176, %v2180, 0
      %2187 = vmatprep.subr.mxu0 0.0
      %2188 = vmatpush1.msra.mxu0 0.0
      %2189 = vmatprep.subr.mxu0 0.0
      %2190 = vmatpush1.msra.mxu0 0.0
      %2191 = vmatprep.subr.mxu0 0.0
      %2192 = vmatpush1.msra.mxu0 0.0
      %2193 = vmatprep.subr.mxu0 0.0
      %2194 = vmatpush1.msra.mxu0 0.0
      %2195 = vmatprep.subr.mxu0 0.0
      %2196 = vmatpush1.msra.mxu0 0.0
      %2197 = vmatprep.subr.mxu0 0.0
      %2198 = vmatpush1.msra.mxu0 0.0
      %2199 = vmatprep.subr.mxu0 0.0
      %2200 = vmatpush1.msra.mxu0 0.0
      %2201 = vmatprep.subr.mxu0 0.0
      %2202 = vmatpush1.msra.mxu0 0.0
      %2203 = vmatprep.subr.mxu0 0.0
      %2204 = vmatpush1.msra.mxu0 0.0
      %2205 = vmatprep.subr.mxu0 0.0
      %2206 = vmatpush1.msra.mxu0 0.0
      %2207 = vmatprep.subr.mxu0 0.0
      %2208 = vmatpush1.msra.mxu0 0.0
      %2209 = vmatprep.subr.mxu0 0.0
      %2210 = vmatpush1.msra.mxu0 0.0
      %2211 = vmatprep.subr.mxu0 0.0
      %2212 = vmatpush1.msra.mxu0 0.0
      %2213 = vmatprep.subr.mxu0 0.0
      %2214 = vmatpush1.msra.mxu0 0.0
      %2215 = vmatprep.subr.mxu0 0.0
      %2216 = vmatpush1.msra.mxu0 0.0
      %2217 = vmatprep.subr.mxu0 0.0
      %2218 = vmatpush1.msra.mxu0 %v2182
      %2219 = vmatprep.subr.mxu0 0.0
      %2220 = vmatpush2.msra.mxu0 0.0
      %2221 = vmatprep.subr.mxu0 0.0
      %2222 = vmatpush2.msra.mxu0 0.0
      %2223 = vmatprep.subr.mxu0 0.0
      %2224 = vmatpush2.msra.mxu0 0.0
      %2225 = vmatprep.subr.mxu0 0.0
      %2226 = vmatpush2.msra.mxu0 0.0
      %2227 = vmatprep.subr.mxu0 0.0
      %2228 = vmatpush2.msra.mxu0 0.0
      %2229 = vmatprep.subr.mxu0 0.0
      %2230 = vmatpush2.msra.mxu0 0.0
      %2231 = vmatprep.subr.mxu0 0.0
      %2232 = vmatpush2.msra.mxu0 0.0
      %2233 = vmatprep.subr.mxu0 0.0
      %2234 = vmatpush2.msra.mxu0 0.0
      %2235 = vmatprep.subr.mxu0 0.0
      %2236 = vmatpush2.msra.mxu0 0.0
      %2237 = vmatprep.subr.mxu0 0.0
      %2238 = vmatpush2.msra.mxu0 0.0
      %2239 = vmatprep.subr.mxu0 0.0
      %2240 = vmatpush2.msra.mxu0 0.0
      %2241 = vmatprep.subr.mxu0 0.0
      %2242 = vmatpush2.msra.mxu0 0.0
      %2243 = vmatprep.subr.mxu0 0.0
      %2244 = vmatpush2.msra.mxu0 0.0
      %2245 = vmatprep.subr.mxu0 0.0
      %2246 = vmatpush2.msra.mxu0 0.0
      %2247 = vmatprep.subr.mxu0 0.0
      %2248 = vmatpush2.msra.mxu0 0.0
      %2249 = vmatprep.subr.mxu0 0.0
      %2250 = vmatpush2.msra.mxu0 0.0
      %2251 = vmatprep.mubr.f32.mxu0 0.0
      %2252 = vmatmul.mubr.f32.gmra.mxu0 %v2185
      %v2253 = vpop.f32.mrf.mxu0
      %v2254 = vadd.f32 0.0, %v2253
      %v2255 = vpop.f32.mrf.mxu0
      %2256 = vdwg.mxu0
      %v2258 = vsel %vm1100, %v2254, 0
      %2260 = vmatprep.subr.mxu0 0.0
      %2261 = vmatpush1.msra.mxu0 0.0
      %2262 = vmatprep.subr.mxu0 0.0
      %2263 = vmatpush1.msra.mxu0 0.0
      %2264 = vmatprep.subr.mxu0 0.0
      %2265 = vmatpush1.msra.mxu0 0.0
      %2266 = vmatprep.subr.mxu0 0.0
      %2267 = vmatpush1.msra.mxu0 0.0
      %2268 = vmatprep.subr.mxu0 0.0
      %2269 = vmatpush1.msra.mxu0 0.0
      %2270 = vmatprep.subr.mxu0 0.0
      %2271 = vmatpush1.msra.mxu0 0.0
      %2272 = vmatprep.subr.mxu0 0.0
      %2273 = vmatpush1.msra.mxu0 0.0
      %2274 = vmatprep.subr.mxu0 0.0
      %2275 = vmatpush1.msra.mxu0 0.0
      %2276 = vmatprep.subr.mxu0 0.0
      %2277 = vmatpush1.msra.mxu0 0.0
      %2278 = vmatprep.subr.mxu0 0.0
      %2279 = vmatpush1.msra.mxu0 0.0
      %2280 = vmatprep.subr.mxu0 0.0
      %2281 = vmatpush1.msra.mxu0 0.0
      %2282 = vmatprep.subr.mxu0 0.0
      %2283 = vmatpush1.msra.mxu0 0.0
      %2284 = vmatprep.subr.mxu0 0.0
      %2285 = vmatpush1.msra.mxu0 0.0
      %2286 = vmatprep.subr.mxu0 0.0
      %2287 = vmatpush1.msra.mxu0 0.0
      %2288 = vmatprep.subr.mxu0 0.0
      %2289 = vmatpush1.msra.mxu0 %v1925
      %2290 = vmatprep.subr.mxu0 0.0
      %2291 = vmatpush1.msra.mxu0 %v1924
      %2292 = vmatprep.subr.mxu0 0.0
      %2293 = vmatpush2.msra.mxu0 0.0
      %2294 = vmatprep.subr.mxu0 0.0
      %2295 = vmatpush2.msra.mxu0 0.0
      %2296 = vmatprep.subr.mxu0 0.0
      %2297 = vmatpush2.msra.mxu0 0.0
      %2298 = vmatprep.subr.mxu0 0.0
      %2299 = vmatpush2.msra.mxu0 0.0
      %2300 = vmatprep.subr.mxu0 0.0
      %2301 = vmatpush2.msra.mxu0 0.0
      %2302 = vmatprep.subr.mxu0 0.0
      %2303 = vmatpush2.msra.mxu0 0.0
      %2304 = vmatprep.subr.mxu0 0.0
      %2305 = vmatpush2.msra.mxu0 0.0
      %2306 = vmatprep.subr.mxu0 0.0
      %2307 = vmatpush2.msra.mxu0 0.0
      %2308 = vmatprep.subr.mxu0 0.0
      %2309 = vmatpush2.msra.mxu0 0.0
      %2310 = vmatprep.subr.mxu0 0.0
      %2311 = vmatpush2.msra.mxu0 0.0
      %2312 = vmatprep.subr.mxu0 0.0
      %2313 = vmatpush2.msra.mxu0 0.0
      %2314 = vmatprep.subr.mxu0 0.0
      %2315 = vmatpush2.msra.mxu0 0.0
      %2316 = vmatprep.subr.mxu0 0.0
      %2317 = vmatpush2.msra.mxu0 0.0
      %2318 = vmatprep.subr.mxu0 0.0
      %2319 = vmatpush2.msra.mxu0 0.0
      %2320 = vmatprep.subr.mxu0 0.0
      %2321 = vmatpush2.msra.mxu0 0.0
      %2322 = vmatprep.subr.mxu0 0.0
      %2323 = vmatpush2.msra.mxu0 0.0
      %2324 = vmatprep.mubr.f32.mxu0 0.0
      %2325 = vmatmul.mubr.f32.gmra.mxu0 %v2258
      %v2326 = vpop.f32.mrf.mxu0
      %v2327 = vadd.f32 0.0, %v2326
      %v2328 = vpop.f32.mrf.mxu0
      %2329 = vdwg.mxu0
      %v2331 = vsel %vm1100, %v2088, 0
      %2333 = vmatprep.subr.mxu0 0.0
      %2334 = vmatpush1.msra.mxu0 0.0
      %2335 = vmatprep.subr.mxu0 0.0
      %2336 = vmatpush1.msra.mxu0 0.0
      %2337 = vmatprep.subr.mxu0 0.0
      %2338 = vmatpush1.msra.mxu0 0.0
      %2339 = vmatprep.subr.mxu0 0.0
      %2340 = vmatpush1.msra.mxu0 0.0
      %2341 = vmatprep.subr.mxu0 0.0
      %2342 = vmatpush1.msra.mxu0 0.0
      %2343 = vmatprep.subr.mxu0 0.0
      %2344 = vmatpush1.msra.mxu0 0.0
      %2345 = vmatprep.subr.mxu0 0.0
      %2346 = vmatpush1.msra.mxu0 0.0
      %2347 = vmatprep.subr.mxu0 0.0
      %2348 = vmatpush1.msra.mxu0 0.0
      %2349 = vmatprep.subr.mxu0 0.0
      %2350 = vmatpush1.msra.mxu0 0.0
      %2351 = vmatprep.subr.mxu0 0.0
      %2352 = vmatpush1.msra.mxu0 0.0
      %2353 = vmatprep.subr.mxu0 0.0
      %2354 = vmatpush1.msra.mxu0 0.0
      %2355 = vmatprep.subr.mxu0 0.0
      %2356 = vmatpush1.msra.mxu0 0.0
      %2357 = vmatprep.subr.mxu0 0.0
      %2358 = vmatpush1.msra.mxu0 0.0
      %2359 = vmatprep.subr.mxu0 0.0
      %2360 = vmatpush1.msra.mxu0 0.0
      %2361 = vmatprep.subr.mxu0 0.0
      %2362 = vmatpush1.msra.mxu0 %v1923
      %2363 = vmatprep.subr.mxu0 0.0
      %2364 = vmatpush1.msra.mxu0 %v1922
      %2365 = vmatprep.subr.mxu0 0.0
      %2366 = vmatpush2.msra.mxu0 0.0
      %2367 = vmatprep.subr.mxu0 0.0
      %2368 = vmatpush2.msra.mxu0 0.0
      %2369 = vmatprep.subr.mxu0 0.0
      %2370 = vmatpush2.msra.mxu0 0.0
      %2371 = vmatprep.subr.mxu0 0.0
      %2372 = vmatpush2.msra.mxu0 0.0
      %2373 = vmatprep.subr.mxu0 0.0
      %2374 = vmatpush2.msra.mxu0 0.0
      %2375 = vmatprep.subr.mxu0 0.0
      %2376 = vmatpush2.msra.mxu0 0.0
      %2377 = vmatprep.subr.mxu0 0.0
      %2378 = vmatpush2.msra.mxu0 0.0
      %2379 = vmatprep.subr.mxu0 0.0
      %2380 = vmatpush2.msra.mxu0 0.0
      %2381 = vmatprep.subr.mxu0 0.0
      %2382 = vmatpush2.msra.mxu0 0.0
      %2383 = vmatprep.subr.mxu0 0.0
      %2384 = vmatpush2.msra.mxu0 0.0
      %2385 = vmatprep.subr.mxu0 0.0
      %2386 = vmatpush2.msra.mxu0 0.0
      %2387 = vmatprep.subr.mxu0 0.0
      %2388 = vmatpush2.msra.mxu0 0.0
      %2389 = vmatprep.subr.mxu0 0.0
      %2390 = vmatpush2.msra.mxu0 0.0
      %2391 = vmatprep.subr.mxu0 0.0
      %2392 = vmatpush2.msra.mxu0 0.0
      %2393 = vmatprep.subr.mxu0 0.0
      %2394 = vmatpush2.msra.mxu0 0.0
      %2395 = vmatprep.subr.mxu0 0.0
      %2396 = vmatpush2.msra.mxu0 0.0
      %2397 = vmatprep.mubr.f32.mxu0 0.0
      %2398 = vmatmul.mubr.f32.gmra.mxu0 %v2331
      %v2399 = vpop.f32.mrf.mxu0
      %v2400 = vadd.f32 %v2327, %v2399
      %v2401 = vpop.f32.mrf.mxu0
      %2402 = vdwg.mxu0
      %s2403 = scalar_lea.vmem %s15, 1
      %v2404 = vld [vmem:[%s2403] sm:$0x1]
      %v2406 = vlaneseq
      %v2407 = vshrl.u32 %v2406, 7
      %v2408 = vsub.s32 0, %v2407
      %v2409 = vrot.slane %v2404, %v2408
      %v2411 = vadd.f32 %v2400, %v2409
      %v2412 = vadd.f32 %v1832, %v2411
      %v2413 = vsel %vm1019, %v2412, 0.0
      %2414 = vadd.xlane.f32.xlu0 %v2413
      %v2415 = vpop.xlane.xlu0 %2414
      %v2416 = vmul.f32 %v2415, %v1588
      %v2417 = vsub.f32 %v2412, %v2416
      %v2418 = vmul.f32 %v2417, %v2417
      %v2419 = vsel %vm1019, %v2418, 0.0
      %2420 = vadd.xlane.f32.xlu0 %v2419
      %v2421 = vpop.xlane.xlu0 %2420
      %v2422 = vmul.f32 %v2421, %v1588
      %v2423 = vadd.f32 %v2422, 1e-05
      %v2424 = vrsqrt.pop %v2423
      %v2425 = vmul.f32 %v2417, %v2424
      %v2426 = vlaneseq
      %v2427 = vshrl.u32 %v2426, 7
      %v2428 = vsub.s32 0, %v2427
      %v2429 = vrot.slane %v1834, %v2428
      %v2430 = vmul.f32 %v2425, %v2429
      %v2431 = vlaneseq
      %v2432 = vshrl.u32 %v2431, 7
      %v2433 = vsub.s32 1, %v2432
      %v2434 = vrot.slane %v1834, %v2433
      %v2435 = vadd.f32 %v2430, %v2434
      %s2436 = scalar_lea.vmem %s19, 32
      %v2437 = vld [vmem:[%s2436] sm:$0xff]
      %v2438 = vld [vmem:[%s2436 + $0x8] sm:$0xff]
      %v2439 = vld [vmem:[%s2436 + $0x10] sm:$0xff]
      %v2440 = vld [vmem:[%s2436 + $0x18] sm:$0xff]
      %s2441 = scalar_lea.vmem %s21, 1
      %v2442 = vld [vmem:[%s2441] sm:$0x1]
      %s2443 = scalar_lea.vmem %s23, 64
      %v2444 = vld [vmem:[%s2443] sm:$0xff]
      %v2445 = vld [vmem:[%s2443 + $0x8] sm:$0xff]
      %v2446 = vld [vmem:[%s2443 + $0x10] sm:$0xff]
      %v2447 = vld [vmem:[%s2443 + $0x18] sm:$0xff]
      %v2448 = vld [vmem:[%s2443 + $0x20] sm:$0xff]
      %v2449 = vld [vmem:[%s2443 + $0x28] sm:$0xff]
      %v2450 = vld [vmem:[%s2443 + $0x30] sm:$0xff]
      %v2451 = vld [vmem:[%s2443 + $0x38] sm:$0xff]
      %s2452 = scalar_lea.vmem %s25, 1
      %v2453 = vld [vmem:[%s2452] sm:$0x1]
      %v2455 = vlaneseq
      %v2456 = vshrl.u32 %v2455, 7
      %v2457 = vsub.s32 0, %v2456
      %v2458 = vrot.slane %v2442, %v2457
      %v2461 = vsel %vm1019, %v2435, 0
      %2463 = vmatprep.subr.mxu0 0.0
      %2464 = vmatpush1.msra.mxu0 0.0
      %2465 = vmatprep.subr.mxu0 0.0
      %2466 = vmatpush1.msra.mxu0 0.0
      %2467 = vmatprep.subr.mxu0 0.0
      %2468 = vmatpush1.msra.mxu0 0.0
      %2469 = vmatprep.subr.mxu0 0.0
      %2470 = vmatpush1.msra.mxu0 0.0
      %2471 = vmatprep.subr.mxu0 0.0
      %2472 = vmatpush1.msra.mxu0 0.0
      %2473 = vmatprep.subr.mxu0 0.0
      %2474 = vmatpush1.msra.mxu0 0.0
      %2475 = vmatprep.subr.mxu0 0.0
      %2476 = vmatpush1.msra.mxu0 0.0
      %2477 = vmatprep.subr.mxu0 0.0
      %2478 = vmatpush1.msra.mxu0 0.0
      %2479 = vmatprep.subr.mxu0 0.0
      %2480 = vmatpush1.msra.mxu0 0.0
      %2481 = vmatprep.subr.mxu0 0.0
      %2482 = vmatpush1.msra.mxu0 0.0
      %2483 = vmatprep.subr.mxu0 0.0
      %2484 = vmatpush1.msra.mxu0 0.0
      %2485 = vmatprep.subr.mxu0 0.0
      %2486 = vmatpush1.msra.mxu0 0.0
      %2487 = vmatprep.subr.mxu0 0.0
      %2488 = vmatpush1.msra.mxu0 %v2440
      %2489 = vmatprep.subr.mxu0 0.0
      %2490 = vmatpush1.msra.mxu0 %v2439
      %2491 = vmatprep.subr.mxu0 0.0
      %2492 = vmatpush1.msra.mxu0 %v2438
      %2493 = vmatprep.subr.mxu0 0.0
      %2494 = vmatpush1.msra.mxu0 %v2437
      %2495 = vmatprep.subr.mxu0 0.0
      %2496 = vmatpush2.msra.mxu0 0.0
      %2497 = vmatprep.subr.mxu0 0.0
      %2498 = vmatpush2.msra.mxu0 0.0
      %2499 = vmatprep.subr.mxu0 0.0
      %2500 = vmatpush2.msra.mxu0 0.0
      %2501 = vmatprep.subr.mxu0 0.0
      %2502 = vmatpush2.msra.mxu0 0.0
      %2503 = vmatprep.subr.mxu0 0.0
      %2504 = vmatpush2.msra.mxu0 0.0
      %2505 = vmatprep.subr.mxu0 0.0
      %2506 = vmatpush2.msra.mxu0 0.0
      %2507 = vmatprep.subr.mxu0 0.0
      %2508 = vmatpush2.msra.mxu0 0.0
      %2509 = vmatprep.subr.mxu0 0.0
      %2510 = vmatpush2.msra.mxu0 0.0
      %2511 = vmatprep.subr.mxu0 0.0
      %2512 = vmatpush2.msra.mxu0 0.0
      %2513 = vmatprep.subr.mxu0 0.0
      %2514 = vmatpush2.msra.mxu0 0.0
      %2515 = vmatprep.subr.mxu0 0.0
      %2516 = vmatpush2.msra.mxu0 0.0
      %2517 = vmatprep.subr.mxu0 0.0
      %2518 = vmatpush2.msra.mxu0 0.0
      %2519 = vmatprep.subr.mxu0 0.0
      %2520 = vmatpush2.msra.mxu0 0.0
      %2521 = vmatprep.subr.mxu0 0.0
      %2522 = vmatpush2.msra.mxu0 0.0
      %2523 = vmatprep.subr.mxu0 0.0
      %2524 = vmatpush2.msra.mxu0 0.0
      %2525 = vmatprep.subr.mxu0 0.0
      %2526 = vmatpush2.msra.mxu0 0.0
      %2527 = vmatprep.mubr.f32.mxu0 0.0
      %2528 = vmatmul.mubr.f32.gmra.mxu0 %v2461
      %v2529 = vpop.f32.mrf.mxu0
      %v2530 = vadd.f32 %v2458, %v2529
      %v2531 = vpop.f32.mrf.mxu0
      %2532 = vdwg.mxu0
      %v2533 = vmul.f32 %v2530, 0.5
      %v2534 = vmul.f32 %v2530, 0.70710677
      %vm2535 = vcmp.ge.f32.partialorder %v2534, 0.0
      %v2536 = vsel %vm2535, 1.0, -1.0
      %v2537 = vand.u32 2147483647, %v2534
      %v2538 = vmul.f32 %v2537, 0.3275911
      %v2539 = vadd.f32 %v2538, 1.0
      %v2540 = vrcp.pop %v2539
      %v2541 = vmul.f32 1.0, %v2540
      %v2542 = vmul.f32 %v2541, 1.0614054
      %v2543 = vadd.f32 %v2542, -1.4531521
      %v2544 = vmul.f32 %v2543, %v2541
      %v2545 = vadd.f32 %v2544, 1.4214138
      %v2546 = vmul.f32 %v2545, %v2541
      %v2547 = vadd.f32 %v2546, -0.28449672
      %v2548 = vmul.f32 %v2547, %v2541
      %v2549 = vadd.f32 %v2548, 0.2548296
      %v2550 = vmul.f32 %v2549, %v2541
      %v2551 = vsub.f32 0.0, %v2537
      %v2552 = vmul.f32 %v2551, %v2537
      %v2553 = vmul.f32 %v2552, 1.442695
      %v2554 = vpow.pop %v2553
      %v2555 = vmul.f32 %v2550, %v2554
      %v2556 = vsub.f32 1.0, %v2555
      %v2557 = vmul.f32 %v2536, %v2556
      %v2558 = vadd.f32 %v2557, 1.0
      %v2559 = vmul.f32 %v2533, %v2558
      %v2561 = vlaneseq
      %v2562 = vshrl.u32 %v2561, 7
      %v2563 = vsub.s32 0, %v2562
      %v2564 = vrot.slane %v2453, %v2563
      %v2567 = vsel %vm1735, %v2559, 0
      %2569 = vmatprep.subr.mxu0 0.0
      %2570 = vmatpush1.msra.mxu0 0.0
      %2571 = vmatprep.subr.mxu0 0.0
      %2572 = vmatpush1.msra.mxu0 0.0
      %2573 = vmatprep.subr.mxu0 0.0
      %2574 = vmatpush1.msra.mxu0 0.0
      %2575 = vmatprep.subr.mxu0 0.0
      %2576 = vmatpush1.msra.mxu0 0.0
      %2577 = vmatprep.subr.mxu0 0.0
      %2578 = vmatpush1.msra.mxu0 0.0
      %2579 = vmatprep.subr.mxu0 0.0
      %2580 = vmatpush1.msra.mxu0 0.0
      %2581 = vmatprep.subr.mxu0 0.0
      %2582 = vmatpush1.msra.mxu0 0.0
      %2583 = vmatprep.subr.mxu0 0.0
      %2584 = vmatpush1.msra.mxu0 0.0
      %2585 = vmatprep.subr.mxu0 0.0
      %2586 = vmatpush1.msra.mxu0 %v2451
      %2587 = vmatprep.subr.mxu0 0.0
      %2588 = vmatpush1.msra.mxu0 %v2450
      %2589 = vmatprep.subr.mxu0 0.0
      %2590 = vmatpush1.msra.mxu0 %v2449
      %2591 = vmatprep.subr.mxu0 0.0
      %2592 = vmatpush1.msra.mxu0 %v2448
      %2593 = vmatprep.subr.mxu0 0.0
      %2594 = vmatpush1.msra.mxu0 %v2447
      %2595 = vmatprep.subr.mxu0 0.0
      %2596 = vmatpush1.msra.mxu0 %v2446
      %2597 = vmatprep.subr.mxu0 0.0
      %2598 = vmatpush1.msra.mxu0 %v2445
      %2599 = vmatprep.subr.mxu0 0.0
      %2600 = vmatpush1.msra.mxu0 %v2444
      %2601 = vmatprep.subr.mxu0 0.0
      %2602 = vmatpush2.msra.mxu0 0.0
      %2603 = vmatprep.subr.mxu0 0.0
      %2604 = vmatpush2.msra.mxu0 0.0
      %2605 = vmatprep.subr.mxu0 0.0
      %2606 = vmatpush2.msra.mxu0 0.0
      %2607 = vmatprep.subr.mxu0 0.0
      %2608 = vmatpush2.msra.mxu0 0.0
      %2609 = vmatprep.subr.mxu0 0.0
      %2610 = vmatpush2.msra.mxu0 0.0
      %2611 = vmatprep.subr.mxu0 0.0
      %2612 = vmatpush2.msra.mxu0 0.0
      %2613 = vmatprep.subr.mxu0 0.0
      %2614 = vmatpush2.msra.mxu0 0.0
      %2615 = vmatprep.subr.mxu0 0.0
      %2616 = vmatpush2.msra.mxu0 0.0
      %2617 = vmatprep.subr.mxu0 0.0
      %2618 = vmatpush2.msra.mxu0 0.0
      %2619 = vmatprep.subr.mxu0 0.0
      %2620 = vmatpush2.msra.mxu0 0.0
      %2621 = vmatprep.subr.mxu0 0.0
      %2622 = vmatpush2.msra.mxu0 0.0
      %2623 = vmatprep.subr.mxu0 0.0
      %2624 = vmatpush2.msra.mxu0 0.0
      %2625 = vmatprep.subr.mxu0 0.0
      %2626 = vmatpush2.msra.mxu0 0.0
      %2627 = vmatprep.subr.mxu0 0.0
      %2628 = vmatpush2.msra.mxu0 0.0
      %2629 = vmatprep.subr.mxu0 0.0
      %2630 = vmatpush2.msra.mxu0 0.0
      %2631 = vmatprep.subr.mxu0 0.0
      %2632 = vmatpush2.msra.mxu0 0.0
      %2633 = vmatprep.mubr.f32.mxu0 0.0
      %2634 = vmatmul.mubr.f32.gmra.mxu0 %v2567
      %v2635 = vpop.f32.mrf.mxu0
      %v2636 = vadd.f32 %v2564, %v2635
      %v2637 = vpop.f32.mrf.mxu0
      %2638 = vdwg.mxu0
      %v2639 = vadd.f32 %v2435, %v2636
      %v2640 = vsel %vm1019, %v2639, 0.0
      %2641 = vadd.xlane.f32.xlu0 %v2640
      %v2642 = vpop.xlane.xlu0 %2641
      %v2643 = vmul.f32 %v2642, %v1588
      %v2644 = vsub.f32 %v2639, %v2643
      %v2645 = vmul.f32 %v2644, %v2644
      %v2646 = vsel %vm1019, %v2645, 0.0
      %2647 = vadd.xlane.f32.xlu0 %v2646
      %v2648 = vpop.xlane.xlu0 %2647
      %v2649 = vmul.f32 %v2648, %v1588
      %v2650 = vadd.f32 %v2649, 1e-05
      %v2651 = vrsqrt.pop %v2650
      %v2652 = vmul.f32 %v2644, %v2651
      %v2653 = vlaneseq
      %v2654 = vshrl.u32 %v2653, 7
      %v2655 = vsub.s32 2, %v2654
      %v2656 = vrot.slane %v1834, %v2655
      %v2657 = vmul.f32 %v2652, %v2656
      %v2658 = vlaneseq
      %v2659 = vshrl.u32 %v2658, 7
      %v2660 = vsub.s32 3, %v2659
      %v2661 = vrot.slane %v1834, %v2660
      %v2662 = vadd.f32 %v2657, %v2661
      %v2663 = vld [vmem:[%s57] sm:$0x3]
      %v2664 = vsel %vm1019, %v2662, 0.0
      %2665 = vadd.xlane.f32.xlu0 %v2664
      %v2666 = vpop.xlane.xlu0 %2665
      %v2667 = vmul.f32 %v2666, %v1588
      %v2668 = vsub.f32 %v2662, %v2667
      %v2669 = vmul.f32 %v2668, %v2668
      %v2670 = vsel %vm1019, %v2669, 0.0
      %2671 = vadd.xlane.f32.xlu0 %v2670
      %v2672 = vpop.xlane.xlu0 %2671
      %v2673 = vmul.f32 %v2672, %v1588
      %v2674 = vadd.f32 %v2673, 1e-05
      %v2675 = vrsqrt.pop %v2674
      %v2676 = vmul.f32 %v2668, %v2675
      %v2677 = vlaneseq
      %v2678 = vshrl.u32 %v2677, 7
      %v2679 = vsub.s32 0, %v2678
      %v2680 = vrot.slane %v2663, %v2679
      %v2681 = vmul.f32 %v2676, %v2680
      %v2682 = vlaneseq
      %v2683 = vshrl.u32 %v2682, 7
      %v2684 = vsub.s32 1, %v2683
      %v2685 = vrot.slane %v2663, %v2684
      %v2686 = vadd.f32 %v2681, %v2685
      %v2687 = vld [vmem:[%s47] sm:$0x3f]
      %v2688 = vld [vmem:[%s27] sm:$0xff]
      %v2689 = vld [vmem:[%s27 + $0x8] sm:$0xff]
      %v2690 = vld [vmem:[%s27 + $0x10] sm:$0xff]
      %v2691 = vld [vmem:[%s27 + $0x18] sm:$0xff]
      %v2692 = vld [vmem:[%s29] sm:$0x1]
      %v2694 = vlaneseq
      %v2695 = vshrl.u32 %v2694, 7
      %v2696 = vsub.s32 0, %v2695
      %v2697 = vrot.slane %v2692, %v2696
      %v2700 = vsel %vm1019, %v1006, 0
      %2702 = vmatprep.subr.mxu0 0.0
      %2703 = vmatpush1.msra.mxu0 0.0
      %2704 = vmatprep.subr.mxu0 0.0
      %2705 = vmatpush1.msra.mxu0 0.0
      %2706 = vmatprep.subr.mxu0 0.0
      %2707 = vmatpush1.msra.mxu0 0.0
      %2708 = vmatprep.subr.mxu0 0.0
      %2709 = vmatpush1.msra.mxu0 0.0
      %2710 = vmatprep.subr.mxu0 0.0
      %2711 = vmatpush1.msra.mxu0 0.0
      %2712 = vmatprep.subr.mxu0 0.0
      %2713 = vmatpush1.msra.mxu0 0.0
      %2714 = vmatprep.subr.mxu0 0.0
      %2715 = vmatpush1.msra.mxu0 0.0
      %2716 = vmatprep.subr.mxu0 0.0
      %2717 = vmatpush1.msra.mxu0 0.0
      %2718 = vmatprep.subr.mxu0 0.0
      %2719 = vmatpush1.msra.mxu0 0.0
      %2720 = vmatprep.subr.mxu0 0.0
      %2721 = vmatpush1.msra.mxu0 0.0
      %2722 = vmatprep.subr.mxu0 0.0
      %2723 = vmatpush1.msra.mxu0 0.0
      %2724 = vmatprep.subr.mxu0 0.0
      %2725 = vmatpush1.msra.mxu0 0.0
      %2726 = vmatprep.subr.mxu0 0.0
      %2727 = vmatpush1.msra.mxu0 %v2691
      %2728 = vmatprep.subr.mxu0 0.0
      %2729 = vmatpush1.msra.mxu0 %v2690
      %2730 = vmatprep.subr.mxu0 0.0
      %2731 = vmatpush1.msra.mxu0 %v2689
      %2732 = vmatprep.subr.mxu0 0.0
      %2733 = vmatpush1.msra.mxu0 %v2688
      %2734 = vmatprep.subr.mxu0 0.0
      %2735 = vmatpush2.msra.mxu0 0.0
      %2736 = vmatprep.subr.mxu0 0.0
      %2737 = vmatpush2.msra.mxu0 0.0
      %2738 = vmatprep.subr.mxu0 0.0
      %2739 = vmatpush2.msra.mxu0 0.0
      %2740 = vmatprep.subr.mxu0 0.0
      %2741 = vmatpush2.msra.mxu0 0.0
      %2742 = vmatprep.subr.mxu0 0.0
      %2743 = vmatpush2.msra.mxu0 0.0
      %2744 = vmatprep.subr.mxu0 0.0
      %2745 = vmatpush2.msra.mxu0 0.0
      %2746 = vmatprep.subr.mxu0 0.0
      %2747 = vmatpush2.msra.mxu0 0.0
      %2748 = vmatprep.subr.mxu0 0.0
      %2749 = vmatpush2.msra.mxu0 0.0
      %2750 = vmatprep.subr.mxu0 0.0
      %2751 = vmatpush2.msra.mxu0 0.0
      %2752 = vmatprep.subr.mxu0 0.0
      %2753 = vmatpush2.msra.mxu0 0.0
      %2754 = vmatprep.subr.mxu0 0.0
      %2755 = vmatpush2.msra.mxu0 0.0
      %2756 = vmatprep.subr.mxu0 0.0
      %2757 = vmatpush2.msra.mxu0 0.0
      %2758 = vmatprep.subr.mxu0 0.0
      %2759 = vmatpush2.msra.mxu0 0.0
      %2760 = vmatprep.subr.mxu0 0.0
      %2761 = vmatpush2.msra.mxu0 0.0
      %2762 = vmatprep.subr.mxu0 0.0
      %2763 = vmatpush2.msra.mxu0 0.0
      %2764 = vmatprep.subr.mxu0 0.0
      %2765 = vmatpush2.msra.mxu0 0.0
      %2766 = vmatprep.mubr.f32.mxu0 0.0
      %2767 = vmatmul.mubr.f32.gmra.mxu0 %v2700
      %v2768 = vpop.f32.mrf.mxu0
      %v2769 = vadd.f32 %v2697, %v2768
      %v2770 = vpop.f32.mrf.mxu0
      %2771 = vdwg.mxu0
      %v2772 = vld [vmem:[%s31] sm:$0xff]
      %v2773 = vld [vmem:[%s31 + $0x8] sm:$0xff]
      %v2774 = vld [vmem:[%s31 + $0x10] sm:$0xff]
      %v2775 = vld [vmem:[%s31 + $0x18] sm:$0xff]
      %2777 = vrot.lane.b32.xlu0 %v2769, 96
      %v2778 = vpop.permute.xlu0 %2777
      %v2779 = vsel %vm1100, %v2769, 0
      %v2781 = vsel %vm1100, %v2778, 0
      %2783 = vmatprep.subr.mxu0 0.0
      %2784 = vmatpush1.xpose.msra.mxu0 0.0
      %2785 = vmatprep.subr.mxu0 0.0
      %2786 = vmatpush1.xpose.msra.mxu0 0.0
      %2787 = vmatprep.subr.mxu0 0.0
      %2788 = vmatpush1.xpose.msra.mxu0 0.0
      %2789 = vmatprep.subr.mxu0 0.0
      %2790 = vmatpush1.xpose.msra.mxu0 0.0
      %2791 = vmatprep.subr.mxu0 0.0
      %2792 = vmatpush1.xpose.msra.mxu0 0.0
      %2793 = vmatprep.subr.mxu0 0.0
      %2794 = vmatpush1.xpose.msra.mxu0 0.0
      %2795 = vmatprep.subr.mxu0 0.0
      %2796 = vmatpush1.xpose.msra.mxu0 0.0
      %2797 = vmatprep.subr.mxu0 0.0
      %2798 = vmatpush1.xpose.msra.mxu0 0.0
      %2799 = vmatprep.subr.mxu0 0.0
      %2800 = vmatpush1.xpose.msra.mxu0 0.0
      %2801 = vmatprep.subr.mxu0 0.0
      %2802 = vmatpush1.xpose.msra.mxu0 0.0
      %2803 = vmatprep.subr.mxu0 0.0
      %2804 = vmatpush1.xpose.msra.mxu0 0.0
      %2805 = vmatprep.subr.mxu0 0.0
      %2806 = vmatpush1.xpose.msra.mxu0 0.0
      %2807 = vmatprep.subr.mxu0 0.0
      %2808 = vmatpush1.xpose.msra.mxu0 0.0
      %2809 = vmatprep.subr.mxu0 0.0
      %2810 = vmatpush1.xpose.msra.mxu0 0.0
      %2811 = vmatprep.subr.mxu0 0.0
      %2812 = vmatpush1.xpose.msra.mxu0 0.0
      %2813 = vmatprep.subr.mxu0 0.0
      %2814 = vmatpush1.xpose.msra.mxu0 %v2781
      %2815 = vmatprep.subr.mxu0 0.0
      %2816 = vmatpush2.xpose.msra.mxu0 0.0
      %2817 = vmatprep.subr.mxu0 0.0
      %2818 = vmatpush2.xpose.msra.mxu0 0.0
      %2819 = vmatprep.subr.mxu0 0.0
      %2820 = vmatpush2.xpose.msra.mxu0 0.0
      %2821 = vmatprep.subr.mxu0 0.0
      %2822 = vmatpush2.xpose.msra.mxu0 0.0
      %2823 = vmatprep.subr.mxu0 0.0
      %2824 = vmatpush2.xpose.msra.mxu0 0.0
      %2825 = vmatprep.subr.mxu0 0.0
      %2826 = vmatpush2.xpose.msra.mxu0 0.0
      %2827 = vmatprep.subr.mxu0 0.0
      %2828 = vmatpush2.xpose.msra.mxu0 0.0
      %2829 = vmatprep.subr.mxu0 0.0
      %2830 = vmatpush2.xpose.msra.mxu0 0.0
      %2831 = vmatprep.subr.mxu0 0.0
      %2832 = vmatpush2.xpose.msra.mxu0 0.0
      %2833 = vmatprep.subr.mxu0 0.0
      %2834 = vmatpush2.xpose.msra.mxu0 0.0
      %2835 = vmatprep.subr.mxu0 0.0
      %2836 = vmatpush2.xpose.msra.mxu0 0.0
      %2837 = vmatprep.subr.mxu0 0.0
      %2838 = vmatpush2.xpose.msra.mxu0 0.0
      %2839 = vmatprep.subr.mxu0 0.0
      %2840 = vmatpush2.xpose.msra.mxu0 0.0
      %2841 = vmatprep.subr.mxu0 0.0
      %2842 = vmatpush2.xpose.msra.mxu0 0.0
      %2843 = vmatprep.subr.mxu0 0.0
      %2844 = vmatpush2.xpose.msra.mxu0 0.0
      %2845 = vmatprep.subr.mxu0 0.0
      %2846 = vmatpush2.xpose.msra.mxu0 0.0
      %2847 = vmatprep.mubr.f32.mxu0 0.0
      %2848 = vmatmul.mubr.f32.gmra.mxu0 %v2779
      %v2849 = vpop.f32.mrf.mxu0
      %v2850 = vadd.f32 0.0, %v2849
      %v2851 = vpop.f32.mrf.mxu0
      %2852 = vdwg.mxu0
      %v2853 = vmul.f32 %v2850, 0.25
      %v2854 = vsel %vm1176, %v2853, -inf
      %2855 = vmax.xlane.f32.xlu0 %v2854
      %v2856 = vpop.xlane.xlu0 %2855
      %v2857 = vsub.f32 %v2853, %v2856
      %v2858 = vmul.f32 %v2857, 1.442695
      %v2859 = vpow.pop %v2858
      %v2860 = vsel %vm1176, %v2859, 0.0
      %2861 = vadd.xlane.f32.xlu0 %v2860
      %v2862 = vpop.xlane.xlu0 %2861
      %v2863 = vrcp.pop %v2862
      %v2864 = vmul.f32 %v2859, %v2863
      %2865 = vrot.lane.b32.xlu0 %v2769, 64
      %v2866 = vpop.permute.xlu0 %2865
      %v2869 = vsel %vm1176, %v2864, 0
      %2871 = vmatprep.subr.mxu0 0.0
      %2872 = vmatpush1.msra.mxu0 0.0
      %2873 = vmatprep.subr.mxu0 0.0
      %2874 = vmatpush1.msra.mxu0 0.0
      %2875 = vmatprep.subr.mxu0 0.0
      %2876 = vmatpush1.msra.mxu0 0.0
      %2877 = vmatprep.subr.mxu0 0.0
      %2878 = vmatpush1.msra.mxu0 0.0
      %2879 = vmatprep.subr.mxu0 0.0
      %2880 = vmatpush1.msra.mxu0 0.0
      %2881 = vmatprep.subr.mxu0 0.0
      %2882 = vmatpush1.msra.mxu0 0.0
      %2883 = vmatprep.subr.mxu0 0.0
      %2884 = vmatpush1.msra.mxu0 0.0
      %2885 = vmatprep.subr.mxu0 0.0
      %2886 = vmatpush1.msra.mxu0 0.0
      %2887 = vmatprep.subr.mxu0 0.0
      %2888 = vmatpush1.msra.mxu0 0.0
      %2889 = vmatprep.subr.mxu0 0.0
      %2890 = vmatpush1.msra.mxu0 0.0
      %2891 = vmatprep.subr.mxu0 0.0
      %2892 = vmatpush1.msra.mxu0 0.0
      %2893 = vmatprep.subr.mxu0 0.0
      %2894 = vmatpush1.msra.mxu0 0.0
      %2895 = vmatprep.subr.mxu0 0.0
      %2896 = vmatpush1.msra.mxu0 0.0
      %2897 = vmatprep.subr.mxu0 0.0
      %2898 = vmatpush1.msra.mxu0 0.0
      %2899 = vmatprep.subr.mxu0 0.0
      %2900 = vmatpush1.msra.mxu0 0.0
      %2901 = vmatprep.subr.mxu0 0.0
      %2902 = vmatpush1.msra.mxu0 %v2866
      %2903 = vmatprep.subr.mxu0 0.0
      %2904 = vmatpush2.msra.mxu0 0.0
      %2905 = vmatprep.subr.mxu0 0.0
      %2906 = vmatpush2.msra.mxu0 0.0
      %2907 = vmatprep.subr.mxu0 0.0
      %2908 = vmatpush2.msra.mxu0 0.0
      %2909 = vmatprep.subr.mxu0 0.0
      %2910 = vmatpush2.msra.mxu0 0.0
      %2911 = vmatprep.subr.mxu0 0.0
      %2912 = vmatpush2.msra.mxu0 0.0
      %2913 = vmatprep.subr.mxu0 0.0
      %2914 = vmatpush2.msra.mxu0 0.0
      %2915 = vmatprep.subr.mxu0 0.0
      %2916 = vmatpush2.msra.mxu0 0.0
      %2917 = vmatprep.subr.mxu0 0.0
      %2918 = vmatpush2.msra.mxu0 0.0
      %2919 = vmatprep.subr.mxu0 0.0
      %2920 = vmatpush2.msra.mxu0 0.0
      %2921 = vmatprep.subr.mxu0 0.0
      %2922 = vmatpush2.msra.mxu0 0.0
      %2923 = vmatprep.subr.mxu0 0.0
      %2924 = vmatpush2.msra.mxu0 0.0
      %2925 = vmatprep.subr.mxu0 0.0
      %2926 = vmatpush2.msra.mxu0 0.0
      %2927 = vmatprep.subr.mxu0 0.0
      %2928 = vmatpush2.msra.mxu0 0.0
      %2929 = vmatprep.subr.mxu0 0.0
      %2930 = vmatpush2.msra.mxu0 0.0
      %2931 = vmatprep.subr.mxu0 0.0
      %2932 = vmatpush2.msra.mxu0 0.0
      %2933 = vmatprep.subr.mxu0 0.0
      %2934 = vmatpush2.msra.mxu0 0.0
      %2935 = vmatprep.mubr.f32.mxu0 0.0
      %2936 = vmatmul.mubr.f32.gmra.mxu0 %v2869
      %v2937 = vpop.f32.mrf.mxu0
      %v2938 = vadd.f32 0.0, %v2937
      %v2939 = vpop.f32.mrf.mxu0
      %2940 = vdwg.mxu0
      %2941 = vrot.lane.b32.xlu0 %v2769, 112
      %v2942 = vpop.permute.xlu0 %2941
      %2943 = vrot.lane.b32.xlu0 %v2769, 80
      %v2944 = vpop.permute.xlu0 %2943
      %v2945 = vsel %vm1100, %v2942, 0
      %v2947 = vsel %vm1100, %v2944, 0
      %2949 = vmatprep.subr.mxu0 0.0
      %2950 = vmatpush1.xpose.msra.mxu0 0.0
      %2951 = vmatprep.subr.mxu0 0.0
      %2952 = vmatpush1.xpose.msra.mxu0 0.0
      %2953 = vmatprep.subr.mxu0 0.0
      %2954 = vmatpush1.xpose.msra.mxu0 0.0
      %2955 = vmatprep.subr.mxu0 0.0
      %2956 = vmatpush1.xpose.msra.mxu0 0.0
      %2957 = vmatprep.subr.mxu0 0.0
      %2958 = vmatpush1.xpose.msra.mxu0 0.0
      %2959 = vmatprep.subr.mxu0 0.0
      %2960 = vmatpush1.xpose.msra.mxu0 0.0
      %2961 = vmatprep.subr.mxu0 0.0
      %2962 = vmatpush1.xpose.msra.mxu0 0.0
      %2963 = vmatprep.subr.mxu0 0.0
      %2964 = vmatpush1.xpose.msra.mxu0 0.0
      %2965 = vmatprep.subr.mxu0 0.0
      %2966 = vmatpush1.xpose.msra.mxu0 0.0
      %2967 = vmatprep.subr.mxu0 0.0
      %2968 = vmatpush1.xpose.msra.mxu0 0.0
      %2969 = vmatprep.subr.mxu0 0.0
      %2970 = vmatpush1.xpose.msra.mxu0 0.0
      %2971 = vmatprep.subr.mxu0 0.0
      %2972 = vmatpush1.xpose.msra.mxu0 0.0
      %2973 = vmatprep.subr.mxu0 0.0
      %2974 = vmatpush1.xpose.msra.mxu0 0.0
      %2975 = vmatprep.subr.mxu0 0.0
      %2976 = vmatpush1.xpose.msra.mxu0 0.0
      %2977 = vmatprep.subr.mxu0 0.0
      %2978 = vmatpush1.xpose.msra.mxu0 0.0
      %2979 = vmatprep.subr.mxu0 0.0
      %2980 = vmatpush1.xpose.msra.mxu0 %v2947
      %2981 = vmatprep.subr.mxu0 0.0
      %2982 = vmatpush2.xpose.msra.mxu0 0.0
      %2983 = vmatprep.subr.mxu0 0.0
      %2984 = vmatpush2.xpose.msra.mxu0 0.0
      %2985 = vmatprep.subr.mxu0 0.0
      %2986 = vmatpush2.xpose.msra.mxu0 0.0
      %2987 = vmatprep.subr.mxu0 0.0
      %2988 = vmatpush2.xpose.msra.mxu0 0.0
      %2989 = vmatprep.subr.mxu0 0.0
      %2990 = vmatpush2.xpose.msra.mxu0 0.0
      %2991 = vmatprep.subr.mxu0 0.0
      %2992 = vmatpush2.xpose.msra.mxu0 0.0
      %2993 = vmatprep.subr.mxu0 0.0
      %2994 = vmatpush2.xpose.msra.mxu0 0.0
      %2995 = vmatprep.subr.mxu0 0.0
      %2996 = vmatpush2.xpose.msra.mxu0 0.0
      %2997 = vmatprep.subr.mxu0 0.0
      %2998 = vmatpush2.xpose.msra.mxu0 0.0
      %2999 = vmatprep.subr.mxu0 0.0
      %3000 = vmatpush2.xpose.msra.mxu0 0.0
      %3001 = vmatprep.subr.mxu0 0.0
      %3002 = vmatpush2.xpose.msra.mxu0 0.0
      %3003 = vmatprep.subr.mxu0 0.0
      %3004 = vmatpush2.xpose.msra.mxu0 0.0
      %3005 = vmatprep.subr.mxu0 0.0
      %3006 = vmatpush2.xpose.msra.mxu0 0.0
      %3007 = vmatprep.subr.mxu0 0.0
      %3008 = vmatpush2.xpose.msra.mxu0 0.0
      %3009 = vmatprep.subr.mxu0 0.0
      %3010 = vmatpush2.xpose.msra.mxu0 0.0
      %3011 = vmatprep.subr.mxu0 0.0
      %3012 = vmatpush2.xpose.msra.mxu0 0.0
      %3013 = vmatprep.mubr.f32.mxu0 0.0
      %3014 = vmatmul.mubr.f32.gmra.mxu0 %v2945
      %v3015 = vpop.f32.mrf.mxu0
      %v3016 = vadd.f32 0.0, %v3015
      %v3017 = vpop.f32.mrf.mxu0
      %3018 = vdwg.mxu0
      %v3019 = vmul.f32 %v3016, 0.25
      %v3020 = vsel %vm1176, %v3019, -inf
      %3021 = vmax.xlane.f32.xlu0 %v3020
      %v3022 = vpop.xlane.xlu0 %3021
      %v3023 = vsub.f32 %v3019, %v3022
      %v3024 = vmul.f32 %v3023, 1.442695
      %v3025 = vpow.pop %v3024
      %v3026 = vsel %vm1176, %v3025, 0.0
      %3027 = vadd.xlane.f32.xlu0 %v3026
      %v3028 = vpop.xlane.xlu0 %3027
      %v3029 = vrcp.pop %v3028
      %v3030 = vmul.f32 %v3025, %v3029
      %3031 = vrot.lane.b32.xlu0 %v2769, 48
      %v3032 = vpop.permute.xlu0 %3031
      %v3035 = vsel %vm1176, %v3030, 0
      %3037 = vmatprep.subr.mxu0 0.0
      %3038 = vmatpush1.msra.mxu0 0.0
      %3039 = vmatprep.subr.mxu0 0.0
      %3040 = vmatpush1.msra.mxu0 0.0
      %3041 = vmatprep.subr.mxu0 0.0
      %3042 = vmatpush1.msra.mxu0 0.0
      %3043 = vmatprep.subr.mxu0 0.0
      %3044 = vmatpush1.msra.mxu0 0.0
      %3045 = vmatprep.subr.mxu0 0.0
      %3046 = vmatpush1.msra.mxu0 0.0
      %3047 = vmatprep.subr.mxu0 0.0
      %3048 = vmatpush1.msra.mxu0 0.0
      %3049 = vmatprep.subr.mxu0 0.0
      %3050 = vmatpush1.msra.mxu0 0.0
      %3051 = vmatprep.subr.mxu0 0.0
      %3052 = vmatpush1.msra.mxu0 0.0
      %3053 = vmatprep.subr.mxu0 0.0
      %3054 = vmatpush1.msra.mxu0 0.0
      %3055 = vmatprep.subr.mxu0 0.0
      %3056 = vmatpush1.msra.mxu0 0.0
      %3057 = vmatprep.subr.mxu0 0.0
      %3058 = vmatpush1.msra.mxu0 0.0
      %3059 = vmatprep.subr.mxu0 0.0
      %3060 = vmatpush1.msra.mxu0 0.0
      %3061 = vmatprep.subr.mxu0 0.0
      %3062 = vmatpush1.msra.mxu0 0.0
      %3063 = vmatprep.subr.mxu0 0.0
      %3064 = vmatpush1.msra.mxu0 0.0
      %3065 = vmatprep.subr.mxu0 0.0
      %3066 = vmatpush1.msra.mxu0 0.0
      %3067 = vmatprep.subr.mxu0 0.0
      %3068 = vmatpush1.msra.mxu0 %v3032
      %3069 = vmatprep.subr.mxu0 0.0
      %3070 = vmatpush2.msra.mxu0 0.0
      %3071 = vmatprep.subr.mxu0 0.0
      %3072 = vmatpush2.msra.mxu0 0.0
      %3073 = vmatprep.subr.mxu0 0.0
      %3074 = vmatpush2.msra.mxu0 0.0
      %3075 = vmatprep.subr.mxu0 0.0
      %3076 = vmatpush2.msra.mxu0 0.0
      %3077 = vmatprep.subr.mxu0 0.0
      %3078 = vmatpush2.msra.mxu0 0.0
      %3079 = vmatprep.subr.mxu0 0.0
      %3080 = vmatpush2.msra.mxu0 0.0
      %3081 = vmatprep.subr.mxu0 0.0
      %3082 = vmatpush2.msra.mxu0 0.0
      %3083 = vmatprep.subr.mxu0 0.0
      %3084 = vmatpush2.msra.mxu0 0.0
      %3085 = vmatprep.subr.mxu0 0.0
      %3086 = vmatpush2.msra.mxu0 0.0
      %3087 = vmatprep.subr.mxu0 0.0
      %3088 = vmatpush2.msra.mxu0 0.0
      %3089 = vmatprep.subr.mxu0 0.0
      %3090 = vmatpush2.msra.mxu0 0.0
      %3091 = vmatprep.subr.mxu0 0.0
      %3092 = vmatpush2.msra.mxu0 0.0
      %3093 = vmatprep.subr.mxu0 0.0
      %3094 = vmatpush2.msra.mxu0 0.0
      %3095 = vmatprep.subr.mxu0 0.0
      %3096 = vmatpush2.msra.mxu0 0.0
      %3097 = vmatprep.subr.mxu0 0.0
      %3098 = vmatpush2.msra.mxu0 0.0
      %3099 = vmatprep.subr.mxu0 0.0
      %3100 = vmatpush2.msra.mxu0 0.0
      %3101 = vmatprep.mubr.f32.mxu0 0.0
      %3102 = vmatmul.mubr.f32.gmra.mxu0 %v3035
      %v3103 = vpop.f32.mrf.mxu0
      %v3104 = vadd.f32 0.0, %v3103
      %v3105 = vpop.f32.mrf.mxu0
      %3106 = vdwg.mxu0
      %v3108 = vsel %vm1100, %v3104, 0
      %3110 = vmatprep.subr.mxu0 0.0
      %3111 = vmatpush1.msra.mxu0 0.0
      %3112 = vmatprep.subr.mxu0 0.0
      %3113 = vmatpush1.msra.mxu0 0.0
      %3114 = vmatprep.subr.mxu0 0.0
      %3115 = vmatpush1.msra.mxu0 0.0
      %3116 = vmatprep.subr.mxu0 0.0
      %3117 = vmatpush1.msra.mxu0 0.0
      %3118 = vmatprep.subr.mxu0 0.0
      %3119 = vmatpush1.msra.mxu0 0.0
      %3120 = vmatprep.subr.mxu0 0.0
      %3121 = vmatpush1.msra.mxu0 0.0
      %3122 = vmatprep.subr.mxu0 0.0
      %3123 = vmatpush1.msra.mxu0 0.0
      %3124 = vmatprep.subr.mxu0 0.0
      %3125 = vmatpush1.msra.mxu0 0.0
      %3126 = vmatprep.subr.mxu0 0.0
      %3127 = vmatpush1.msra.mxu0 0.0
      %3128 = vmatprep.subr.mxu0 0.0
      %3129 = vmatpush1.msra.mxu0 0.0
      %3130 = vmatprep.subr.mxu0 0.0
      %3131 = vmatpush1.msra.mxu0 0.0
      %3132 = vmatprep.subr.mxu0 0.0
      %3133 = vmatpush1.msra.mxu0 0.0
      %3134 = vmatprep.subr.mxu0 0.0
      %3135 = vmatpush1.msra.mxu0 0.0
      %3136 = vmatprep.subr.mxu0 0.0
      %3137 = vmatpush1.msra.mxu0 0.0
      %3138 = vmatprep.subr.mxu0 0.0
      %3139 = vmatpush1.msra.mxu0 %v2775
      %3140 = vmatprep.subr.mxu0 0.0
      %3141 = vmatpush1.msra.mxu0 %v2774
      %3142 = vmatprep.subr.mxu0 0.0
      %3143 = vmatpush2.msra.mxu0 0.0
      %3144 = vmatprep.subr.mxu0 0.0
      %3145 = vmatpush2.msra.mxu0 0.0
      %3146 = vmatprep.subr.mxu0 0.0
      %3147 = vmatpush2.msra.mxu0 0.0
      %3148 = vmatprep.subr.mxu0 0.0
      %3149 = vmatpush2.msra.mxu0 0.0
      %3150 = vmatprep.subr.mxu0 0.0
      %3151 = vmatpush2.msra.mxu0 0.0
      %3152 = vmatprep.subr.mxu0 0.0
      %3153 = vmatpush2.msra.mxu0 0.0
      %3154 = vmatprep.subr.mxu0 0.0
      %3155 = vmatpush2.msra.mxu0 0.0
      %3156 = vmatprep.subr.mxu0 0.0
      %3157 = vmatpush2.msra.mxu0 0.0
      %3158 = vmatprep.subr.mxu0 0.0
      %3159 = vmatpush2.msra.mxu0 0.0
      %3160 = vmatprep.subr.mxu0 0.0
      %3161 = vmatpush2.msra.mxu0 0.0
      %3162 = vmatprep.subr.mxu0 0.0
      %3163 = vmatpush2.msra.mxu0 0.0
      %3164 = vmatprep.subr.mxu0 0.0
      %3165 = vmatpush2.msra.mxu0 0.0
      %3166 = vmatprep.subr.mxu0 0.0
      %3167 = vmatpush2.msra.mxu0 0.0
      %3168 = vmatprep.subr.mxu0 0.0
      %3169 = vmatpush2.msra.mxu0 0.0
      %3170 = vmatprep.subr.mxu0 0.0
      %3171 = vmatpush2.msra.mxu0 0.0
      %3172 = vmatprep.subr.mxu0 0.0
      %3173 = vmatpush2.msra.mxu0 0.0
      %3174 = vmatprep.mubr.f32.mxu0 0.0
      %3175 = vmatmul.mubr.f32.gmra.mxu0 %v3108
      %v3176 = vpop.f32.mrf.mxu0
      %v3177 = vadd.f32 0.0, %v3176
      %v3178 = vpop.f32.mrf.mxu0
      %3179 = vdwg.mxu0
      %v3181 = vsel %vm1100, %v2938, 0
      %3183 = vmatprep.subr.mxu0 0.0
      %3184 = vmatpush1.msra.mxu0 0.0
      %3185 = vmatprep.subr.mxu0 0.0
      %3186 = vmatpush1.msra.mxu0 0.0
      %3187 = vmatprep.subr.mxu0 0.0
      %3188 = vmatpush1.msra.mxu0 0.0
      %3189 = vmatprep.subr.mxu0 0.0
      %3190 = vmatpush1.msra.mxu0 0.0
      %3191 = vmatprep.subr.mxu0 0.0
      %3192 = vmatpush1.msra.mxu0 0.0
      %3193 = vmatprep.subr.mxu0 0.0
      %3194 = vmatpush1.msra.mxu0 0.0
      %3195 = vmatprep.subr.mxu0 0.0
      %3196 = vmatpush1.msra.mxu0 0.0
      %3197 = vmatprep.subr.mxu0 0.0
      %3198 = vmatpush1.msra.mxu0 0.0
      %3199 = vmatprep.subr.mxu0 0.0
      %3200 = vmatpush1.msra.mxu0 0.0
      %3201 = vmatprep.subr.mxu0 0.0
      %3202 = vmatpush1.msra.mxu0 0.0
      %3203 = vmatprep.subr.mxu0 0.0
      %3204 = vmatpush1.msra.mxu0 0.0
      %3205 = vmatprep.subr.mxu0 0.0
      %3206 = vmatpush1.msra.mxu0 0.0
      %3207 = vmatprep.subr.mxu0 0.0
      %3208 = vmatpush1.msra.mxu0 0.0
      %3209 = vmatprep.subr.mxu0 0.0
      %3210 = vmatpush1.msra.mxu0 0.0
      %3211 = vmatprep.subr.mxu0 0.0
      %3212 = vmatpush1.msra.mxu0 %v2773
      %3213 = vmatprep.subr.mxu0 0.0
      %3214 = vmatpush1.msra.mxu0 %v2772
      %3215 = vmatprep.subr.mxu0 0.0
      %3216 = vmatpush2.msra.mxu0 0.0
      %3217 = vmatprep.subr.mxu0 0.0
      %3218 = vmatpush2.msra.mxu0 0.0
      %3219 = vmatprep.subr.mxu0 0.0
      %3220 = vmatpush2.msra.mxu0 0.0
      %3221 = vmatprep.subr.mxu0 0.0
      %3222 = vmatpush2.msra.mxu0 0.0
      %3223 = vmatprep.subr.mxu0 0.0
      %3224 = vmatpush2.msra.mxu0 0.0
      %3225 = vmatprep.subr.mxu0 0.0
      %3226 = vmatpush2.msra.mxu0 0.0
      %3227 = vmatprep.subr.mxu0 0.0
      %3228 = vmatpush2.msra.mxu0 0.0
      %3229 = vmatprep.subr.mxu0 0.0
      %3230 = vmatpush2.msra.mxu0 0.0
      %3231 = vmatprep.subr.mxu0 0.0
      %3232 = vmatpush2.msra.mxu0 0.0
      %3233 = vmatprep.subr.mxu0 0.0
      %3234 = vmatpush2.msra.mxu0 0.0
      %3235 = vmatprep.subr.mxu0 0.0
      %3236 = vmatpush2.msra.mxu0 0.0
      %3237 = vmatprep.subr.mxu0 0.0
      %3238 = vmatpush2.msra.mxu0 0.0
      %3239 = vmatprep.subr.mxu0 0.0
      %3240 = vmatpush2.msra.mxu0 0.0
      %3241 = vmatprep.subr.mxu0 0.0
      %3242 = vmatpush2.msra.mxu0 0.0
      %3243 = vmatprep.subr.mxu0 0.0
      %3244 = vmatpush2.msra.mxu0 0.0
      %3245 = vmatprep.subr.mxu0 0.0
      %3246 = vmatpush2.msra.mxu0 0.0
      %3247 = vmatprep.mubr.f32.mxu0 0.0
      %3248 = vmatmul.mubr.f32.gmra.mxu0 %v3181
      %v3249 = vpop.f32.mrf.mxu0
      %v3250 = vadd.f32 %v3177, %v3249
      %v3251 = vpop.f32.mrf.mxu0
      %3252 = vdwg.mxu0
      %v3253 = vld [vmem:[%s33] sm:$0x1]
      %v3255 = vlaneseq
      %v3256 = vshrl.u32 %v3255, 7
      %v3257 = vsub.s32 0, %v3256
      %v3258 = vrot.slane %v3253, %v3257
      %v3260 = vadd.f32 %v3250, %v3258
      %v3261 = vadd.f32 %v1006, %v3260
      %v3262 = vsel %vm1019, %v3261, 0.0
      %3263 = vadd.xlane.f32.xlu0 %v3262
      %v3264 = vpop.xlane.xlu0 %3263
      %v3265 = vmul.f32 %v3264, %v1588
      %v3266 = vsub.f32 %v3261, %v3265
      %v3267 = vmul.f32 %v3266, %v3266
      %v3268 = vsel %vm1019, %v3267, 0.0
      %3269 = vadd.xlane.f32.xlu0 %v3268
      %v3270 = vpop.xlane.xlu0 %3269
      %v3271 = vmul.f32 %v3270, %v1588
      %v3272 = vadd.f32 %v3271, 1e-05
      %v3273 = vrsqrt.pop %v3272
      %v3274 = vmul.f32 %v3266, %v3273
      %v3275 = vlaneseq
      %v3276 = vshrl.u32 %v3275, 7
      %v3277 = vsub.s32 0, %v3276
      %v3278 = vrot.slane %v2687, %v3277
      %v3279 = vmul.f32 %v3274, %v3278
      %v3280 = vlaneseq
      %v3281 = vshrl.u32 %v3280, 7
      %v3282 = vsub.s32 1, %v3281
      %v3283 = vrot.slane %v2687, %v3282
      %v3284 = vadd.f32 %v3279, %v3283
      %v3285 = vld [vmem:[%s35] sm:$0xff]
      %v3286 = vld [vmem:[%s35 + $0x8] sm:$0xff]
      %v3287 = vld [vmem:[%s35 + $0x10] sm:$0xff]
      %v3288 = vld [vmem:[%s35 + $0x18] sm:$0xff]
      %v3289 = vld [vmem:[%s37] sm:$0x1]
      %v3291 = vlaneseq
      %v3292 = vshrl.u32 %v3291, 7
      %v3293 = vsub.s32 0, %v3292
      %v3294 = vrot.slane %v3289, %v3293
      %v3297 = vsel %vm1019, %v3284, 0
      %3299 = vmatprep.subr.mxu0 0.0
      %3300 = vmatpush1.msra.mxu0 0.0
      %3301 = vmatprep.subr.mxu0 0.0
      %3302 = vmatpush1.msra.mxu0 0.0
      %3303 = vmatprep.subr.mxu0 0.0
      %3304 = vmatpush1.msra.mxu0 0.0
      %3305 = vmatprep.subr.mxu0 0.0
      %3306 = vmatpush1.msra.mxu0 0.0
      %3307 = vmatprep.subr.mxu0 0.0
      %3308 = vmatpush1.msra.mxu0 0.0
      %3309 = vmatprep.subr.mxu0 0.0
      %3310 = vmatpush1.msra.mxu0 0.0
      %3311 = vmatprep.subr.mxu0 0.0
      %3312 = vmatpush1.msra.mxu0 0.0
      %3313 = vmatprep.subr.mxu0 0.0
      %3314 = vmatpush1.msra.mxu0 0.0
      %3315 = vmatprep.subr.mxu0 0.0
      %3316 = vmatpush1.msra.mxu0 0.0
      %3317 = vmatprep.subr.mxu0 0.0
      %3318 = vmatpush1.msra.mxu0 0.0
      %3319 = vmatprep.subr.mxu0 0.0
      %3320 = vmatpush1.msra.mxu0 0.0
      %3321 = vmatprep.subr.mxu0 0.0
      %3322 = vmatpush1.msra.mxu0 0.0
      %3323 = vmatprep.subr.mxu0 0.0
      %3324 = vmatpush1.msra.mxu0 %v3288
      %3325 = vmatprep.subr.mxu0 0.0
      %3326 = vmatpush1.msra.mxu0 %v3287
      %3327 = vmatprep.subr.mxu0 0.0
      %3328 = vmatpush1.msra.mxu0 %v3286
      %3329 = vmatprep.subr.mxu0 0.0
      %3330 = vmatpush1.msra.mxu0 %v3285
      %3331 = vmatprep.subr.mxu0 0.0
      %3332 = vmatpush2.msra.mxu0 0.0
      %3333 = vmatprep.subr.mxu0 0.0
      %3334 = vmatpush2.msra.mxu0 0.0
      %3335 = vmatprep.subr.mxu0 0.0
      %3336 = vmatpush2.msra.mxu0 0.0
      %3337 = vmatprep.subr.mxu0 0.0
      %3338 = vmatpush2.msra.mxu0 0.0
      %3339 = vmatprep.subr.mxu0 0.0
      %3340 = vmatpush2.msra.mxu0 0.0
      %3341 = vmatprep.subr.mxu0 0.0
      %3342 = vmatpush2.msra.mxu0 0.0
      %3343 = vmatprep.subr.mxu0 0.0
      %3344 = vmatpush2.msra.mxu0 0.0
      %3345 = vmatprep.subr.mxu0 0.0
      %3346 = vmatpush2.msra.mxu0 0.0
      %3347 = vmatprep.subr.mxu0 0.0
      %3348 = vmatpush2.msra.mxu0 0.0
      %3349 = vmatprep.subr.mxu0 0.0
      %3350 = vmatpush2.msra.mxu0 0.0
      %3351 = vmatprep.subr.mxu0 0.0
      %3352 = vmatpush2.msra.mxu0 0.0
      %3353 = vmatprep.subr.mxu0 0.0
      %3354 = vmatpush2.msra.mxu0 0.0
      %3355 = vmatprep.subr.mxu0 0.0
      %3356 = vmatpush2.msra.mxu0 0.0
      %3357 = vmatprep.subr.mxu0 0.0
      %3358 = vmatpush2.msra.mxu0 0.0
      %3359 = vmatprep.subr.mxu0 0.0
      %3360 = vmatpush2.msra.mxu0 0.0
      %3361 = vmatprep.subr.mxu0 0.0
      %3362 = vmatpush2.msra.mxu0 0.0
      %3363 = vmatprep.mubr.f32.mxu0 0.0
      %3364 = vmatmul.mubr.f32.gmra.mxu0 %v3297
      %v3365 = vpop.f32.mrf.mxu0
      %v3366 = vadd.f32 %v3294, %v3365
      %v3367 = vpop.f32.mrf.mxu0
      %3368 = vdwg.mxu0
      %v3369 = vld [vmem:[%s39] sm:$0xff]
      %v3370 = vld [vmem:[%s39 + $0x8] sm:$0xff]
      %v3371 = vld [vmem:[%s39 + $0x10] sm:$0xff]
      %v3372 = vld [vmem:[%s39 + $0x18] sm:$0xff]
      %v3373 = vld [vmem:[%s41] sm:$0x1]
      %v3375 = vlaneseq
      %v3376 = vshrl.u32 %v3375, 7
      %v3377 = vsub.s32 0, %v3376
      %v3378 = vrot.slane %v3373, %v3377
      %v3381 = vsel %vm1019, %v2686, 0
      %3383 = vmatprep.subr.mxu0 0.0
      %3384 = vmatpush1.msra.mxu0 0.0
      %3385 = vmatprep.subr.mxu0 0.0
      %3386 = vmatpush1.msra.mxu0 0.0
      %3387 = vmatprep.subr.mxu0 0.0
      %3388 = vmatpush1.msra.mxu0 0.0
      %3389 = vmatprep.subr.mxu0 0.0
      %3390 = vmatpush1.msra.mxu0 0.0
      %3391 = vmatprep.subr.mxu0 0.0
      %3392 = vmatpush1.msra.mxu0 0.0
      %3393 = vmatprep.subr.mxu0 0.0
      %3394 = vmatpush1.msra.mxu0 0.0
      %3395 = vmatprep.subr.mxu0 0.0
      %3396 = vmatpush1.msra.mxu0 0.0
      %3397 = vmatprep.subr.mxu0 0.0
      %3398 = vmatpush1.msra.mxu0 0.0
      %3399 = vmatprep.subr.mxu0 0.0
      %3400 = vmatpush1.msra.mxu0 0.0
      %3401 = vmatprep.subr.mxu0 0.0
      %3402 = vmatpush1.msra.mxu0 0.0
      %3403 = vmatprep.subr.mxu0 0.0
      %3404 = vmatpush1.msra.mxu0 0.0
      %3405 = vmatprep.subr.mxu0 0.0
      %3406 = vmatpush1.msra.mxu0 0.0
      %3407 = vmatprep.subr.mxu0 0.0
      %3408 = vmatpush1.msra.mxu0 %v3372
      %3409 = vmatprep.subr.mxu0 0.0
      %3410 = vmatpush1.msra.mxu0 %v3371
      %3411 = vmatprep.subr.mxu0 0.0
      %3412 = vmatpush1.msra.mxu0 %v3370
      %3413 = vmatprep.subr.mxu0 0.0
      %3414 = vmatpush1.msra.mxu0 %v3369
      %3415 = vmatprep.subr.mxu0 0.0
      %3416 = vmatpush2.msra.mxu0 0.0
      %3417 = vmatprep.subr.mxu0 0.0
      %3418 = vmatpush2.msra.mxu0 0.0
      %3419 = vmatprep.subr.mxu0 0.0
      %3420 = vmatpush2.msra.mxu0 0.0
      %3421 = vmatprep.subr.mxu0 0.0
      %3422 = vmatpush2.msra.mxu0 0.0
      %3423 = vmatprep.subr.mxu0 0.0
      %3424 = vmatpush2.msra.mxu0 0.0
      %3425 = vmatprep.subr.mxu0 0.0
      %3426 = vmatpush2.msra.mxu0 0.0
      %3427 = vmatprep.subr.mxu0 0.0
      %3428 = vmatpush2.msra.mxu0 0.0
      %3429 = vmatprep.subr.mxu0 0.0
      %3430 = vmatpush2.msra.mxu0 0.0
      %3431 = vmatprep.subr.mxu0 0.0
      %3432 = vmatpush2.msra.mxu0 0.0
      %3433 = vmatprep.subr.mxu0 0.0
      %3434 = vmatpush2.msra.mxu0 0.0
      %3435 = vmatprep.subr.mxu0 0.0
      %3436 = vmatpush2.msra.mxu0 0.0
      %3437 = vmatprep.subr.mxu0 0.0
      %3438 = vmatpush2.msra.mxu0 0.0
      %3439 = vmatprep.subr.mxu0 0.0
      %3440 = vmatpush2.msra.mxu0 0.0
      %3441 = vmatprep.subr.mxu0 0.0
      %3442 = vmatpush2.msra.mxu0 0.0
      %3443 = vmatprep.subr.mxu0 0.0
      %3444 = vmatpush2.msra.mxu0 0.0
      %3445 = vmatprep.subr.mxu0 0.0
      %3446 = vmatpush2.msra.mxu0 0.0
      %3447 = vmatprep.mubr.f32.mxu0 0.0
      %3448 = vmatmul.mubr.f32.gmra.mxu0 %v3381
      %v3449 = vpop.f32.mrf.mxu0
      %v3450 = vadd.f32 %v3378, %v3449
      %v3451 = vpop.f32.mrf.mxu0
      %3452 = vdwg.mxu0
      %v3453 = vld [vmem:[%s43] sm:$0xff]
      %v3454 = vld [vmem:[%s43 + $0x8] sm:$0xff]
      %v3455 = vld [vmem:[%s43 + $0x10] sm:$0xff]
      %v3456 = vld [vmem:[%s43 + $0x18] sm:$0xff]
      %v3458 = vsel %vm1100, %v3366, 0
      %v3461 = vsel %vm1100, %v3450, 0
      %3463 = vmatprep.subr.mxu0 0.0
      %3464 = vmatpush1.xpose.msra.mxu0 0.0
      %3465 = vmatprep.subr.mxu0 0.0
      %3466 = vmatpush1.xpose.msra.mxu0 0.0
      %3467 = vmatprep.subr.mxu0 0.0
      %3468 = vmatpush1.xpose.msra.mxu0 0.0
      %3469 = vmatprep.subr.mxu0 0.0
      %3470 = vmatpush1.xpose.msra.mxu0 0.0
      %3471 = vmatprep.subr.mxu0 0.0
      %3472 = vmatpush1.xpose.msra.mxu0 0.0
      %3473 = vmatprep.subr.mxu0 0.0
      %3474 = vmatpush1.xpose.msra.mxu0 0.0
      %3475 = vmatprep.subr.mxu0 0.0
      %3476 = vmatpush1.xpose.msra.mxu0 0.0
      %3477 = vmatprep.subr.mxu0 0.0
      %3478 = vmatpush1.xpose.msra.mxu0 0.0
      %3479 = vmatprep.subr.mxu0 0.0
      %3480 = vmatpush1.xpose.msra.mxu0 0.0
      %3481 = vmatprep.subr.mxu0 0.0
      %3482 = vmatpush1.xpose.msra.mxu0 0.0
      %3483 = vmatprep.subr.mxu0 0.0
      %3484 = vmatpush1.xpose.msra.mxu0 0.0
      %3485 = vmatprep.subr.mxu0 0.0
      %3486 = vmatpush1.xpose.msra.mxu0 0.0
      %3487 = vmatprep.subr.mxu0 0.0
      %3488 = vmatpush1.xpose.msra.mxu0 0.0
      %3489 = vmatprep.subr.mxu0 0.0
      %3490 = vmatpush1.xpose.msra.mxu0 0.0
      %3491 = vmatprep.subr.mxu0 0.0
      %3492 = vmatpush1.xpose.msra.mxu0 0.0
      %3493 = vmatprep.subr.mxu0 0.0
      %3494 = vmatpush1.xpose.msra.mxu0 %v3461
      %3495 = vmatprep.subr.mxu0 0.0
      %3496 = vmatpush2.xpose.msra.mxu0 0.0
      %3497 = vmatprep.subr.mxu0 0.0
      %3498 = vmatpush2.xpose.msra.mxu0 0.0
      %3499 = vmatprep.subr.mxu0 0.0
      %3500 = vmatpush2.xpose.msra.mxu0 0.0
      %3501 = vmatprep.subr.mxu0 0.0
      %3502 = vmatpush2.xpose.msra.mxu0 0.0
      %3503 = vmatprep.subr.mxu0 0.0
      %3504 = vmatpush2.xpose.msra.mxu0 0.0
      %3505 = vmatprep.subr.mxu0 0.0
      %3506 = vmatpush2.xpose.msra.mxu0 0.0
      %3507 = vmatprep.subr.mxu0 0.0
      %3508 = vmatpush2.xpose.msra.mxu0 0.0
      %3509 = vmatprep.subr.mxu0 0.0
      %3510 = vmatpush2.xpose.msra.mxu0 0.0
      %3511 = vmatprep.subr.mxu0 0.0
      %3512 = vmatpush2.xpose.msra.mxu0 0.0
      %3513 = vmatprep.subr.mxu0 0.0
      %3514 = vmatpush2.xpose.msra.mxu0 0.0
      %3515 = vmatprep.subr.mxu0 0.0
      %3516 = vmatpush2.xpose.msra.mxu0 0.0
      %3517 = vmatprep.subr.mxu0 0.0
      %3518 = vmatpush2.xpose.msra.mxu0 0.0
      %3519 = vmatprep.subr.mxu0 0.0
      %3520 = vmatpush2.xpose.msra.mxu0 0.0
      %3521 = vmatprep.subr.mxu0 0.0
      %3522 = vmatpush2.xpose.msra.mxu0 0.0
      %3523 = vmatprep.subr.mxu0 0.0
      %3524 = vmatpush2.xpose.msra.mxu0 0.0
      %3525 = vmatprep.subr.mxu0 0.0
      %3526 = vmatpush2.xpose.msra.mxu0 0.0
      %3527 = vmatprep.mubr.f32.mxu0 0.0
      %3528 = vmatmul.mubr.f32.gmra.mxu0 %v3458
      %v3529 = vpop.f32.mrf.mxu0
      %v3530 = vadd.f32 0.0, %v3529
      %v3531 = vpop.f32.mrf.mxu0
      %3532 = vdwg.mxu0
      %v3533 = vmul.f32 %v3530, 0.25
      %v3534 = vsel %vm1176, %v3533, -inf
      %3535 = vmax.xlane.f32.xlu0 %v3534
      %v3536 = vpop.xlane.xlu0 %3535
      %v3537 = vsub.f32 %v3533, %v3536
      %v3538 = vmul.f32 %v3537, 1.442695
      %v3539 = vpow.pop %v3538
      %v3540 = vsel %vm1176, %v3539, 0.0
      %3541 = vadd.xlane.f32.xlu0 %v3540
      %v3542 = vpop.xlane.xlu0 %3541
      %v3543 = vrcp.pop %v3542
      %v3544 = vmul.f32 %v3539, %v3543
      %3545 = vrot.lane.b32.xlu0 %v3450, 96
      %v3546 = vpop.permute.xlu0 %3545
      %v3549 = vsel %vm1176, %v3544, 0
      %3551 = vmatprep.subr.mxu0 0.0
      %3552 = vmatpush1.msra.mxu0 0.0
      %3553 = vmatprep.subr.mxu0 0.0
      %3554 = vmatpush1.msra.mxu0 0.0
      %3555 = vmatprep.subr.mxu0 0.0
      %3556 = vmatpush1.msra.mxu0 0.0
      %3557 = vmatprep.subr.mxu0 0.0
      %3558 = vmatpush1.msra.mxu0 0.0
      %3559 = vmatprep.subr.mxu0 0.0
      %3560 = vmatpush1.msra.mxu0 0.0
      %3561 = vmatprep.subr.mxu0 0.0
      %3562 = vmatpush1.msra.mxu0 0.0
      %3563 = vmatprep.subr.mxu0 0.0
      %3564 = vmatpush1.msra.mxu0 0.0
      %3565 = vmatprep.subr.mxu0 0.0
      %3566 = vmatpush1.msra.mxu0 0.0
      %3567 = vmatprep.subr.mxu0 0.0
      %3568 = vmatpush1.msra.mxu0 0.0
      %3569 = vmatprep.subr.mxu0 0.0
      %3570 = vmatpush1.msra.mxu0 0.0
      %3571 = vmatprep.subr.mxu0 0.0
      %3572 = vmatpush1.msra.mxu0 0.0
      %3573 = vmatprep.subr.mxu0 0.0
      %3574 = vmatpush1.msra.mxu0 0.0
      %3575 = vmatprep.subr.mxu0 0.0
      %3576 = vmatpush1.msra.mxu0 0.0
      %3577 = vmatprep.subr.mxu0 0.0
      %3578 = vmatpush1.msra.mxu0 0.0
      %3579 = vmatprep.subr.mxu0 0.0
      %3580 = vmatpush1.msra.mxu0 0.0
      %3581 = vmatprep.subr.mxu0 0.0
      %3582 = vmatpush1.msra.mxu0 %v3546
      %3583 = vmatprep.subr.mxu0 0.0
      %3584 = vmatpush2.msra.mxu0 0.0
      %3585 = vmatprep.subr.mxu0 0.0
      %3586 = vmatpush2.msra.mxu0 0.0
      %3587 = vmatprep.subr.mxu0 0.0
      %3588 = vmatpush2.msra.mxu0 0.0
      %3589 = vmatprep.subr.mxu0 0.0
      %3590 = vmatpush2.msra.mxu0 0.0
      %3591 = vmatprep.subr.mxu0 0.0
      %3592 = vmatpush2.msra.mxu0 0.0
      %3593 = vmatprep.subr.mxu0 0.0
      %3594 = vmatpush2.msra.mxu0 0.0
      %3595 = vmatprep.subr.mxu0 0.0
      %3596 = vmatpush2.msra.mxu0 0.0
      %3597 = vmatprep.subr.mxu0 0.0
      %3598 = vmatpush2.msra.mxu0 0.0
      %3599 = vmatprep.subr.mxu0 0.0
      %3600 = vmatpush2.msra.mxu0 0.0
      %3601 = vmatprep.subr.mxu0 0.0
      %3602 = vmatpush2.msra.mxu0 0.0
      %3603 = vmatprep.subr.mxu0 0.0
      %3604 = vmatpush2.msra.mxu0 0.0
      %3605 = vmatprep.subr.mxu0 0.0
      %3606 = vmatpush2.msra.mxu0 0.0
      %3607 = vmatprep.subr.mxu0 0.0
      %3608 = vmatpush2.msra.mxu0 0.0
      %3609 = vmatprep.subr.mxu0 0.0
      %3610 = vmatpush2.msra.mxu0 0.0
      %3611 = vmatprep.subr.mxu0 0.0
      %3612 = vmatpush2.msra.mxu0 0.0
      %3613 = vmatprep.subr.mxu0 0.0
      %3614 = vmatpush2.msra.mxu0 0.0
      %3615 = vmatprep.mubr.f32.mxu0 0.0
      %3616 = vmatmul.mubr.f32.gmra.mxu0 %v3549
      %v3617 = vpop.f32.mrf.mxu0
      %v3618 = vadd.f32 0.0, %v3617
      %v3619 = vpop.f32.mrf.mxu0
      %3620 = vdwg.mxu0
      %3621 = vrot.lane.b32.xlu0 %v3366, 112
      %v3622 = vpop.permute.xlu0 %3621
      %3623 = vrot.lane.b32.xlu0 %v3450, 112
      %v3624 = vpop.permute.xlu0 %3623
      %v3625 = vsel %vm1100, %v3622, 0
      %v3627 = vsel %vm1100, %v3624, 0
      %3629 = vmatprep.subr.mxu0 0.0
      %3630 = vmatpush1.xpose.msra.mxu0 0.0
      %3631 = vmatprep.subr.mxu0 0.0
      %3632 = vmatpush1.xpose.msra.mxu0 0.0
      %3633 = vmatprep.subr.mxu0 0.0
      %3634 = vmatpush1.xpose.msra.mxu0 0.0
      %3635 = vmatprep.subr.mxu0 0.0
      %3636 = vmatpush1.xpose.msra.mxu0 0.0
      %3637 = vmatprep.subr.mxu0 0.0
      %3638 = vmatpush1.xpose.msra.mxu0 0.0
      %3639 = vmatprep.subr.mxu0 0.0
      %3640 = vmatpush1.xpose.msra.mxu0 0.0
      %3641 = vmatprep.subr.mxu0 0.0
      %3642 = vmatpush1.xpose.msra.mxu0 0.0
      %3643 = vmatprep.subr.mxu0 0.0
      %3644 = vmatpush1.xpose.msra.mxu0 0.0
      %3645 = vmatprep.subr.mxu0 0.0
      %3646 = vmatpush1.xpose.msra.mxu0 0.0
      %3647 = vmatprep.subr.mxu0 0.0
      %3648 = vmatpush1.xpose.msra.mxu0 0.0
      %3649 = vmatprep.subr.mxu0 0.0
      %3650 = vmatpush1.xpose.msra.mxu0 0.0
      %3651 = vmatprep.subr.mxu0 0.0
      %3652 = vmatpush1.xpose.msra.mxu0 0.0
      %3653 = vmatprep.subr.mxu0 0.0
      %3654 = vmatpush1.xpose.msra.mxu0 0.0
      %3655 = vmatprep.subr.mxu0 0.0
      %3656 = vmatpush1.xpose.msra.mxu0 0.0
      %3657 = vmatprep.subr.mxu0 0.0
      %3658 = vmatpush1.xpose.msra.mxu0 0.0
      %3659 = vmatprep.subr.mxu0 0.0
      %3660 = vmatpush1.xpose.msra.mxu0 %v3627
      %3661 = vmatprep.subr.mxu0 0.0
      %3662 = vmatpush2.xpose.msra.mxu0 0.0
      %3663 = vmatprep.subr.mxu0 0.0
      %3664 = vmatpush2.xpose.msra.mxu0 0.0
      %3665 = vmatprep.subr.mxu0 0.0
      %3666 = vmatpush2.xpose.msra.mxu0 0.0
      %3667 = vmatprep.subr.mxu0 0.0
      %3668 = vmatpush2.xpose.msra.mxu0 0.0
      %3669 = vmatprep.subr.mxu0 0.0
      %3670 = vmatpush2.xpose.msra.mxu0 0.0
      %3671 = vmatprep.subr.mxu0 0.0
      %3672 = vmatpush2.xpose.msra.mxu0 0.0
      %3673 = vmatprep.subr.mxu0 0.0
      %3674 = vmatpush2.xpose.msra.mxu0 0.0
      %3675 = vmatprep.subr.mxu0 0.0
      %3676 = vmatpush2.xpose.msra.mxu0 0.0
      %3677 = vmatprep.subr.mxu0 0.0
      %3678 = vmatpush2.xpose.msra.mxu0 0.0
      %3679 = vmatprep.subr.mxu0 0.0
      %3680 = vmatpush2.xpose.msra.mxu0 0.0
      %3681 = vmatprep.subr.mxu0 0.0
      %3682 = vmatpush2.xpose.msra.mxu0 0.0
      %3683 = vmatprep.subr.mxu0 0.0
      %3684 = vmatpush2.xpose.msra.mxu0 0.0
      %3685 = vmatprep.subr.mxu0 0.0
      %3686 = vmatpush2.xpose.msra.mxu0 0.0
      %3687 = vmatprep.subr.mxu0 0.0
      %3688 = vmatpush2.xpose.msra.mxu0 0.0
      %3689 = vmatprep.subr.mxu0 0.0
      %3690 = vmatpush2.xpose.msra.mxu0 0.0
      %3691 = vmatprep.subr.mxu0 0.0
      %3692 = vmatpush2.xpose.msra.mxu0 0.0
      %3693 = vmatprep.mubr.f32.mxu0 0.0
      %3694 = vmatmul.mubr.f32.gmra.mxu0 %v3625
      %v3695 = vpop.f32.mrf.mxu0
      %v3696 = vadd.f32 0.0, %v3695
      %v3697 = vpop.f32.mrf.mxu0
      %3698 = vdwg.mxu0
      %v3699 = vmul.f32 %v3696, 0.25
      %v3700 = vsel %vm1176, %v3699, -inf
      %3701 = vmax.xlane.f32.xlu0 %v3700
      %v3702 = vpop.xlane.xlu0 %3701
      %v3703 = vsub.f32 %v3699, %v3702
      %v3704 = vmul.f32 %v3703, 1.442695
      %v3705 = vpow.pop %v3704
      %v3706 = vsel %vm1176, %v3705, 0.0
      %3707 = vadd.xlane.f32.xlu0 %v3706
      %v3708 = vpop.xlane.xlu0 %3707
      %v3709 = vrcp.pop %v3708
      %v3710 = vmul.f32 %v3705, %v3709
      %3711 = vrot.lane.b32.xlu0 %v3450, 80
      %v3712 = vpop.permute.xlu0 %3711
      %v3715 = vsel %vm1176, %v3710, 0
      %3717 = vmatprep.subr.mxu0 0.0
      %3718 = vmatpush1.msra.mxu0 0.0
      %3719 = vmatprep.subr.mxu0 0.0
      %3720 = vmatpush1.msra.mxu0 0.0
      %3721 = vmatprep.subr.mxu0 0.0
      %3722 = vmatpush1.msra.mxu0 0.0
      %3723 = vmatprep.subr.mxu0 0.0
      %3724 = vmatpush1.msra.mxu0 0.0
      %3725 = vmatprep.subr.mxu0 0.0
      %3726 = vmatpush1.msra.mxu0 0.0
      %3727 = vmatprep.subr.mxu0 0.0
      %3728 = vmatpush1.msra.mxu0 0.0
      %3729 = vmatprep.subr.mxu0 0.0
      %3730 = vmatpush1.msra.mxu0 0.0
      %3731 = vmatprep.subr.mxu0 0.0
      %3732 = vmatpush1.msra.mxu0 0.0
      %3733 = vmatprep.subr.mxu0 0.0
      %3734 = vmatpush1.msra.mxu0 0.0
      %3735 = vmatprep.subr.mxu0 0.0
      %3736 = vmatpush1.msra.mxu0 0.0
      %3737 = vmatprep.subr.mxu0 0.0
      %3738 = vmatpush1.msra.mxu0 0.0
      %3739 = vmatprep.subr.mxu0 0.0
      %3740 = vmatpush1.msra.mxu0 0.0
      %3741 = vmatprep.subr.mxu0 0.0
      %3742 = vmatpush1.msra.mxu0 0.0
      %3743 = vmatprep.subr.mxu0 0.0
      %3744 = vmatpush1.msra.mxu0 0.0
      %3745 = vmatprep.subr.mxu0 0.0
      %3746 = vmatpush1.msra.mxu0 0.0
      %3747 = vmatprep.subr.mxu0 0.0
      %3748 = vmatpush1.msra.mxu0 %v3712
      %3749 = vmatprep.subr.mxu0 0.0
      %3750 = vmatpush2.msra.mxu0 0.0
      %3751 = vmatprep.subr.mxu0 0.0
      %3752 = vmatpush2.msra.mxu0 0.0
      %3753 = vmatprep.subr.mxu0 0.0
      %3754 = vmatpush2.msra.mxu0 0.0
      %3755 = vmatprep.subr.mxu0 0.0
      %3756 = vmatpush2.msra.mxu0 0.0
      %3757 = vmatprep.subr.mxu0 0.0
      %3758 = vmatpush2.msra.mxu0 0.0
      %3759 = vmatprep.subr.mxu0 0.0
      %3760 = vmatpush2.msra.mxu0 0.0
      %3761 = vmatprep.subr.mxu0 0.0
      %3762 = vmatpush2.msra.mxu0 0.0
      %3763 = vmatprep.subr.mxu0 0.0
      %3764 = vmatpush2.msra.mxu0 0.0
      %3765 = vmatprep.subr.mxu0 0.0
      %3766 = vmatpush2.msra.mxu0 0.0
      %3767 = vmatprep.subr.mxu0 0.0
      %3768 = vmatpush2.msra.mxu0 0.0
      %3769 = vmatprep.subr.mxu0 0.0
      %3770 = vmatpush2.msra.mxu0 0.0
      %3771 = vmatprep.subr.mxu0 0.0
      %3772 = vmatpush2.msra.mxu0 0.0
      %3773 = vmatprep.subr.mxu0 0.0
      %3774 = vmatpush2.msra.mxu0 0.0
      %3775 = vmatprep.subr.mxu0 0.0
      %3776 = vmatpush2.msra.mxu0 0.0
      %3777 = vmatprep.subr.mxu0 0.0
      %3778 = vmatpush2.msra.mxu0 0.0
      %3779 = vmatprep.subr.mxu0 0.0
      %3780 = vmatpush2.msra.mxu0 0.0
      %3781 = vmatprep.mubr.f32.mxu0 0.0
      %3782 = vmatmul.mubr.f32.gmra.mxu0 %v3715
      %v3783 = vpop.f32.mrf.mxu0
      %v3784 = vadd.f32 0.0, %v3783
      %v3785 = vpop.f32.mrf.mxu0
      %3786 = vdwg.mxu0
      %v3788 = vsel %vm1100, %v3784, 0
      %3790 = vmatprep.subr.mxu0 0.0
      %3791 = vmatpush1.msra.mxu0 0.0
      %3792 = vmatprep.subr.mxu0 0.0
      %3793 = vmatpush1.msra.mxu0 0.0
      %3794 = vmatprep.subr.mxu0 0.0
      %3795 = vmatpush1.msra.mxu0 0.0
      %3796 = vmatprep.subr.mxu0 0.0
      %3797 = vmatpush1.msra.mxu0 0.0
      %3798 = vmatprep.subr.mxu0 0.0
      %3799 = vmatpush1.msra.mxu0 0.0
      %3800 = vmatprep.subr.mxu0 0.0
      %3801 = vmatpush1.msra.mxu0 0.0
      %3802 = vmatprep.subr.mxu0 0.0
      %3803 = vmatpush1.msra.mxu0 0.0
      %3804 = vmatprep.subr.mxu0 0.0
      %3805 = vmatpush1.msra.mxu0 0.0
      %3806 = vmatprep.subr.mxu0 0.0
      %3807 = vmatpush1.msra.mxu0 0.0
      %3808 = vmatprep.subr.mxu0 0.0
      %3809 = vmatpush1.msra.mxu0 0.0
      %3810 = vmatprep.subr.mxu0 0.0
      %3811 = vmatpush1.msra.mxu0 0.0
      %3812 = vmatprep.subr.mxu0 0.0
      %3813 = vmatpush1.msra.mxu0 0.0
      %3814 = vmatprep.subr.mxu0 0.0
      %3815 = vmatpush1.msra.mxu0 0.0
      %3816 = vmatprep.subr.mxu0 0.0
      %3817 = vmatpush1.msra.mxu0 0.0
      %3818 = vmatprep.subr.mxu0 0.0
      %3819 = vmatpush1.msra.mxu0 %v3456
      %3820 = vmatprep.subr.mxu0 0.0
      %3821 = vmatpush1.msra.mxu0 %v3455
      %3822 = vmatprep.subr.mxu0 0.0
      %3823 = vmatpush2.msra.mxu0 0.0
      %3824 = vmatprep.subr.mxu0 0.0
      %3825 = vmatpush2.msra.mxu0 0.0
      %3826 = vmatprep.subr.mxu0 0.0
      %3827 = vmatpush2.msra.mxu0 0.0
      %3828 = vmatprep.subr.mxu0 0.0
      %3829 = vmatpush2.msra.mxu0 0.0
      %3830 = vmatprep.subr.mxu0 0.0
      %3831 = vmatpush2.msra.mxu0 0.0
      %3832 = vmatprep.subr.mxu0 0.0
      %3833 = vmatpush2.msra.mxu0 0.0
      %3834 = vmatprep.subr.mxu0 0.0
      %3835 = vmatpush2.msra.mxu0 0.0
      %3836 = vmatprep.subr.mxu0 0.0
      %3837 = vmatpush2.msra.mxu0 0.0
      %3838 = vmatprep.subr.mxu0 0.0
      %3839 = vmatpush2.msra.mxu0 0.0
      %3840 = vmatprep.subr.mxu0 0.0
      %3841 = vmatpush2.msra.mxu0 0.0
      %3842 = vmatprep.subr.mxu0 0.0
      %3843 = vmatpush2.msra.mxu0 0.0
      %3844 = vmatprep.subr.mxu0 0.0
      %3845 = vmatpush2.msra.mxu0 0.0
      %3846 = vmatprep.subr.mxu0 0.0
      %3847 = vmatpush2.msra.mxu0 0.0
      %3848 = vmatprep.subr.mxu0 0.0
      %3849 = vmatpush2.msra.mxu0 0.0
      %3850 = vmatprep.subr.mxu0 0.0
      %3851 = vmatpush2.msra.mxu0 0.0
      %3852 = vmatprep.subr.mxu0 0.0
      %3853 = vmatpush2.msra.mxu0 0.0
      %3854 = vmatprep.mubr.f32.mxu0 0.0
      %3855 = vmatmul.mubr.f32.gmra.mxu0 %v3788
      %v3856 = vpop.f32.mrf.mxu0
      %v3857 = vadd.f32 0.0, %v3856
      %v3858 = vpop.f32.mrf.mxu0
      %3859 = vdwg.mxu0
      %v3861 = vsel %vm1100, %v3618, 0
      %3863 = vmatprep.subr.mxu0 0.0
      %3864 = vmatpush1.msra.mxu0 0.0
      %3865 = vmatprep.subr.mxu0 0.0
      %3866 = vmatpush1.msra.mxu0 0.0
      %3867 = vmatprep.subr.mxu0 0.0
      %3868 = vmatpush1.msra.mxu0 0.0
      %3869 = vmatprep.subr.mxu0 0.0
      %3870 = vmatpush1.msra.mxu0 0.0
      %3871 = vmatprep.subr.mxu0 0.0
      %3872 = vmatpush1.msra.mxu0 0.0
      %3873 = vmatprep.subr.mxu0 0.0
      %3874 = vmatpush1.msra.mxu0 0.0
      %3875 = vmatprep.subr.mxu0 0.0
      %3876 = vmatpush1.msra.mxu0 0.0
      %3877 = vmatprep.subr.mxu0 0.0
      %3878 = vmatpush1.msra.mxu0 0.0
      %3879 = vmatprep.subr.mxu0 0.0
      %3880 = vmatpush1.msra.mxu0 0.0
      %3881 = vmatprep.subr.mxu0 0.0
      %3882 = vmatpush1.msra.mxu0 0.0
      %3883 = vmatprep.subr.mxu0 0.0
      %3884 = vmatpush1.msra.mxu0 0.0
      %3885 = vmatprep.subr.mxu0 0.0
      %3886 = vmatpush1.msra.mxu0 0.0
      %3887 = vmatprep.subr.mxu0 0.0
      %3888 = vmatpush1.msra.mxu0 0.0
      %3889 = vmatprep.subr.mxu0 0.0
      %3890 = vmatpush1.msra.mxu0 0.0
      %3891 = vmatprep.subr.mxu0 0.0
      %3892 = vmatpush1.msra.mxu0 %v3454
      %3893 = vmatprep.subr.mxu0 0.0
      %3894 = vmatpush1.msra.mxu0 %v3453
      %3895 = vmatprep.subr.mxu0 0.0
      %3896 = vmatpush2.msra.mxu0 0.0
      %3897 = vmatprep.subr.mxu0 0.0
      %3898 = vmatpush2.msra.mxu0 0.0
      %3899 = vmatprep.subr.mxu0 0.0
      %3900 = vmatpush2.msra.mxu0 0.0
      %3901 = vmatprep.subr.mxu0 0.0
      %3902 = vmatpush2.msra.mxu0 0.0
      %3903 = vmatprep.subr.mxu0 0.0
      %3904 = vmatpush2.msra.mxu0 0.0
      %3905 = vmatprep.subr.mxu0 0.0
      %3906 = vmatpush2.msra.mxu0 0.0
      %3907 = vmatprep.subr.mxu0 0.0
      %3908 = vmatpush2.msra.mxu0 0.0
      %3909 = vmatprep.subr.mxu0 0.0
      %3910 = vmatpush2.msra.mxu0 0.0
      %3911 = vmatprep.subr.mxu0 0.0
      %3912 = vmatpush2.msra.mxu0 0.0
      %3913 = vmatprep.subr.mxu0 0.0
      %3914 = vmatpush2.msra.mxu0 0.0
      %3915 = vmatprep.subr.mxu0 0.0
      %3916 = vmatpush2.msra.mxu0 0.0
      %3917 = vmatprep.subr.mxu0 0.0
      %3918 = vmatpush2.msra.mxu0 0.0
      %3919 = vmatprep.subr.mxu0 0.0
      %3920 = vmatpush2.msra.mxu0 0.0
      %3921 = vmatprep.subr.mxu0 0.0
      %3922 = vmatpush2.msra.mxu0 0.0
      %3923 = vmatprep.subr.mxu0 0.0
      %3924 = vmatpush2.msra.mxu0 0.0
      %3925 = vmatprep.subr.mxu0 0.0
      %3926 = vmatpush2.msra.mxu0 0.0
      %3927 = vmatprep.mubr.f32.mxu0 0.0
      %3928 = vmatmul.mubr.f32.gmra.mxu0 %v3861
      %v3929 = vpop.f32.mrf.mxu0
      %v3930 = vadd.f32 %v3857, %v3929
      %v3931 = vpop.f32.mrf.mxu0
      %3932 = vdwg.mxu0
      %v3933 = vld [vmem:[%s45] sm:$0x1]
      %v3935 = vlaneseq
      %v3936 = vshrl.u32 %v3935, 7
      %v3937 = vsub.s32 0, %v3936
      %v3938 = vrot.slane %v3933, %v3937
      %v3940 = vadd.f32 %v3930, %v3938
      %v3941 = vadd.f32 %v3284, %v3940
      %v3942 = vsel %vm1019, %v3941, 0.0
      %3943 = vadd.xlane.f32.xlu0 %v3942
      %v3944 = vpop.xlane.xlu0 %3943
      %v3945 = vmul.f32 %v3944, %v1588
      %v3946 = vsub.f32 %v3941, %v3945
      %v3947 = vmul.f32 %v3946, %v3946
      %v3948 = vsel %vm1019, %v3947, 0.0
      %3949 = vadd.xlane.f32.xlu0 %v3948
      %v3950 = vpop.xlane.xlu0 %3949
      %v3951 = vmul.f32 %v3950, %v1588
      %v3952 = vadd.f32 %v3951, 1e-05
      %v3953 = vrsqrt.pop %v3952
      %v3954 = vmul.f32 %v3946, %v3953
      %v3955 = vlaneseq
      %v3956 = vshrl.u32 %v3955, 7
      %v3957 = vsub.s32 2, %v3956
      %v3958 = vrot.slane %v2687, %v3957
      %v3959 = vmul.f32 %v3954, %v3958
      %v3960 = vlaneseq
      %v3961 = vshrl.u32 %v3960, 7
      %v3962 = vsub.s32 3, %v3961
      %v3963 = vrot.slane %v2687, %v3962
      %v3964 = vadd.f32 %v3959, %v3963
      %v3965 = vld [vmem:[%s49] sm:$0xff]
      %v3966 = vld [vmem:[%s49 + $0x8] sm:$0xff]
      %v3967 = vld [vmem:[%s49 + $0x10] sm:$0xff]
      %v3968 = vld [vmem:[%s49 + $0x18] sm:$0xff]
      %v3969 = vld [vmem:[%s51] sm:$0x1]
      %v3970 = vld [vmem:[%s53] sm:$0xff]
      %v3971 = vld [vmem:[%s53 + $0x8] sm:$0xff]
      %v3972 = vld [vmem:[%s53 + $0x10] sm:$0xff]
      %v3973 = vld [vmem:[%s53 + $0x18] sm:$0xff]
      %v3974 = vld [vmem:[%s53 + $0x20] sm:$0xff]
      %v3975 = vld [vmem:[%s53 + $0x28] sm:$0xff]
      %v3976 = vld [vmem:[%s53 + $0x30] sm:$0xff]
      %v3977 = vld [vmem:[%s53 + $0x38] sm:$0xff]
      %v3978 = vld [vmem:[%s55] sm:$0x1]
      %v3980 = vlaneseq
      %v3981 = vshrl.u32 %v3980, 7
      %v3982 = vsub.s32 0, %v3981
      %v3983 = vrot.slane %v3969, %v3982
      %v3986 = vsel %vm1019, %v3964, 0
      %3988 = vmatprep.subr.mxu0 0.0
      %3989 = vmatpush1.msra.mxu0 0.0
      %3990 = vmatprep.subr.mxu0 0.0
      %3991 = vmatpush1.msra.mxu0 0.0
      %3992 = vmatprep.subr.mxu0 0.0
      %3993 = vmatpush1.msra.mxu0 0.0
      %3994 = vmatprep.subr.mxu0 0.0
      %3995 = vmatpush1.msra.mxu0 0.0
      %3996 = vmatprep.subr.mxu0 0.0
      %3997 = vmatpush1.msra.mxu0 0.0
      %3998 = vmatprep.subr.mxu0 0.0
      %3999 = vmatpush1.msra.mxu0 0.0
      %4000 = vmatprep.subr.mxu0 0.0
      %4001 = vmatpush1.msra.mxu0 0.0
      %4002 = vmatprep.subr.mxu0 0.0
      %4003 = vmatpush1.msra.mxu0 0.0
      %4004 = vmatprep.subr.mxu0 0.0
      %4005 = vmatpush1.msra.mxu0 0.0
      %4006 = vmatprep.subr.mxu0 0.0
      %4007 = vmatpush1.msra.mxu0 0.0
      %4008 = vmatprep.subr.mxu0 0.0
      %4009 = vmatpush1.msra.mxu0 0.0
      %4010 = vmatprep.subr.mxu0 0.0
      %4011 = vmatpush1.msra.mxu0 0.0
      %4012 = vmatprep.subr.mxu0 0.0
      %4013 = vmatpush1.msra.mxu0 %v3968
      %4014 = vmatprep.subr.mxu0 0.0
      %4015 = vmatpush1.msra.mxu0 %v3967
      %4016 = vmatprep.subr.mxu0 0.0
      %4017 = vmatpush1.msra.mxu0 %v3966
      %4018 = vmatprep.subr.mxu0 0.0
      %4019 = vmatpush1.msra.mxu0 %v3965
      %4020 = vmatprep.subr.mxu0 0.0
      %4021 = vmatpush2.msra.mxu0 0.0
      %4022 = vmatprep.subr.mxu0 0.0
      %4023 = vmatpush2.msra.mxu0 0.0
      %4024 = vmatprep.subr.mxu0 0.0
      %4025 = vmatpush2.msra.mxu0 0.0
      %4026 = vmatprep.subr.mxu0 0.0
      %4027 = vmatpush2.msra.mxu0 0.0
      %4028 = vmatprep.subr.mxu0 0.0
      %4029 = vmatpush2.msra.mxu0 0.0
      %4030 = vmatprep.subr.mxu0 0.0
      %4031 = vmatpush2.msra.mxu0 0.0
      %4032 = vmatprep.subr.mxu0 0.0
      %4033 = vmatpush2.msra.mxu0 0.0
      %4034 = vmatprep.subr.mxu0 0.0
      %4035 = vmatpush2.msra.mxu0 0.0
      %4036 = vmatprep.subr.mxu0 0.0
      %4037 = vmatpush2.msra.mxu0 0.0
      %4038 = vmatprep.subr.mxu0 0.0
      %4039 = vmatpush2.msra.mxu0 0.0
      %4040 = vmatprep.subr.mxu0 0.0
      %4041 = vmatpush2.msra.mxu0 0.0
      %4042 = vmatprep.subr.mxu0 0.0
      %4043 = vmatpush2.msra.mxu0 0.0
      %4044 = vmatprep.subr.mxu0 0.0
      %4045 = vmatpush2.msra.mxu0 0.0
      %4046 = vmatprep.subr.mxu0 0.0
      %4047 = vmatpush2.msra.mxu0 0.0
      %4048 = vmatprep.subr.mxu0 0.0
      %4049 = vmatpush2.msra.mxu0 0.0
      %4050 = vmatprep.subr.mxu0 0.0
      %4051 = vmatpush2.msra.mxu0 0.0
      %4052 = vmatprep.mubr.f32.mxu0 0.0
      %4053 = vmatmul.mubr.f32.gmra.mxu0 %v3986
      %v4054 = vpop.f32.mrf.mxu0
      %v4055 = vadd.f32 %v3983, %v4054
      %v4056 = vpop.f32.mrf.mxu0
      %4057 = vdwg.mxu0
      %v4058 = vmul.f32 %v4055, 0.5
      %v4059 = vmul.f32 %v4055, 0.70710677
      %vm4060 = vcmp.ge.f32.partialorder %v4059, 0.0
      %v4061 = vsel %vm4060, 1.0, -1.0
      %v4062 = vand.u32 2147483647, %v4059
      %v4063 = vmul.f32 %v4062, 0.3275911
      %v4064 = vadd.f32 %v4063, 1.0
      %v4065 = vrcp.pop %v4064
      %v4066 = vmul.f32 1.0, %v4065
      %v4067 = vmul.f32 %v4066, 1.0614054
      %v4068 = vadd.f32 %v4067, -1.4531521
      %v4069 = vmul.f32 %v4068, %v4066
      %v4070 = vadd.f32 %v4069, 1.4214138
      %v4071 = vmul.f32 %v4070, %v4066
      %v4072 = vadd.f32 %v4071, -0.28449672
      %v4073 = vmul.f32 %v4072, %v4066
      %v4074 = vadd.f32 %v4073, 0.2548296
      %v4075 = vmul.f32 %v4074, %v4066
      %v4076 = vsub.f32 0.0, %v4062
      %v4077 = vmul.f32 %v4076, %v4062
      %v4078 = vmul.f32 %v4077, 1.442695
      %v4079 = vpow.pop %v4078
      %v4080 = vmul.f32 %v4075, %v4079
      %v4081 = vsub.f32 1.0, %v4080
      %v4082 = vmul.f32 %v4061, %v4081
      %v4083 = vadd.f32 %v4082, 1.0
      %v4084 = vmul.f32 %v4058, %v4083
      %v4086 = vlaneseq
      %v4087 = vshrl.u32 %v4086, 7
      %v4088 = vsub.s32 0, %v4087
      %v4089 = vrot.slane %v3978, %v4088
      %v4092 = vsel %vm1735, %v4084, 0
      %4094 = vmatprep.subr.mxu0 0.0
      %4095 = vmatpush1.msra.mxu0 0.0
      %4096 = vmatprep.subr.mxu0 0.0
      %4097 = vmatpush1.msra.mxu0 0.0
      %4098 = vmatprep.subr.mxu0 0.0
      %4099 = vmatpush1.msra.mxu0 0.0
      %4100 = vmatprep.subr.mxu0 0.0
      %4101 = vmatpush1.msra.mxu0 0.0
      %4102 = vmatprep.subr.mxu0 0.0
      %4103 = vmatpush1.msra.mxu0 0.0
      %4104 = vmatprep.subr.mxu0 0.0
      %4105 = vmatpush1.msra.mxu0 0.0
      %4106 = vmatprep.subr.mxu0 0.0
      %4107 = vmatpush1.msra.mxu0 0.0
      %4108 = vmatprep.subr.mxu0 0.0
      %4109 = vmatpush1.msra.mxu0 0.0
      %4110 = vmatprep.subr.mxu0 0.0
      %4111 = vmatpush1.msra.mxu0 %v3977
      %4112 = vmatprep.subr.mxu0 0.0
      %4113 = vmatpush1.msra.mxu0 %v3976
      %4114 = vmatprep.subr.mxu0 0.0
      %4115 = vmatpush1.msra.mxu0 %v3975
      %4116 = vmatprep.subr.mxu0 0.0
      %4117 = vmatpush1.msra.mxu0 %v3974
      %4118 = vmatprep.subr.mxu0 0.0
      %4119 = vmatpush1.msra.mxu0 %v3973
      %4120 = vmatprep.subr.mxu0 0.0
      %4121 = vmatpush1.msra.mxu0 %v3972
      %4122 = vmatprep.subr.mxu0 0.0
      %4123 = vmatpush1.msra.mxu0 %v3971
      %4124 = vmatprep.subr.mxu0 0.0
      %4125 = vmatpush1.msra.mxu0 %v3970
      %4126 = vmatprep.subr.mxu0 0.0
      %4127 = vmatpush2.msra.mxu0 0.0
      %4128 = vmatprep.subr.mxu0 0.0
      %4129 = vmatpush2.msra.mxu0 0.0
      %4130 = vmatprep.subr.mxu0 0.0
      %4131 = vmatpush2.msra.mxu0 0.0
      %4132 = vmatprep.subr.mxu0 0.0
      %4133 = vmatpush2.msra.mxu0 0.0
      %4134 = vmatprep.subr.mxu0 0.0
      %4135 = vmatpush2.msra.mxu0 0.0
      %4136 = vmatprep.subr.mxu0 0.0
      %4137 = vmatpush2.msra.mxu0 0.0
      %4138 = vmatprep.subr.mxu0 0.0
      %4139 = vmatpush2.msra.mxu0 0.0
      %4140 = vmatprep.subr.mxu0 0.0
      %4141 = vmatpush2.msra.mxu0 0.0
      %4142 = vmatprep.subr.mxu0 0.0
      %4143 = vmatpush2.msra.mxu0 0.0
      %4144 = vmatprep.subr.mxu0 0.0
      %4145 = vmatpush2.msra.mxu0 0.0
      %4146 = vmatprep.subr.mxu0 0.0
      %4147 = vmatpush2.msra.mxu0 0.0
      %4148 = vmatprep.subr.mxu0 0.0
      %4149 = vmatpush2.msra.mxu0 0.0
      %4150 = vmatprep.subr.mxu0 0.0
      %4151 = vmatpush2.msra.mxu0 0.0
      %4152 = vmatprep.subr.mxu0 0.0
      %4153 = vmatpush2.msra.mxu0 0.0
      %4154 = vmatprep.subr.mxu0 0.0
      %4155 = vmatpush2.msra.mxu0 0.0
      %4156 = vmatprep.subr.mxu0 0.0
      %4157 = vmatpush2.msra.mxu0 0.0
      %4158 = vmatprep.mubr.f32.mxu0 0.0
      %4159 = vmatmul.mubr.f32.gmra.mxu0 %v4092
      %v4160 = vpop.f32.mrf.mxu0
      %v4161 = vadd.f32 %v4089, %v4160
      %v4162 = vpop.f32.mrf.mxu0
      %4163 = vdwg.mxu0
      %v4164 = vadd.f32 %v3964, %v4161
      %v4165 = vsel %vm1019, %v4164, 0.0
      %4166 = vadd.xlane.f32.xlu0 %v4165
      %v4167 = vpop.xlane.xlu0 %4166
      %v4168 = vmul.f32 %v4167, %v1588
      %v4169 = vsub.f32 %v4164, %v4168
      %v4170 = vmul.f32 %v4169, %v4169
      %v4171 = vsel %vm1019, %v4170, 0.0
      %4172 = vadd.xlane.f32.xlu0 %v4171
      %v4173 = vpop.xlane.xlu0 %4172
      %v4174 = vmul.f32 %v4173, %v1588
      %v4175 = vadd.f32 %v4174, 1e-05
      %v4176 = vrsqrt.pop %v4175
      %v4177 = vmul.f32 %v4169, %v4176
      %v4178 = vlaneseq
      %v4179 = vshrl.u32 %v4178, 7
      %v4180 = vsub.s32 4, %v4179
      %v4181 = vrot.slane %v2687, %v4180
      %v4182 = vmul.f32 %v4177, %v4181
      %v4183 = vlaneseq
      %v4184 = vshrl.u32 %v4183, 7
      %v4185 = vsub.s32 5, %v4184
      %v4186 = vrot.slane %v2687, %v4185
      %v4187 = vadd.f32 %v4182, %v4186
      %s4188 = scalar_lea.vmem %s47, 8
      %v4189 = vld [vmem:[%s4188] sm:$0x3f]
      %s4190 = scalar_lea.vmem %s27, 32
      %v4191 = vld [vmem:[%s4190] sm:$0xff]
      %v4192 = vld [vmem:[%s4190 + $0x8] sm:$0xff]
      %v4193 = vld [vmem:[%s4190 + $0x10] sm:$0xff]
      %v4194 = vld [vmem:[%s4190 + $0x18] sm:$0xff]
      %s4195 = scalar_lea.vmem %s29, 1
      %v4196 = vld [vmem:[%s4195] sm:$0x1]
      %v4198 = vlaneseq
      %v4199 = vshrl.u32 %v4198, 7
      %v4200 = vsub.s32 0, %v4199
      %v4201 = vrot.slane %v4196, %v4200
      %v4204 = vsel %vm1019, %v4187, 0
      %4206 = vmatprep.subr.mxu0 0.0
      %4207 = vmatpush1.msra.mxu0 0.0
      %4208 = vmatprep.subr.mxu0 0.0
      %4209 = vmatpush1.msra.mxu0 0.0
      %4210 = vmatprep.subr.mxu0 0.0
      %4211 = vmatpush1.msra.mxu0 0.0
      %4212 = vmatprep.subr.mxu0 0.0
      %4213 = vmatpush1.msra.mxu0 0.0
      %4214 = vmatprep.subr.mxu0 0.0
      %4215 = vmatpush1.msra.mxu0 0.0
      %4216 = vmatprep.subr.mxu0 0.0
      %4217 = vmatpush1.msra.mxu0 0.0
      %4218 = vmatprep.subr.mxu0 0.0
      %4219 = vmatpush1.msra.mxu0 0.0
      %4220 = vmatprep.subr.mxu0 0.0
      %4221 = vmatpush1.msra.mxu0 0.0
      %4222 = vmatprep.subr.mxu0 0.0
      %4223 = vmatpush1.msra.mxu0 0.0
      %4224 = vmatprep.subr.mxu0 0.0
      %4225 = vmatpush1.msra.mxu0 0.0
      %4226 = vmatprep.subr.mxu0 0.0
      %4227 = vmatpush1.msra.mxu0 0.0
      %4228 = vmatprep.subr.mxu0 0.0
      %4229 = vmatpush1.msra.mxu0 0.0
      %4230 = vmatprep.subr.mxu0 0.0
      %4231 = vmatpush1.msra.mxu0 %v4194
      %4232 = vmatprep.subr.mxu0 0.0
      %4233 = vmatpush1.msra.mxu0 %v4193
      %4234 = vmatprep.subr.mxu0 0.0
      %4235 = vmatpush1.msra.mxu0 %v4192
      %4236 = vmatprep.subr.mxu0 0.0
      %4237 = vmatpush1.msra.mxu0 %v4191
      %4238 = vmatprep.subr.mxu0 0.0
      %4239 = vmatpush2.msra.mxu0 0.0
      %4240 = vmatprep.subr.mxu0 0.0
      %4241 = vmatpush2.msra.mxu0 0.0
      %4242 = vmatprep.subr.mxu0 0.0
      %4243 = vmatpush2.msra.mxu0 0.0
      %4244 = vmatprep.subr.mxu0 0.0
      %4245 = vmatpush2.msra.mxu0 0.0
      %4246 = vmatprep.subr.mxu0 0.0
      %4247 = vmatpush2.msra.mxu0 0.0
      %4248 = vmatprep.subr.mxu0 0.0
      %4249 = vmatpush2.msra.mxu0 0.0
      %4250 = vmatprep.subr.mxu0 0.0
      %4251 = vmatpush2.msra.mxu0 0.0
      %4252 = vmatprep.subr.mxu0 0.0
      %4253 = vmatpush2.msra.mxu0 0.0
      %4254 = vmatprep.subr.mxu0 0.0
      %4255 = vmatpush2.msra.mxu0 0.0
      %4256 = vmatprep.subr.mxu0 0.0
      %4257 = vmatpush2.msra.mxu0 0.0
      %4258 = vmatprep.subr.mxu0 0.0
      %4259 = vmatpush2.msra.mxu0 0.0
      %4260 = vmatprep.subr.mxu0 0.0
      %4261 = vmatpush2.msra.mxu0 0.0
      %4262 = vmatprep.subr.mxu0 0.0
      %4263 = vmatpush2.msra.mxu0 0.0
      %4264 = vmatprep.subr.mxu0 0.0
      %4265 = vmatpush2.msra.mxu0 0.0
      %4266 = vmatprep.subr.mxu0 0.0
      %4267 = vmatpush2.msra.mxu0 0.0
      %4268 = vmatprep.subr.mxu0 0.0
      %4269 = vmatpush2.msra.mxu0 0.0
      %4270 = vmatprep.mubr.f32.mxu0 0.0
      %4271 = vmatmul.mubr.f32.gmra.mxu0 %v4204
      %v4272 = vpop.f32.mrf.mxu0
      %v4273 = vadd.f32 %v4201, %v4272
      %v4274 = vpop.f32.mrf.mxu0
      %4275 = vdwg.mxu0
      %s4276 = scalar_lea.vmem %s31, 32
      %v4277 = vld [vmem:[%s4276] sm:$0xff]
      %v4278 = vld [vmem:[%s4276 + $0x8] sm:$0xff]
      %v4279 = vld [vmem:[%s4276 + $0x10] sm:$0xff]
      %v4280 = vld [vmem:[%s4276 + $0x18] sm:$0xff]
      %4282 = vrot.lane.b32.xlu0 %v4273, 96
      %v4283 = vpop.permute.xlu0 %4282
      %v4284 = vsel %vm1100, %v4273, 0
      %v4286 = vsel %vm1100, %v4283, 0
      %4288 = vmatprep.subr.mxu0 0.0
      %4289 = vmatpush1.xpose.msra.mxu0 0.0
      %4290 = vmatprep.subr.mxu0 0.0
      %4291 = vmatpush1.xpose.msra.mxu0 0.0
      %4292 = vmatprep.subr.mxu0 0.0
      %4293 = vmatpush1.xpose.msra.mxu0 0.0
      %4294 = vmatprep.subr.mxu0 0.0
      %4295 = vmatpush1.xpose.msra.mxu0 0.0
      %4296 = vmatprep.subr.mxu0 0.0
      %4297 = vmatpush1.xpose.msra.mxu0 0.0
      %4298 = vmatprep.subr.mxu0 0.0
      %4299 = vmatpush1.xpose.msra.mxu0 0.0
      %4300 = vmatprep.subr.mxu0 0.0
      %4301 = vmatpush1.xpose.msra.mxu0 0.0
      %4302 = vmatprep.subr.mxu0 0.0
      %4303 = vmatpush1.xpose.msra.mxu0 0.0
      %4304 = vmatprep.subr.mxu0 0.0
      %4305 = vmatpush1.xpose.msra.mxu0 0.0
      %4306 = vmatprep.subr.mxu0 0.0
      %4307 = vmatpush1.xpose.msra.mxu0 0.0
      %4308 = vmatprep.subr.mxu0 0.0
      %4309 = vmatpush1.xpose.msra.mxu0 0.0
      %4310 = vmatprep.subr.mxu0 0.0
      %4311 = vmatpush1.xpose.msra.mxu0 0.0
      %4312 = vmatprep.subr.mxu0 0.0
      %4313 = vmatpush1.xpose.msra.mxu0 0.0
      %4314 = vmatprep.subr.mxu0 0.0
      %4315 = vmatpush1.xpose.msra.mxu0 0.0
      %4316 = vmatprep.subr.mxu0 0.0
      %4317 = vmatpush1.xpose.msra.mxu0 0.0
      %4318 = vmatprep.subr.mxu0 0.0
      %4319 = vmatpush1.xpose.msra.mxu0 %v4286
      %4320 = vmatprep.subr.mxu0 0.0
      %4321 = vmatpush2.xpose.msra.mxu0 0.0
      %4322 = vmatprep.subr.mxu0 0.0
      %4323 = vmatpush2.xpose.msra.mxu0 0.0
      %4324 = vmatprep.subr.mxu0 0.0
      %4325 = vmatpush2.xpose.msra.mxu0 0.0
      %4326 = vmatprep.subr.mxu0 0.0
      %4327 = vmatpush2.xpose.msra.mxu0 0.0
      %4328 = vmatprep.subr.mxu0 0.0
      %4329 = vmatpush2.xpose.msra.mxu0 0.0
      %4330 = vmatprep.subr.mxu0 0.0
      %4331 = vmatpush2.xpose.msra.mxu0 0.0
      %4332 = vmatprep.subr.mxu0 0.0
      %4333 = vmatpush2.xpose.msra.mxu0 0.0
      %4334 = vmatprep.subr.mxu0 0.0
      %4335 = vmatpush2.xpose.msra.mxu0 0.0
      %4336 = vmatprep.subr.mxu0 0.0
      %4337 = vmatpush2.xpose.msra.mxu0 0.0
      %4338 = vmatprep.subr.mxu0 0.0
      %4339 = vmatpush2.xpose.msra.mxu0 0.0
      %4340 = vmatprep.subr.mxu0 0.0
      %4341 = vmatpush2.xpose.msra.mxu0 0.0
      %4342 = vmatprep.subr.mxu0 0.0
      %4343 = vmatpush2.xpose.msra.mxu0 0.0
      %4344 = vmatprep.subr.mxu0 0.0
      %4345 = vmatpush2.xpose.msra.mxu0 0.0
      %4346 = vmatprep.subr.mxu0 0.0
      %4347 = vmatpush2.xpose.msra.mxu0 0.0
      %4348 = vmatprep.subr.mxu0 0.0
      %4349 = vmatpush2.xpose.msra.mxu0 0.0
      %4350 = vmatprep.subr.mxu0 0.0
      %4351 = vmatpush2.xpose.msra.mxu0 0.0
      %4352 = vmatprep.mubr.f32.mxu0 0.0
      %4353 = vmatmul.mubr.f32.gmra.mxu0 %v4284
      %v4354 = vpop.f32.mrf.mxu0
      %v4355 = vadd.f32 0.0, %v4354
      %v4356 = vpop.f32.mrf.mxu0
      %4357 = vdwg.mxu0
      %v4358 = vmul.f32 %v4355, 0.25
      %v4359 = vsel %vm1176, %v4358, -inf
      %4360 = vmax.xlane.f32.xlu0 %v4359
      %v4361 = vpop.xlane.xlu0 %4360
      %v4362 = vsub.f32 %v4358, %v4361
      %v4363 = vmul.f32 %v4362, 1.442695
      %v4364 = vpow.pop %v4363
      %v4365 = vsel %vm1176, %v4364, 0.0
      %4366 = vadd.xlane.f32.xlu0 %v4365
      %v4367 = vpop.xlane.xlu0 %4366
      %v4368 = vrcp.pop %v4367
      %v4369 = vmul.f32 %v4364, %v4368
      %4370 = vrot.lane.b32.xlu0 %v4273, 64
      %v4371 = vpop.permute.xlu0 %4370
      %v4374 = vsel %vm1176, %v4369, 0
      %4376 = vmatprep.subr.mxu0 0.0
      %4377 = vmatpush1.msra.mxu0 0.0
      %4378 = vmatprep.subr.mxu0 0.0
      %4379 = vmatpush1.msra.mxu0 0.0
      %4380 = vmatprep.subr.mxu0 0.0
      %4381 = vmatpush1.msra.mxu0 0.0
      %4382 = vmatprep.subr.mxu0 0.0
      %4383 = vmatpush1.msra.mxu0 0.0
      %4384 = vmatprep.subr.mxu0 0.0
      %4385 = vmatpush1.msra.mxu0 0.0
      %4386 = vmatprep.subr.mxu0 0.0
      %4387 = vmatpush1.msra.mxu0 0.0
      %4388 = vmatprep.subr.mxu0 0.0
      %4389 = vmatpush1.msra.mxu0 0.0
      %4390 = vmatprep.subr.mxu0 0.0
      %4391 = vmatpush1.msra.mxu0 0.0
      %4392 = vmatprep.subr.mxu0 0.0
      %4393 = vmatpush1.msra.mxu0 0.0
      %4394 = vmatprep.subr.mxu0 0.0
      %4395 = vmatpush1.msra.mxu0 0.0
      %4396 = vmatprep.subr.mxu0 0.0
      %4397 = vmatpush1.msra.mxu0 0.0
      %4398 = vmatprep.subr.mxu0 0.0
      %4399 = vmatpush1.msra.mxu0 0.0
      %4400 = vmatprep.subr.mxu0 0.0
      %4401 = vmatpush1.msra.mxu0 0.0
      %4402 = vmatprep.subr.mxu0 0.0
      %4403 = vmatpush1.msra.mxu0 0.0
      %4404 = vmatprep.subr.mxu0 0.0
      %4405 = vmatpush1.msra.mxu0 0.0
      %4406 = vmatprep.subr.mxu0 0.0
      %4407 = vmatpush1.msra.mxu0 %v4371
      %4408 = vmatprep.subr.mxu0 0.0
      %4409 = vmatpush2.msra.mxu0 0.0
      %4410 = vmatprep.subr.mxu0 0.0
      %4411 = vmatpush2.msra.mxu0 0.0
      %4412 = vmatprep.subr.mxu0 0.0
      %4413 = vmatpush2.msra.mxu0 0.0
      %4414 = vmatprep.subr.mxu0 0.0
      %4415 = vmatpush2.msra.mxu0 0.0
      %4416 = vmatprep.subr.mxu0 0.0
      %4417 = vmatpush2.msra.mxu0 0.0
      %4418 = vmatprep.subr.mxu0 0.0
      %4419 = vmatpush2.msra.mxu0 0.0
      %4420 = vmatprep.subr.mxu0 0.0
      %4421 = vmatpush2.msra.mxu0 0.0
      %4422 = vmatprep.subr.mxu0 0.0
      %4423 = vmatpush2.msra.mxu0 0.0
      %4424 = vmatprep.subr.mxu0 0.0
      %4425 = vmatpush2.msra.mxu0 0.0
      %4426 = vmatprep.subr.mxu0 0.0
      %4427 = vmatpush2.msra.mxu0 0.0
      %4428 = vmatprep.subr.mxu0 0.0
      %4429 = vmatpush2.msra.mxu0 0.0
      %4430 = vmatprep.subr.mxu0 0.0
      %4431 = vmatpush2.msra.mxu0 0.0
      %4432 = vmatprep.subr.mxu0 0.0
      %4433 = vmatpush2.msra.mxu0 0.0
      %4434 = vmatprep.subr.mxu0 0.0
      %4435 = vmatpush2.msra.mxu0 0.0
      %4436 = vmatprep.subr.mxu0 0.0
      %4437 = vmatpush2.msra.mxu0 0.0
      %4438 = vmatprep.subr.mxu0 0.0
      %4439 = vmatpush2.msra.mxu0 0.0
      %4440 = vmatprep.mubr.f32.mxu0 0.0
      %4441 = vmatmul.mubr.f32.gmra.mxu0 %v4374
      %v4442 = vpop.f32.mrf.mxu0
      %v4443 = vadd.f32 0.0, %v4442
      %v4444 = vpop.f32.mrf.mxu0
      %4445 = vdwg.mxu0
      %4446 = vrot.lane.b32.xlu0 %v4273, 112
      %v4447 = vpop.permute.xlu0 %4446
      %4448 = vrot.lane.b32.xlu0 %v4273, 80
      %v4449 = vpop.permute.xlu0 %4448
      %v4450 = vsel %vm1100, %v4447, 0
      %v4452 = vsel %vm1100, %v4449, 0
      %4454 = vmatprep.subr.mxu0 0.0
      %4455 = vmatpush1.xpose.msra.mxu0 0.0
      %4456 = vmatprep.subr.mxu0 0.0
      %4457 = vmatpush1.xpose.msra.mxu0 0.0
      %4458 = vmatprep.subr.mxu0 0.0
      %4459 = vmatpush1.xpose.msra.mxu0 0.0
      %4460 = vmatprep.subr.mxu0 0.0
      %4461 = vmatpush1.xpose.msra.mxu0 0.0
      %4462 = vmatprep.subr.mxu0 0.0
      %4463 = vmatpush1.xpose.msra.mxu0 0.0
      %4464 = vmatprep.subr.mxu0 0.0
      %4465 = vmatpush1.xpose.msra.mxu0 0.0
      %4466 = vmatprep.subr.mxu0 0.0
      %4467 = vmatpush1.xpose.msra.mxu0 0.0
      %4468 = vmatprep.subr.mxu0 0.0
      %4469 = vmatpush1.xpose.msra.mxu0 0.0
      %4470 = vmatprep.subr.mxu0 0.0
      %4471 = vmatpush1.xpose.msra.mxu0 0.0
      %4472 = vmatprep.subr.mxu0 0.0
      %4473 = vmatpush1.xpose.msra.mxu0 0.0
      %4474 = vmatprep.subr.mxu0 0.0
      %4475 = vmatpush1.xpose.msra.mxu0 0.0
      %4476 = vmatprep.subr.mxu0 0.0
      %4477 = vmatpush1.xpose.msra.mxu0 0.0
      %4478 = vmatprep.subr.mxu0 0.0
      %4479 = vmatpush1.xpose.msra.mxu0 0.0
      %4480 = vmatprep.subr.mxu0 0.0
      %4481 = vmatpush1.xpose.msra.mxu0 0.0
      %4482 = vmatprep.subr.mxu0 0.0
      %4483 = vmatpush1.xpose.msra.mxu0 0.0
      %4484 = vmatprep.subr.mxu0 0.0
      %4485 = vmatpush1.xpose.msra.mxu0 %v4452
      %4486 = vmatprep.subr.mxu0 0.0
      %4487 = vmatpush2.xpose.msra.mxu0 0.0
      %4488 = vmatprep.subr.mxu0 0.0
      %4489 = vmatpush2.xpose.msra.mxu0 0.0
      %4490 = vmatprep.subr.mxu0 0.0
      %4491 = vmatpush2.xpose.msra.mxu0 0.0
      %4492 = vmatprep.subr.mxu0 0.0
      %4493 = vmatpush2.xpose.msra.mxu0 0.0
      %4494 = vmatprep.subr.mxu0 0.0
      %4495 = vmatpush2.xpose.msra.mxu0 0.0
      %4496 = vmatprep.subr.mxu0 0.0
      %4497 = vmatpush2.xpose.msra.mxu0 0.0
      %4498 = vmatprep.subr.mxu0 0.0
      %4499 = vmatpush2.xpose.msra.mxu0 0.0
      %4500 = vmatprep.subr.mxu0 0.0
      %4501 = vmatpush2.xpose.msra.mxu0 0.0
      %4502 = vmatprep.subr.mxu0 0.0
      %4503 = vmatpush2.xpose.msra.mxu0 0.0
      %4504 = vmatprep.subr.mxu0 0.0
      %4505 = vmatpush2.xpose.msra.mxu0 0.0
      %4506 = vmatprep.subr.mxu0 0.0
      %4507 = vmatpush2.xpose.msra.mxu0 0.0
      %4508 = vmatprep.subr.mxu0 0.0
      %4509 = vmatpush2.xpose.msra.mxu0 0.0
      %4510 = vmatprep.subr.mxu0 0.0
      %4511 = vmatpush2.xpose.msra.mxu0 0.0
      %4512 = vmatprep.subr.mxu0 0.0
      %4513 = vmatpush2.xpose.msra.mxu0 0.0
      %4514 = vmatprep.subr.mxu0 0.0
      %4515 = vmatpush2.xpose.msra.mxu0 0.0
      %4516 = vmatprep.subr.mxu0 0.0
      %4517 = vmatpush2.xpose.msra.mxu0 0.0
      %4518 = vmatprep.mubr.f32.mxu0 0.0
      %4519 = vmatmul.mubr.f32.gmra.mxu0 %v4450
      %v4520 = vpop.f32.mrf.mxu0
      %v4521 = vadd.f32 0.0, %v4520
      %v4522 = vpop.f32.mrf.mxu0
      %4523 = vdwg.mxu0
      %v4524 = vmul.f32 %v4521, 0.25
      %v4525 = vsel %vm1176, %v4524, -inf
      %4526 = vmax.xlane.f32.xlu0 %v4525
      %v4527 = vpop.xlane.xlu0 %4526
      %v4528 = vsub.f32 %v4524, %v4527
      %v4529 = vmul.f32 %v4528, 1.442695
      %v4530 = vpow.pop %v4529
      %v4531 = vsel %vm1176, %v4530, 0.0
      %4532 = vadd.xlane.f32.xlu0 %v4531
      %v4533 = vpop.xlane.xlu0 %4532
      %v4534 = vrcp.pop %v4533
      %v4535 = vmul.f32 %v4530, %v4534
      %4536 = vrot.lane.b32.xlu0 %v4273, 48
      %v4537 = vpop.permute.xlu0 %4536
      %v4540 = vsel %vm1176, %v4535, 0
      %4542 = vmatprep.subr.mxu0 0.0
      %4543 = vmatpush1.msra.mxu0 0.0
      %4544 = vmatprep.subr.mxu0 0.0
      %4545 = vmatpush1.msra.mxu0 0.0
      %4546 = vmatprep.subr.mxu0 0.0
      %4547 = vmatpush1.msra.mxu0 0.0
      %4548 = vmatprep.subr.mxu0 0.0
      %4549 = vmatpush1.msra.mxu0 0.0
      %4550 = vmatprep.subr.mxu0 0.0
      %4551 = vmatpush1.msra.mxu0 0.0
      %4552 = vmatprep.subr.mxu0 0.0
      %4553 = vmatpush1.msra.mxu0 0.0
      %4554 = vmatprep.subr.mxu0 0.0
      %4555 = vmatpush1.msra.mxu0 0.0
      %4556 = vmatprep.subr.mxu0 0.0
      %4557 = vmatpush1.msra.mxu0 0.0
      %4558 = vmatprep.subr.mxu0 0.0
      %4559 = vmatpush1.msra.mxu0 0.0
      %4560 = vmatprep.subr.mxu0 0.0
      %4561 = vmatpush1.msra.mxu0 0.0
      %4562 = vmatprep.subr.mxu0 0.0
      %4563 = vmatpush1.msra.mxu0 0.0
      %4564 = vmatprep.subr.mxu0 0.0
      %4565 = vmatpush1.msra.mxu0 0.0
      %4566 = vmatprep.subr.mxu0 0.0
      %4567 = vmatpush1.msra.mxu0 0.0
      %4568 = vmatprep.subr.mxu0 0.0
      %4569 = vmatpush1.msra.mxu0 0.0
      %4570 = vmatprep.subr.mxu0 0.0
      %4571 = vmatpush1.msra.mxu0 0.0
      %4572 = vmatprep.subr.mxu0 0.0
      %4573 = vmatpush1.msra.mxu0 %v4537
      %4574 = vmatprep.subr.mxu0 0.0
      %4575 = vmatpush2.msra.mxu0 0.0
      %4576 = vmatprep.subr.mxu0 0.0
      %4577 = vmatpush2.msra.mxu0 0.0
      %4578 = vmatprep.subr.mxu0 0.0
      %4579 = vmatpush2.msra.mxu0 0.0
      %4580 = vmatprep.subr.mxu0 0.0
      %4581 = vmatpush2.msra.mxu0 0.0
      %4582 = vmatprep.subr.mxu0 0.0
      %4583 = vmatpush2.msra.mxu0 0.0
      %4584 = vmatprep.subr.mxu0 0.0
      %4585 = vmatpush2.msra.mxu0 0.0
      %4586 = vmatprep.subr.mxu0 0.0
      %4587 = vmatpush2.msra.mxu0 0.0
      %4588 = vmatprep.subr.mxu0 0.0
      %4589 = vmatpush2.msra.mxu0 0.0
      %4590 = vmatprep.subr.mxu0 0.0
      %4591 = vmatpush2.msra.mxu0 0.0
      %4592 = vmatprep.subr.mxu0 0.0
      %4593 = vmatpush2.msra.mxu0 0.0
      %4594 = vmatprep.subr.mxu0 0.0
      %4595 = vmatpush2.msra.mxu0 0.0
      %4596 = vmatprep.subr.mxu0 0.0
      %4597 = vmatpush2.msra.mxu0 0.0
      %4598 = vmatprep.subr.mxu0 0.0
      %4599 = vmatpush2.msra.mxu0 0.0
      %4600 = vmatprep.subr.mxu0 0.0
      %4601 = vmatpush2.msra.mxu0 0.0
      %4602 = vmatprep.subr.mxu0 0.0
      %4603 = vmatpush2.msra.mxu0 0.0
      %4604 = vmatprep.subr.mxu0 0.0
      %4605 = vmatpush2.msra.mxu0 0.0
      %4606 = vmatprep.mubr.f32.mxu0 0.0
      %4607 = vmatmul.mubr.f32.gmra.mxu0 %v4540
      %v4608 = vpop.f32.mrf.mxu0
      %v4609 = vadd.f32 0.0, %v4608
      %v4610 = vpop.f32.mrf.mxu0
      %4611 = vdwg.mxu0
      %v4613 = vsel %vm1100, %v4609, 0
      %4615 = vmatprep.subr.mxu0 0.0
      %4616 = vmatpush1.msra.mxu0 0.0
      %4617 = vmatprep.subr.mxu0 0.0
      %4618 = vmatpush1.msra.mxu0 0.0
      %4619 = vmatprep.subr.mxu0 0.0
      %4620 = vmatpush1.msra.mxu0 0.0
      %4621 = vmatprep.subr.mxu0 0.0
      %4622 = vmatpush1.msra.mxu0 0.0
      %4623 = vmatprep.subr.mxu0 0.0
      %4624 = vmatpush1.msra.mxu0 0.0
      %4625 = vmatprep.subr.mxu0 0.0
      %4626 = vmatpush1.msra.mxu0 0.0
      %4627 = vmatprep.subr.mxu0 0.0
      %4628 = vmatpush1.msra.mxu0 0.0
      %4629 = vmatprep.subr.mxu0 0.0
      %4630 = vmatpush1.msra.mxu0 0.0
      %4631 = vmatprep.subr.mxu0 0.0
      %4632 = vmatpush1.msra.mxu0 0.0
      %4633 = vmatprep.subr.mxu0 0.0
      %4634 = vmatpush1.msra.mxu0 0.0
      %4635 = vmatprep.subr.mxu0 0.0
      %4636 = vmatpush1.msra.mxu0 0.0
      %4637 = vmatprep.subr.mxu0 0.0
      %4638 = vmatpush1.msra.mxu0 0.0
      %4639 = vmatprep.subr.mxu0 0.0
      %4640 = vmatpush1.msra.mxu0 0.0
      %4641 = vmatprep.subr.mxu0 0.0
      %4642 = vmatpush1.msra.mxu0 0.0
      %4643 = vmatprep.subr.mxu0 0.0
      %4644 = vmatpush1.msra.mxu0 %v4280
      %4645 = vmatprep.subr.mxu0 0.0
      %4646 = vmatpush1.msra.mxu0 %v4279
      %4647 = vmatprep.subr.mxu0 0.0
      %4648 = vmatpush2.msra.mxu0 0.0
      %4649 = vmatprep.subr.mxu0 0.0
      %4650 = vmatpush2.msra.mxu0 0.0
      %4651 = vmatprep.subr.mxu0 0.0
      %4652 = vmatpush2.msra.mxu0 0.0
      %4653 = vmatprep.subr.mxu0 0.0
      %4654 = vmatpush2.msra.mxu0 0.0
      %4655 = vmatprep.subr.mxu0 0.0
      %4656 = vmatpush2.msra.mxu0 0.0
      %4657 = vmatprep.subr.mxu0 0.0
      %4658 = vmatpush2.msra.mxu0 0.0
      %4659 = vmatprep.subr.mxu0 0.0
      %4660 = vmatpush2.msra.mxu0 0.0
      %4661 = vmatprep.subr.mxu0 0.0
      %4662 = vmatpush2.msra.mxu0 0.0
      %4663 = vmatprep.subr.mxu0 0.0
      %4664 = vmatpush2.msra.mxu0 0.0
      %4665 = vmatprep.subr.mxu0 0.0
      %4666 = vmatpush2.msra.mxu0 0.0
      %4667 = vmatprep.subr.mxu0 0.0
      %4668 = vmatpush2.msra.mxu0 0.0
      %4669 = vmatprep.subr.mxu0 0.0
      %4670 = vmatpush2.msra.mxu0 0.0
      %4671 = vmatprep.subr.mxu0 0.0
      %4672 = vmatpush2.msra.mxu0 0.0
      %4673 = vmatprep.subr.mxu0 0.0
      %4674 = vmatpush2.msra.mxu0 0.0
      %4675 = vmatprep.subr.mxu0 0.0
      %4676 = vmatpush2.msra.mxu0 0.0
      %4677 = vmatprep.subr.mxu0 0.0
      %4678 = vmatpush2.msra.mxu0 0.0
      %4679 = vmatprep.mubr.f32.mxu0 0.0
      %4680 = vmatmul.mubr.f32.gmra.mxu0 %v4613
      %v4681 = vpop.f32.mrf.mxu0
      %v4682 = vadd.f32 0.0, %v4681
      %v4683 = vpop.f32.mrf.mxu0
      %4684 = vdwg.mxu0
      %v4686 = vsel %vm1100, %v4443, 0
      %4688 = vmatprep.subr.mxu0 0.0
      %4689 = vmatpush1.msra.mxu0 0.0
      %4690 = vmatprep.subr.mxu0 0.0
      %4691 = vmatpush1.msra.mxu0 0.0
      %4692 = vmatprep.subr.mxu0 0.0
      %4693 = vmatpush1.msra.mxu0 0.0
      %4694 = vmatprep.subr.mxu0 0.0
      %4695 = vmatpush1.msra.mxu0 0.0
      %4696 = vmatprep.subr.mxu0 0.0
      %4697 = vmatpush1.msra.mxu0 0.0
      %4698 = vmatprep.subr.mxu0 0.0
      %4699 = vmatpush1.msra.mxu0 0.0
      %4700 = vmatprep.subr.mxu0 0.0
      %4701 = vmatpush1.msra.mxu0 0.0
      %4702 = vmatprep.subr.mxu0 0.0
      %4703 = vmatpush1.msra.mxu0 0.0
      %4704 = vmatprep.subr.mxu0 0.0
      %4705 = vmatpush1.msra.mxu0 0.0
      %4706 = vmatprep.subr.mxu0 0.0
      %4707 = vmatpush1.msra.mxu0 0.0
      %4708 = vmatprep.subr.mxu0 0.0
      %4709 = vmatpush1.msra.mxu0 0.0
      %4710 = vmatprep.subr.mxu0 0.0
      %4711 = vmatpush1.msra.mxu0 0.0
      %4712 = vmatprep.subr.mxu0 0.0
      %4713 = vmatpush1.msra.mxu0 0.0
      %4714 = vmatprep.subr.mxu0 0.0
      %4715 = vmatpush1.msra.mxu0 0.0
      %4716 = vmatprep.subr.mxu0 0.0
      %4717 = vmatpush1.msra.mxu0 %v4278
      %4718 = vmatprep.subr.mxu0 0.0
      %4719 = vmatpush1.msra.mxu0 %v4277
      %4720 = vmatprep.subr.mxu0 0.0
      %4721 = vmatpush2.msra.mxu0 0.0
      %4722 = vmatprep.subr.mxu0 0.0
      %4723 = vmatpush2.msra.mxu0 0.0
      %4724 = vmatprep.subr.mxu0 0.0
      %4725 = vmatpush2.msra.mxu0 0.0
      %4726 = vmatprep.subr.mxu0 0.0
      %4727 = vmatpush2.msra.mxu0 0.0
      %4728 = vmatprep.subr.mxu0 0.0
      %4729 = vmatpush2.msra.mxu0 0.0
      %4730 = vmatprep.subr.mxu0 0.0
      %4731 = vmatpush2.msra.mxu0 0.0
      %4732 = vmatprep.subr.mxu0 0.0
      %4733 = vmatpush2.msra.mxu0 0.0
      %4734 = vmatprep.subr.mxu0 0.0
      %4735 = vmatpush2.msra.mxu0 0.0
      %4736 = vmatprep.subr.mxu0 0.0
      %4737 = vmatpush2.msra.mxu0 0.0
      %4738 = vmatprep.subr.mxu0 0.0
      %4739 = vmatpush2.msra.mxu0 0.0
      %4740 = vmatprep.subr.mxu0 0.0
      %4741 = vmatpush2.msra.mxu0 0.0
      %4742 = vmatprep.subr.mxu0 0.0
      %4743 = vmatpush2.msra.mxu0 0.0
      %4744 = vmatprep.subr.mxu0 0.0
      %4745 = vmatpush2.msra.mxu0 0.0
      %4746 = vmatprep.subr.mxu0 0.0
      %4747 = vmatpush2.msra.mxu0 0.0
      %4748 = vmatprep.subr.mxu0 0.0
      %4749 = vmatpush2.msra.mxu0 0.0
      %4750 = vmatprep.subr.mxu0 0.0
      %4751 = vmatpush2.msra.mxu0 0.0
      %4752 = vmatprep.mubr.f32.mxu0 0.0
      %4753 = vmatmul.mubr.f32.gmra.mxu0 %v4686
      %v4754 = vpop.f32.mrf.mxu0
      %v4755 = vadd.f32 %v4682, %v4754
      %v4756 = vpop.f32.mrf.mxu0
      %4757 = vdwg.mxu0
      %s4758 = scalar_lea.vmem %s33, 1
      %v4759 = vld [vmem:[%s4758] sm:$0x1]
      %v4761 = vlaneseq
      %v4762 = vshrl.u32 %v4761, 7
      %v4763 = vsub.s32 0, %v4762
      %v4764 = vrot.slane %v4759, %v4763
      %v4766 = vadd.f32 %v4755, %v4764
      %v4767 = vadd.f32 %v4187, %v4766
      %v4768 = vsel %vm1019, %v4767, 0.0
      %4769 = vadd.xlane.f32.xlu0 %v4768
      %v4770 = vpop.xlane.xlu0 %4769
      %v4771 = vmul.f32 %v4770, %v1588
      %v4772 = vsub.f32 %v4767, %v4771
      %v4773 = vmul.f32 %v4772, %v4772
      %v4774 = vsel %vm1019, %v4773, 0.0
      %4775 = vadd.xlane.f32.xlu0 %v4774
      %v4776 = vpop.xlane.xlu0 %4775
      %v4777 = vmul.f32 %v4776, %v1588
      %v4778 = vadd.f32 %v4777, 1e-05
      %v4779 = vrsqrt.pop %v4778
      %v4780 = vmul.f32 %v4772, %v4779
      %v4781 = vlaneseq
      %v4782 = vshrl.u32 %v4781, 7
      %v4783 = vsub.s32 0, %v4782
      %v4784 = vrot.slane %v4189, %v4783
      %v4785 = vmul.f32 %v4780, %v4784
      %v4786 = vlaneseq
      %v4787 = vshrl.u32 %v4786, 7
      %v4788 = vsub.s32 1, %v4787
      %v4789 = vrot.slane %v4189, %v4788
      %v4790 = vadd.f32 %v4785, %v4789
      %s4791 = scalar_lea.vmem %s35, 32
      %v4792 = vld [vmem:[%s4791] sm:$0xff]
      %v4793 = vld [vmem:[%s4791 + $0x8] sm:$0xff]
      %v4794 = vld [vmem:[%s4791 + $0x10] sm:$0xff]
      %v4795 = vld [vmem:[%s4791 + $0x18] sm:$0xff]
      %s4796 = scalar_lea.vmem %s37, 1
      %v4797 = vld [vmem:[%s4796] sm:$0x1]
      %v4799 = vlaneseq
      %v4800 = vshrl.u32 %v4799, 7
      %v4801 = vsub.s32 0, %v4800
      %v4802 = vrot.slane %v4797, %v4801
      %v4805 = vsel %vm1019, %v4790, 0
      %4807 = vmatprep.subr.mxu0 0.0
      %4808 = vmatpush1.msra.mxu0 0.0
      %4809 = vmatprep.subr.mxu0 0.0
      %4810 = vmatpush1.msra.mxu0 0.0
      %4811 = vmatprep.subr.mxu0 0.0
      %4812 = vmatpush1.msra.mxu0 0.0
      %4813 = vmatprep.subr.mxu0 0.0
      %4814 = vmatpush1.msra.mxu0 0.0
      %4815 = vmatprep.subr.mxu0 0.0
      %4816 = vmatpush1.msra.mxu0 0.0
      %4817 = vmatprep.subr.mxu0 0.0
      %4818 = vmatpush1.msra.mxu0 0.0
      %4819 = vmatprep.subr.mxu0 0.0
      %4820 = vmatpush1.msra.mxu0 0.0
      %4821 = vmatprep.subr.mxu0 0.0
      %4822 = vmatpush1.msra.mxu0 0.0
      %4823 = vmatprep.subr.mxu0 0.0
      %4824 = vmatpush1.msra.mxu0 0.0
      %4825 = vmatprep.subr.mxu0 0.0
      %4826 = vmatpush1.msra.mxu0 0.0
      %4827 = vmatprep.subr.mxu0 0.0
      %4828 = vmatpush1.msra.mxu0 0.0
      %4829 = vmatprep.subr.mxu0 0.0
      %4830 = vmatpush1.msra.mxu0 0.0
      %4831 = vmatprep.subr.mxu0 0.0
      %4832 = vmatpush1.msra.mxu0 %v4795
      %4833 = vmatprep.subr.mxu0 0.0
      %4834 = vmatpush1.msra.mxu0 %v4794
      %4835 = vmatprep.subr.mxu0 0.0
      %4836 = vmatpush1.msra.mxu0 %v4793
      %4837 = vmatprep.subr.mxu0 0.0
      %4838 = vmatpush1.msra.mxu0 %v4792
      %4839 = vmatprep.subr.mxu0 0.0
      %4840 = vmatpush2.msra.mxu0 0.0
      %4841 = vmatprep.subr.mxu0 0.0
      %4842 = vmatpush2.msra.mxu0 0.0
      %4843 = vmatprep.subr.mxu0 0.0
      %4844 = vmatpush2.msra.mxu0 0.0
      %4845 = vmatprep.subr.mxu0 0.0
      %4846 = vmatpush2.msra.mxu0 0.0
      %4847 = vmatprep.subr.mxu0 0.0
      %4848 = vmatpush2.msra.mxu0 0.0
      %4849 = vmatprep.subr.mxu0 0.0
      %4850 = vmatpush2.msra.mxu0 0.0
      %4851 = vmatprep.subr.mxu0 0.0
      %4852 = vmatpush2.msra.mxu0 0.0
      %4853 = vmatprep.subr.mxu0 0.0
      %4854 = vmatpush2.msra.mxu0 0.0
      %4855 = vmatprep.subr.mxu0 0.0
      %4856 = vmatpush2.msra.mxu0 0.0
      %4857 = vmatprep.subr.mxu0 0.0
      %4858 = vmatpush2.msra.mxu0 0.0
      %4859 = vmatprep.subr.mxu0 0.0
      %4860 = vmatpush2.msra.mxu0 0.0
      %4861 = vmatprep.subr.mxu0 0.0
      %4862 = vmatpush2.msra.mxu0 0.0
      %4863 = vmatprep.subr.mxu0 0.0
      %4864 = vmatpush2.msra.mxu0 0.0
      %4865 = vmatprep.subr.mxu0 0.0
      %4866 = vmatpush2.msra.mxu0 0.0
      %4867 = vmatprep.subr.mxu0 0.0
      %4868 = vmatpush2.msra.mxu0 0.0
      %4869 = vmatprep.subr.mxu0 0.0
      %4870 = vmatpush2.msra.mxu0 0.0
      %4871 = vmatprep.mubr.f32.mxu0 0.0
      %4872 = vmatmul.mubr.f32.gmra.mxu0 %v4805
      %v4873 = vpop.f32.mrf.mxu0
      %v4874 = vadd.f32 %v4802, %v4873
      %v4875 = vpop.f32.mrf.mxu0
      %4876 = vdwg.mxu0
      %s4877 = scalar_lea.vmem %s39, 32
      %v4878 = vld [vmem:[%s4877] sm:$0xff]
      %v4879 = vld [vmem:[%s4877 + $0x8] sm:$0xff]
      %v4880 = vld [vmem:[%s4877 + $0x10] sm:$0xff]
      %v4881 = vld [vmem:[%s4877 + $0x18] sm:$0xff]
      %s4882 = scalar_lea.vmem %s41, 1
      %v4883 = vld [vmem:[%s4882] sm:$0x1]
      %v4885 = vlaneseq
      %v4886 = vshrl.u32 %v4885, 7
      %v4887 = vsub.s32 0, %v4886
      %v4888 = vrot.slane %v4883, %v4887
      %4890 = vmatprep.subr.mxu0 0.0
      %4891 = vmatpush1.msra.mxu0 0.0
      %4892 = vmatprep.subr.mxu0 0.0
      %4893 = vmatpush1.msra.mxu0 0.0
      %4894 = vmatprep.subr.mxu0 0.0
      %4895 = vmatpush1.msra.mxu0 0.0
      %4896 = vmatprep.subr.mxu0 0.0
      %4897 = vmatpush1.msra.mxu0 0.0
      %4898 = vmatprep.subr.mxu0 0.0
      %4899 = vmatpush1.msra.mxu0 0.0
      %4900 = vmatprep.subr.mxu0 0.0
      %4901 = vmatpush1.msra.mxu0 0.0
      %4902 = vmatprep.subr.mxu0 0.0
      %4903 = vmatpush1.msra.mxu0 0.0
      %4904 = vmatprep.subr.mxu0 0.0
      %4905 = vmatpush1.msra.mxu0 0.0
      %4906 = vmatprep.subr.mxu0 0.0
      %4907 = vmatpush1.msra.mxu0 0.0
      %4908 = vmatprep.subr.mxu0 0.0
      %4909 = vmatpush1.msra.mxu0 0.0
      %4910 = vmatprep.subr.mxu0 0.0
      %4911 = vmatpush1.msra.mxu0 0.0
      %4912 = vmatprep.subr.mxu0 0.0
      %4913 = vmatpush1.msra.mxu0 0.0
      %4914 = vmatprep.subr.mxu0 0.0
      %4915 = vmatpush1.msra.mxu0 %v4881
      %4916 = vmatprep.subr.mxu0 0.0
      %4917 = vmatpush1.msra.mxu0 %v4880
      %4918 = vmatprep.subr.mxu0 0.0
      %4919 = vmatpush1.msra.mxu0 %v4879
      %4920 = vmatprep.subr.mxu0 0.0
      %4921 = vmatpush1.msra.mxu0 %v4878
      %4922 = vmatprep.subr.mxu0 0.0
      %4923 = vmatpush2.msra.mxu0 0.0
      %4924 = vmatprep.subr.mxu0 0.0
      %4925 = vmatpush2.msra.mxu0 0.0
      %4926 = vmatprep.subr.mxu0 0.0
      %4927 = vmatpush2.msra.mxu0 0.0
      %4928 = vmatprep.subr.mxu0 0.0
      %4929 = vmatpush2.msra.mxu0 0.0
      %4930 = vmatprep.subr.mxu0 0.0
      %4931 = vmatpush2.msra.mxu0 0.0
      %4932 = vmatprep.subr.mxu0 0.0
      %4933 = vmatpush2.msra.mxu0 0.0
      %4934 = vmatprep.subr.mxu0 0.0
      %4935 = vmatpush2.msra.mxu0 0.0
      %4936 = vmatprep.subr.mxu0 0.0
      %4937 = vmatpush2.msra.mxu0 0.0
      %4938 = vmatprep.subr.mxu0 0.0
      %4939 = vmatpush2.msra.mxu0 0.0
      %4940 = vmatprep.subr.mxu0 0.0
      %4941 = vmatpush2.msra.mxu0 0.0
      %4942 = vmatprep.subr.mxu0 0.0
      %4943 = vmatpush2.msra.mxu0 0.0
      %4944 = vmatprep.subr.mxu0 0.0
      %4945 = vmatpush2.msra.mxu0 0.0
      %4946 = vmatprep.subr.mxu0 0.0
      %4947 = vmatpush2.msra.mxu0 0.0
      %4948 = vmatprep.subr.mxu0 0.0
      %4949 = vmatpush2.msra.mxu0 0.0
      %4950 = vmatprep.subr.mxu0 0.0
      %4951 = vmatpush2.msra.mxu0 0.0
      %4952 = vmatprep.subr.mxu0 0.0
      %4953 = vmatpush2.msra.mxu0 0.0
      %4954 = vmatprep.mubr.f32.mxu0 0.0
      %4955 = vmatmul.mubr.f32.gmra.mxu0 %v3381
      %v4956 = vpop.f32.mrf.mxu0
      %v4957 = vadd.f32 %v4888, %v4956
      %v4958 = vpop.f32.mrf.mxu0
      %4959 = vdwg.mxu0
      %s4960 = scalar_lea.vmem %s43, 32
      %v4961 = vld [vmem:[%s4960] sm:$0xff]
      %v4962 = vld [vmem:[%s4960 + $0x8] sm:$0xff]
      %v4963 = vld [vmem:[%s4960 + $0x10] sm:$0xff]
      %v4964 = vld [vmem:[%s4960 + $0x18] sm:$0xff]
      %v4966 = vsel %vm1100, %v4874, 0
      %v4969 = vsel %vm1100, %v4957, 0
      %4971 = vmatprep.subr.mxu0 0.0
      %4972 = vmatpush1.xpose.msra.mxu0 0.0
      %4973 = vmatprep.subr.mxu0 0.0
      %4974 = vmatpush1.xpose.msra.mxu0 0.0
      %4975 = vmatprep.subr.mxu0 0.0
      %4976 = vmatpush1.xpose.msra.mxu0 0.0
      %4977 = vmatprep.subr.mxu0 0.0
      %4978 = vmatpush1.xpose.msra.mxu0 0.0
      %4979 = vmatprep.subr.mxu0 0.0
      %4980 = vmatpush1.xpose.msra.mxu0 0.0
      %4981 = vmatprep.subr.mxu0 0.0
      %4982 = vmatpush1.xpose.msra.mxu0 0.0
      %4983 = vmatprep.subr.mxu0 0.0
      %4984 = vmatpush1.xpose.msra.mxu0 0.0
      %4985 = vmatprep.subr.mxu0 0.0
      %4986 = vmatpush1.xpose.msra.mxu0 0.0
      %4987 = vmatprep.subr.mxu0 0.0
      %4988 = vmatpush1.xpose.msra.mxu0 0.0
      %4989 = vmatprep.subr.mxu0 0.0
      %4990 = vmatpush1.xpose.msra.mxu0 0.0
      %4991 = vmatprep.subr.mxu0 0.0
      %4992 = vmatpush1.xpose.msra.mxu0 0.0
      %4993 = vmatprep.subr.mxu0 0.0
      %4994 = vmatpush1.xpose.msra.mxu0 0.0
      %4995 = vmatprep.subr.mxu0 0.0
      %4996 = vmatpush1.xpose.msra.mxu0 0.0
      %4997 = vmatprep.subr.mxu0 0.0
      %4998 = vmatpush1.xpose.msra.mxu0 0.0
      %4999 = vmatprep.subr.mxu0 0.0
      %5000 = vmatpush1.xpose.msra.mxu0 0.0
      %5001 = vmatprep.subr.mxu0 0.0
      %5002 = vmatpush1.xpose.msra.mxu0 %v4969
      %5003 = vmatprep.subr.mxu0 0.0
      %5004 = vmatpush2.xpose.msra.mxu0 0.0
      %5005 = vmatprep.subr.mxu0 0.0
      %5006 = vmatpush2.xpose.msra.mxu0 0.0
      %5007 = vmatprep.subr.mxu0 0.0
      %5008 = vmatpush2.xpose.msra.mxu0 0.0
      %5009 = vmatprep.subr.mxu0 0.0
      %5010 = vmatpush2.xpose.msra.mxu0 0.0
      %5011 = vmatprep.subr.mxu0 0.0
      %5012 = vmatpush2.xpose.msra.mxu0 0.0
      %5013 = vmatprep.subr.mxu0 0.0
      %5014 = vmatpush2.xpose.msra.mxu0 0.0
      %5015 = vmatprep.subr.mxu0 0.0
      %5016 = vmatpush2.xpose.msra.mxu0 0.0
      %5017 = vmatprep.subr.mxu0 0.0
      %5018 = vmatpush2.xpose.msra.mxu0 0.0
      %5019 = vmatprep.subr.mxu0 0.0
      %5020 = vmatpush2.xpose.msra.mxu0 0.0
      %5021 = vmatprep.subr.mxu0 0.0
      %5022 = vmatpush2.xpose.msra.mxu0 0.0
      %5023 = vmatprep.subr.mxu0 0.0
      %5024 = vmatpush2.xpose.msra.mxu0 0.0
      %5025 = vmatprep.subr.mxu0 0.0
      %5026 = vmatpush2.xpose.msra.mxu0 0.0
      %5027 = vmatprep.subr.mxu0 0.0
      %5028 = vmatpush2.xpose.msra.mxu0 0.0
      %5029 = vmatprep.subr.mxu0 0.0
      %5030 = vmatpush2.xpose.msra.mxu0 0.0
      %5031 = vmatprep.subr.mxu0 0.0
      %5032 = vmatpush2.xpose.msra.mxu0 0.0
      %5033 = vmatprep.subr.mxu0 0.0
      %5034 = vmatpush2.xpose.msra.mxu0 0.0
      %5035 = vmatprep.mubr.f32.mxu0 0.0
      %5036 = vmatmul.mubr.f32.gmra.mxu0 %v4966
      %v5037 = vpop.f32.mrf.mxu0
      %v5038 = vadd.f32 0.0, %v5037
      %v5039 = vpop.f32.mrf.mxu0
      %5040 = vdwg.mxu0
      %v5041 = vmul.f32 %v5038, 0.25
      %v5042 = vsel %vm1176, %v5041, -inf
      %5043 = vmax.xlane.f32.xlu0 %v5042
      %v5044 = vpop.xlane.xlu0 %5043
      %v5045 = vsub.f32 %v5041, %v5044
      %v5046 = vmul.f32 %v5045, 1.442695
      %v5047 = vpow.pop %v5046
      %v5048 = vsel %vm1176, %v5047, 0.0
      %5049 = vadd.xlane.f32.xlu0 %v5048
      %v5050 = vpop.xlane.xlu0 %5049
      %v5051 = vrcp.pop %v5050
      %v5052 = vmul.f32 %v5047, %v5051
      %5053 = vrot.lane.b32.xlu0 %v4957, 96
      %v5054 = vpop.permute.xlu0 %5053
      %v5057 = vsel %vm1176, %v5052, 0
      %5059 = vmatprep.subr.mxu0 0.0
      %5060 = vmatpush1.msra.mxu0 0.0
      %5061 = vmatprep.subr.mxu0 0.0
      %5062 = vmatpush1.msra.mxu0 0.0
      %5063 = vmatprep.subr.mxu0 0.0
      %5064 = vmatpush1.msra.mxu0 0.0
      %5065 = vmatprep.subr.mxu0 0.0
      %5066 = vmatpush1.msra.mxu0 0.0
      %5067 = vmatprep.subr.mxu0 0.0
      %5068 = vmatpush1.msra.mxu0 0.0
      %5069 = vmatprep.subr.mxu0 0.0
      %5070 = vmatpush1.msra.mxu0 0.0
      %5071 = vmatprep.subr.mxu0 0.0
      %5072 = vmatpush1.msra.mxu0 0.0
      %5073 = vmatprep.subr.mxu0 0.0
      %5074 = vmatpush1.msra.mxu0 0.0
      %5075 = vmatprep.subr.mxu0 0.0
      %5076 = vmatpush1.msra.mxu0 0.0
      %5077 = vmatprep.subr.mxu0 0.0
      %5078 = vmatpush1.msra.mxu0 0.0
      %5079 = vmatprep.subr.mxu0 0.0
      %5080 = vmatpush1.msra.mxu0 0.0
      %5081 = vmatprep.subr.mxu0 0.0
      %5082 = vmatpush1.msra.mxu0 0.0
      %5083 = vmatprep.subr.mxu0 0.0
      %5084 = vmatpush1.msra.mxu0 0.0
      %5085 = vmatprep.subr.mxu0 0.0
      %5086 = vmatpush1.msra.mxu0 0.0
      %5087 = vmatprep.subr.mxu0 0.0
      %5088 = vmatpush1.msra.mxu0 0.0
      %5089 = vmatprep.subr.mxu0 0.0
      %5090 = vmatpush1.msra.mxu0 %v5054
      %5091 = vmatprep.subr.mxu0 0.0
      %5092 = vmatpush2.msra.mxu0 0.0
      %5093 = vmatprep.subr.mxu0 0.0
      %5094 = vmatpush2.msra.mxu0 0.0
      %5095 = vmatprep.subr.mxu0 0.0
      %5096 = vmatpush2.msra.mxu0 0.0
      %5097 = vmatprep.subr.mxu0 0.0
      %5098 = vmatpush2.msra.mxu0 0.0
      %5099 = vmatprep.subr.mxu0 0.0
      %5100 = vmatpush2.msra.mxu0 0.0
      %5101 = vmatprep.subr.mxu0 0.0
      %5102 = vmatpush2.msra.mxu0 0.0
      %5103 = vmatprep.subr.mxu0 0.0
      %5104 = vmatpush2.msra.mxu0 0.0
      %5105 = vmatprep.subr.mxu0 0.0
      %5106 = vmatpush2.msra.mxu0 0.0
      %5107 = vmatprep.subr.mxu0 0.0
      %5108 = vmatpush2.msra.mxu0 0.0
      %5109 = vmatprep.subr.mxu0 0.0
      %5110 = vmatpush2.msra.mxu0 0.0
      %5111 = vmatprep.subr.mxu0 0.0
      %5112 = vmatpush2.msra.mxu0 0.0
      %5113 = vmatprep.subr.mxu0 0.0
      %5114 = vmatpush2.msra.mxu0 0.0
      %5115 = vmatprep.subr.mxu0 0.0
      %5116 = vmatpush2.msra.mxu0 0.0
      %5117 = vmatprep.subr.mxu0 0.0
      %5118 = vmatpush2.msra.mxu0 0.0
      %5119 = vmatprep.subr.mxu0 0.0
      %5120 = vmatpush2.msra.mxu0 0.0
      %5121 = vmatprep.subr.mxu0 0.0
      %5122 = vmatpush2.msra.mxu0 0.0
      %5123 = vmatprep.mubr.f32.mxu0 0.0
      %5124 = vmatmul.mubr.f32.gmra.mxu0 %v5057
      %v5125 = vpop.f32.mrf.mxu0
      %v5126 = vadd.f32 0.0, %v5125
      %v5127 = vpop.f32.mrf.mxu0
      %5128 = vdwg.mxu0
      %5129 = vrot.lane.b32.xlu0 %v4874, 112
      %v5130 = vpop.permute.xlu0 %5129
      %5131 = vrot.lane.b32.xlu0 %v4957, 112
      %v5132 = vpop.permute.xlu0 %5131
      %v5133 = vsel %vm1100, %v5130, 0
      %v5135 = vsel %vm1100, %v5132, 0
      %5137 = vmatprep.subr.mxu0 0.0
      %5138 = vmatpush1.xpose.msra.mxu0 0.0
      %5139 = vmatprep.subr.mxu0 0.0
      %5140 = vmatpush1.xpose.msra.mxu0 0.0
      %5141 = vmatprep.subr.mxu0 0.0
      %5142 = vmatpush1.xpose.msra.mxu0 0.0
      %5143 = vmatprep.subr.mxu0 0.0
      %5144 = vmatpush1.xpose.msra.mxu0 0.0
      %5145 = vmatprep.subr.mxu0 0.0
      %5146 = vmatpush1.xpose.msra.mxu0 0.0
      %5147 = vmatprep.subr.mxu0 0.0
      %5148 = vmatpush1.xpose.msra.mxu0 0.0
      %5149 = vmatprep.subr.mxu0 0.0
      %5150 = vmatpush1.xpose.msra.mxu0 0.0
      %5151 = vmatprep.subr.mxu0 0.0
      %5152 = vmatpush1.xpose.msra.mxu0 0.0
      %5153 = vmatprep.subr.mxu0 0.0
      %5154 = vmatpush1.xpose.msra.mxu0 0.0
      %5155 = vmatprep.subr.mxu0 0.0
      %5156 = vmatpush1.xpose.msra.mxu0 0.0
      %5157 = vmatprep.subr.mxu0 0.0
      %5158 = vmatpush1.xpose.msra.mxu0 0.0
      %5159 = vmatprep.subr.mxu0 0.0
      %5160 = vmatpush1.xpose.msra.mxu0 0.0
      %5161 = vmatprep.subr.mxu0 0.0
      %5162 = vmatpush1.xpose.msra.mxu0 0.0
      %5163 = vmatprep.subr.mxu0 0.0
      %5164 = vmatpush1.xpose.msra.mxu0 0.0
      %5165 = vmatprep.subr.mxu0 0.0
      %5166 = vmatpush1.xpose.msra.mxu0 0.0
      %5167 = vmatprep.subr.mxu0 0.0
      %5168 = vmatpush1.xpose.msra.mxu0 %v5135
      %5169 = vmatprep.subr.mxu0 0.0
      %5170 = vmatpush2.xpose.msra.mxu0 0.0
      %5171 = vmatprep.subr.mxu0 0.0
      %5172 = vmatpush2.xpose.msra.mxu0 0.0
      %5173 = vmatprep.subr.mxu0 0.0
      %5174 = vmatpush2.xpose.msra.mxu0 0.0
      %5175 = vmatprep.subr.mxu0 0.0
      %5176 = vmatpush2.xpose.msra.mxu0 0.0
      %5177 = vmatprep.subr.mxu0 0.0
      %5178 = vmatpush2.xpose.msra.mxu0 0.0
      %5179 = vmatprep.subr.mxu0 0.0
      %5180 = vmatpush2.xpose.msra.mxu0 0.0
      %5181 = vmatprep.subr.mxu0 0.0
      %5182 = vmatpush2.xpose.msra.mxu0 0.0
      %5183 = vmatprep.subr.mxu0 0.0
      %5184 = vmatpush2.xpose.msra.mxu0 0.0
      %5185 = vmatprep.subr.mxu0 0.0
      %5186 = vmatpush2.xpose.msra.mxu0 0.0
      %5187 = vmatprep.subr.mxu0 0.0
      %5188 = vmatpush2.xpose.msra.mxu0 0.0
      %5189 = vmatprep.subr.mxu0 0.0
      %5190 = vmatpush2.xpose.msra.mxu0 0.0
      %5191 = vmatprep.subr.mxu0 0.0
      %5192 = vmatpush2.xpose.msra.mxu0 0.0
      %5193 = vmatprep.subr.mxu0 0.0
      %5194 = vmatpush2.xpose.msra.mxu0 0.0
      %5195 = vmatprep.subr.mxu0 0.0
      %5196 = vmatpush2.xpose.msra.mxu0 0.0
      %5197 = vmatprep.subr.mxu0 0.0
      %5198 = vmatpush2.xpose.msra.mxu0 0.0
      %5199 = vmatprep.subr.mxu0 0.0
      %5200 = vmatpush2.xpose.msra.mxu0 0.0
      %5201 = vmatprep.mubr.f32.mxu0 0.0
      %5202 = vmatmul.mubr.f32.gmra.mxu0 %v5133
      %v5203 = vpop.f32.mrf.mxu0
      %v5204 = vadd.f32 0.0, %v5203
      %v5205 = vpop.f32.mrf.mxu0
      %5206 = vdwg.mxu0
      %v5207 = vmul.f32 %v5204, 0.25
      %v5208 = vsel %vm1176, %v5207, -inf
      %5209 = vmax.xlane.f32.xlu0 %v5208
      %v5210 = vpop.xlane.xlu0 %5209
      %v5211 = vsub.f32 %v5207, %v5210
      %v5212 = vmul.f32 %v5211, 1.442695
      %v5213 = vpow.pop %v5212
      %v5214 = vsel %vm1176, %v5213, 0.0
      %5215 = vadd.xlane.f32.xlu0 %v5214
      %v5216 = vpop.xlane.xlu0 %5215
      %v5217 = vrcp.pop %v5216
      %v5218 = vmul.f32 %v5213, %v5217
      %5219 = vrot.lane.b32.xlu0 %v4957, 80
      %v5220 = vpop.permute.xlu0 %5219
      %v5223 = vsel %vm1176, %v5218, 0
      %5225 = vmatprep.subr.mxu0 0.0
      %5226 = vmatpush1.msra.mxu0 0.0
      %5227 = vmatprep.subr.mxu0 0.0
      %5228 = vmatpush1.msra.mxu0 0.0
      %5229 = vmatprep.subr.mxu0 0.0
      %5230 = vmatpush1.msra.mxu0 0.0
      %5231 = vmatprep.subr.mxu0 0.0
      %5232 = vmatpush1.msra.mxu0 0.0
      %5233 = vmatprep.subr.mxu0 0.0
      %5234 = vmatpush1.msra.mxu0 0.0
      %5235 = vmatprep.subr.mxu0 0.0
      %5236 = vmatpush1.msra.mxu0 0.0
      %5237 = vmatprep.subr.mxu0 0.0
      %5238 = vmatpush1.msra.mxu0 0.0
      %5239 = vmatprep.subr.mxu0 0.0
      %5240 = vmatpush1.msra.mxu0 0.0
      %5241 = vmatprep.subr.mxu0 0.0
      %5242 = vmatpush1.msra.mxu0 0.0
      %5243 = vmatprep.subr.mxu0 0.0
      %5244 = vmatpush1.msra.mxu0 0.0
      %5245 = vmatprep.subr.mxu0 0.0
      %5246 = vmatpush1.msra.mxu0 0.0
      %5247 = vmatprep.subr.mxu0 0.0
      %5248 = vmatpush1.msra.mxu0 0.0
      %5249 = vmatprep.subr.mxu0 0.0
      %5250 = vmatpush1.msra.mxu0 0.0
      %5251 = vmatprep.subr.mxu0 0.0
      %5252 = vmatpush1.msra.mxu0 0.0
      %5253 = vmatprep.subr.mxu0 0.0
      %5254 = vmatpush1.msra.mxu0 0.0
      %5255 = vmatprep.subr.mxu0 0.0
      %5256 = vmatpush1.msra.mxu0 %v5220
      %5257 = vmatprep.subr.mxu0 0.0
      %5258 = vmatpush2.msra.mxu0 0.0
      %5259 = vmatprep.subr.mxu0 0.0
      %5260 = vmatpush2.msra.mxu0 0.0
      %5261 = vmatprep.subr.mxu0 0.0
      %5262 = vmatpush2.msra.mxu0 0.0
      %5263 = vmatprep.subr.mxu0 0.0
      %5264 = vmatpush2.msra.mxu0 0.0
      %5265 = vmatprep.subr.mxu0 0.0
      %5266 = vmatpush2.msra.mxu0 0.0
      %5267 = vmatprep.subr.mxu0 0.0
      %5268 = vmatpush2.msra.mxu0 0.0
      %5269 = vmatprep.subr.mxu0 0.0
      %5270 = vmatpush2.msra.mxu0 0.0
      %5271 = vmatprep.subr.mxu0 0.0
      %5272 = vmatpush2.msra.mxu0 0.0
      %5273 = vmatprep.subr.mxu0 0.0
      %5274 = vmatpush2.msra.mxu0 0.0
      %5275 = vmatprep.subr.mxu0 0.0
      %5276 = vmatpush2.msra.mxu0 0.0
      %5277 = vmatprep.subr.mxu0 0.0
      %5278 = vmatpush2.msra.mxu0 0.0
      %5279 = vmatprep.subr.mxu0 0.0
      %5280 = vmatpush2.msra.mxu0 0.0
      %5281 = vmatprep.subr.mxu0 0.0
      %5282 = vmatpush2.msra.mxu0 0.0
      %5283 = vmatprep.subr.mxu0 0.0
      %5284 = vmatpush2.msra.mxu0 0.0
      %5285 = vmatprep.subr.mxu0 0.0
      %5286 = vmatpush2.msra.mxu0 0.0
      %5287 = vmatprep.subr.mxu0 0.0
      %5288 = vmatpush2.msra.mxu0 0.0
      %5289 = vmatprep.mubr.f32.mxu0 0.0
      %5290 = vmatmul.mubr.f32.gmra.mxu0 %v5223
      %v5291 = vpop.f32.mrf.mxu0
      %v5292 = vadd.f32 0.0, %v5291
      %v5293 = vpop.f32.mrf.mxu0
      %5294 = vdwg.mxu0
      %v5296 = vsel %vm1100, %v5292, 0
      %5298 = vmatprep.subr.mxu0 0.0
      %5299 = vmatpush1.msra.mxu0 0.0
      %5300 = vmatprep.subr.mxu0 0.0
      %5301 = vmatpush1.msra.mxu0 0.0
      %5302 = vmatprep.subr.mxu0 0.0
      %5303 = vmatpush1.msra.mxu0 0.0
      %5304 = vmatprep.subr.mxu0 0.0
      %5305 = vmatpush1.msra.mxu0 0.0
      %5306 = vmatprep.subr.mxu0 0.0
      %5307 = vmatpush1.msra.mxu0 0.0
      %5308 = vmatprep.subr.mxu0 0.0
      %5309 = vmatpush1.msra.mxu0 0.0
      %5310 = vmatprep.subr.mxu0 0.0
      %5311 = vmatpush1.msra.mxu0 0.0
      %5312 = vmatprep.subr.mxu0 0.0
      %5313 = vmatpush1.msra.mxu0 0.0
      %5314 = vmatprep.subr.mxu0 0.0
      %5315 = vmatpush1.msra.mxu0 0.0
      %5316 = vmatprep.subr.mxu0 0.0
      %5317 = vmatpush1.msra.mxu0 0.0
      %5318 = vmatprep.subr.mxu0 0.0
      %5319 = vmatpush1.msra.mxu0 0.0
      %5320 = vmatprep.subr.mxu0 0.0
      %5321 = vmatpush1.msra.mxu0 0.0
      %5322 = vmatprep.subr.mxu0 0.0
      %5323 = vmatpush1.msra.mxu0 0.0
      %5324 = vmatprep.subr.mxu0 0.0
      %5325 = vmatpush1.msra.mxu0 0.0
      %5326 = vmatprep.subr.mxu0 0.0
      %5327 = vmatpush1.msra.mxu0 %v4964
      %5328 = vmatprep.subr.mxu0 0.0
      %5329 = vmatpush1.msra.mxu0 %v4963
      %5330 = vmatprep.subr.mxu0 0.0
      %5331 = vmatpush2.msra.mxu0 0.0
      %5332 = vmatprep.subr.mxu0 0.0
      %5333 = vmatpush2.msra.mxu0 0.0
      %5334 = vmatprep.subr.mxu0 0.0
      %5335 = vmatpush2.msra.mxu0 0.0
      %5336 = vmatprep.subr.mxu0 0.0
      %5337 = vmatpush2.msra.mxu0 0.0
      %5338 = vmatprep.subr.mxu0 0.0
      %5339 = vmatpush2.msra.mxu0 0.0
      %5340 = vmatprep.subr.mxu0 0.0
      %5341 = vmatpush2.msra.mxu0 0.0
      %5342 = vmatprep.subr.mxu0 0.0
      %5343 = vmatpush2.msra.mxu0 0.0
      %5344 = vmatprep.subr.mxu0 0.0
      %5345 = vmatpush2.msra.mxu0 0.0
      %5346 = vmatprep.subr.mxu0 0.0
      %5347 = vmatpush2.msra.mxu0 0.0
      %5348 = vmatprep.subr.mxu0 0.0
      %5349 = vmatpush2.msra.mxu0 0.0
      %5350 = vmatprep.subr.mxu0 0.0
      %5351 = vmatpush2.msra.mxu0 0.0
      %5352 = vmatprep.subr.mxu0 0.0
      %5353 = vmatpush2.msra.mxu0 0.0
      %5354 = vmatprep.subr.mxu0 0.0
      %5355 = vmatpush2.msra.mxu0 0.0
      %5356 = vmatprep.subr.mxu0 0.0
      %5357 = vmatpush2.msra.mxu0 0.0
      %5358 = vmatprep.subr.mxu0 0.0
      %5359 = vmatpush2.msra.mxu0 0.0
      %5360 = vmatprep.subr.mxu0 0.0
      %5361 = vmatpush2.msra.mxu0 0.0
      %5362 = vmatprep.mubr.f32.mxu0 0.0
      %5363 = vmatmul.mubr.f32.gmra.mxu0 %v5296
      %v5364 = vpop.f32.mrf.mxu0
      %v5365 = vadd.f32 0.0, %v5364
      %v5366 = vpop.f32.mrf.mxu0
      %5367 = vdwg.mxu0
      %v5369 = vsel %vm1100, %v5126, 0
      %5371 = vmatprep.subr.mxu0 0.0
      %5372 = vmatpush1.msra.mxu0 0.0
      %5373 = vmatprep.subr.mxu0 0.0
      %5374 = vmatpush1.msra.mxu0 0.0
      %5375 = vmatprep.subr.mxu0 0.0
      %5376 = vmatpush1.msra.mxu0 0.0
      %5377 = vmatprep.subr.mxu0 0.0
      %5378 = vmatpush1.msra.mxu0 0.0
      %5379 = vmatprep.subr.mxu0 0.0
      %5380 = vmatpush1.msra.mxu0 0.0
      %5381 = vmatprep.subr.mxu0 0.0
      %5382 = vmatpush1.msra.mxu0 0.0
      %5383 = vmatprep.subr.mxu0 0.0
      %5384 = vmatpush1.msra.mxu0 0.0
      %5385 = vmatprep.subr.mxu0 0.0
      %5386 = vmatpush1.msra.mxu0 0.0
      %5387 = vmatprep.subr.mxu0 0.0
      %5388 = vmatpush1.msra.mxu0 0.0
      %5389 = vmatprep.subr.mxu0 0.0
      %5390 = vmatpush1.msra.mxu0 0.0
      %5391 = vmatprep.subr.mxu0 0.0
      %5392 = vmatpush1.msra.mxu0 0.0
      %5393 = vmatprep.subr.mxu0 0.0
      %5394 = vmatpush1.msra.mxu0 0.0
      %5395 = vmatprep.subr.mxu0 0.0
      %5396 = vmatpush1.msra.mxu0 0.0
      %5397 = vmatprep.subr.mxu0 0.0
      %5398 = vmatpush1.msra.mxu0 0.0
      %5399 = vmatprep.subr.mxu0 0.0
      %5400 = vmatpush1.msra.mxu0 %v4962
      %5401 = vmatprep.subr.mxu0 0.0
      %5402 = vmatpush1.msra.mxu0 %v4961
      %5403 = vmatprep.subr.mxu0 0.0
      %5404 = vmatpush2.msra.mxu0 0.0
      %5405 = vmatprep.subr.mxu0 0.0
      %5406 = vmatpush2.msra.mxu0 0.0
      %5407 = vmatprep.subr.mxu0 0.0
      %5408 = vmatpush2.msra.mxu0 0.0
      %5409 = vmatprep.subr.mxu0 0.0
      %5410 = vmatpush2.msra.mxu0 0.0
      %5411 = vmatprep.subr.mxu0 0.0
      %5412 = vmatpush2.msra.mxu0 0.0
      %5413 = vmatprep.subr.mxu0 0.0
      %5414 = vmatpush2.msra.mxu0 0.0
      %5415 = vmatprep.subr.mxu0 0.0
      %5416 = vmatpush2.msra.mxu0 0.0
      %5417 = vmatprep.subr.mxu0 0.0
      %5418 = vmatpush2.msra.mxu0 0.0
      %5419 = vmatprep.subr.mxu0 0.0
      %5420 = vmatpush2.msra.mxu0 0.0
      %5421 = vmatprep.subr.mxu0 0.0
      %5422 = vmatpush2.msra.mxu0 0.0
      %5423 = vmatprep.subr.mxu0 0.0
      %5424 = vmatpush2.msra.mxu0 0.0
      %5425 = vmatprep.subr.mxu0 0.0
      %5426 = vmatpush2.msra.mxu0 0.0
      %5427 = vmatprep.subr.mxu0 0.0
      %5428 = vmatpush2.msra.mxu0 0.0
      %5429 = vmatprep.subr.mxu0 0.0
      %5430 = vmatpush2.msra.mxu0 0.0
      %5431 = vmatprep.subr.mxu0 0.0
      %5432 = vmatpush2.msra.mxu0 0.0
      %5433 = vmatprep.subr.mxu0 0.0
      %5434 = vmatpush2.msra.mxu0 0.0
      %5435 = vmatprep.mubr.f32.mxu0 0.0
      %5436 = vmatmul.mubr.f32.gmra.mxu0 %v5369
      %v5437 = vpop.f32.mrf.mxu0
      %v5438 = vadd.f32 %v5365, %v5437
      %v5439 = vpop.f32.mrf.mxu0
      %5440 = vdwg.mxu0
      %s5441 = scalar_lea.vmem %s45, 1
      %v5442 = vld [vmem:[%s5441] sm:$0x1]
      %v5444 = vlaneseq
      %v5445 = vshrl.u32 %v5444, 7
      %v5446 = vsub.s32 0, %v5445
      %v5447 = vrot.slane %v5442, %v5446
      %v5449 = vadd.f32 %v5438, %v5447
      %v5450 = vadd.f32 %v4790, %v5449
      %v5451 = vsel %vm1019, %v5450, 0.0
      %5452 = vadd.xlane.f32.xlu0 %v5451
      %v5453 = vpop.xlane.xlu0 %5452
      %v5454 = vmul.f32 %v5453, %v1588
      %v5455 = vsub.f32 %v5450, %v5454
      %v5456 = vmul.f32 %v5455, %v5455
      %v5457 = vsel %vm1019, %v5456, 0.0
      %5458 = vadd.xlane.f32.xlu0 %v5457
      %v5459 = vpop.xlane.xlu0 %5458
      %v5460 = vmul.f32 %v5459, %v1588
      %v5461 = vadd.f32 %v5460, 1e-05
      %v5462 = vrsqrt.pop %v5461
      %v5463 = vmul.f32 %v5455, %v5462
      %v5464 = vlaneseq
      %v5465 = vshrl.u32 %v5464, 7
      %v5466 = vsub.s32 2, %v5465
      %v5467 = vrot.slane %v4189, %v5466
      %v5468 = vmul.f32 %v5463, %v5467
      %v5469 = vlaneseq
      %v5470 = vshrl.u32 %v5469, 7
      %v5471 = vsub.s32 3, %v5470
      %v5472 = vrot.slane %v4189, %v5471
      %v5473 = vadd.f32 %v5468, %v5472
      %s5474 = scalar_lea.vmem %s49, 32
      %v5475 = vld [vmem:[%s5474] sm:$0xff]
      %v5476 = vld [vmem:[%s5474 + $0x8] sm:$0xff]
      %v5477 = vld [vmem:[%s5474 + $0x10] sm:$0xff]
      %v5478 = vld [vmem:[%s5474 + $0x18] sm:$0xff]
      %s5479 = scalar_lea.vmem %s51, 1
      %v5480 = vld [vmem:[%s5479] sm:$0x1]
      %s5481 = scalar_lea.vmem %s53, 64
      %v5482 = vld [vmem:[%s5481] sm:$0xff]
      %v5483 = vld [vmem:[%s5481 + $0x8] sm:$0xff]
      %v5484 = vld [vmem:[%s5481 + $0x10] sm:$0xff]
      %v5485 = vld [vmem:[%s5481 + $0x18] sm:$0xff]
      %v5486 = vld [vmem:[%s5481 + $0x20] sm:$0xff]
      %v5487 = vld [vmem:[%s5481 + $0x28] sm:$0xff]
      %v5488 = vld [vmem:[%s5481 + $0x30] sm:$0xff]
      %v5489 = vld [vmem:[%s5481 + $0x38] sm:$0xff]
      %s5490 = scalar_lea.vmem %s55, 1
      %v5491 = vld [vmem:[%s5490] sm:$0x1]
      %v5493 = vlaneseq
      %v5494 = vshrl.u32 %v5493, 7
      %v5495 = vsub.s32 0, %v5494
      %v5496 = vrot.slane %v5480, %v5495
      %v5499 = vsel %vm1019, %v5473, 0
      %5501 = vmatprep.subr.mxu0 0.0
      %5502 = vmatpush1.msra.mxu0 0.0
      %5503 = vmatprep.subr.mxu0 0.0
      %5504 = vmatpush1.msra.mxu0 0.0
      %5505 = vmatprep.subr.mxu0 0.0
      %5506 = vmatpush1.msra.mxu0 0.0
      %5507 = vmatprep.subr.mxu0 0.0
      %5508 = vmatpush1.msra.mxu0 0.0
      %5509 = vmatprep.subr.mxu0 0.0
      %5510 = vmatpush1.msra.mxu0 0.0
      %5511 = vmatprep.subr.mxu0 0.0
      %5512 = vmatpush1.msra.mxu0 0.0
      %5513 = vmatprep.subr.mxu0 0.0
      %5514 = vmatpush1.msra.mxu0 0.0
      %5515 = vmatprep.subr.mxu0 0.0
      %5516 = vmatpush1.msra.mxu0 0.0
      %5517 = vmatprep.subr.mxu0 0.0
      %5518 = vmatpush1.msra.mxu0 0.0
      %5519 = vmatprep.subr.mxu0 0.0
      %5520 = vmatpush1.msra.mxu0 0.0
      %5521 = vmatprep.subr.mxu0 0.0
      %5522 = vmatpush1.msra.mxu0 0.0
      %5523 = vmatprep.subr.mxu0 0.0
      %5524 = vmatpush1.msra.mxu0 0.0
      %5525 = vmatprep.subr.mxu0 0.0
      %5526 = vmatpush1.msra.mxu0 %v5478
      %5527 = vmatprep.subr.mxu0 0.0
      %5528 = vmatpush1.msra.mxu0 %v5477
      %5529 = vmatprep.subr.mxu0 0.0
      %5530 = vmatpush1.msra.mxu0 %v5476
      %5531 = vmatprep.subr.mxu0 0.0
      %5532 = vmatpush1.msra.mxu0 %v5475
      %5533 = vmatprep.subr.mxu0 0.0
      %5534 = vmatpush2.msra.mxu0 0.0
      %5535 = vmatprep.subr.mxu0 0.0
      %5536 = vmatpush2.msra.mxu0 0.0
      %5537 = vmatprep.subr.mxu0 0.0
      %5538 = vmatpush2.msra.mxu0 0.0
      %5539 = vmatprep.subr.mxu0 0.0
      %5540 = vmatpush2.msra.mxu0 0.0
      %5541 = vmatprep.subr.mxu0 0.0
      %5542 = vmatpush2.msra.mxu0 0.0
      %5543 = vmatprep.subr.mxu0 0.0
      %5544 = vmatpush2.msra.mxu0 0.0
      %5545 = vmatprep.subr.mxu0 0.0
      %5546 = vmatpush2.msra.mxu0 0.0
      %5547 = vmatprep.subr.mxu0 0.0
      %5548 = vmatpush2.msra.mxu0 0.0
      %5549 = vmatprep.subr.mxu0 0.0
      %5550 = vmatpush2.msra.mxu0 0.0
      %5551 = vmatprep.subr.mxu0 0.0
      %5552 = vmatpush2.msra.mxu0 0.0
      %5553 = vmatprep.subr.mxu0 0.0
      %5554 = vmatpush2.msra.mxu0 0.0
      %5555 = vmatprep.subr.mxu0 0.0
      %5556 = vmatpush2.msra.mxu0 0.0
      %5557 = vmatprep.subr.mxu0 0.0
      %5558 = vmatpush2.msra.mxu0 0.0
      %5559 = vmatprep.subr.mxu0 0.0
      %5560 = vmatpush2.msra.mxu0 0.0
      %5561 = vmatprep.subr.mxu0 0.0
      %5562 = vmatpush2.msra.mxu0 0.0
      %5563 = vmatprep.subr.mxu0 0.0
      %5564 = vmatpush2.msra.mxu0 0.0
      %5565 = vmatprep.mubr.f32.mxu0 0.0
      %5566 = vmatmul.mubr.f32.gmra.mxu0 %v5499
      %v5567 = vpop.f32.mrf.mxu0
      %v5568 = vadd.f32 %v5496, %v5567
      %v5569 = vpop.f32.mrf.mxu0
      %5570 = vdwg.mxu0
      %v5571 = vmul.f32 %v5568, 0.5
      %v5572 = vmul.f32 %v5568, 0.70710677
      %vm5573 = vcmp.ge.f32.partialorder %v5572, 0.0
      %v5574 = vsel %vm5573, 1.0, -1.0
      %v5575 = vand.u32 2147483647, %v5572
      %v5576 = vmul.f32 %v5575, 0.3275911
      %v5577 = vadd.f32 %v5576, 1.0
      %v5578 = vrcp.pop %v5577
      %v5579 = vmul.f32 1.0, %v5578
      %v5580 = vmul.f32 %v5579, 1.0614054
      %v5581 = vadd.f32 %v5580, -1.4531521
      %v5582 = vmul.f32 %v5581, %v5579
      %v5583 = vadd.f32 %v5582, 1.4214138
      %v5584 = vmul.f32 %v5583, %v5579
      %v5585 = vadd.f32 %v5584, -0.28449672
      %v5586 = vmul.f32 %v5585, %v5579
      %v5587 = vadd.f32 %v5586, 0.2548296
      %v5588 = vmul.f32 %v5587, %v5579
      %v5589 = vsub.f32 0.0, %v5575
      %v5590 = vmul.f32 %v5589, %v5575
      %v5591 = vmul.f32 %v5590, 1.442695
      %v5592 = vpow.pop %v5591
      %v5593 = vmul.f32 %v5588, %v5592
      %v5594 = vsub.f32 1.0, %v5593
      %v5595 = vmul.f32 %v5574, %v5594
      %v5596 = vadd.f32 %v5595, 1.0
      %v5597 = vmul.f32 %v5571, %v5596
      %v5599 = vlaneseq
      %v5600 = vshrl.u32 %v5599, 7
      %v5601 = vsub.s32 0, %v5600
      %v5602 = vrot.slane %v5491, %v5601
      %v5605 = vsel %vm1735, %v5597, 0
      %5607 = vmatprep.subr.mxu0 0.0
      %5608 = vmatpush1.msra.mxu0 0.0
      %5609 = vmatprep.subr.mxu0 0.0
      %5610 = vmatpush1.msra.mxu0 0.0
      %5611 = vmatprep.subr.mxu0 0.0
      %5612 = vmatpush1.msra.mxu0 0.0
      %5613 = vmatprep.subr.mxu0 0.0
      %5614 = vmatpush1.msra.mxu0 0.0
      %5615 = vmatprep.subr.mxu0 0.0
      %5616 = vmatpush1.msra.mxu0 0.0
      %5617 = vmatprep.subr.mxu0 0.0
      %5618 = vmatpush1.msra.mxu0 0.0
      %5619 = vmatprep.subr.mxu0 0.0
      %5620 = vmatpush1.msra.mxu0 0.0
      %5621 = vmatprep.subr.mxu0 0.0
      %5622 = vmatpush1.msra.mxu0 0.0
      %5623 = vmatprep.subr.mxu0 0.0
      %5624 = vmatpush1.msra.mxu0 %v5489
      %5625 = vmatprep.subr.mxu0 0.0
      %5626 = vmatpush1.msra.mxu0 %v5488
      %5627 = vmatprep.subr.mxu0 0.0
      %5628 = vmatpush1.msra.mxu0 %v5487
      %5629 = vmatprep.subr.mxu0 0.0
      %5630 = vmatpush1.msra.mxu0 %v5486
      %5631 = vmatprep.subr.mxu0 0.0
      %5632 = vmatpush1.msra.mxu0 %v5485
      %5633 = vmatprep.subr.mxu0 0.0
      %5634 = vmatpush1.msra.mxu0 %v5484
      %5635 = vmatprep.subr.mxu0 0.0
      %5636 = vmatpush1.msra.mxu0 %v5483
      %5637 = vmatprep.subr.mxu0 0.0
      %5638 = vmatpush1.msra.mxu0 %v5482
      %5639 = vmatprep.subr.mxu0 0.0
      %5640 = vmatpush2.msra.mxu0 0.0
      %5641 = vmatprep.subr.mxu0 0.0
      %5642 = vmatpush2.msra.mxu0 0.0
      %5643 = vmatprep.subr.mxu0 0.0
      %5644 = vmatpush2.msra.mxu0 0.0
      %5645 = vmatprep.subr.mxu0 0.0
      %5646 = vmatpush2.msra.mxu0 0.0
      %5647 = vmatprep.subr.mxu0 0.0
      %5648 = vmatpush2.msra.mxu0 0.0
      %5649 = vmatprep.subr.mxu0 0.0
      %5650 = vmatpush2.msra.mxu0 0.0
      %5651 = vmatprep.subr.mxu0 0.0
      %5652 = vmatpush2.msra.mxu0 0.0
      %5653 = vmatprep.subr.mxu0 0.0
      %5654 = vmatpush2.msra.mxu0 0.0
      %5655 = vmatprep.subr.mxu0 0.0
      %5656 = vmatpush2.msra.mxu0 0.0
      %5657 = vmatprep.subr.mxu0 0.0
      %5658 = vmatpush2.msra.mxu0 0.0
      %5659 = vmatprep.subr.mxu0 0.0
      %5660 = vmatpush2.msra.mxu0 0.0
      %5661 = vmatprep.subr.mxu0 0.0
      %5662 = vmatpush2.msra.mxu0 0.0
      %5663 = vmatprep.subr.mxu0 0.0
      %5664 = vmatpush2.msra.mxu0 0.0
      %5665 = vmatprep.subr.mxu0 0.0
      %5666 = vmatpush2.msra.mxu0 0.0
      %5667 = vmatprep.subr.mxu0 0.0
      %5668 = vmatpush2.msra.mxu0 0.0
      %5669 = vmatprep.subr.mxu0 0.0
      %5670 = vmatpush2.msra.mxu0 0.0
      %5671 = vmatprep.mubr.f32.mxu0 0.0
      %5672 = vmatmul.mubr.f32.gmra.mxu0 %v5605
      %v5673 = vpop.f32.mrf.mxu0
      %v5674 = vadd.f32 %v5602, %v5673
      %v5675 = vpop.f32.mrf.mxu0
      %5676 = vdwg.mxu0
      %v5677 = vadd.f32 %v5473, %v5674
      %v5678 = vsel %vm1019, %v5677, 0.0
      %5679 = vadd.xlane.f32.xlu0 %v5678
      %v5680 = vpop.xlane.xlu0 %5679
      %v5681 = vmul.f32 %v5680, %v1588
      %v5682 = vsub.f32 %v5677, %v5681
      %v5683 = vmul.f32 %v5682, %v5682
      %v5684 = vsel %vm1019, %v5683, 0.0
      %5685 = vadd.xlane.f32.xlu0 %v5684
      %v5686 = vpop.xlane.xlu0 %5685
      %v5687 = vmul.f32 %v5686, %v1588
      %v5688 = vadd.f32 %v5687, 1e-05
      %v5689 = vrsqrt.pop %v5688
      %v5690 = vmul.f32 %v5682, %v5689
      %v5691 = vlaneseq
      %v5692 = vshrl.u32 %v5691, 7
      %v5693 = vsub.s32 4, %v5692
      %v5694 = vrot.slane %v4189, %v5693
      %v5695 = vmul.f32 %v5690, %v5694
      %v5696 = vlaneseq
      %v5697 = vshrl.u32 %v5696, 7
      %v5698 = vsub.s32 5, %v5697
      %v5699 = vrot.slane %v4189, %v5698
      %v5700 = vadd.f32 %v5695, %v5699
      %v5701 = vld [vmem:[%s59] sm:$0x3]
      %v5702 = vsel %vm1019, %v5700, 0.0
      %5703 = vadd.xlane.f32.xlu0 %v5702
      %v5704 = vpop.xlane.xlu0 %5703
      %v5705 = vmul.f32 %v5704, %v1588
      %v5706 = vsub.f32 %v5700, %v5705
      %v5707 = vmul.f32 %v5706, %v5706
      %v5708 = vsel %vm1019, %v5707, 0.0
      %5709 = vadd.xlane.f32.xlu0 %v5708
      %v5710 = vpop.xlane.xlu0 %5709
      %v5711 = vmul.f32 %v5710, %v1588
      %v5712 = vadd.f32 %v5711, 1e-05
      %v5713 = vrsqrt.pop %v5712
      %v5714 = vmul.f32 %v5706, %v5713
      %v5715 = vlaneseq
      %v5716 = vshrl.u32 %v5715, 7
      %v5717 = vsub.s32 0, %v5716
      %v5718 = vrot.slane %v5701, %v5717
      %v5719 = vmul.f32 %v5714, %v5718
      %v5720 = vlaneseq
      %v5721 = vshrl.u32 %v5720, 7
      %v5722 = vsub.s32 1, %v5721
      %v5723 = vrot.slane %v5701, %v5722
      %v5724 = vadd.f32 %v5719, %v5723
      %v5725 = vld [vmem:[%s61] sm:$0xff]
      %v5726 = vld [vmem:[%s61 + $0x8] sm:$0xff]
      %v5727 = vld [vmem:[%s61 + $0x10] sm:$0xff]
      %v5728 = vld [vmem:[%s61 + $0x18] sm:$0xff]
      %v5729 = vld [vmem:[%s63] sm:$0x1]
      %v5731 = vlaneseq
      %v5732 = vshrl.u32 %v5731, 7
      %v5733 = vsub.s32 0, %v5732
      %v5734 = vrot.slane %v5729, %v5733
      %v5737 = vsel %vm1019, %v5724, 0
      %5739 = vmatprep.subr.mxu0 0.0
      %5740 = vmatpush1.msra.mxu0 0.0
      %5741 = vmatprep.subr.mxu0 0.0
      %5742 = vmatpush1.msra.mxu0 0.0
      %5743 = vmatprep.subr.mxu0 0.0
      %5744 = vmatpush1.msra.mxu0 0.0
      %5745 = vmatprep.subr.mxu0 0.0
      %5746 = vmatpush1.msra.mxu0 0.0
      %5747 = vmatprep.subr.mxu0 0.0
      %5748 = vmatpush1.msra.mxu0 0.0
      %5749 = vmatprep.subr.mxu0 0.0
      %5750 = vmatpush1.msra.mxu0 0.0
      %5751 = vmatprep.subr.mxu0 0.0
      %5752 = vmatpush1.msra.mxu0 0.0
      %5753 = vmatprep.subr.mxu0 0.0
      %5754 = vmatpush1.msra.mxu0 0.0
      %5755 = vmatprep.subr.mxu0 0.0
      %5756 = vmatpush1.msra.mxu0 0.0
      %5757 = vmatprep.subr.mxu0 0.0
      %5758 = vmatpush1.msra.mxu0 0.0
      %5759 = vmatprep.subr.mxu0 0.0
      %5760 = vmatpush1.msra.mxu0 0.0
      %5761 = vmatprep.subr.mxu0 0.0
      %5762 = vmatpush1.msra.mxu0 0.0
      %5763 = vmatprep.subr.mxu0 0.0
      %5764 = vmatpush1.msra.mxu0 %v5728
      %5765 = vmatprep.subr.mxu0 0.0
      %5766 = vmatpush1.msra.mxu0 %v5727
      %5767 = vmatprep.subr.mxu0 0.0
      %5768 = vmatpush1.msra.mxu0 %v5726
      %5769 = vmatprep.subr.mxu0 0.0
      %5770 = vmatpush1.msra.mxu0 %v5725
      %5771 = vmatprep.subr.mxu0 0.0
      %5772 = vmatpush2.msra.mxu0 0.0
      %5773 = vmatprep.subr.mxu0 0.0
      %5774 = vmatpush2.msra.mxu0 0.0
      %5775 = vmatprep.subr.mxu0 0.0
      %5776 = vmatpush2.msra.mxu0 0.0
      %5777 = vmatprep.subr.mxu0 0.0
      %5778 = vmatpush2.msra.mxu0 0.0
      %5779 = vmatprep.subr.mxu0 0.0
      %5780 = vmatpush2.msra.mxu0 0.0
      %5781 = vmatprep.subr.mxu0 0.0
      %5782 = vmatpush2.msra.mxu0 0.0
      %5783 = vmatprep.subr.mxu0 0.0
      %5784 = vmatpush2.msra.mxu0 0.0
      %5785 = vmatprep.subr.mxu0 0.0
      %5786 = vmatpush2.msra.mxu0 0.0
      %5787 = vmatprep.subr.mxu0 0.0
      %5788 = vmatpush2.msra.mxu0 0.0
      %5789 = vmatprep.subr.mxu0 0.0
      %5790 = vmatpush2.msra.mxu0 0.0
      %5791 = vmatprep.subr.mxu0 0.0
      %5792 = vmatpush2.msra.mxu0 0.0
      %5793 = vmatprep.subr.mxu0 0.0
      %5794 = vmatpush2.msra.mxu0 0.0
      %5795 = vmatprep.subr.mxu0 0.0
      %5796 = vmatpush2.msra.mxu0 0.0
      %5797 = vmatprep.subr.mxu0 0.0
      %5798 = vmatpush2.msra.mxu0 0.0
      %5799 = vmatprep.subr.mxu0 0.0
      %5800 = vmatpush2.msra.mxu0 0.0
      %5801 = vmatprep.subr.mxu0 0.0
      %5802 = vmatpush2.msra.mxu0 0.0
      %5803 = vmatprep.mubr.f32.mxu0 0.0
      %5804 = vmatmul.mubr.f32.gmra.mxu0 %v5737
      %v5805 = vpop.f32.mrf.mxu0
      %v5806 = vadd.f32 %v5734, %v5805
      %v5807 = vpop.f32.mrf.mxu0
      %5808 = vdwg.mxu0
      %5809 = vst.msk [vmem:[%s998] sm:$0xff] %vm1019, %v5806
      %p5810 = scmp.lt.s32.totalorder %s76, 1
      %s5811 = scalar_select %p5810, %s76, 1
      %s5812 = smul.addr %s5811, 8
      %s5813 = scalar_lea.vmem %s65, %s5812
      // Predicated region
      $region149: #{generator_forward.1} parent=147 // pred_check
        %p5814 = pneg %p776
      $region150: #{generator_forward.1} parent=147 // pred_check_branch
        %5816 = sbr.rel (%p5814) target = $region152
      $region151: #{generator_forward.1} parent=147 // pred_region
        _
      $region152: #{generator_forward.1} parent=147 // pred_fallthru
        _
    $region148: #{generator_forward.1} parent=5 // pred_fallthru
      _
    %p5817 = scmp.le.s32.totalorder 2, %s71
    // Predicated region
    $region153: #{generator_forward.1} parent=5 // pred_check
      %p5818 = pneg %p5817
    $region154: #{generator_forward.1} parent=5 // pred_check_branch
      %5820 = sbr.rel (%p5818) target = $region156
    $region155: #{generator_forward.1} parent=5 // pred_region
      %s5821 = ssub.s32 %s71, 2
      // Predicated region
      $region157: #{generator_forward.1} parent=155 // pred_check
        %p5822 = pneg %p782
      $region158: #{generator_forward.1} parent=155 // pred_check_branch
        %5824 = sbr.rel (%p5822) target = $region160
      $region159: #{generator_forward.1} parent=155 // pred_region
        %p5825 = scmp.lt.s32.totalorder %s77, 1
        %s5826 = scalar_select %p5825, %s77, 1
        %s5827 = smul.addr %s5826, 8
        %s5828 = scalar_lea.vmem %s65, %s5827
      $region160: #{generator_forward.1} parent=155 // pred_fallthru
        _
    $region156: #{generator_forward.1} parent=5 // pred_fallthru
      _
  $region6: #{generator_forward.1} parent=0 // loop_footer
    %s75 = sadd.s32 1, %s71
  $region7: #{generator_forward.1} parent=0 // loop_footer_branch
    %70 = sbr.rel target = $region3
  $region8: #{generator_forward.1} parent=0 // loop_exit
    _

</llo_original>
